<compile_context>
chip_gen: v7x
topology: tpu7x:2x2x1
jax: 0.10.0
libtpu: 0.0.40
codegen_flags: <defaults>
</compile_context>

<pallas_src>
import numpy as np

import jax
import jax.numpy as jnp
from jax.experimental import pallas as pl
from jax.experimental.pallas import tpu as pltpu

EPS = 1e-5

# Lane-layout constants: conv outputs are (x, channel) interleaved on lanes with x
# split by parity so the w-pool is an aligned half/half max.
C1PAD = 32                 # conv1 channels 20 -> 32 per x position
C2PAD = 64                 # conv2 channels 50 -> 64 per x position
N1 = 24 * C1PAD            # 768  conv1 matmul output width (24 x positions)
N2 = 8 * C2PAD             # 512  conv2 matmul output width (8 x positions)
K1 = 5 * 32                # 160  conv1 contraction: 5 row shifts x 32-wide padded rows
K2 = 5 * (12 * C1PAD)      # 1920 conv2 contraction: 5 row shifts x pooled row width 384
KFC = 4 * (4 * C2PAD)      # 1024 fc1 contraction: 4 pooled rows x 256
FC1_PAD = 512              # fc1 hidden 500 -> 512
OUT_PAD = 128              # logits 10 -> 128


# ----------------------------------------------------------------------------
# Fused Pallas kernel: conv1+bn1+relu+pool -> conv2+bn2+relu+pool -> fc1+relu+fc2
# ----------------------------------------------------------------------------
def _fused_lenet_kernel(x_ref, w1_ref, s1_ref, t1_ref, w2_ref, s2_ref, t2_ref,
                        wf1_ref, bf1_ref, wf2_ref, bf2_ref, o_ref):
    bblk = x_ref.shape[0]

    # ---- conv1 + BN1 + ReLU: one banded matmul over 5 row-shifted slabs ------
    xb = x_ref[...].astype(jnp.bfloat16)                      # cast input ONCE
    lhs1 = jnp.concatenate([xb[:, i:i + 24, :] for i in range(5)], axis=-1)
    lhs1 = lhs1.reshape(bblk * 24, K1)                        # (bblk*24, 160)
    y1 = jnp.dot(lhs1, w1_ref[...], preferred_element_type=jnp.float32)
    y1 = jnp.maximum(y1 * s1_ref[...] + t1_ref[...], 0.0)     # (bblk*24, 768) f32

    # ---- 2x2/2 max-pool #1: h via row-pair max, w via parity-half max -------
    y1 = y1.reshape(bblk, 12, 2, N1).max(axis=2)              # (bblk, 12, 768)
    p1 = jnp.maximum(y1[:, :, :N1 // 2], y1[:, :, N1 // 2:])  # (bblk, 12, 384)

    # ---- conv2 + BN2 + ReLU --------------------------------------------------
    p1 = p1.astype(jnp.bfloat16)                              # cast ONCE
    lhs2 = jnp.concatenate([p1[:, i:i + 8, :] for i in range(5)], axis=-1)
    lhs2 = lhs2.reshape(bblk * 8, K2)                         # (bblk*8, 1920)
    y2 = jnp.dot(lhs2, w2_ref[...], preferred_element_type=jnp.float32)
    y2 = jnp.maximum(y2 * s2_ref[...] + t2_ref[...], 0.0)     # (bblk*8, 512)

    # ---- 2x2/2 max-pool #2 ---------------------------------------------------
    y2 = y2.reshape(bblk, 4, 2, N2).max(axis=2)               # (bblk, 4, 512)
    p2 = jnp.maximum(y2[:, :, :N2 // 2], y2[:, :, N2 // 2:])  # (bblk, 4, 256)

    # ---- fc1 + ReLU + fc2 (weights pre-permuted to this flatten order) -------
    p2 = p2.astype(jnp.bfloat16)
    flat = jnp.concatenate([p2[:, r, :] for r in range(4)], axis=-1)   # (bblk, 1024)
    h = jnp.dot(flat, wf1_ref[...], preferred_element_type=jnp.float32)
    h = jnp.maximum(h + bf1_ref[...], 0.0)
    o = jnp.dot(h.astype(jnp.bfloat16), wf2_ref[...],
                preferred_element_type=jnp.float32)
    o_ref[0] = (o + bf2_ref[...]).astype(o_ref.dtype)


def _pick_block_batch(B, cap=8):
    """Largest divisor of B (<= cap) that still leaves >= 2 grid steps when B >= 2."""
    divs = [c for c in range(1, min(B, cap) + 1) if B % c == 0]
    multi = [c for c in divs if B // c >= 2]
    return max(multi) if multi else max(divs)


def naive_model_forward(x_nchw, prep):
    B = x_nchw.shape[0]
    assert x_nchw.shape[1:] == (1, 28, 28)
    # NCHW with C=1 -> (B, 28, 28) is a pure reshape; pad rows 28 -> 32 lanes so the
    # in-kernel slab concat lands at 32-lane offsets (zero rows in W1 match the pad).
    x = jnp.pad(x_nchw.reshape(B, 28, 28), ((0, 0), (0, 0), (0, 4)))

    bblk = _pick_block_batch(B)
    nblk = B // bblk

    out = pl.pallas_call(
        _fused_lenet_kernel,
        out_shape=jax.ShapeDtypeStruct((nblk, bblk, OUT_PAD), jnp.float32),
        grid=(nblk,),
        in_specs=[
            pl.BlockSpec((bblk, 28, 32), lambda b: (b, 0, 0)),     # x block
            pl.BlockSpec((K1, N1), lambda b: (0, 0)),              # conv1 banded W
            pl.BlockSpec((1, N1), lambda b: (0, 0)),               # bn1 scale (tiled)
            pl.BlockSpec((1, N1), lambda b: (0, 0)),               # bn1 shift (tiled)
            pl.BlockSpec((K2, N2), lambda b: (0, 0)),              # conv2 banded W
            pl.BlockSpec((1, N2), lambda b: (0, 0)),               # bn2 scale
            pl.BlockSpec((1, N2), lambda b: (0, 0)),               # bn2 shift
            pl.BlockSpec((KFC, FC1_PAD), lambda b: (0, 0)),        # fc1 W (permuted)
            pl.BlockSpec((1, FC1_PAD), lambda b: (0, 0)),          # fc1 b
            pl.BlockSpec((FC1_PAD, OUT_PAD), lambda b: (0, 0)),    # fc2 W
            pl.BlockSpec((1, OUT_PAD), lambda b: (0, 0)),          # fc2 b
        ],
        out_specs=pl.BlockSpec((1, bblk, OUT_PAD), lambda b: (b, 0, 0)),
        compiler_params=pltpu.CompilerParams(
            dimension_semantics=("parallel",),
            vmem_limit_bytes=32 * 1024 * 1024,
        ),
    )(x, prep["w1"], prep["s1"], prep["t1"],
      prep["w2"], prep["s2"], prep["t2"],
      prep["wf1"], prep["bf1"], prep["wf2"], prep["bf2"])
    return out.reshape(B, OUT_PAD)[:, :10]


# ----------------------------------------------------------------------------
# One-time parameter prep (numpy): BN folding, banded-weight packing, bf16 cast
# ----------------------------------------------------------------------------
def _fold_bn(conv_b, gamma, beta, mean, var, eps=EPS):
    s = gamma / np.sqrt(var + eps)
    t = (conv_b - mean) * s + beta
    return s.astype(np.float32), t.astype(np.float32)


def prepare_params(p):
    f32 = np.float32
    pn = {k: np.asarray(v, f32) for k, v in p.items()}
    prep = {}

    # conv1: W1[(i, u), n(x, co)] = w1[co, 0, i, u - x] for 0 <= u-x < 5,
    # with n(x, co) = (x%2)*384 + (x//2)*32 + co  (parity-split lane layout).
    w1 = pn["conv1_w"]                                       # (20, 1, 5, 5)
    W1 = np.zeros((5, 32, N1), f32)
    for i in range(5):
        for j in range(5):
            for x in range(24):
                n0 = (x % 2) * (N1 // 2) + (x // 2) * C1PAD
                W1[i, x + j, n0:n0 + 20] = w1[:, 0, i, j]
    prep["w1"] = jnp.asarray(W1.reshape(K1, N1), jnp.bfloat16)
    s1, t1 = _fold_bn(pn["conv1_b"], pn["bn1_gamma"], pn["bn1_beta"],
                      pn["bn1_mean"], pn["bn1_var"])
    g1 = np.zeros(C1PAD, f32); g1[:20] = s1
    h1 = np.zeros(C1PAD, f32); h1[:20] = t1
    prep["s1"] = jnp.asarray(np.tile(g1, 24)[None, :])
    prep["t1"] = jnp.asarray(np.tile(h1, 24)[None, :])

    # conv2: W2[(i, x_in, c), n(x, d)] = w2[d, c, i, x_in - x],
    # n(x, d) = (x%2)*256 + (x//2)*64 + d; pooled-input lane v = x_in*32 + c.
    w2 = pn["conv2_w"]                                       # (50, 20, 5, 5)
    W2 = np.zeros((5, 12 * C1PAD, N2), f32)
    for i in range(5):
        for j in range(5):
            for x in range(8):
                xin = x + j
                n0 = (x % 2) * (N2 // 2) + (x // 2) * C2PAD
                W2[i, xin * C1PAD:xin * C1PAD + 20, n0:n0 + 50] = w2[:, :, i, j].T
    prep["w2"] = jnp.asarray(W2.reshape(K2, N2), jnp.bfloat16)
    s2, t2 = _fold_bn(pn["conv2_b"], pn["bn2_gamma"], pn["bn2_beta"],
                      pn["bn2_mean"], pn["bn2_var"])
    g2 = np.zeros(C2PAD, f32); g2[:50] = s2
    h2 = np.zeros(C2PAD, f32); h2[:50] = t2
    prep["s2"] = jnp.asarray(np.tile(g2, 8)[None, :])
    prep["t2"] = jnp.asarray(np.tile(h2, 8)[None, :])

    # fc1: torch expects NCHW flatten c*16 + h*4 + w; kernel flatten is
    # h*256 + w*64 + c (with c padded 50 -> 64). Permute rows once; pad 500 -> 512.
    Wf1 = np.zeros((4, 4, C2PAD, FC1_PAD), f32)
    Wf1[:, :, :50, :500] = pn["fc1_w"].reshape(500, 50, 4, 4).transpose(2, 3, 1, 0)
    prep["wf1"] = jnp.asarray(Wf1.reshape(KFC, FC1_PAD), jnp.bfloat16)
    bf1 = np.zeros(FC1_PAD, f32); bf1[:500] = pn["fc1_b"]
    prep["bf1"] = jnp.asarray(bf1[None, :])

    # fc2: (10, 500) -> (512, 128).
    Wf2 = np.zeros((FC1_PAD, OUT_PAD), f32)
    Wf2[:500, :10] = pn["fc2_w"].T
    prep["wf2"] = jnp.asarray(Wf2, jnp.bfloat16)
    bf2 = np.zeros(OUT_PAD, f32); bf2[:10] = pn["fc2_b"]
    prep["bf2"] = jnp.asarray(bf2[None, :])
    return prep


# ----------------------------------------------------------------------------
# Pure-JAX reference (for correctness check) and parameter init
# ----------------------------------------------------------------------------
def reference_forward(x_nchw, p):
    def bn(y, g, b, m, v):
        return ((y - m[None, :, None, None]) / jnp.sqrt(v + EPS)[None, :, None, None]
                * g[None, :, None, None] + b[None, :, None, None])

    def pool(y):
        B, C, H, W = y.shape
        return y.reshape(B, C, H // 2, 2, W // 2, 2).max(axis=(3, 5))

    dn = ("NCHW", "OIHW", "NCHW")
    y = jax.lax.conv_general_dilated(x_nchw, p["conv1_w"], (1, 1), "VALID",
                                     dimension_numbers=dn)
    y = y + p["conv1_b"][None, :, None, None]
    y = jnp.maximum(bn(y, p["bn1_gamma"], p["bn1_beta"], p["bn1_mean"], p["bn1_var"]), 0.0)
    y = pool(y)
    y = jax.lax.conv_general_dilated(y, p["conv2_w"], (1, 1), "VALID",
                                     dimension_numbers=dn)
    y = y + p["conv2_b"][None, :, None, None]
    y = jnp.maximum(bn(y, p["bn2_gamma"], p["bn2_beta"], p["bn2_mean"], p["bn2_var"]), 0.0)
    y = pool(y)
    flat = y.reshape(y.shape[0], -1)
    h = jnp.maximum(flat @ p["fc1_w"].T + p["fc1_b"], 0.0)
    return h @ p["fc2_w"].T + p["fc2_b"]


def init_params(key):
    ks = jax.random.split(key, 16)
    p = {}
    p["conv1_w"] = 0.1 * jax.random.normal(ks[0], (20, 1, 5, 5), jnp.float32)
    p["conv1_b"] = 0.1 * jax.random.normal(ks[1], (20,), jnp.float32)
    p["bn1_gamma"] = 1.0 + 0.1 * jax.random.normal(ks[2], (20,), jnp.float32)
    p["bn1_beta"] = 0.1 * jax.random.normal(ks[3], (20,), jnp.float32)
    p["bn1_mean"] = 0.1 * jax.random.normal(ks[4], (20,), jnp.float32)
    p["bn1_var"] = jax.random.uniform(ks[5], (20,), jnp.float32, 0.5, 1.5)
    p["conv2_w"] = 0.05 * jax.random.normal(ks[6], (50, 20, 5, 5), jnp.float32)
    p["conv2_b"] = 0.1 * jax.random.normal(ks[7], (50,), jnp.float32)
    p["bn2_gamma"] = 1.0 + 0.1 * jax.random.normal(ks[8], (50,), jnp.float32)
    p["bn2_beta"] = 0.1 * jax.random.normal(ks[9], (50,), jnp.float32)
    p["bn2_mean"] = 0.1 * jax.random.normal(ks[10], (50,), jnp.float32)
    p["bn2_var"] = jax.random.uniform(ks[11], (50,), jnp.float32, 0.5, 1.5)
    p["fc1_w"] = 0.03 * jax.random.normal(ks[12], (500, 4 * 4 * 50), jnp.float32)
    p["fc1_b"] = 0.1 * jax.random.normal(ks[13], (500,), jnp.float32)
    p["fc2_w"] = 0.05 * jax.random.normal(ks[14], (10, 500), jnp.float32)
    p["fc2_b"] = 0.1 * jax.random.normal(ks[15], (10,), jnp.float32)
    return p


if __name__ == "__main__":
    root = jax.random.PRNGKey(0)
    kp, kx = jax.random.split(root)
    params = init_params(kp)
    prep = prepare_params(params)
    x = jax.random.normal(kx, (2, 1, 28, 28), jnp.float32)

    fwd = jax.jit(lambda xx: naive_model_forward(xx, prep))
    logits = fwd(x)
    jax.block_until_ready(logits)

    ref = reference_forward(x, params)
    assert logits.shape == (2, 10)
    assert bool(jnp.all(jnp.isfinite(logits)))
    max_err = float(jnp.max(jnp.abs(logits - ref)))
    assert max_err < 0.1, f"mismatch vs reference: {max_err}"
    print("KERNEL_OK")
</pallas_src>

<mosaic_0001>
module attributes {stable_mosaic.version = 11 : i64} {
  func.func @_fused_lenet_kernel(%arg0: i32, %arg1: memref<1x28x32xf32, #tpu.memory_space<vmem>>, %arg2: memref<160x768xbf16, #tpu.memory_space<vmem>>, %arg3: memref<1x768xf32, #tpu.memory_space<vmem>>, %arg4: memref<1x768xf32, #tpu.memory_space<vmem>>, %arg5: memref<1920x512xbf16, #tpu.memory_space<vmem>>, %arg6: memref<1x512xf32, #tpu.memory_space<vmem>>, %arg7: memref<1x512xf32, #tpu.memory_space<vmem>>, %arg8: memref<1024x512xbf16, #tpu.memory_space<vmem>>, %arg9: memref<1x512xf32, #tpu.memory_space<vmem>>, %arg10: memref<512x128xbf16, #tpu.memory_space<vmem>>, %arg11: memref<1x128xf32, #tpu.memory_space<vmem>>, %arg12: memref<1x1x128xf32, #tpu.memory_space<vmem>>) attributes {dimension_semantics = [#tpu.dimension_semantics<parallel>], iteration_bounds = array<i64: 2>, scalar_prefetch = 0 : i64, scratch_operands = 0 : i64, tpu.core_type = #tpu.core_type<tc>, window_params = [{transform_indices = @transform_0, window_bounds = array<i64: 1, 28, 32>}, {pipeline_mode = #tpu.pipeline_mode<synchronous>, transform_indices = @transform_1, window_bounds = array<i64: 160, 768>}, {pipeline_mode = #tpu.pipeline_mode<synchronous>, transform_indices = @transform_2, window_bounds = array<i64: 1, 768>}, {pipeline_mode = #tpu.pipeline_mode<synchronous>, transform_indices = @transform_3, window_bounds = array<i64: 1, 768>}, {pipeline_mode = #tpu.pipeline_mode<synchronous>, transform_indices = @transform_4, window_bounds = array<i64: 1920, 512>}, {pipeline_mode = #tpu.pipeline_mode<synchronous>, transform_indices = @transform_5, window_bounds = array<i64: 1, 512>}, {pipeline_mode = #tpu.pipeline_mode<synchronous>, transform_indices = @transform_6, window_bounds = array<i64: 1, 512>}, {pipeline_mode = #tpu.pipeline_mode<synchronous>, transform_indices = @transform_7, window_bounds = array<i64: 1024, 512>}, {pipeline_mode = #tpu.pipeline_mode<synchronous>, transform_indices = @transform_8, window_bounds = array<i64: 1, 512>}, {pipeline_mode = #tpu.pipeline_mode<synchronous>, transform_indices = @transform_9, window_bounds = array<i64: 512, 128>}, {pipeline_mode = #tpu.pipeline_mode<synchronous>, transform_indices = @transform_10, window_bounds = array<i64: 1, 128>}, {transform_indices = @transform_11, window_bounds = array<i64: 1, 1, 128>}]} {
    %c0 = arith.constant 0 : index
    %c0_0 = arith.constant 0 : index
    %c0_1 = arith.constant 0 : index
    %0 = vector.load %arg1[%c0, %c0_0, %c0_1] : memref<1x28x32xf32, #tpu.memory_space<vmem>>, vector<1x28x32xf32>
    %1 = arith.truncf %0 : vector<1x28x32xf32> to vector<1x28x32xbf16>
    %2 = vector.extract_strided_slice %1 {offsets = [0, 0, 0], sizes = [1, 24, 32], strides = [1, 1, 1]} : vector<1x28x32xbf16> to vector<1x24x32xbf16>
    %3 = vector.extract_strided_slice %1 {offsets = [0, 1, 0], sizes = [1, 24, 32], strides = [1, 1, 1]} : vector<1x28x32xbf16> to vector<1x24x32xbf16>
    %4 = vector.extract_strided_slice %1 {offsets = [0, 2, 0], sizes = [1, 24, 32], strides = [1, 1, 1]} : vector<1x28x32xbf16> to vector<1x24x32xbf16>
    %5 = vector.extract_strided_slice %1 {offsets = [0, 3, 0], sizes = [1, 24, 32], strides = [1, 1, 1]} : vector<1x28x32xbf16> to vector<1x24x32xbf16>
    %6 = vector.extract_strided_slice %1 {offsets = [0, 4, 0], sizes = [1, 24, 32], strides = [1, 1, 1]} : vector<1x28x32xbf16> to vector<1x24x32xbf16>
    %7 = tpu.concatenate %2, %3, %4, %5, %6 in 2 : vector<1x24x32xbf16>, vector<1x24x32xbf16>, vector<1x24x32xbf16>, vector<1x24x32xbf16>, vector<1x24x32xbf16> -> vector<1x24x160xbf16>
    %8 = vector.shape_cast %7 : vector<1x24x160xbf16> to vector<24x160xbf16>
    %c0_2 = arith.constant 0 : index
    %c0_3 = arith.constant 0 : index
    %9 = vector.load %arg2[%c0_2, %c0_3] : memref<160x768xbf16, #tpu.memory_space<vmem>>, vector<160x768xbf16>
    %cst = arith.constant dense<0.000000e+00> : vector<24x768xf32>
    %10 = tpu.matmul %8, %9, %cst {dimension_numbers = #tpu.dot_dimension_numbers<[1], [0], [0], [1], [0, 0, 1, 1], [], []>} : vector<24x160xbf16>, vector<160x768xbf16>, vector<24x768xf32> -> vector<24x768xf32>
    %c0_4 = arith.constant 0 : index
    %c0_5 = arith.constant 0 : index
    %11 = vector.load %arg3[%c0_4, %c0_5] : memref<1x768xf32, #tpu.memory_space<vmem>>, vector<1x768xf32>
    %12 = vector.broadcast %11 : vector<1x768xf32> to vector<24x768xf32>
    %13 = arith.mulf %10, %12 : vector<24x768xf32>
    %c0_6 = arith.constant 0 : index
    %c0_7 = arith.constant 0 : index
    %14 = vector.load %arg4[%c0_6, %c0_7] : memref<1x768xf32, #tpu.memory_space<vmem>>, vector<1x768xf32>
    %15 = vector.broadcast %14 : vector<1x768xf32> to vector<24x768xf32>
    %16 = arith.addf %13, %15 : vector<24x768xf32>
    %cst_8 = arith.constant 0.000000e+00 : f32
    %17 = vector.broadcast %cst_8 : f32 to vector<24x768xf32>
    %18 = arith.maximumf %16, %17 : vector<24x768xf32>
    %19 = vector.shape_cast %18 : vector<24x768xf32> to vector<1x12x2x768xf32>
    %cst_9 = arith.constant dense<0xFF800000> : vector<1x12x768xf32>
    %20 = vector.multi_reduction <maximumf>, %19, %cst_9 [2] : vector<1x12x2x768xf32> to vector<1x12x768xf32>
    %21 = vector.extract_strided_slice %20 {offsets = [0, 0, 0], sizes = [1, 12, 384], strides = [1, 1, 1]} : vector<1x12x768xf32> to vector<1x12x384xf32>
    %22 = vector.extract_strided_slice %20 {offsets = [0, 0, 384], sizes = [1, 12, 384], strides = [1, 1, 1]} : vector<1x12x768xf32> to vector<1x12x384xf32>
    %23 = arith.maximumf %21, %22 : vector<1x12x384xf32>
    %24 = arith.truncf %23 : vector<1x12x384xf32> to vector<1x12x384xbf16>
    %25 = vector.extract_strided_slice %24 {offsets = [0, 0, 0], sizes = [1, 8, 384], strides = [1, 1, 1]} : vector<1x12x384xbf16> to vector<1x8x384xbf16>
    %26 = vector.extract_strided_slice %24 {offsets = [0, 1, 0], sizes = [1, 8, 384], strides = [1, 1, 1]} : vector<1x12x384xbf16> to vector<1x8x384xbf16>
    %27 = vector.extract_strided_slice %24 {offsets = [0, 2, 0], sizes = [1, 8, 384], strides = [1, 1, 1]} : vector<1x12x384xbf16> to vector<1x8x384xbf16>
    %28 = vector.extract_strided_slice %24 {offsets = [0, 3, 0], sizes = [1, 8, 384], strides = [1, 1, 1]} : vector<1x12x384xbf16> to vector<1x8x384xbf16>
    %29 = vector.extract_strided_slice %24 {offsets = [0, 4, 0], sizes = [1, 8, 384], strides = [1, 1, 1]} : vector<1x12x384xbf16> to vector<1x8x384xbf16>
    %30 = tpu.concatenate %25, %26, %27, %28, %29 in 2 : vector<1x8x384xbf16>, vector<1x8x384xbf16>, vector<1x8x384xbf16>, vector<1x8x384xbf16>, vector<1x8x384xbf16> -> vector<1x8x1920xbf16>
    %31 = vector.shape_cast %30 : vector<1x8x1920xbf16> to vector<8x1920xbf16>
    %c0_10 = arith.constant 0 : index
    %c0_11 = arith.constant 0 : index
    %32 = vector.load %arg5[%c0_10, %c0_11] : memref<1920x512xbf16, #tpu.memory_space<vmem>>, vector<1920x512xbf16>
    %cst_12 = arith.constant dense<0.000000e+00> : vector<8x512xf32>
    %33 = tpu.matmul %31, %32, %cst_12 {dimension_numbers = #tpu.dot_dimension_numbers<[1], [0], [0], [1], [0, 0, 1, 1], [], []>} : vector<8x1920xbf16>, vector<1920x512xbf16>, vector<8x512xf32> -> vector<8x512xf32>
    %c0_13 = arith.constant 0 : index
    %c0_14 = arith.constant 0 : index
    %34 = vector.load %arg6[%c0_13, %c0_14] : memref<1x512xf32, #tpu.memory_space<vmem>>, vector<1x512xf32>
    %35 = vector.broadcast %34 : vector<1x512xf32> to vector<8x512xf32>
    %36 = arith.mulf %33, %35 : vector<8x512xf32>
    %c0_15 = arith.constant 0 : index
    %c0_16 = arith.constant 0 : index
    %37 = vector.load %arg7[%c0_15, %c0_16] : memref<1x512xf32, #tpu.memory_space<vmem>>, vector<1x512xf32>
    %38 = vector.broadcast %37 : vector<1x512xf32> to vector<8x512xf32>
    %39 = arith.addf %36, %38 : vector<8x512xf32>
    %cst_17 = arith.constant 0.000000e+00 : f32
    %40 = vector.broadcast %cst_17 : f32 to vector<8x512xf32>
    %41 = arith.maximumf %39, %40 : vector<8x512xf32>
    %42 = vector.shape_cast %41 : vector<8x512xf32> to vector<1x4x2x512xf32>
    %cst_18 = arith.constant dense<0xFF800000> : vector<1x4x512xf32>
    %43 = vector.multi_reduction <maximumf>, %42, %cst_18 [2] : vector<1x4x2x512xf32> to vector<1x4x512xf32>
    %44 = vector.extract_strided_slice %43 {offsets = [0, 0, 0], sizes = [1, 4, 256], strides = [1, 1, 1]} : vector<1x4x512xf32> to vector<1x4x256xf32>
    %45 = vector.extract_strided_slice %43 {offsets = [0, 0, 256], sizes = [1, 4, 256], strides = [1, 1, 1]} : vector<1x4x512xf32> to vector<1x4x256xf32>
    %46 = arith.maximumf %44, %45 : vector<1x4x256xf32>
    %47 = arith.truncf %46 : vector<1x4x256xf32> to vector<1x4x256xbf16>
    %48 = vector.extract_strided_slice %47 {offsets = [0, 0, 0], sizes = [1, 1, 256], strides = [1, 1, 1]} : vector<1x4x256xbf16> to vector<1x1x256xbf16>
    %49 = vector.shape_cast %48 : vector<1x1x256xbf16> to vector<1x256xbf16>
    %50 = vector.extract_strided_slice %47 {offsets = [0, 1, 0], sizes = [1, 1, 256], strides = [1, 1, 1]} : vector<1x4x256xbf16> to vector<1x1x256xbf16>
    %51 = vector.shape_cast %50 : vector<1x1x256xbf16> to vector<1x256xbf16>
    %52 = vector.extract_strided_slice %47 {offsets = [0, 2, 0], sizes = [1, 1, 256], strides = [1, 1, 1]} : vector<1x4x256xbf16> to vector<1x1x256xbf16>
    %53 = vector.shape_cast %52 : vector<1x1x256xbf16> to vector<1x256xbf16>
    %54 = vector.extract_strided_slice %47 {offsets = [0, 3, 0], sizes = [1, 1, 256], strides = [1, 1, 1]} : vector<1x4x256xbf16> to vector<1x1x256xbf16>
    %55 = vector.shape_cast %54 : vector<1x1x256xbf16> to vector<1x256xbf16>
    %56 = tpu.concatenate %49, %51, %53, %55 in 1 : vector<1x256xbf16>, vector<1x256xbf16>, vector<1x256xbf16>, vector<1x256xbf16> -> vector<1x1024xbf16>
    %c0_19 = arith.constant 0 : index
    %c0_20 = arith.constant 0 : index
    %57 = vector.load %arg8[%c0_19, %c0_20] : memref<1024x512xbf16, #tpu.memory_space<vmem>>, vector<1024x512xbf16>
    %cst_21 = arith.constant dense<0.000000e+00> : vector<1x512xf32>
    %58 = tpu.matmul %56, %57, %cst_21 {dimension_numbers = #tpu.dot_dimension_numbers<[1], [0], [0], [1], [0, 0, 1, 1], [], []>} : vector<1x1024xbf16>, vector<1024x512xbf16>, vector<1x512xf32> -> vector<1x512xf32>
    %c0_22 = arith.constant 0 : index
    %c0_23 = arith.constant 0 : index
    %59 = vector.load %arg9[%c0_22, %c0_23] : memref<1x512xf32, #tpu.memory_space<vmem>>, vector<1x512xf32>
    %60 = arith.addf %58, %59 : vector<1x512xf32>
    %cst_24 = arith.constant 0.000000e+00 : f32
    %61 = vector.broadcast %cst_24 : f32 to vector<1x512xf32>
    %62 = arith.maximumf %60, %61 : vector<1x512xf32>
    %63 = arith.truncf %62 : vector<1x512xf32> to vector<1x512xbf16>
    %c0_25 = arith.constant 0 : index
    %c0_26 = arith.constant 0 : index
    %64 = vector.load %arg10[%c0_25, %c0_26] : memref<512x128xbf16, #tpu.memory_space<vmem>>, vector<512x128xbf16>
    %cst_27 = arith.constant dense<0.000000e+00> : vector<1x128xf32>
    %65 = tpu.matmul %63, %64, %cst_27 {dimension_numbers = #tpu.dot_dimension_numbers<[1], [0], [0], [1], [0, 0, 1, 1], [], []>} : vector<1x512xbf16>, vector<512x128xbf16>, vector<1x128xf32> -> vector<1x128xf32>
    %c0_28 = arith.constant 0 : index
    %c0_29 = arith.constant 0 : index
    %66 = vector.load %arg11[%c0_28, %c0_29] : memref<1x128xf32, #tpu.memory_space<vmem>>, vector<1x128xf32>
    %67 = arith.addf %65, %66 : vector<1x128xf32>
    %c0_30 = arith.constant 0 : index
    %c0_31 = arith.constant 0 : index
    %c0_32 = arith.constant 0 : index
    %68 = vector.load %arg12[%c0_30, %c0_31, %c0_32] : memref<1x1x128xf32, #tpu.memory_space<vmem>>, vector<1x1x128xf32>
    %69 = vector.shape_cast %68 : vector<1x1x128xf32> to vector<1x128xf32>
    %70 = vector.shape_cast %67 : vector<1x128xf32> to vector<1x1x128xf32>
    tpu.vector_store %arg12[%c0_30, %c0_31, %c0_32], %70 {strides = array<i32>} : memref<1x1x128xf32, #tpu.memory_space<vmem>>, vector<1x1x128xf32>,
    return
  }
  func.func @transform_0(%arg0: i32) -> (i32, i32, i32) {
    %c0_i32 = arith.constant 0 : i32
    %c0_i32_0 = arith.constant 0 : i32
    %c0_i32_1 = arith.constant 0 : i32
    return %arg0, %c0_i32, %c0_i32_0 : i32, i32, i32
  }
  func.func @transform_1(%arg0: i32) -> (i32, i32) {
    %c0_i32 = arith.constant 0 : i32
    %c0_i32_0 = arith.constant 0 : i32
    %c0_i32_1 = arith.constant 0 : i32
    return %c0_i32, %c0_i32_0 : i32, i32
  }
  func.func @transform_2(%arg0: i32) -> (i32, i32) {
    %c0_i32 = arith.constant 0 : i32
    %c0_i32_0 = arith.constant 0 : i32
    %c0_i32_1 = arith.constant 0 : i32
    return %c0_i32, %c0_i32_0 : i32, i32
  }
  func.func @transform_3(%arg0: i32) -> (i32, i32) {
    %c0_i32 = arith.constant 0 : i32
    %c0_i32_0 = arith.constant 0 : i32
    %c0_i32_1 = arith.constant 0 : i32
    return %c0_i32, %c0_i32_0 : i32, i32
  }
  func.func @transform_4(%arg0: i32) -> (i32, i32) {
    %c0_i32 = arith.constant 0 : i32
    %c0_i32_0 = arith.constant 0 : i32
    %c0_i32_1 = arith.constant 0 : i32
    return %c0_i32, %c0_i32_0 : i32, i32
  }
  func.func @transform_5(%arg0: i32) -> (i32, i32) {
    %c0_i32 = arith.constant 0 : i32
    %c0_i32_0 = arith.constant 0 : i32
    %c0_i32_1 = arith.constant 0 : i32
    return %c0_i32, %c0_i32_0 : i32, i32
  }
  func.func @transform_6(%arg0: i32) -> (i32, i32) {
    %c0_i32 = arith.constant 0 : i32
    %c0_i32_0 = arith.constant 0 : i32
    %c0_i32_1 = arith.constant 0 : i32
    return %c0_i32, %c0_i32_0 : i32, i32
  }
  func.func @transform_7(%arg0: i32) -> (i32, i32) {
    %c0_i32 = arith.constant 0 : i32
    %c0_i32_0 = arith.constant 0 : i32
    %c0_i32_1 = arith.constant 0 : i32
    return %c0_i32, %c0_i32_0 : i32, i32
  }
  func.func @transform_8(%arg0: i32) -> (i32, i32) {
    %c0_i32 = arith.constant 0 : i32
    %c0_i32_0 = arith.constant 0 : i32
    %c0_i32_1 = arith.constant 0 : i32
    return %c0_i32, %c0_i32_0 : i32, i32
  }
  func.func @transform_9(%arg0: i32) -> (i32, i32) {
    %c0_i32 = arith.constant 0 : i32
    %c0_i32_0 = arith.constant 0 : i32
    %c0_i32_1 = arith.constant 0 : i32
    return %c0_i32, %c0_i32_0 : i32, i32
  }
  func.func @transform_10(%arg0: i32) -> (i32, i32) {
    %c0_i32 = arith.constant 0 : i32
    %c0_i32_0 = arith.constant 0 : i32
    %c0_i32_1 = arith.constant 0 : i32
    return %c0_i32, %c0_i32_0 : i32, i32
  }
  func.func @transform_11(%arg0: i32) -> (i32, i32, i32) {
    %c0_i32 = arith.constant 0 : i32
    %c0_i32_0 = arith.constant 0 : i32
    %c0_i32_1 = arith.constant 0 : i32
    return %arg0, %c0_i32, %c0_i32_0 : i32, i32, i32
  }
}

</mosaic_0001>

<llo_original>
// kernel: _lambda_.1
$region0: #{_lambda_.1}
  #allocation0 [shape = 'u32[]', space=smem, size = 0x4, offset = 0x4, fixed_abs, tag = 'smem constant byte address 0x4 - core index']
  #allocation1 [shape = 'u32[144,128]{1,0:T(1,128)}', space=vmem, size = 0x12000, scoped, tag = 'internal scratch']
  %s0 = inlined_call_operand.vmem [shape: f32[2,28,32], index: 0, kind: input, shape index: {}]
  %s1 = inlined_call_operand.vmem [shape: bf16[160,768], index: 1, kind: input, shape index: {}]
  %s2 = inlined_call_operand.vmem [shape: f32[1,768], index: 2, kind: input, shape index: {}]
  %s3 = inlined_call_operand.vmem [shape: f32[1,768], index: 3, kind: input, shape index: {}]
  %s4 = inlined_call_operand.vmem [shape: bf16[1920,512], index: 4, kind: input, shape index: {}]
  %s5 = inlined_call_operand.vmem [shape: f32[1,512], index: 5, kind: input, shape index: {}]
  %s6 = inlined_call_operand.vmem [shape: f32[1,512], index: 6, kind: input, shape index: {}]
  %s7 = inlined_call_operand.vmem [shape: bf16[1024,512], index: 7, kind: input, shape index: {}]
  %s8 = inlined_call_operand.vmem [shape: f32[1,512], index: 8, kind: input, shape index: {}]
  %s9 = inlined_call_operand.vmem [shape: bf16[512,128], index: 9, kind: input, shape index: {}]
  %s10 = inlined_call_operand.vmem [shape: f32[1,128], index: 10, kind: input, shape index: {}]
  %s11 = inlined_call_operand.hbm [shape: f32[2,1,128], index: 11, kind: output, shape index: {}]
  %s12 = sld [smem:[#allocation0]]
  $region77: #{_lambda_.1} parent=0
    _
  %s14 = ssub.s32 1, %s12
  %s15 = scalar_select 0, %s14, %s12
  $region1: #{_lambda_.1} parent=0
    #allocation2 [shape = 'u8[1024]{0}', space=vmem, size = 0x400, scoped, tag = 'output window, operand 0']
    #allocation3 [shape = 's32[2]{0}', space=sflag, size = 0x8, scoped, tag = 'scoped memory for _lambda_.1']
    %16 = vsyncpa [#allocation3], 0
    %s17 = scalar_lea.sflag [#allocation3], 1
    %18 = vsyncpa %s17, 0
    loop: start=0, step=1, limit=4
    $region2: #{_lambda_.1} parent=1 // loop_pre_header
      _
    $region3: #{_lambda_.1} parent=1 // loop_header
      %s20 = sphi 0, %s24
      %p21 = scmp.ge.s32.totalorder %s20, 4
      %s30 = sphi 0, %s32
      %s33 = sphi 0, %s30
      %s34 = sphi 0, %s33
      %s50 = sphi 0, %s34
      %s54 = sphi 0, %s54
      %s56 = sphi 0, %s54
      %s57 = sphi 0, %s56
      %s71 = sphi 0, %s57
      %s75 = sphi 0, %s75
      %s77 = sphi 0, %s75
      %s78 = sphi 0, %s77
      %s92 = sphi 0, %s78
      %s96 = sphi 0, %s96
      %s98 = sphi 0, %s96
      %s99 = sphi 0, %s98
      %s113 = sphi 0, %s99
      %s117 = sphi 0, %s117
      %s119 = sphi 0, %s117
      %s120 = sphi 0, %s119
      %s134 = sphi 0, %s120
      %s138 = sphi 0, %s138
      %s140 = sphi 0, %s138
      %s141 = sphi 0, %s140
      %s155 = sphi 0, %s141
      %s159 = sphi 0, %s159
      %s161 = sphi 0, %s159
      %s162 = sphi 0, %s161
      %s176 = sphi 0, %s162
      %s180 = sphi 0, %s180
      %s182 = sphi 0, %s180
      %s183 = sphi 0, %s182
      %s197 = sphi 0, %s183
      %s201 = sphi 0, %s201
      %s203 = sphi 0, %s201
      %s204 = sphi 0, %s203
      %s218 = sphi 0, %s204
      %s222 = sphi 0, %s222
      %s224 = sphi 0, %s222
      %s225 = sphi 0, %s224
      %s239 = sphi 0, %s225
      %s243 = sphi 0, %s243
      %s245 = sphi 0, %s243
      %s246 = sphi 0, %s245
      %s260 = sphi 0, %s246
      %s266 = sphi 0, %s268
      %s269 = sphi 0, %s266
      %s270 = sphi 0, %s269
      %s286 = sphi 0, %s270
    $region4: #{_lambda_.1} parent=1 // loop_header_branch
      %23 = sbr.rel (%p21) target = $region8
    $region5: #{_lambda_.1} parent=1 // loop_body
      %s25 = ssub.s32 %s20, 1
      %s26 = ssub.s32 %s20, 2
      %s27 = sadd.s32 %s20, 1
      %s28 = ssub.s32 %s20, %s27
      %p29 = scmp.eq.s32.totalorder %s28, 0
      %s31 = sadd.s32 %s30, 1
      %s32 = scalar_select %p29, %s30, %s31
      %p35 = pneg %p29
      %p36 = scmp.eq.s32.totalorder %s20, 1
      %p37 = por %p35, %p36
      %p38 = scmp.ne.s32.totalorder %s30, %s33
      %p39 = scmp.eq.s32.totalorder %s20, 0
      %p40 = por %p38, %p39
      %p41 = scmp.ne.s32.totalorder %s30, %s33
      %p42 = scmp.eq.s32.totalorder %s25, 1
      %p43 = por %p41, %p42
      %p44 = scmp.ne.s32.totalorder %s33, %s34
      %p45 = scmp.eq.s32.totalorder %s25, 0
      %p46 = por %p44, %p45
      %p47 = scmp.ne.s32.totalorder %s33, %s34
      %p48 = scmp.eq.s32.totalorder %s26, 1
      %p49 = por %p47, %p48
      %p51 = scmp.ne.s32.totalorder %s34, %s50
      %p52 = scmp.eq.s32.totalorder %s26, 0
      %p53 = por %p51, %p52
      %s55 = sadd.s32 %s54, 1
      %p58 = scmp.eq.s32.totalorder %s20, 1
      %p59 = scmp.ne.s32.totalorder %s54, %s56
      %p60 = scmp.eq.s32.totalorder %s20, 0
      %p61 = por %p59, %p60
      %p62 = scmp.ne.s32.totalorder %s54, %s56
      %p63 = scmp.eq.s32.totalorder %s25, 1
      %p64 = por %p62, %p63
      %p65 = scmp.ne.s32.totalorder %s56, %s57
      %p66 = scmp.eq.s32.totalorder %s25, 0
      %p67 = por %p65, %p66
      %p68 = scmp.ne.s32.totalorder %s56, %s57
      %p69 = scmp.eq.s32.totalorder %s26, 1
      %p70 = por %p68, %p69
      %p72 = scmp.ne.s32.totalorder %s57, %s71
      %p73 = scmp.eq.s32.totalorder %s26, 0
      %p74 = por %p72, %p73
      %s76 = sadd.s32 %s75, 1
      %p79 = scmp.eq.s32.totalorder %s20, 1
      %p80 = scmp.ne.s32.totalorder %s75, %s77
      %p81 = scmp.eq.s32.totalorder %s20, 0
      %p82 = por %p80, %p81
      %p83 = scmp.ne.s32.totalorder %s75, %s77
      %p84 = scmp.eq.s32.totalorder %s25, 1
      %p85 = por %p83, %p84
      %p86 = scmp.ne.s32.totalorder %s77, %s78
      %p87 = scmp.eq.s32.totalorder %s25, 0
      %p88 = por %p86, %p87
      %p89 = scmp.ne.s32.totalorder %s77, %s78
      %p90 = scmp.eq.s32.totalorder %s26, 1
      %p91 = por %p89, %p90
      %p93 = scmp.ne.s32.totalorder %s78, %s92
      %p94 = scmp.eq.s32.totalorder %s26, 0
      %p95 = por %p93, %p94
      %s97 = sadd.s32 %s96, 1
      %p100 = scmp.eq.s32.totalorder %s20, 1
      %p101 = scmp.ne.s32.totalorder %s96, %s98
      %p102 = scmp.eq.s32.totalorder %s20, 0
      %p103 = por %p101, %p102
      %p104 = scmp.ne.s32.totalorder %s96, %s98
      %p105 = scmp.eq.s32.totalorder %s25, 1
      %p106 = por %p104, %p105
      %p107 = scmp.ne.s32.totalorder %s98, %s99
      %p108 = scmp.eq.s32.totalorder %s25, 0
      %p109 = por %p107, %p108
      %p110 = scmp.ne.s32.totalorder %s98, %s99
      %p111 = scmp.eq.s32.totalorder %s26, 1
      %p112 = por %p110, %p111
      %p114 = scmp.ne.s32.totalorder %s99, %s113
      %p115 = scmp.eq.s32.totalorder %s26, 0
      %p116 = por %p114, %p115
      %s118 = sadd.s32 %s117, 1
      %p121 = scmp.eq.s32.totalorder %s20, 1
      %p122 = scmp.ne.s32.totalorder %s117, %s119
      %p123 = scmp.eq.s32.totalorder %s20, 0
      %p124 = por %p122, %p123
      %p125 = scmp.ne.s32.totalorder %s117, %s119
      %p126 = scmp.eq.s32.totalorder %s25, 1
      %p127 = por %p125, %p126
      %p128 = scmp.ne.s32.totalorder %s119, %s120
      %p129 = scmp.eq.s32.totalorder %s25, 0
      %p130 = por %p128, %p129
      %p131 = scmp.ne.s32.totalorder %s119, %s120
      %p132 = scmp.eq.s32.totalorder %s26, 1
      %p133 = por %p131, %p132
      %p135 = scmp.ne.s32.totalorder %s120, %s134
      %p136 = scmp.eq.s32.totalorder %s26, 0
      %p137 = por %p135, %p136
      %s139 = sadd.s32 %s138, 1
      %p142 = scmp.eq.s32.totalorder %s20, 1
      %p143 = scmp.ne.s32.totalorder %s138, %s140
      %p144 = scmp.eq.s32.totalorder %s20, 0
      %p145 = por %p143, %p144
      %p146 = scmp.ne.s32.totalorder %s138, %s140
      %p147 = scmp.eq.s32.totalorder %s25, 1
      %p148 = por %p146, %p147
      %p149 = scmp.ne.s32.totalorder %s140, %s141
      %p150 = scmp.eq.s32.totalorder %s25, 0
      %p151 = por %p149, %p150
      %p152 = scmp.ne.s32.totalorder %s140, %s141
      %p153 = scmp.eq.s32.totalorder %s26, 1
      %p154 = por %p152, %p153
      %p156 = scmp.ne.s32.totalorder %s141, %s155
      %p157 = scmp.eq.s32.totalorder %s26, 0
      %p158 = por %p156, %p157
      %s160 = sadd.s32 %s159, 1
      %p163 = scmp.eq.s32.totalorder %s20, 1
      %p164 = scmp.ne.s32.totalorder %s159, %s161
      %p165 = scmp.eq.s32.totalorder %s20, 0
      %p166 = por %p164, %p165
      %p167 = scmp.ne.s32.totalorder %s159, %s161
      %p168 = scmp.eq.s32.totalorder %s25, 1
      %p169 = por %p167, %p168
      %p170 = scmp.ne.s32.totalorder %s161, %s162
      %p171 = scmp.eq.s32.totalorder %s25, 0
      %p172 = por %p170, %p171
      %p173 = scmp.ne.s32.totalorder %s161, %s162
      %p174 = scmp.eq.s32.totalorder %s26, 1
      %p175 = por %p173, %p174
      %p177 = scmp.ne.s32.totalorder %s162, %s176
      %p178 = scmp.eq.s32.totalorder %s26, 0
      %p179 = por %p177, %p178
      %s181 = sadd.s32 %s180, 1
      %p184 = scmp.eq.s32.totalorder %s20, 1
      %p185 = scmp.ne.s32.totalorder %s180, %s182
      %p186 = scmp.eq.s32.totalorder %s20, 0
      %p187 = por %p185, %p186
      %p188 = scmp.ne.s32.totalorder %s180, %s182
      %p189 = scmp.eq.s32.totalorder %s25, 1
      %p190 = por %p188, %p189
      %p191 = scmp.ne.s32.totalorder %s182, %s183
      %p192 = scmp.eq.s32.totalorder %s25, 0
      %p193 = por %p191, %p192
      %p194 = scmp.ne.s32.totalorder %s182, %s183
      %p195 = scmp.eq.s32.totalorder %s26, 1
      %p196 = por %p194, %p195
      %p198 = scmp.ne.s32.totalorder %s183, %s197
      %p199 = scmp.eq.s32.totalorder %s26, 0
      %p200 = por %p198, %p199
      %s202 = sadd.s32 %s201, 1
      %p205 = scmp.eq.s32.totalorder %s20, 1
      %p206 = scmp.ne.s32.totalorder %s201, %s203
      %p207 = scmp.eq.s32.totalorder %s20, 0
      %p208 = por %p206, %p207
      %p209 = scmp.ne.s32.totalorder %s201, %s203
      %p210 = scmp.eq.s32.totalorder %s25, 1
      %p211 = por %p209, %p210
      %p212 = scmp.ne.s32.totalorder %s203, %s204
      %p213 = scmp.eq.s32.totalorder %s25, 0
      %p214 = por %p212, %p213
      %p215 = scmp.ne.s32.totalorder %s203, %s204
      %p216 = scmp.eq.s32.totalorder %s26, 1
      %p217 = por %p215, %p216
      %p219 = scmp.ne.s32.totalorder %s204, %s218
      %p220 = scmp.eq.s32.totalorder %s26, 0
      %p221 = por %p219, %p220
      %s223 = sadd.s32 %s222, 1
      %p226 = scmp.eq.s32.totalorder %s20, 1
      %p227 = scmp.ne.s32.totalorder %s222, %s224
      %p228 = scmp.eq.s32.totalorder %s20, 0
      %p229 = por %p227, %p228
      %p230 = scmp.ne.s32.totalorder %s222, %s224
      %p231 = scmp.eq.s32.totalorder %s25, 1
      %p232 = por %p230, %p231
      %p233 = scmp.ne.s32.totalorder %s224, %s225
      %p234 = scmp.eq.s32.totalorder %s25, 0
      %p235 = por %p233, %p234
      %p236 = scmp.ne.s32.totalorder %s224, %s225
      %p237 = scmp.eq.s32.totalorder %s26, 1
      %p238 = por %p236, %p237
      %p240 = scmp.ne.s32.totalorder %s225, %s239
      %p241 = scmp.eq.s32.totalorder %s26, 0
      %p242 = por %p240, %p241
      %s244 = sadd.s32 %s243, 1
      %p247 = scmp.eq.s32.totalorder %s20, 1
      %p248 = scmp.ne.s32.totalorder %s243, %s245
      %p249 = scmp.eq.s32.totalorder %s20, 0
      %p250 = por %p248, %p249
      %p251 = scmp.ne.s32.totalorder %s243, %s245
      %p252 = scmp.eq.s32.totalorder %s25, 1
      %p253 = por %p251, %p252
      %p254 = scmp.ne.s32.totalorder %s245, %s246
      %p255 = scmp.eq.s32.totalorder %s25, 0
      %p256 = por %p254, %p255
      %p257 = scmp.ne.s32.totalorder %s245, %s246
      %p258 = scmp.eq.s32.totalorder %s26, 1
      %p259 = por %p257, %p258
      %p261 = scmp.ne.s32.totalorder %s246, %s260
      %p262 = scmp.eq.s32.totalorder %s26, 0
      %p263 = por %p261, %p262
      %s264 = ssub.s32 %s20, %s27
      %p265 = scmp.eq.s32.totalorder %s264, 0
      %s267 = sadd.s32 %s266, 1
      %s268 = scalar_select %p265, %s266, %s267
      %p271 = pneg %p265
      %p272 = scmp.eq.s32.totalorder %s20, 1
      %p273 = por %p271, %p272
      %p274 = scmp.ne.s32.totalorder %s266, %s269
      %p275 = scmp.eq.s32.totalorder %s20, 0
      %p276 = por %p274, %p275
      %p277 = scmp.ne.s32.totalorder %s266, %s269
      %p278 = scmp.eq.s32.totalorder %s25, 1
      %p279 = por %p277, %p278
      %p280 = scmp.ne.s32.totalorder %s269, %s270
      %p281 = scmp.eq.s32.totalorder %s25, 0
      %p282 = por %p280, %p281
      %p283 = scmp.ne.s32.totalorder %s269, %s270
      %p284 = scmp.eq.s32.totalorder %s26, 1
      %p285 = por %p283, %p284
      %p287 = scmp.ne.s32.totalorder %s270, %s286
      %p288 = scmp.eq.s32.totalorder %s26, 0
      %p289 = por %p287, %p288
      %p290 = scmp.le.s32.totalorder 1, %s20
      %p291 = scmp.lt.s32.totalorder %s20, 3
      %p292 = pnand %p290, %p291
      %p293 = pneg %p292
      // Predicated region
      $region9: #{_lambda_.1} parent=5 // pred_check
        _
      $region10: #{_lambda_.1} parent=5 // pred_check_branch
        %295 = sbr.rel (%p292) target = $region12
      $region11: #{_lambda_.1} parent=5 // pred_region
        %s296 = ssub.s32 %s20, 1
        // Predicated region
        $region13: #{_lambda_.1} parent=11 // pred_check
          %p297 = pneg %p67
        $region14: #{_lambda_.1} parent=11 // pred_check_branch
          %299 = sbr.rel (%p297) target = $region16
        $region15: #{_lambda_.1} parent=11 // pred_region
          _
        $region16: #{_lambda_.1} parent=11 // pred_fallthru
          _
        // Predicated region
        $region17: #{_lambda_.1} parent=11 // pred_check
          %p300 = pneg %p88
        $region18: #{_lambda_.1} parent=11 // pred_check_branch
          %302 = sbr.rel (%p300) target = $region20
        $region19: #{_lambda_.1} parent=11 // pred_region
          _
        $region20: #{_lambda_.1} parent=11 // pred_fallthru
          _
        // Predicated region
        $region21: #{_lambda_.1} parent=11 // pred_check
          %p303 = pneg %p109
        $region22: #{_lambda_.1} parent=11 // pred_check_branch
          %305 = sbr.rel (%p303) target = $region24
        $region23: #{_lambda_.1} parent=11 // pred_region
          _
        $region24: #{_lambda_.1} parent=11 // pred_fallthru
          _
        // Predicated region
        $region25: #{_lambda_.1} parent=11 // pred_check
          %p306 = pneg %p130
        $region26: #{_lambda_.1} parent=11 // pred_check_branch
          %308 = sbr.rel (%p306) target = $region28
        $region27: #{_lambda_.1} parent=11 // pred_region
          _
        $region28: #{_lambda_.1} parent=11 // pred_fallthru
          _
        // Predicated region
        $region29: #{_lambda_.1} parent=11 // pred_check
          %p309 = pneg %p151
        $region30: #{_lambda_.1} parent=11 // pred_check_branch
          %311 = sbr.rel (%p309) target = $region32
        $region31: #{_lambda_.1} parent=11 // pred_region
          _
        $region32: #{_lambda_.1} parent=11 // pred_fallthru
          _
        // Predicated region
        $region33: #{_lambda_.1} parent=11 // pred_check
          %p312 = pneg %p172
        $region34: #{_lambda_.1} parent=11 // pred_check_branch
          %314 = sbr.rel (%p312) target = $region36
        $region35: #{_lambda_.1} parent=11 // pred_region
          _
        $region36: #{_lambda_.1} parent=11 // pred_fallthru
          _
        // Predicated region
        $region37: #{_lambda_.1} parent=11 // pred_check
          %p315 = pneg %p193
        $region38: #{_lambda_.1} parent=11 // pred_check_branch
          %317 = sbr.rel (%p315) target = $region40
        $region39: #{_lambda_.1} parent=11 // pred_region
          _
        $region40: #{_lambda_.1} parent=11 // pred_fallthru
          _
        // Predicated region
        $region41: #{_lambda_.1} parent=11 // pred_check
          %p318 = pneg %p214
        $region42: #{_lambda_.1} parent=11 // pred_check_branch
          %320 = sbr.rel (%p318) target = $region44
        $region43: #{_lambda_.1} parent=11 // pred_region
          _
        $region44: #{_lambda_.1} parent=11 // pred_fallthru
          _
        // Predicated region
        $region45: #{_lambda_.1} parent=11 // pred_check
          %p321 = pneg %p235
        $region46: #{_lambda_.1} parent=11 // pred_check_branch
          %323 = sbr.rel (%p321) target = $region48
        $region47: #{_lambda_.1} parent=11 // pred_region
          _
        $region48: #{_lambda_.1} parent=11 // pred_fallthru
          _
        // Predicated region
        $region49: #{_lambda_.1} parent=11 // pred_check
          %p324 = pneg %p256
        $region50: #{_lambda_.1} parent=11 // pred_check_branch
          %326 = sbr.rel (%p324) target = $region52
        $region51: #{_lambda_.1} parent=11 // pred_region
          _
        $region52: #{_lambda_.1} parent=11 // pred_fallthru
          _
      $region12: #{_lambda_.1} parent=5 // pred_fallthru
        _
      %p327 = scmp.lt.s32.totalorder %s20, 2
      // Predicated region
      $region53: #{_lambda_.1} parent=5 // pred_check
        %p328 = pneg %p327
      $region54: #{_lambda_.1} parent=5 // pred_check_branch
        %330 = sbr.rel (%p328) target = $region56
      $region55: #{_lambda_.1} parent=5 // pred_region
        // Predicated region
        $region57: #{_lambda_.1} parent=55 // pred_check
          %p331 = pneg %p40
        $region58: #{_lambda_.1} parent=55 // pred_check_branch
          %333 = sbr.rel (%p331) target = $region60
        $region59: #{_lambda_.1} parent=55 // pred_region
          %p334 = scmp.lt.s32.totalorder %s20, 1
          %s335 = scalar_select %p334, %s20, 1
          %s336 = smul.addr %s335, 4
          %s337 = smul.addr %s336, 8
          %s338 = scalar_lea.vmem %s0, %s337
        $region60: #{_lambda_.1} parent=55 // pred_fallthru
          _
      $region56: #{_lambda_.1} parent=5 // pred_fallthru
        _
      %p339 = scmp.le.s32.totalorder 1, %s20
      %p340 = scmp.lt.s32.totalorder %s20, 3
      %p341 = pnand %p339, %p340
      %p342 = pneg %p341
      // Predicated region
      $region61: #{_lambda_.1} parent=5 // pred_check
        _
      $region62: #{_lambda_.1} parent=5 // pred_check_branch
        %344 = sbr.rel (%p341) target = $region64
      $region63: #{_lambda_.1} parent=5 // pred_region
        %s345 = ssub.s32 %s20, 1
        %p346 = scmp.lt.s32.totalorder %s25, 1
        %s347 = scalar_select %p346, %s25, 1
        %s348 = smul.addr %s347, 4
        %s349 = smul.addr %s348, 8
        %s350 = scalar_lea.vmem %s0, %s349
        %p351 = pneg %p46
        %p352 = pneg %p43
        %p353 = pneg %p67
        %p354 = pneg %p64
        %p355 = pneg %p88
        %p356 = pneg %p85
        %p357 = pneg %p109
        %p358 = pneg %p106
        %p359 = pneg %p130
        %p360 = pneg %p127
        %p361 = pneg %p151
        %p362 = pneg %p148
        %p363 = pneg %p172
        %p364 = pneg %p169
        %p365 = pneg %p193
        %p366 = pneg %p190
        %p367 = pneg %p214
        %p368 = pneg %p211
        %p369 = pneg %p235
        %p370 = pneg %p232
        %p371 = pneg %p256
        %p372 = pneg %p253
        %p373 = pneg %p282
        %p374 = pneg %p279
        %s375 = sand.u32 %s269, 1
        %s376 = scalar_lea.sflag [#allocation3], %s375
        %s377 = sand.u32 %s269, 1
        %s378 = scalar_lea.vmem [#allocation2], %s377
        %p379 = scmp.lt.s32.totalorder %s25, 1
        %s380 = scalar_select %p379, %s25, 1
        %s381 = smul.addr %s380, 4
        %s382 = smul.addr %s381, 8
        %s383 = scalar_lea.vmem %s0, %s382
        %v385 = vld [vmem:[%s383] sm:$0xff]
        %v386 = vld [vmem:[%s383 + $0x8] sm:$0xff]
        %v387 = vld [vmem:[%s383 + $0x10] sm:$0xff]
        %v388 = vld [vmem:[%s383 + $0x18] sm:$0xf]
        %v389 = vpack.c.bf16 %v386, %v385
        %v390 = vpack.c.bf16 %v388, %v387
        %vm391 = vsmask.f32 7424
        %v393 = vshrl.u32 %v389, 16
        %v395 = vshll.u32 %v389, 16
        %v397 = vrot.slane %v395, 1
        %v398 = vor.u32 %v393, %v397
        %v400 = vshll.u32 %v390, 16
        %v402 = vrot.slane %v400, 1
        %v403 = vsel %vm391, %v398, %v402
        %v404 = vshrl.u32 %v390, 16
        %v406 = vor.u32 %v404, %v402
        %407 = vrot.lane.b32.xlu0 %v403, 32
        %v408 = vpop.permute.xlu0 %407
        %409 = vrot.lane.b32.xlu0 %v406, 32
        %v410 = vpop.permute.xlu0 %409
        %vm413 = vcmask 1046528
        %v414 = vrot.slane %v389, 1
        %v415 = vrot.slane %v390, 1
        %v416 = vsel %vm413, %v414, %v415
        %417 = vrot.lane.b32.xlu0 %v416, 64
        %v418 = vpop.permute.xlu0 %417
        %419 = vrot.lane.b32.xlu0 %v415, 64
        %v420 = vpop.permute.xlu0 %419
        %vm421 = vsmask.f32 6400
        %v422 = vrot.slane %v393, 1
        %v423 = vrot.slane %v395, 2
        %v424 = vor.u32 %v422, %v423
        %v425 = vrot.slane %v404, 1
        %v426 = vrot.slane %v400, 2
        %v427 = vor.u32 %v425, %v426
        %v428 = vsel %vm421, %v424, %v427
        %429 = vrot.lane.b32.xlu0 %v428, 96
        %v430 = vpop.permute.xlu0 %429
        %431 = vrot.lane.b32.xlu0 %v427, 96
        %v432 = vpop.permute.xlu0 %431
        %vm433 = vcmask 1045504
        %v434 = vrot.slane %v389, 2
        %v435 = vrot.slane %v390, 2
        %v436 = vsel %vm433, %v434, %v435
        %vm437 = vcmask 261120
        %v439 = vsel %vm437, %v389, %v408
        %v441 = vsel %vm437, %v390, %v410
        %vm442 = vcmask 523264
        %v444 = vsel %vm442, %v439, %v418
        %v446 = vsel %vm442, %v441, %v420
        %vm447 = vcmask 785408
        %v449 = vsel %vm447, %v444, %v430
        %v452 = vsel %vm447, %v446, %v432
        %v454 = vld [vmem:[%s1] sm:$0xff]
        %v455 = vld [vmem:[%s1 + $0x8] sm:$0xff]
        %v456 = vld [vmem:[%s1 + $0x10] sm:$0xff]
        %v457 = vld [vmem:[%s1 + $0x18] sm:$0xff]
        %v458 = vld [vmem:[%s1 + $0x20] sm:$0xff]
        %v459 = vld [vmem:[%s1 + $0x28] sm:$0xff]
        %v460 = vld [vmem:[%s1 + $0x30] sm:$0xff]
        %v461 = vld [vmem:[%s1 + $0x38] sm:$0xff]
        %v462 = vld [vmem:[%s1 + $0x40] sm:$0xff]
        %v463 = vld [vmem:[%s1 + $0x48] sm:$0xff]
        %v464 = vld [vmem:[%s1 + $0x50] sm:$0xff]
        %v465 = vld [vmem:[%s1 + $0x58] sm:$0xff]
        %v466 = vld [vmem:[%s1 + $0x60] sm:$0xff]
        %v467 = vld [vmem:[%s1 + $0x68] sm:$0xff]
        %v468 = vld [vmem:[%s1 + $0x70] sm:$0xff]
        %v469 = vld [vmem:[%s1 + $0x78] sm:$0xff]
        %v470 = vld [vmem:[%s1 + $0x80] sm:$0xff]
        %v471 = vld [vmem:[%s1 + $0x88] sm:$0xff]
        %v472 = vld [vmem:[%s1 + $0x90] sm:$0xff]
        %v473 = vld [vmem:[%s1 + $0x98] sm:$0xff]
        %v474 = vld [vmem:[%s1 + $0xa0] sm:$0xff]
        %v475 = vld [vmem:[%s1 + $0xa8] sm:$0xff]
        %v476 = vld [vmem:[%s1 + $0xb0] sm:$0xff]
        %v477 = vld [vmem:[%s1 + $0xb8] sm:$0xff]
        %v478 = vld [vmem:[%s1 + $0xc0] sm:$0xff]
        %v479 = vld [vmem:[%s1 + $0xc8] sm:$0xff]
        %v480 = vld [vmem:[%s1 + $0xd0] sm:$0xff]
        %v481 = vld [vmem:[%s1 + $0xd8] sm:$0xff]
        %v482 = vld [vmem:[%s1 + $0xe0] sm:$0xff]
        %v483 = vld [vmem:[%s1 + $0xe8] sm:$0xff]
        %v484 = vld [vmem:[%s1 + $0xf0] sm:$0xff]
        %v485 = vld [vmem:[%s1 + $0xf8] sm:$0xff]
        %v486 = vld [vmem:[%s1 + $0x100] sm:$0xff]
        %v487 = vld [vmem:[%s1 + $0x108] sm:$0xff]
        %v488 = vld [vmem:[%s1 + $0x110] sm:$0xff]
        %v489 = vld [vmem:[%s1 + $0x118] sm:$0xff]
        %v490 = vld [vmem:[%s1 + $0x120] sm:$0xff]
        %v491 = vld [vmem:[%s1 + $0x128] sm:$0xff]
        %v492 = vld [vmem:[%s1 + $0x130] sm:$0xff]
        %v493 = vld [vmem:[%s1 + $0x138] sm:$0xff]
        %v494 = vld [vmem:[%s1 + $0x140] sm:$0xff]
        %v495 = vld [vmem:[%s1 + $0x148] sm:$0xff]
        %v496 = vld [vmem:[%s1 + $0x150] sm:$0xff]
        %v497 = vld [vmem:[%s1 + $0x158] sm:$0xff]
        %v498 = vld [vmem:[%s1 + $0x160] sm:$0xff]
        %v499 = vld [vmem:[%s1 + $0x168] sm:$0xff]
        %v500 = vld [vmem:[%s1 + $0x170] sm:$0xff]
        %v501 = vld [vmem:[%s1 + $0x178] sm:$0xff]
        %v502 = vld [vmem:[%s1 + $0x180] sm:$0xff]
        %v503 = vld [vmem:[%s1 + $0x188] sm:$0xff]
        %v504 = vld [vmem:[%s1 + $0x190] sm:$0xff]
        %v505 = vld [vmem:[%s1 + $0x198] sm:$0xff]
        %v506 = vld [vmem:[%s1 + $0x1a0] sm:$0xff]
        %v507 = vld [vmem:[%s1 + $0x1a8] sm:$0xff]
        %v508 = vld [vmem:[%s1 + $0x1b0] sm:$0xff]
        %v509 = vld [vmem:[%s1 + $0x1b8] sm:$0xff]
        %v510 = vld [vmem:[%s1 + $0x1c0] sm:$0xff]
        %v511 = vld [vmem:[%s1 + $0x1c8] sm:$0xff]
        %v512 = vld [vmem:[%s1 + $0x1d0] sm:$0xff]
        %v513 = vld [vmem:[%s1 + $0x1d8] sm:$0xff]
        %v574 = vunpack.c.l.b16 %v454
        %v575 = vunpack.c.h.b16 %v454
        %v576 = vunpack.c.l.b16 %v455
        %v577 = vunpack.c.h.b16 %v455
        %v578 = vunpack.c.l.b16 %v456
        %v579 = vunpack.c.h.b16 %v456
        %v580 = vunpack.c.l.b16 %v457
        %v581 = vunpack.c.h.b16 %v457
        %v582 = vunpack.c.l.b16 %v458
        %v583 = vunpack.c.h.b16 %v458
        %v584 = vunpack.c.l.b16 %v459
        %v585 = vunpack.c.h.b16 %v459
        %v586 = vunpack.c.l.b16 %v460
        %v587 = vunpack.c.h.b16 %v460
        %v588 = vunpack.c.l.b16 %v461
        %v589 = vunpack.c.h.b16 %v461
        %v590 = vunpack.c.l.b16 %v462
        %v591 = vunpack.c.h.b16 %v462
        %v592 = vunpack.c.l.b16 %v463
        %v593 = vunpack.c.h.b16 %v463
        %v594 = vunpack.c.l.b16 %v464
        %v595 = vunpack.c.h.b16 %v464
        %v596 = vunpack.c.l.b16 %v465
        %v597 = vunpack.c.h.b16 %v465
        %v598 = vunpack.c.l.b16 %v466
        %v599 = vunpack.c.h.b16 %v466
        %v600 = vunpack.c.l.b16 %v467
        %v601 = vunpack.c.h.b16 %v467
        %v602 = vunpack.c.l.b16 %v468
        %v603 = vunpack.c.h.b16 %v468
        %v604 = vunpack.c.l.b16 %v469
        %v605 = vunpack.c.h.b16 %v469
        %v606 = vunpack.c.l.b16 %v470
        %v607 = vunpack.c.h.b16 %v470
        %v608 = vunpack.c.l.b16 %v471
        %v609 = vunpack.c.h.b16 %v471
        %v610 = vunpack.c.l.b16 %v472
        %v611 = vunpack.c.h.b16 %v472
        %v612 = vunpack.c.l.b16 %v473
        %v613 = vunpack.c.h.b16 %v473
        %v614 = vunpack.c.l.b16 %v474
        %v615 = vunpack.c.h.b16 %v474
        %v616 = vunpack.c.l.b16 %v475
        %v617 = vunpack.c.h.b16 %v475
        %v618 = vunpack.c.l.b16 %v476
        %v619 = vunpack.c.h.b16 %v476
        %v620 = vunpack.c.l.b16 %v477
        %v621 = vunpack.c.h.b16 %v477
        %v622 = vunpack.c.l.b16 %v478
        %v623 = vunpack.c.h.b16 %v478
        %v624 = vunpack.c.l.b16 %v479
        %v625 = vunpack.c.h.b16 %v479
        %v626 = vunpack.c.l.b16 %v480
        %v627 = vunpack.c.h.b16 %v480
        %v628 = vunpack.c.l.b16 %v481
        %v629 = vunpack.c.h.b16 %v481
        %v630 = vunpack.c.l.b16 %v482
        %v631 = vunpack.c.h.b16 %v482
        %v632 = vunpack.c.l.b16 %v483
        %v633 = vunpack.c.h.b16 %v483
        %v634 = vunpack.c.l.b16 %v484
        %v635 = vunpack.c.h.b16 %v484
        %v636 = vunpack.c.l.b16 %v485
        %v637 = vunpack.c.h.b16 %v485
        %v638 = vunpack.c.l.b16 %v486
        %v639 = vunpack.c.h.b16 %v486
        %v640 = vunpack.c.l.b16 %v487
        %v641 = vunpack.c.h.b16 %v487
        %v642 = vunpack.c.l.b16 %v488
        %v643 = vunpack.c.h.b16 %v488
        %v644 = vunpack.c.l.b16 %v489
        %v645 = vunpack.c.h.b16 %v489
        %v646 = vunpack.c.l.b16 %v490
        %v647 = vunpack.c.h.b16 %v490
        %v648 = vunpack.c.l.b16 %v491
        %v649 = vunpack.c.h.b16 %v491
        %v650 = vunpack.c.l.b16 %v492
        %v651 = vunpack.c.h.b16 %v492
        %v652 = vunpack.c.l.b16 %v493
        %v653 = vunpack.c.h.b16 %v493
        %v654 = vunpack.c.l.b16 %v494
        %v655 = vunpack.c.h.b16 %v494
        %v656 = vunpack.c.l.b16 %v495
        %v657 = vunpack.c.h.b16 %v495
        %v658 = vunpack.c.l.b16 %v496
        %v659 = vunpack.c.h.b16 %v496
        %v660 = vunpack.c.l.b16 %v497
        %v661 = vunpack.c.h.b16 %v497
        %v662 = vunpack.c.l.b16 %v498
        %v663 = vunpack.c.h.b16 %v498
        %v664 = vunpack.c.l.b16 %v499
        %v665 = vunpack.c.h.b16 %v499
        %v666 = vunpack.c.l.b16 %v500
        %v667 = vunpack.c.h.b16 %v500
        %v668 = vunpack.c.l.b16 %v501
        %v669 = vunpack.c.h.b16 %v501
        %v670 = vunpack.c.l.b16 %v502
        %v671 = vunpack.c.h.b16 %v502
        %v672 = vunpack.c.l.b16 %v503
        %v673 = vunpack.c.h.b16 %v503
        %v674 = vunpack.c.l.b16 %v504
        %v675 = vunpack.c.h.b16 %v504
        %v676 = vunpack.c.l.b16 %v505
        %v677 = vunpack.c.h.b16 %v505
        %v678 = vunpack.c.l.b16 %v506
        %v679 = vunpack.c.h.b16 %v506
        %v680 = vunpack.c.l.b16 %v507
        %v681 = vunpack.c.h.b16 %v507
        %v682 = vunpack.c.l.b16 %v508
        %v683 = vunpack.c.h.b16 %v508
        %v684 = vunpack.c.l.b16 %v509
        %v685 = vunpack.c.h.b16 %v509
        %v686 = vunpack.c.l.b16 %v510
        %v687 = vunpack.c.h.b16 %v510
        %v688 = vunpack.c.l.b16 %v511
        %v689 = vunpack.c.h.b16 %v511
        %v690 = vunpack.c.l.b16 %v512
        %v691 = vunpack.c.h.b16 %v512
        %v692 = vunpack.c.l.b16 %v513
        %v693 = vunpack.c.h.b16 %v513
        %v694 = vpack.c.b16 %v580, %v574
        %v695 = vpack.c.b16 %v581, %v575
        %v696 = vpack.c.b16 %v582, %v576
        %v697 = vpack.c.b16 %v583, %v577
        %v698 = vpack.c.b16 %v584, %v578
        %v699 = vpack.c.b16 %v585, %v579
        %v700 = vpack.c.b16 %v592, %v586
        %v701 = vpack.c.b16 %v593, %v587
        %v702 = vpack.c.b16 %v594, %v588
        %v703 = vpack.c.b16 %v595, %v589
        %v704 = vpack.c.b16 %v596, %v590
        %v705 = vpack.c.b16 %v597, %v591
        %v706 = vpack.c.b16 %v604, %v598
        %v707 = vpack.c.b16 %v605, %v599
        %v708 = vpack.c.b16 %v606, %v600
        %v709 = vpack.c.b16 %v607, %v601
        %v710 = vpack.c.b16 %v608, %v602
        %v711 = vpack.c.b16 %v609, %v603
        %v712 = vpack.c.b16 %v616, %v610
        %v713 = vpack.c.b16 %v617, %v611
        %v714 = vpack.c.b16 %v618, %v612
        %v715 = vpack.c.b16 %v619, %v613
        %v716 = vpack.c.b16 %v620, %v614
        %v717 = vpack.c.b16 %v621, %v615
        %v718 = vpack.c.b16 %v628, %v622
        %v719 = vpack.c.b16 %v629, %v623
        %v720 = vpack.c.b16 %v630, %v624
        %v721 = vpack.c.b16 %v631, %v625
        %v722 = vpack.c.b16 %v632, %v626
        %v723 = vpack.c.b16 %v633, %v627
        %v724 = vpack.c.b16 %v640, %v634
        %v725 = vpack.c.b16 %v641, %v635
        %v726 = vpack.c.b16 %v642, %v636
        %v727 = vpack.c.b16 %v643, %v637
        %v728 = vpack.c.b16 %v644, %v638
        %v729 = vpack.c.b16 %v645, %v639
        %v730 = vpack.c.b16 %v652, %v646
        %v731 = vpack.c.b16 %v653, %v647
        %v732 = vpack.c.b16 %v654, %v648
        %v733 = vpack.c.b16 %v655, %v649
        %v734 = vpack.c.b16 %v656, %v650
        %v735 = vpack.c.b16 %v657, %v651
        %v736 = vpack.c.b16 %v664, %v658
        %v737 = vpack.c.b16 %v665, %v659
        %v738 = vpack.c.b16 %v666, %v660
        %v739 = vpack.c.b16 %v667, %v661
        %v740 = vpack.c.b16 %v668, %v662
        %v741 = vpack.c.b16 %v669, %v663
        %v742 = vpack.c.b16 %v676, %v670
        %v743 = vpack.c.b16 %v677, %v671
        %v744 = vpack.c.b16 %v678, %v672
        %v745 = vpack.c.b16 %v679, %v673
        %v746 = vpack.c.b16 %v680, %v674
        %v747 = vpack.c.b16 %v681, %v675
        %v748 = vpack.c.b16 %v688, %v682
        %v749 = vpack.c.b16 %v689, %v683
        %v750 = vpack.c.b16 %v690, %v684
        %v751 = vpack.c.b16 %v691, %v685
        %v752 = vpack.c.b16 %v692, %v686
        %v753 = vpack.c.b16 %v693, %v687
        %v815 = vsel %vm437, %v436, 0
        %v818 = vsel %vm437, %v435, 0
        %820 = vmatprep.subr.bf16.mxu0 %v695
        %821 = vmatpush1.bf16.msra.mxu0 %v694
        %822 = vmatprep.subr.bf16.mxu0 %v701
        %823 = vmatpush1.bf16.msra.mxu0 %v700
        %824 = vmatprep.subr.bf16.mxu0 %v707
        %825 = vmatpush1.bf16.msra.mxu0 %v706
        %826 = vmatprep.subr.bf16.mxu0 %v713
        %827 = vmatpush1.bf16.msra.mxu0 %v712
        %828 = vmatprep.subr.bf16.mxu0 %v719
        %829 = vmatpush1.bf16.msra.mxu0 %v718
        %830 = vmatprep.subr.bf16.mxu0 %v725
        %831 = vmatpush1.bf16.msra.mxu0 %v724
        %832 = vmatprep.subr.bf16.mxu0 %v731
        %833 = vmatpush1.bf16.msra.mxu0 %v730
        %834 = vmatprep.subr.bf16.mxu0 %v737
        %835 = vmatpush1.bf16.msra.mxu0 %v736
        %836 = vmatprep.subr.bf16.mxu0 %v743
        %837 = vmatpush1.bf16.msra.mxu0 %v742
        %838 = vmatprep.subr.bf16.mxu0 %v749
        %839 = vmatpush1.bf16.msra.mxu0 %v748
        %840 = vmatprep.subr.bf16.mxu0 0
        %841 = vmatpush1.bf16.msra.mxu0 0
        %842 = vmatprep.subr.bf16.mxu0 0
        %843 = vmatpush1.bf16.msra.mxu0 0
        %844 = vmatprep.subr.bf16.mxu0 0
        %845 = vmatpush1.bf16.msra.mxu0 0
        %846 = vmatprep.subr.bf16.mxu0 0
        %847 = vmatpush1.bf16.msra.mxu0 0
        %848 = vmatprep.subr.bf16.mxu0 0
        %849 = vmatpush1.bf16.msra.mxu0 0
        %850 = vmatprep.subr.bf16.mxu0 0
        %851 = vmatpush1.bf16.msra.mxu0 0
        %852 = vmatprep.mubr.bf16.mxu0 %v815
        %853 = vmatmul.mubr.bf16.gmra.mrb[0].mxu0 %v449
        %v854 = vpop.f32.mrb[0].mxu0
        %v855 = vadd.f32 0.0, %v854
        %v856 = vpop.f32.mrb[0].mxu0
        %v857 = vadd.f32 0.0, %v856
        %v858 = vpop.f32.mrb[0].mxu0
        %v859 = vadd.f32 0.0, %v858
        %v860 = vpop.f32.mrb[0].mxu0
        %v861 = vadd.f32 0.0, %v860
        %862 = vmatprep.mubr.bf16.mxu0 %v818
        %863 = vmatmul.mubr.bf16.gmra.mrb[0].mxu0 %v452
        %v864 = vpop.f32.mrb[0].mxu0
        %v865 = vadd.f32 0.0, %v864
        %v866 = vpop.f32.mrb[0].mxu0
        %v867 = vadd.f32 0.0, %v866
        %v868 = vpop.f32.mrb[0].mxu0
        %v869 = vpop.f32.mrb[0].mxu0
        %870 = vdwg.mxu0
        %871 = vmatprep.subr.bf16.mxu0 %v697
        %872 = vmatpush1.bf16.msra.mxu0 %v696
        %873 = vmatprep.subr.bf16.mxu0 %v703
        %874 = vmatpush1.bf16.msra.mxu0 %v702
        %875 = vmatprep.subr.bf16.mxu0 %v709
        %876 = vmatpush1.bf16.msra.mxu0 %v708
        %877 = vmatprep.subr.bf16.mxu0 %v715
        %878 = vmatpush1.bf16.msra.mxu0 %v714
        %879 = vmatprep.subr.bf16.mxu0 %v721
        %880 = vmatpush1.bf16.msra.mxu0 %v720
        %881 = vmatprep.subr.bf16.mxu0 %v727
        %882 = vmatpush1.bf16.msra.mxu0 %v726
        %883 = vmatprep.subr.bf16.mxu0 %v733
        %884 = vmatpush1.bf16.msra.mxu0 %v732
        %885 = vmatprep.subr.bf16.mxu0 %v739
        %886 = vmatpush1.bf16.msra.mxu0 %v738
        %887 = vmatprep.subr.bf16.mxu0 %v745
        %888 = vmatpush1.bf16.msra.mxu0 %v744
        %889 = vmatprep.subr.bf16.mxu0 %v751
        %890 = vmatpush1.bf16.msra.mxu0 %v750
        %891 = vmatprep.subr.bf16.mxu0 0
        %892 = vmatpush1.bf16.msra.mxu0 0
        %893 = vmatprep.subr.bf16.mxu0 0
        %894 = vmatpush1.bf16.msra.mxu0 0
        %895 = vmatprep.subr.bf16.mxu0 0
        %896 = vmatpush1.bf16.msra.mxu0 0
        %897 = vmatprep.subr.bf16.mxu0 0
        %898 = vmatpush1.bf16.msra.mxu0 0
        %899 = vmatprep.subr.bf16.mxu0 0
        %900 = vmatpush1.bf16.msra.mxu0 0
        %901 = vmatprep.subr.bf16.mxu0 0
        %902 = vmatpush1.bf16.msra.mxu0 0
        %903 = vmatprep.mubr.bf16.mxu0 %v815
        %904 = vmatmul.mubr.bf16.gmra.mrb[0].mxu0 %v449
        %v905 = vpop.f32.mrb[0].mxu0
        %v906 = vadd.f32 0.0, %v905
        %v907 = vpop.f32.mrb[0].mxu0
        %v908 = vadd.f32 0.0, %v907
        %v909 = vpop.f32.mrb[0].mxu0
        %v910 = vadd.f32 0.0, %v909
        %v911 = vpop.f32.mrb[0].mxu0
        %v912 = vadd.f32 0.0, %v911
        %913 = vmatprep.mubr.bf16.mxu0 %v818
        %914 = vmatmul.mubr.bf16.gmra.mrb[0].mxu0 %v452
        %v915 = vpop.f32.mrb[0].mxu0
        %v916 = vadd.f32 0.0, %v915
        %v917 = vpop.f32.mrb[0].mxu0
        %v918 = vadd.f32 0.0, %v917
        %v919 = vpop.f32.mrb[0].mxu0
        %v920 = vpop.f32.mrb[0].mxu0
        %921 = vdwg.mxu0
        %922 = vmatprep.subr.bf16.mxu0 %v699
        %923 = vmatpush1.bf16.msra.mxu0 %v698
        %924 = vmatprep.subr.bf16.mxu0 %v705
        %925 = vmatpush1.bf16.msra.mxu0 %v704
        %926 = vmatprep.subr.bf16.mxu0 %v711
        %927 = vmatpush1.bf16.msra.mxu0 %v710
        %928 = vmatprep.subr.bf16.mxu0 %v717
        %929 = vmatpush1.bf16.msra.mxu0 %v716
        %930 = vmatprep.subr.bf16.mxu0 %v723
        %931 = vmatpush1.bf16.msra.mxu0 %v722
        %932 = vmatprep.subr.bf16.mxu0 %v729
        %933 = vmatpush1.bf16.msra.mxu0 %v728
        %934 = vmatprep.subr.bf16.mxu0 %v735
        %935 = vmatpush1.bf16.msra.mxu0 %v734
        %936 = vmatprep.subr.bf16.mxu0 %v741
        %937 = vmatpush1.bf16.msra.mxu0 %v740
        %938 = vmatprep.subr.bf16.mxu0 %v747
        %939 = vmatpush1.bf16.msra.mxu0 %v746
        %940 = vmatprep.subr.bf16.mxu0 %v753
        %941 = vmatpush1.bf16.msra.mxu0 %v752
        %942 = vmatprep.subr.bf16.mxu0 0
        %943 = vmatpush1.bf16.msra.mxu0 0
        %944 = vmatprep.subr.bf16.mxu0 0
        %945 = vmatpush1.bf16.msra.mxu0 0
        %946 = vmatprep.subr.bf16.mxu0 0
        %947 = vmatpush1.bf16.msra.mxu0 0
        %948 = vmatprep.subr.bf16.mxu0 0
        %949 = vmatpush1.bf16.msra.mxu0 0
        %950 = vmatprep.subr.bf16.mxu0 0
        %951 = vmatpush1.bf16.msra.mxu0 0
        %952 = vmatprep.subr.bf16.mxu0 0
        %953 = vmatpush1.bf16.msra.mxu0 0
        %954 = vmatprep.mubr.bf16.mxu0 %v815
        %955 = vmatmul.mubr.bf16.gmra.mrb[0].mxu0 %v449
        %v956 = vpop.f32.mrb[0].mxu0
        %v957 = vadd.f32 0.0, %v956
        %v958 = vpop.f32.mrb[0].mxu0
        %v959 = vadd.f32 0.0, %v958
        %v960 = vpop.f32.mrb[0].mxu0
        %v961 = vadd.f32 0.0, %v960
        %v962 = vpop.f32.mrb[0].mxu0
        %v963 = vadd.f32 0.0, %v962
        %964 = vmatprep.mubr.bf16.mxu0 %v818
        %965 = vmatmul.mubr.bf16.gmra.mrb[0].mxu0 %v452
        %v966 = vpop.f32.mrb[0].mxu0
        %v967 = vadd.f32 0.0, %v966
        %v968 = vpop.f32.mrb[0].mxu0
        %v969 = vadd.f32 0.0, %v968
        %v970 = vpop.f32.mrb[0].mxu0
        %v971 = vpop.f32.mrb[0].mxu0
        %972 = vdwg.mxu0
        %v973 = vld [vmem:[%s2] sm:$0x3f]
        %v975 = vlaneseq
        %v976 = vshrl.u32 %v975, 7
        %v977 = vsub.s32 0, %v976
        %v978 = vrot.slane %v973, %v977
        %v979 = vlaneseq
        %v980 = vshrl.u32 %v979, 7
        %v981 = vsub.s32 1, %v980
        %v982 = vrot.slane %v973, %v981
        %v983 = vlaneseq
        %v984 = vshrl.u32 %v983, 7
        %v985 = vsub.s32 2, %v984
        %v986 = vrot.slane %v973, %v985
        %v987 = vlaneseq
        %v988 = vshrl.u32 %v987, 7
        %v989 = vsub.s32 3, %v988
        %v990 = vrot.slane %v973, %v989
        %v991 = vlaneseq
        %v992 = vshrl.u32 %v991, 7
        %v993 = vsub.s32 4, %v992
        %v994 = vrot.slane %v973, %v993
        %v995 = vlaneseq
        %v996 = vshrl.u32 %v995, 7
        %v997 = vsub.s32 5, %v996
        %v998 = vrot.slane %v973, %v997
        %v1005 = vmul.f32 %v855, %v978
        %v1006 = vmul.f32 %v857, %v982
        %v1007 = vmul.f32 %v906, %v986
        %v1008 = vmul.f32 %v908, %v990
        %v1009 = vmul.f32 %v957, %v994
        %v1010 = vmul.f32 %v959, %v998
        %v1011 = vmul.f32 %v859, %v978
        %v1012 = vmul.f32 %v861, %v982
        %v1013 = vmul.f32 %v910, %v986
        %v1014 = vmul.f32 %v912, %v990
        %v1015 = vmul.f32 %v961, %v994
        %v1016 = vmul.f32 %v963, %v998
        %v1017 = vmul.f32 %v865, %v978
        %v1018 = vmul.f32 %v867, %v982
        %v1019 = vmul.f32 %v916, %v986
        %v1020 = vmul.f32 %v918, %v990
        %v1021 = vmul.f32 %v967, %v994
        %v1022 = vmul.f32 %v969, %v998
        %v1023 = vld [vmem:[%s3] sm:$0x3f]
        %v1025 = vlaneseq
        %v1026 = vshrl.u32 %v1025, 7
        %v1027 = vsub.s32 0, %v1026
        %v1028 = vrot.slane %v1023, %v1027
        %v1029 = vlaneseq
        %v1030 = vshrl.u32 %v1029, 7
        %v1031 = vsub.s32 1, %v1030
        %v1032 = vrot.slane %v1023, %v1031
        %v1033 = vlaneseq
        %v1034 = vshrl.u32 %v1033, 7
        %v1035 = vsub.s32 2, %v1034
        %v1036 = vrot.slane %v1023, %v1035
        %v1037 = vlaneseq
        %v1038 = vshrl.u32 %v1037, 7
        %v1039 = vsub.s32 3, %v1038
        %v1040 = vrot.slane %v1023, %v1039
        %v1041 = vlaneseq
        %v1042 = vshrl.u32 %v1041, 7
        %v1043 = vsub.s32 4, %v1042
        %v1044 = vrot.slane %v1023, %v1043
        %v1045 = vlaneseq
        %v1046 = vshrl.u32 %v1045, 7
        %v1047 = vsub.s32 5, %v1046
        %v1048 = vrot.slane %v1023, %v1047
        %v1055 = vadd.f32 %v1005, %v1028
        %v1056 = vadd.f32 %v1006, %v1032
        %v1057 = vadd.f32 %v1007, %v1036
        %v1058 = vadd.f32 %v1008, %v1040
        %v1059 = vadd.f32 %v1009, %v1044
        %v1060 = vadd.f32 %v1010, %v1048
        %v1061 = vadd.f32 %v1011, %v1028
        %v1062 = vadd.f32 %v1012, %v1032
        %v1063 = vadd.f32 %v1013, %v1036
        %v1064 = vadd.f32 %v1014, %v1040
        %v1065 = vadd.f32 %v1015, %v1044
        %v1066 = vadd.f32 %v1016, %v1048
        %v1067 = vadd.f32 %v1017, %v1028
        %v1068 = vadd.f32 %v1018, %v1032
        %v1069 = vadd.f32 %v1019, %v1036
        %v1070 = vadd.f32 %v1020, %v1040
        %v1071 = vadd.f32 %v1021, %v1044
        %v1072 = vadd.f32 %v1022, %v1048
        %v1073 = vmax.f32 %v1055, 0.0
        %v1074 = vmax.f32 %v1056, 0.0
        %v1075 = vmax.f32 %v1057, 0.0
        %v1076 = vmax.f32 %v1058, 0.0
        %v1077 = vmax.f32 %v1059, 0.0
        %v1078 = vmax.f32 %v1060, 0.0
        %v1079 = vmax.f32 %v1061, 0.0
        %v1080 = vmax.f32 %v1062, 0.0
        %v1081 = vmax.f32 %v1063, 0.0
        %v1082 = vmax.f32 %v1064, 0.0
        %v1083 = vmax.f32 %v1065, 0.0
        %v1084 = vmax.f32 %v1066, 0.0
        %v1085 = vmax.f32 %v1067, 0.0
        %v1086 = vmax.f32 %v1068, 0.0
        %v1087 = vmax.f32 %v1069, 0.0
        %v1088 = vmax.f32 %v1070, 0.0
        %v1089 = vmax.f32 %v1071, 0.0
        %v1090 = vmax.f32 %v1072, 0.0
        %v1109 = vcombine.low %v1073, %v1074
        %v1110 = vcombine.high %v1073, %v1074
        %v1111 = vcombine.low %v1075, %v1076
        %v1112 = vcombine.high %v1075, %v1076
        %v1114 = vunpack.c.l.s4 1983009808
        %v1115 = vunpack.c.0.s8 %v1114
        %v1116 = vlaneseq
        %v1117 = vshrl.u32 %v1116, 7
        %v1118 = vsub.s32 %v1115, %v1117
        %v1119 = vrot.slane %v1109, %v1118
        %v1121 = vunpack.c.l.s4 1983009808
        %v1122 = vunpack.c.0.s8 %v1121
        %v1123 = vlaneseq
        %v1124 = vshrl.u32 %v1123, 7
        %v1125 = vsub.s32 %v1122, %v1124
        %v1126 = vrot.slane %v1110, %v1125
        %v1128 = vunpack.c.l.s4 1983009808
        %v1129 = vunpack.c.0.s8 %v1128
        %v1130 = vlaneseq
        %v1131 = vshrl.u32 %v1130, 7
        %v1132 = vsub.s32 %v1129, %v1131
        %v1133 = vrot.slane %v1111, %v1132
        %v1135 = vunpack.c.l.s4 1983009808
        %v1136 = vunpack.c.0.s8 %v1135
        %v1137 = vlaneseq
        %v1138 = vshrl.u32 %v1137, 7
        %v1139 = vsub.s32 %v1136, %v1138
        %v1140 = vrot.slane %v1112, %v1139
        %v1141 = vcombine.low %v1119, %v1133
        %v1142 = vcombine.high %v1119, %v1133
        %v1143 = vcombine.low %v1126, %v1140
        %v1144 = vcombine.high %v1126, %v1140
        %v1145 = vcombine.low %v1077, %v1078
        %v1146 = vcombine.high %v1077, %v1078
        %v1148 = vunpack.c.l.s4 1983009808
        %v1149 = vunpack.c.0.s8 %v1148
        %v1150 = vlaneseq
        %v1151 = vshrl.u32 %v1150, 7
        %v1152 = vsub.s32 %v1149, %v1151
        %v1153 = vrot.slane %v1145, %v1152
        %v1155 = vunpack.c.l.s4 1983009808
        %v1156 = vunpack.c.0.s8 %v1155
        %v1157 = vlaneseq
        %v1158 = vshrl.u32 %v1157, 7
        %v1159 = vsub.s32 %v1156, %v1158
        %v1160 = vrot.slane %v1146, %v1159
        %v1161 = vcombine.high %v1153, %v1153
        %v1162 = vcombine.high %v1160, %v1160
        %v1163 = vcombine.low %v1079, %v1080
        %v1164 = vcombine.high %v1079, %v1080
        %v1165 = vcombine.low %v1081, %v1082
        %v1166 = vcombine.high %v1081, %v1082
        %v1168 = vunpack.c.l.s4 1983009808
        %v1169 = vunpack.c.0.s8 %v1168
        %v1170 = vlaneseq
        %v1171 = vshrl.u32 %v1170, 7
        %v1172 = vsub.s32 %v1169, %v1171
        %v1173 = vrot.slane %v1163, %v1172
        %v1175 = vunpack.c.l.s4 1983009808
        %v1176 = vunpack.c.0.s8 %v1175
        %v1177 = vlaneseq
        %v1178 = vshrl.u32 %v1177, 7
        %v1179 = vsub.s32 %v1176, %v1178
        %v1180 = vrot.slane %v1164, %v1179
        %v1182 = vunpack.c.l.s4 1983009808
        %v1183 = vunpack.c.0.s8 %v1182
        %v1184 = vlaneseq
        %v1185 = vshrl.u32 %v1184, 7
        %v1186 = vsub.s32 %v1183, %v1185
        %v1187 = vrot.slane %v1165, %v1186
        %v1189 = vunpack.c.l.s4 1983009808
        %v1190 = vunpack.c.0.s8 %v1189
        %v1191 = vlaneseq
        %v1192 = vshrl.u32 %v1191, 7
        %v1193 = vsub.s32 %v1190, %v1192
        %v1194 = vrot.slane %v1166, %v1193
        %v1195 = vcombine.low %v1173, %v1187
        %v1196 = vcombine.high %v1173, %v1187
        %v1197 = vcombine.low %v1180, %v1194
        %v1198 = vcombine.high %v1180, %v1194
        %v1199 = vcombine.low %v1083, %v1084
        %v1200 = vcombine.high %v1083, %v1084
        %v1202 = vunpack.c.l.s4 1983009808
        %v1203 = vunpack.c.0.s8 %v1202
        %v1204 = vlaneseq
        %v1205 = vshrl.u32 %v1204, 7
        %v1206 = vsub.s32 %v1203, %v1205
        %v1207 = vrot.slane %v1199, %v1206
        %v1209 = vunpack.c.l.s4 1983009808
        %v1210 = vunpack.c.0.s8 %v1209
        %v1211 = vlaneseq
        %v1212 = vshrl.u32 %v1211, 7
        %v1213 = vsub.s32 %v1210, %v1212
        %v1214 = vrot.slane %v1200, %v1213
        %v1215 = vcombine.high %v1207, %v1207
        %v1216 = vcombine.high %v1214, %v1214
        %v1217 = vcombine.low %v1085, %v1086
        %v1218 = vcombine.high %v1085, %v1086
        %v1219 = vcombine.low %v1087, %v1088
        %v1220 = vcombine.high %v1087, %v1088
        %v1222 = vunpack.c.l.s4 1983009808
        %v1223 = vunpack.c.0.s8 %v1222
        %v1224 = vlaneseq
        %v1225 = vshrl.u32 %v1224, 7
        %v1226 = vsub.s32 %v1223, %v1225
        %v1227 = vrot.slane %v1217, %v1226
        %v1229 = vunpack.c.l.s4 1983009808
        %v1230 = vunpack.c.0.s8 %v1229
        %v1231 = vlaneseq
        %v1232 = vshrl.u32 %v1231, 7
        %v1233 = vsub.s32 %v1230, %v1232
        %v1234 = vrot.slane %v1218, %v1233
        %v1236 = vunpack.c.l.s4 1983009808
        %v1237 = vunpack.c.0.s8 %v1236
        %v1238 = vlaneseq
        %v1239 = vshrl.u32 %v1238, 7
        %v1240 = vsub.s32 %v1237, %v1239
        %v1241 = vrot.slane %v1219, %v1240
        %v1243 = vunpack.c.l.s4 1983009808
        %v1244 = vunpack.c.0.s8 %v1243
        %v1245 = vlaneseq
        %v1246 = vshrl.u32 %v1245, 7
        %v1247 = vsub.s32 %v1244, %v1246
        %v1248 = vrot.slane %v1220, %v1247
        %v1249 = vcombine.low %v1227, %v1241
        %v1250 = vcombine.high %v1227, %v1241
        %v1251 = vcombine.low %v1234, %v1248
        %v1252 = vcombine.high %v1234, %v1248
        %v1253 = vcombine.low %v1089, %v1090
        %v1254 = vcombine.high %v1089, %v1090
        %v1256 = vunpack.c.l.s4 1983009808
        %v1257 = vunpack.c.0.s8 %v1256
        %v1258 = vlaneseq
        %v1259 = vshrl.u32 %v1258, 7
        %v1260 = vsub.s32 %v1257, %v1259
        %v1261 = vrot.slane %v1253, %v1260
        %v1263 = vunpack.c.l.s4 1983009808
        %v1264 = vunpack.c.0.s8 %v1263
        %v1265 = vlaneseq
        %v1266 = vshrl.u32 %v1265, 7
        %v1267 = vsub.s32 %v1264, %v1266
        %v1268 = vrot.slane %v1254, %v1267
        %v1269 = vcombine.high %v1261, %v1261
        %v1270 = vcombine.high %v1268, %v1268
        %v1271 = vcombine.high %v1141, %v1141
        %v1273 = vunpack.c.l.s4 1983009808
        %v1274 = vunpack.c.0.s8 %v1273
        %v1275 = vlaneseq
        %v1276 = vshrl.u32 %v1275, 7
        %v1277 = vsub.s32 %v1274, %v1276
        %v1278 = vrot.slane %v1141, %v1277
        %v1280 = vunpack.c.l.s4 1983009808
        %v1281 = vunpack.c.0.s8 %v1280
        %v1282 = vlaneseq
        %v1283 = vshrl.u32 %v1282, 7
        %v1284 = vsub.s32 %v1281, %v1283
        %v1285 = vrot.slane %v1271, %v1284
        %v1286 = vcombine.high %v1278, %v1278
        %v1287 = vcombine.high %v1285, %v1285
        %v1289 = vunpack.c.l.s4 1983009808
        %v1290 = vunpack.c.0.s8 %v1289
        %v1291 = vlaneseq
        %v1292 = vshrl.u32 %v1291, 7
        %v1293 = vsub.s32 %v1290, %v1292
        %v1294 = vrot.slane %v1153, %v1293
        %v1295 = vcombine.high %v1294, %v1294
        %v1296 = vcombine.high %v1142, %v1142
        %v1298 = vunpack.c.l.s4 1983009808
        %v1299 = vunpack.c.0.s8 %v1298
        %v1300 = vlaneseq
        %v1301 = vshrl.u32 %v1300, 7
        %v1302 = vsub.s32 %v1299, %v1301
        %v1303 = vrot.slane %v1142, %v1302
        %v1305 = vunpack.c.l.s4 1983009808
        %v1306 = vunpack.c.0.s8 %v1305
        %v1307 = vlaneseq
        %v1308 = vshrl.u32 %v1307, 7
        %v1309 = vsub.s32 %v1306, %v1308
        %v1310 = vrot.slane %v1296, %v1309
        %v1311 = vcombine.high %v1303, %v1303
        %v1312 = vcombine.high %v1310, %v1310
        %v1314 = vunpack.c.l.s4 1983009808
        %v1315 = vunpack.c.0.s8 %v1314
        %v1316 = vlaneseq
        %v1317 = vshrl.u32 %v1316, 7
        %v1318 = vsub.s32 %v1315, %v1317
        %v1319 = vrot.slane %v1161, %v1318
        %v1320 = vcombine.high %v1319, %v1319
        %v1321 = vcombine.high %v1143, %v1143
        %v1323 = vunpack.c.l.s4 1983009808
        %v1324 = vunpack.c.0.s8 %v1323
        %v1325 = vlaneseq
        %v1326 = vshrl.u32 %v1325, 7
        %v1327 = vsub.s32 %v1324, %v1326
        %v1328 = vrot.slane %v1143, %v1327
        %v1330 = vunpack.c.l.s4 1983009808
        %v1331 = vunpack.c.0.s8 %v1330
        %v1332 = vlaneseq
        %v1333 = vshrl.u32 %v1332, 7
        %v1334 = vsub.s32 %v1331, %v1333
        %v1335 = vrot.slane %v1321, %v1334
        %v1336 = vcombine.high %v1328, %v1328
        %v1337 = vcombine.high %v1335, %v1335
        %v1339 = vunpack.c.l.s4 1983009808
        %v1340 = vunpack.c.0.s8 %v1339
        %v1341 = vlaneseq
        %v1342 = vshrl.u32 %v1341, 7
        %v1343 = vsub.s32 %v1340, %v1342
        %v1344 = vrot.slane %v1160, %v1343
        %v1345 = vcombine.high %v1344, %v1344
        %v1346 = vcombine.high %v1144, %v1144
        %v1348 = vunpack.c.l.s4 1983009808
        %v1349 = vunpack.c.0.s8 %v1348
        %v1350 = vlaneseq
        %v1351 = vshrl.u32 %v1350, 7
        %v1352 = vsub.s32 %v1349, %v1351
        %v1353 = vrot.slane %v1144, %v1352
        %v1355 = vunpack.c.l.s4 1983009808
        %v1356 = vunpack.c.0.s8 %v1355
        %v1357 = vlaneseq
        %v1358 = vshrl.u32 %v1357, 7
        %v1359 = vsub.s32 %v1356, %v1358
        %v1360 = vrot.slane %v1346, %v1359
        %v1361 = vcombine.high %v1353, %v1353
        %v1362 = vcombine.high %v1360, %v1360
        %v1364 = vunpack.c.l.s4 1983009808
        %v1365 = vunpack.c.0.s8 %v1364
        %v1366 = vlaneseq
        %v1367 = vshrl.u32 %v1366, 7
        %v1368 = vsub.s32 %v1365, %v1367
        %v1369 = vrot.slane %v1162, %v1368
        %v1370 = vcombine.high %v1369, %v1369
        %v1371 = vcombine.high %v1195, %v1195
        %v1373 = vunpack.c.l.s4 1983009808
        %v1374 = vunpack.c.0.s8 %v1373
        %v1375 = vlaneseq
        %v1376 = vshrl.u32 %v1375, 7
        %v1377 = vsub.s32 %v1374, %v1376
        %v1378 = vrot.slane %v1195, %v1377
        %v1380 = vunpack.c.l.s4 1983009808
        %v1381 = vunpack.c.0.s8 %v1380
        %v1382 = vlaneseq
        %v1383 = vshrl.u32 %v1382, 7
        %v1384 = vsub.s32 %v1381, %v1383
        %v1385 = vrot.slane %v1371, %v1384
        %v1386 = vcombine.high %v1378, %v1378
        %v1387 = vcombine.high %v1385, %v1385
        %v1389 = vunpack.c.l.s4 1983009808
        %v1390 = vunpack.c.0.s8 %v1389
        %v1391 = vlaneseq
        %v1392 = vshrl.u32 %v1391, 7
        %v1393 = vsub.s32 %v1390, %v1392
        %v1394 = vrot.slane %v1207, %v1393
        %v1395 = vcombine.high %v1394, %v1394
        %v1396 = vcombine.high %v1196, %v1196
        %v1398 = vunpack.c.l.s4 1983009808
        %v1399 = vunpack.c.0.s8 %v1398
        %v1400 = vlaneseq
        %v1401 = vshrl.u32 %v1400, 7
        %v1402 = vsub.s32 %v1399, %v1401
        %v1403 = vrot.slane %v1196, %v1402
        %v1405 = vunpack.c.l.s4 1983009808
        %v1406 = vunpack.c.0.s8 %v1405
        %v1407 = vlaneseq
        %v1408 = vshrl.u32 %v1407, 7
        %v1409 = vsub.s32 %v1406, %v1408
        %v1410 = vrot.slane %v1396, %v1409
        %v1411 = vcombine.high %v1403, %v1403
        %v1412 = vcombine.high %v1410, %v1410
        %v1414 = vunpack.c.l.s4 1983009808
        %v1415 = vunpack.c.0.s8 %v1414
        %v1416 = vlaneseq
        %v1417 = vshrl.u32 %v1416, 7
        %v1418 = vsub.s32 %v1415, %v1417
        %v1419 = vrot.slane %v1215, %v1418
        %v1420 = vcombine.high %v1419, %v1419
        %v1421 = vcombine.high %v1197, %v1197
        %v1423 = vunpack.c.l.s4 1983009808
        %v1424 = vunpack.c.0.s8 %v1423
        %v1425 = vlaneseq
        %v1426 = vshrl.u32 %v1425, 7
        %v1427 = vsub.s32 %v1424, %v1426
        %v1428 = vrot.slane %v1197, %v1427
        %v1430 = vunpack.c.l.s4 1983009808
        %v1431 = vunpack.c.0.s8 %v1430
        %v1432 = vlaneseq
        %v1433 = vshrl.u32 %v1432, 7
        %v1434 = vsub.s32 %v1431, %v1433
        %v1435 = vrot.slane %v1421, %v1434
        %v1436 = vcombine.high %v1428, %v1428
        %v1437 = vcombine.high %v1435, %v1435
        %v1439 = vunpack.c.l.s4 1983009808
        %v1440 = vunpack.c.0.s8 %v1439
        %v1441 = vlaneseq
        %v1442 = vshrl.u32 %v1441, 7
        %v1443 = vsub.s32 %v1440, %v1442
        %v1444 = vrot.slane %v1214, %v1443
        %v1445 = vcombine.high %v1444, %v1444
        %v1446 = vcombine.high %v1198, %v1198
        %v1448 = vunpack.c.l.s4 1983009808
        %v1449 = vunpack.c.0.s8 %v1448
        %v1450 = vlaneseq
        %v1451 = vshrl.u32 %v1450, 7
        %v1452 = vsub.s32 %v1449, %v1451
        %v1453 = vrot.slane %v1198, %v1452
        %v1455 = vunpack.c.l.s4 1983009808
        %v1456 = vunpack.c.0.s8 %v1455
        %v1457 = vlaneseq
        %v1458 = vshrl.u32 %v1457, 7
        %v1459 = vsub.s32 %v1456, %v1458
        %v1460 = vrot.slane %v1446, %v1459
        %v1461 = vcombine.high %v1453, %v1453
        %v1462 = vcombine.high %v1460, %v1460
        %v1464 = vunpack.c.l.s4 1983009808
        %v1465 = vunpack.c.0.s8 %v1464
        %v1466 = vlaneseq
        %v1467 = vshrl.u32 %v1466, 7
        %v1468 = vsub.s32 %v1465, %v1467
        %v1469 = vrot.slane %v1216, %v1468
        %v1470 = vcombine.high %v1469, %v1469
        %v1471 = vcombine.high %v1249, %v1249
        %v1473 = vunpack.c.l.s4 1983009808
        %v1474 = vunpack.c.0.s8 %v1473
        %v1475 = vlaneseq
        %v1476 = vshrl.u32 %v1475, 7
        %v1477 = vsub.s32 %v1474, %v1476
        %v1478 = vrot.slane %v1249, %v1477
        %v1480 = vunpack.c.l.s4 1983009808
        %v1481 = vunpack.c.0.s8 %v1480
        %v1482 = vlaneseq
        %v1483 = vshrl.u32 %v1482, 7
        %v1484 = vsub.s32 %v1481, %v1483
        %v1485 = vrot.slane %v1471, %v1484
        %v1486 = vcombine.high %v1478, %v1478
        %v1487 = vcombine.high %v1485, %v1485
        %v1489 = vunpack.c.l.s4 1983009808
        %v1490 = vunpack.c.0.s8 %v1489
        %v1491 = vlaneseq
        %v1492 = vshrl.u32 %v1491, 7
        %v1493 = vsub.s32 %v1490, %v1492
        %v1494 = vrot.slane %v1261, %v1493
        %v1495 = vcombine.high %v1494, %v1494
        %v1496 = vcombine.high %v1250, %v1250
        %v1498 = vunpack.c.l.s4 1983009808
        %v1499 = vunpack.c.0.s8 %v1498
        %v1500 = vlaneseq
        %v1501 = vshrl.u32 %v1500, 7
        %v1502 = vsub.s32 %v1499, %v1501
        %v1503 = vrot.slane %v1250, %v1502
        %v1505 = vunpack.c.l.s4 1983009808
        %v1506 = vunpack.c.0.s8 %v1505
        %v1507 = vlaneseq
        %v1508 = vshrl.u32 %v1507, 7
        %v1509 = vsub.s32 %v1506, %v1508
        %v1510 = vrot.slane %v1496, %v1509
        %v1511 = vcombine.high %v1503, %v1503
        %v1512 = vcombine.high %v1510, %v1510
        %v1514 = vunpack.c.l.s4 1983009808
        %v1515 = vunpack.c.0.s8 %v1514
        %v1516 = vlaneseq
        %v1517 = vshrl.u32 %v1516, 7
        %v1518 = vsub.s32 %v1515, %v1517
        %v1519 = vrot.slane %v1269, %v1518
        %v1520 = vcombine.high %v1519, %v1519
        %v1521 = vcombine.high %v1251, %v1251
        %v1523 = vunpack.c.l.s4 1983009808
        %v1524 = vunpack.c.0.s8 %v1523
        %v1525 = vlaneseq
        %v1526 = vshrl.u32 %v1525, 7
        %v1527 = vsub.s32 %v1524, %v1526
        %v1528 = vrot.slane %v1251, %v1527
        %v1530 = vunpack.c.l.s4 1983009808
        %v1531 = vunpack.c.0.s8 %v1530
        %v1532 = vlaneseq
        %v1533 = vshrl.u32 %v1532, 7
        %v1534 = vsub.s32 %v1531, %v1533
        %v1535 = vrot.slane %v1521, %v1534
        %v1536 = vcombine.high %v1528, %v1528
        %v1537 = vcombine.high %v1535, %v1535
        %v1539 = vunpack.c.l.s4 1983009808
        %v1540 = vunpack.c.0.s8 %v1539
        %v1541 = vlaneseq
        %v1542 = vshrl.u32 %v1541, 7
        %v1543 = vsub.s32 %v1540, %v1542
        %v1544 = vrot.slane %v1268, %v1543
        %v1545 = vcombine.high %v1544, %v1544
        %v1546 = vcombine.high %v1252, %v1252
        %v1548 = vunpack.c.l.s4 1983009808
        %v1549 = vunpack.c.0.s8 %v1548
        %v1550 = vlaneseq
        %v1551 = vshrl.u32 %v1550, 7
        %v1552 = vsub.s32 %v1549, %v1551
        %v1553 = vrot.slane %v1252, %v1552
        %v1555 = vunpack.c.l.s4 1983009808
        %v1556 = vunpack.c.0.s8 %v1555
        %v1557 = vlaneseq
        %v1558 = vshrl.u32 %v1557, 7
        %v1559 = vsub.s32 %v1556, %v1558
        %v1560 = vrot.slane %v1546, %v1559
        %v1561 = vcombine.high %v1553, %v1553
        %v1562 = vcombine.high %v1560, %v1560
        %v1564 = vunpack.c.l.s4 1983009808
        %v1565 = vunpack.c.0.s8 %v1564
        %v1566 = vlaneseq
        %v1567 = vshrl.u32 %v1566, 7
        %v1568 = vsub.s32 %v1565, %v1567
        %v1569 = vrot.slane %v1270, %v1568
        %v1570 = vcombine.high %v1569, %v1569
        %vm1643 = vcmask 1041408
        %v1644 = vsel %vm1643, %v1278, -inf
        %v1645 = vrot.slane %v1644, 4
        %v1646 = vmax.f32 %v1644, %v1645
        %v1647 = vrot.slane %v1646, 2
        %v1648 = vmax.f32 %v1646, %v1647
        %v1649 = vrot.slane %v1648, 1
        %v1650 = vmax.f32 %v1648, %v1649
        %v1651 = vsel %vm1643, %v1286, -inf
        %v1652 = vrot.slane %v1651, 4
        %v1653 = vmax.f32 %v1651, %v1652
        %v1654 = vrot.slane %v1653, 2
        %v1655 = vmax.f32 %v1653, %v1654
        %v1656 = vrot.slane %v1655, 1
        %v1657 = vmax.f32 %v1655, %v1656
        %v1658 = vsel %vm1643, %v1285, -inf
        %v1659 = vrot.slane %v1658, 4
        %v1660 = vmax.f32 %v1658, %v1659
        %v1661 = vrot.slane %v1660, 2
        %v1662 = vmax.f32 %v1660, %v1661
        %v1663 = vrot.slane %v1662, 1
        %v1664 = vmax.f32 %v1662, %v1663
        %v1665 = vsel %vm1643, %v1287, -inf
        %v1666 = vrot.slane %v1665, 4
        %v1667 = vmax.f32 %v1665, %v1666
        %v1668 = vrot.slane %v1667, 2
        %v1669 = vmax.f32 %v1667, %v1668
        %v1670 = vrot.slane %v1669, 1
        %v1671 = vmax.f32 %v1669, %v1670
        %v1672 = vsel %vm1643, %v1294, -inf
        %v1673 = vrot.slane %v1672, 4
        %v1674 = vmax.f32 %v1672, %v1673
        %v1675 = vrot.slane %v1674, 2
        %v1676 = vmax.f32 %v1674, %v1675
        %v1677 = vrot.slane %v1676, 1
        %v1678 = vmax.f32 %v1676, %v1677
        %v1679 = vsel %vm1643, %v1295, -inf
        %v1680 = vrot.slane %v1679, 4
        %v1681 = vmax.f32 %v1679, %v1680
        %v1682 = vrot.slane %v1681, 2
        %v1683 = vmax.f32 %v1681, %v1682
        %v1684 = vrot.slane %v1683, 1
        %v1685 = vmax.f32 %v1683, %v1684
        %v1686 = vsel %vm1643, %v1303, -inf
        %v1687 = vrot.slane %v1686, 4
        %v1688 = vmax.f32 %v1686, %v1687
        %v1689 = vrot.slane %v1688, 2
        %v1690 = vmax.f32 %v1688, %v1689
        %v1691 = vrot.slane %v1690, 1
        %v1692 = vmax.f32 %v1690, %v1691
        %v1693 = vsel %vm1643, %v1311, -inf
        %v1694 = vrot.slane %v1693, 4
        %v1695 = vmax.f32 %v1693, %v1694
        %v1696 = vrot.slane %v1695, 2
        %v1697 = vmax.f32 %v1695, %v1696
        %v1698 = vrot.slane %v1697, 1
        %v1699 = vmax.f32 %v1697, %v1698
        %v1700 = vsel %vm1643, %v1310, -inf
        %v1701 = vrot.slane %v1700, 4
        %v1702 = vmax.f32 %v1700, %v1701
        %v1703 = vrot.slane %v1702, 2
        %v1704 = vmax.f32 %v1702, %v1703
        %v1705 = vrot.slane %v1704, 1
        %v1706 = vmax.f32 %v1704, %v1705
        %v1707 = vsel %vm1643, %v1312, -inf
        %v1708 = vrot.slane %v1707, 4
        %v1709 = vmax.f32 %v1707, %v1708
        %v1710 = vrot.slane %v1709, 2
        %v1711 = vmax.f32 %v1709, %v1710
        %v1712 = vrot.slane %v1711, 1
        %v1713 = vmax.f32 %v1711, %v1712
        %v1714 = vsel %vm1643, %v1319, -inf
        %v1715 = vrot.slane %v1714, 4
        %v1716 = vmax.f32 %v1714, %v1715
        %v1717 = vrot.slane %v1716, 2
        %v1718 = vmax.f32 %v1716, %v1717
        %v1719 = vrot.slane %v1718, 1
        %v1720 = vmax.f32 %v1718, %v1719
        %v1721 = vsel %vm1643, %v1320, -inf
        %v1722 = vrot.slane %v1721, 4
        %v1723 = vmax.f32 %v1721, %v1722
        %v1724 = vrot.slane %v1723, 2
        %v1725 = vmax.f32 %v1723, %v1724
        %v1726 = vrot.slane %v1725, 1
        %v1727 = vmax.f32 %v1725, %v1726
        %v1728 = vsel %vm1643, %v1328, -inf
        %v1729 = vrot.slane %v1728, 4
        %v1730 = vmax.f32 %v1728, %v1729
        %v1731 = vrot.slane %v1730, 2
        %v1732 = vmax.f32 %v1730, %v1731
        %v1733 = vrot.slane %v1732, 1
        %v1734 = vmax.f32 %v1732, %v1733
        %v1735 = vsel %vm1643, %v1336, -inf
        %v1736 = vrot.slane %v1735, 4
        %v1737 = vmax.f32 %v1735, %v1736
        %v1738 = vrot.slane %v1737, 2
        %v1739 = vmax.f32 %v1737, %v1738
        %v1740 = vrot.slane %v1739, 1
        %v1741 = vmax.f32 %v1739, %v1740
        %v1742 = vsel %vm1643, %v1335, -inf
        %v1743 = vrot.slane %v1742, 4
        %v1744 = vmax.f32 %v1742, %v1743
        %v1745 = vrot.slane %v1744, 2
        %v1746 = vmax.f32 %v1744, %v1745
        %v1747 = vrot.slane %v1746, 1
        %v1748 = vmax.f32 %v1746, %v1747
        %v1749 = vsel %vm1643, %v1337, -inf
        %v1750 = vrot.slane %v1749, 4
        %v1751 = vmax.f32 %v1749, %v1750
        %v1752 = vrot.slane %v1751, 2
        %v1753 = vmax.f32 %v1751, %v1752
        %v1754 = vrot.slane %v1753, 1
        %v1755 = vmax.f32 %v1753, %v1754
        %v1756 = vsel %vm1643, %v1344, -inf
        %v1757 = vrot.slane %v1756, 4
        %v1758 = vmax.f32 %v1756, %v1757
        %v1759 = vrot.slane %v1758, 2
        %v1760 = vmax.f32 %v1758, %v1759
        %v1761 = vrot.slane %v1760, 1
        %v1762 = vmax.f32 %v1760, %v1761
        %v1763 = vsel %vm1643, %v1345, -inf
        %v1764 = vrot.slane %v1763, 4
        %v1765 = vmax.f32 %v1763, %v1764
        %v1766 = vrot.slane %v1765, 2
        %v1767 = vmax.f32 %v1765, %v1766
        %v1768 = vrot.slane %v1767, 1
        %v1769 = vmax.f32 %v1767, %v1768
        %v1770 = vsel %vm1643, %v1353, -inf
        %v1771 = vrot.slane %v1770, 4
        %v1772 = vmax.f32 %v1770, %v1771
        %v1773 = vrot.slane %v1772, 2
        %v1774 = vmax.f32 %v1772, %v1773
        %v1775 = vrot.slane %v1774, 1
        %v1776 = vmax.f32 %v1774, %v1775
        %v1777 = vsel %vm1643, %v1361, -inf
        %v1778 = vrot.slane %v1777, 4
        %v1779 = vmax.f32 %v1777, %v1778
        %v1780 = vrot.slane %v1779, 2
        %v1781 = vmax.f32 %v1779, %v1780
        %v1782 = vrot.slane %v1781, 1
        %v1783 = vmax.f32 %v1781, %v1782
        %v1784 = vsel %vm1643, %v1360, -inf
        %v1785 = vrot.slane %v1784, 4
        %v1786 = vmax.f32 %v1784, %v1785
        %v1787 = vrot.slane %v1786, 2
        %v1788 = vmax.f32 %v1786, %v1787
        %v1789 = vrot.slane %v1788, 1
        %v1790 = vmax.f32 %v1788, %v1789
        %v1791 = vsel %vm1643, %v1362, -inf
        %v1792 = vrot.slane %v1791, 4
        %v1793 = vmax.f32 %v1791, %v1792
        %v1794 = vrot.slane %v1793, 2
        %v1795 = vmax.f32 %v1793, %v1794
        %v1796 = vrot.slane %v1795, 1
        %v1797 = vmax.f32 %v1795, %v1796
        %v1798 = vsel %vm1643, %v1369, -inf
        %v1799 = vrot.slane %v1798, 4
        %v1800 = vmax.f32 %v1798, %v1799
        %v1801 = vrot.slane %v1800, 2
        %v1802 = vmax.f32 %v1800, %v1801
        %v1803 = vrot.slane %v1802, 1
        %v1804 = vmax.f32 %v1802, %v1803
        %v1805 = vsel %vm1643, %v1370, -inf
        %v1806 = vrot.slane %v1805, 4
        %v1807 = vmax.f32 %v1805, %v1806
        %v1808 = vrot.slane %v1807, 2
        %v1809 = vmax.f32 %v1807, %v1808
        %v1810 = vrot.slane %v1809, 1
        %v1811 = vmax.f32 %v1809, %v1810
        %v1812 = vsel %vm1643, %v1378, -inf
        %v1813 = vrot.slane %v1812, 4
        %v1814 = vmax.f32 %v1812, %v1813
        %v1815 = vrot.slane %v1814, 2
        %v1816 = vmax.f32 %v1814, %v1815
        %v1817 = vrot.slane %v1816, 1
        %v1818 = vmax.f32 %v1816, %v1817
        %v1819 = vsel %vm1643, %v1386, -inf
        %v1820 = vrot.slane %v1819, 4
        %v1821 = vmax.f32 %v1819, %v1820
        %v1822 = vrot.slane %v1821, 2
        %v1823 = vmax.f32 %v1821, %v1822
        %v1824 = vrot.slane %v1823, 1
        %v1825 = vmax.f32 %v1823, %v1824
        %v1826 = vsel %vm1643, %v1385, -inf
        %v1827 = vrot.slane %v1826, 4
        %v1828 = vmax.f32 %v1826, %v1827
        %v1829 = vrot.slane %v1828, 2
        %v1830 = vmax.f32 %v1828, %v1829
        %v1831 = vrot.slane %v1830, 1
        %v1832 = vmax.f32 %v1830, %v1831
        %v1833 = vsel %vm1643, %v1387, -inf
        %v1834 = vrot.slane %v1833, 4
        %v1835 = vmax.f32 %v1833, %v1834
        %v1836 = vrot.slane %v1835, 2
        %v1837 = vmax.f32 %v1835, %v1836
        %v1838 = vrot.slane %v1837, 1
        %v1839 = vmax.f32 %v1837, %v1838
        %v1840 = vsel %vm1643, %v1394, -inf
        %v1841 = vrot.slane %v1840, 4
        %v1842 = vmax.f32 %v1840, %v1841
        %v1843 = vrot.slane %v1842, 2
        %v1844 = vmax.f32 %v1842, %v1843
        %v1845 = vrot.slane %v1844, 1
        %v1846 = vmax.f32 %v1844, %v1845
        %v1847 = vsel %vm1643, %v1395, -inf
        %v1848 = vrot.slane %v1847, 4
        %v1849 = vmax.f32 %v1847, %v1848
        %v1850 = vrot.slane %v1849, 2
        %v1851 = vmax.f32 %v1849, %v1850
        %v1852 = vrot.slane %v1851, 1
        %v1853 = vmax.f32 %v1851, %v1852
        %v1854 = vsel %vm1643, %v1403, -inf
        %v1855 = vrot.slane %v1854, 4
        %v1856 = vmax.f32 %v1854, %v1855
        %v1857 = vrot.slane %v1856, 2
        %v1858 = vmax.f32 %v1856, %v1857
        %v1859 = vrot.slane %v1858, 1
        %v1860 = vmax.f32 %v1858, %v1859
        %v1861 = vsel %vm1643, %v1411, -inf
        %v1862 = vrot.slane %v1861, 4
        %v1863 = vmax.f32 %v1861, %v1862
        %v1864 = vrot.slane %v1863, 2
        %v1865 = vmax.f32 %v1863, %v1864
        %v1866 = vrot.slane %v1865, 1
        %v1867 = vmax.f32 %v1865, %v1866
        %v1868 = vsel %vm1643, %v1410, -inf
        %v1869 = vrot.slane %v1868, 4
        %v1870 = vmax.f32 %v1868, %v1869
        %v1871 = vrot.slane %v1870, 2
        %v1872 = vmax.f32 %v1870, %v1871
        %v1873 = vrot.slane %v1872, 1
        %v1874 = vmax.f32 %v1872, %v1873
        %v1875 = vsel %vm1643, %v1412, -inf
        %v1876 = vrot.slane %v1875, 4
        %v1877 = vmax.f32 %v1875, %v1876
        %v1878 = vrot.slane %v1877, 2
        %v1879 = vmax.f32 %v1877, %v1878
        %v1880 = vrot.slane %v1879, 1
        %v1881 = vmax.f32 %v1879, %v1880
        %v1882 = vsel %vm1643, %v1419, -inf
        %v1883 = vrot.slane %v1882, 4
        %v1884 = vmax.f32 %v1882, %v1883
        %v1885 = vrot.slane %v1884, 2
        %v1886 = vmax.f32 %v1884, %v1885
        %v1887 = vrot.slane %v1886, 1
        %v1888 = vmax.f32 %v1886, %v1887
        %v1889 = vsel %vm1643, %v1420, -inf
        %v1890 = vrot.slane %v1889, 4
        %v1891 = vmax.f32 %v1889, %v1890
        %v1892 = vrot.slane %v1891, 2
        %v1893 = vmax.f32 %v1891, %v1892
        %v1894 = vrot.slane %v1893, 1
        %v1895 = vmax.f32 %v1893, %v1894
        %v1896 = vsel %vm1643, %v1428, -inf
        %v1897 = vrot.slane %v1896, 4
        %v1898 = vmax.f32 %v1896, %v1897
        %v1899 = vrot.slane %v1898, 2
        %v1900 = vmax.f32 %v1898, %v1899
        %v1901 = vrot.slane %v1900, 1
        %v1902 = vmax.f32 %v1900, %v1901
        %v1903 = vsel %vm1643, %v1436, -inf
        %v1904 = vrot.slane %v1903, 4
        %v1905 = vmax.f32 %v1903, %v1904
        %v1906 = vrot.slane %v1905, 2
        %v1907 = vmax.f32 %v1905, %v1906
        %v1908 = vrot.slane %v1907, 1
        %v1909 = vmax.f32 %v1907, %v1908
        %v1910 = vsel %vm1643, %v1435, -inf
        %v1911 = vrot.slane %v1910, 4
        %v1912 = vmax.f32 %v1910, %v1911
        %v1913 = vrot.slane %v1912, 2
        %v1914 = vmax.f32 %v1912, %v1913
        %v1915 = vrot.slane %v1914, 1
        %v1916 = vmax.f32 %v1914, %v1915
        %v1917 = vsel %vm1643, %v1437, -inf
        %v1918 = vrot.slane %v1917, 4
        %v1919 = vmax.f32 %v1917, %v1918
        %v1920 = vrot.slane %v1919, 2
        %v1921 = vmax.f32 %v1919, %v1920
        %v1922 = vrot.slane %v1921, 1
        %v1923 = vmax.f32 %v1921, %v1922
        %v1924 = vsel %vm1643, %v1444, -inf
        %v1925 = vrot.slane %v1924, 4
        %v1926 = vmax.f32 %v1924, %v1925
        %v1927 = vrot.slane %v1926, 2
        %v1928 = vmax.f32 %v1926, %v1927
        %v1929 = vrot.slane %v1928, 1
        %v1930 = vmax.f32 %v1928, %v1929
        %v1931 = vsel %vm1643, %v1445, -inf
        %v1932 = vrot.slane %v1931, 4
        %v1933 = vmax.f32 %v1931, %v1932
        %v1934 = vrot.slane %v1933, 2
        %v1935 = vmax.f32 %v1933, %v1934
        %v1936 = vrot.slane %v1935, 1
        %v1937 = vmax.f32 %v1935, %v1936
        %v1938 = vsel %vm1643, %v1453, -inf
        %v1939 = vrot.slane %v1938, 4
        %v1940 = vmax.f32 %v1938, %v1939
        %v1941 = vrot.slane %v1940, 2
        %v1942 = vmax.f32 %v1940, %v1941
        %v1943 = vrot.slane %v1942, 1
        %v1944 = vmax.f32 %v1942, %v1943
        %v1945 = vsel %vm1643, %v1461, -inf
        %v1946 = vrot.slane %v1945, 4
        %v1947 = vmax.f32 %v1945, %v1946
        %v1948 = vrot.slane %v1947, 2
        %v1949 = vmax.f32 %v1947, %v1948
        %v1950 = vrot.slane %v1949, 1
        %v1951 = vmax.f32 %v1949, %v1950
        %v1952 = vsel %vm1643, %v1460, -inf
        %v1953 = vrot.slane %v1952, 4
        %v1954 = vmax.f32 %v1952, %v1953
        %v1955 = vrot.slane %v1954, 2
        %v1956 = vmax.f32 %v1954, %v1955
        %v1957 = vrot.slane %v1956, 1
        %v1958 = vmax.f32 %v1956, %v1957
        %v1959 = vsel %vm1643, %v1462, -inf
        %v1960 = vrot.slane %v1959, 4
        %v1961 = vmax.f32 %v1959, %v1960
        %v1962 = vrot.slane %v1961, 2
        %v1963 = vmax.f32 %v1961, %v1962
        %v1964 = vrot.slane %v1963, 1
        %v1965 = vmax.f32 %v1963, %v1964
        %v1966 = vsel %vm1643, %v1469, -inf
        %v1967 = vrot.slane %v1966, 4
        %v1968 = vmax.f32 %v1966, %v1967
        %v1969 = vrot.slane %v1968, 2
        %v1970 = vmax.f32 %v1968, %v1969
        %v1971 = vrot.slane %v1970, 1
        %v1972 = vmax.f32 %v1970, %v1971
        %v1973 = vsel %vm1643, %v1470, -inf
        %v1974 = vrot.slane %v1973, 4
        %v1975 = vmax.f32 %v1973, %v1974
        %v1976 = vrot.slane %v1975, 2
        %v1977 = vmax.f32 %v1975, %v1976
        %v1978 = vrot.slane %v1977, 1
        %v1979 = vmax.f32 %v1977, %v1978
        %v1980 = vsel %vm1643, %v1478, -inf
        %v1981 = vrot.slane %v1980, 4
        %v1982 = vmax.f32 %v1980, %v1981
        %v1983 = vrot.slane %v1982, 2
        %v1984 = vmax.f32 %v1982, %v1983
        %v1985 = vrot.slane %v1984, 1
        %v1986 = vmax.f32 %v1984, %v1985
        %v1987 = vsel %vm1643, %v1486, -inf
        %v1988 = vrot.slane %v1987, 4
        %v1989 = vmax.f32 %v1987, %v1988
        %v1990 = vrot.slane %v1989, 2
        %v1991 = vmax.f32 %v1989, %v1990
        %v1992 = vrot.slane %v1991, 1
        %v1993 = vmax.f32 %v1991, %v1992
        %v1994 = vsel %vm1643, %v1485, -inf
        %v1995 = vrot.slane %v1994, 4
        %v1996 = vmax.f32 %v1994, %v1995
        %v1997 = vrot.slane %v1996, 2
        %v1998 = vmax.f32 %v1996, %v1997
        %v1999 = vrot.slane %v1998, 1
        %v2000 = vmax.f32 %v1998, %v1999
        %v2001 = vsel %vm1643, %v1487, -inf
        %v2002 = vrot.slane %v2001, 4
        %v2003 = vmax.f32 %v2001, %v2002
        %v2004 = vrot.slane %v2003, 2
        %v2005 = vmax.f32 %v2003, %v2004
        %v2006 = vrot.slane %v2005, 1
        %v2007 = vmax.f32 %v2005, %v2006
        %v2008 = vsel %vm1643, %v1494, -inf
        %v2009 = vrot.slane %v2008, 4
        %v2010 = vmax.f32 %v2008, %v2009
        %v2011 = vrot.slane %v2010, 2
        %v2012 = vmax.f32 %v2010, %v2011
        %v2013 = vrot.slane %v2012, 1
        %v2014 = vmax.f32 %v2012, %v2013
        %v2015 = vsel %vm1643, %v1495, -inf
        %v2016 = vrot.slane %v2015, 4
        %v2017 = vmax.f32 %v2015, %v2016
        %v2018 = vrot.slane %v2017, 2
        %v2019 = vmax.f32 %v2017, %v2018
        %v2020 = vrot.slane %v2019, 1
        %v2021 = vmax.f32 %v2019, %v2020
        %v2022 = vsel %vm1643, %v1503, -inf
        %v2023 = vrot.slane %v2022, 4
        %v2024 = vmax.f32 %v2022, %v2023
        %v2025 = vrot.slane %v2024, 2
        %v2026 = vmax.f32 %v2024, %v2025
        %v2027 = vrot.slane %v2026, 1
        %v2028 = vmax.f32 %v2026, %v2027
        %v2029 = vsel %vm1643, %v1511, -inf
        %v2030 = vrot.slane %v2029, 4
        %v2031 = vmax.f32 %v2029, %v2030
        %v2032 = vrot.slane %v2031, 2
        %v2033 = vmax.f32 %v2031, %v2032
        %v2034 = vrot.slane %v2033, 1
        %v2035 = vmax.f32 %v2033, %v2034
        %v2036 = vsel %vm1643, %v1510, -inf
        %v2037 = vrot.slane %v2036, 4
        %v2038 = vmax.f32 %v2036, %v2037
        %v2039 = vrot.slane %v2038, 2
        %v2040 = vmax.f32 %v2038, %v2039
        %v2041 = vrot.slane %v2040, 1
        %v2042 = vmax.f32 %v2040, %v2041
        %v2043 = vsel %vm1643, %v1512, -inf
        %v2044 = vrot.slane %v2043, 4
        %v2045 = vmax.f32 %v2043, %v2044
        %v2046 = vrot.slane %v2045, 2
        %v2047 = vmax.f32 %v2045, %v2046
        %v2048 = vrot.slane %v2047, 1
        %v2049 = vmax.f32 %v2047, %v2048
        %v2050 = vsel %vm1643, %v1519, -inf
        %v2051 = vrot.slane %v2050, 4
        %v2052 = vmax.f32 %v2050, %v2051
        %v2053 = vrot.slane %v2052, 2
        %v2054 = vmax.f32 %v2052, %v2053
        %v2055 = vrot.slane %v2054, 1
        %v2056 = vmax.f32 %v2054, %v2055
        %v2057 = vsel %vm1643, %v1520, -inf
        %v2058 = vrot.slane %v2057, 4
        %v2059 = vmax.f32 %v2057, %v2058
        %v2060 = vrot.slane %v2059, 2
        %v2061 = vmax.f32 %v2059, %v2060
        %v2062 = vrot.slane %v2061, 1
        %v2063 = vmax.f32 %v2061, %v2062
        %v2064 = vsel %vm1643, %v1528, -inf
        %v2065 = vrot.slane %v2064, 4
        %v2066 = vmax.f32 %v2064, %v2065
        %v2067 = vrot.slane %v2066, 2
        %v2068 = vmax.f32 %v2066, %v2067
        %v2069 = vrot.slane %v2068, 1
        %v2070 = vmax.f32 %v2068, %v2069
        %v2071 = vsel %vm1643, %v1536, -inf
        %v2072 = vrot.slane %v2071, 4
        %v2073 = vmax.f32 %v2071, %v2072
        %v2074 = vrot.slane %v2073, 2
        %v2075 = vmax.f32 %v2073, %v2074
        %v2076 = vrot.slane %v2075, 1
        %v2077 = vmax.f32 %v2075, %v2076
        %v2078 = vsel %vm1643, %v1535, -inf
        %v2079 = vrot.slane %v2078, 4
        %v2080 = vmax.f32 %v2078, %v2079
        %v2081 = vrot.slane %v2080, 2
        %v2082 = vmax.f32 %v2080, %v2081
        %v2083 = vrot.slane %v2082, 1
        %v2084 = vmax.f32 %v2082, %v2083
        %v2085 = vsel %vm1643, %v1537, -inf
        %v2086 = vrot.slane %v2085, 4
        %v2087 = vmax.f32 %v2085, %v2086
        %v2088 = vrot.slane %v2087, 2
        %v2089 = vmax.f32 %v2087, %v2088
        %v2090 = vrot.slane %v2089, 1
        %v2091 = vmax.f32 %v2089, %v2090
        %v2092 = vsel %vm1643, %v1544, -inf
        %v2093 = vrot.slane %v2092, 4
        %v2094 = vmax.f32 %v2092, %v2093
        %v2095 = vrot.slane %v2094, 2
        %v2096 = vmax.f32 %v2094, %v2095
        %v2097 = vrot.slane %v2096, 1
        %v2098 = vmax.f32 %v2096, %v2097
        %v2099 = vsel %vm1643, %v1545, -inf
        %v2100 = vrot.slane %v2099, 4
        %v2101 = vmax.f32 %v2099, %v2100
        %v2102 = vrot.slane %v2101, 2
        %v2103 = vmax.f32 %v2101, %v2102
        %v2104 = vrot.slane %v2103, 1
        %v2105 = vmax.f32 %v2103, %v2104
        %v2106 = vsel %vm1643, %v1553, -inf
        %v2107 = vrot.slane %v2106, 4
        %v2108 = vmax.f32 %v2106, %v2107
        %v2109 = vrot.slane %v2108, 2
        %v2110 = vmax.f32 %v2108, %v2109
        %v2111 = vrot.slane %v2110, 1
        %v2112 = vmax.f32 %v2110, %v2111
        %v2113 = vsel %vm1643, %v1561, -inf
        %v2114 = vrot.slane %v2113, 4
        %v2115 = vmax.f32 %v2113, %v2114
        %v2116 = vrot.slane %v2115, 2
        %v2117 = vmax.f32 %v2115, %v2116
        %v2118 = vrot.slane %v2117, 1
        %v2119 = vmax.f32 %v2117, %v2118
        %v2120 = vsel %vm1643, %v1560, -inf
        %v2121 = vrot.slane %v2120, 4
        %v2122 = vmax.f32 %v2120, %v2121
        %v2123 = vrot.slane %v2122, 2
        %v2124 = vmax.f32 %v2122, %v2123
        %v2125 = vrot.slane %v2124, 1
        %v2126 = vmax.f32 %v2124, %v2125
        %v2127 = vsel %vm1643, %v1562, -inf
        %v2128 = vrot.slane %v2127, 4
        %v2129 = vmax.f32 %v2127, %v2128
        %v2130 = vrot.slane %v2129, 2
        %v2131 = vmax.f32 %v2129, %v2130
        %v2132 = vrot.slane %v2131, 1
        %v2133 = vmax.f32 %v2131, %v2132
        %v2134 = vsel %vm1643, %v1569, -inf
        %v2135 = vrot.slane %v2134, 4
        %v2136 = vmax.f32 %v2134, %v2135
        %v2137 = vrot.slane %v2136, 2
        %v2138 = vmax.f32 %v2136, %v2137
        %v2139 = vrot.slane %v2138, 1
        %v2140 = vmax.f32 %v2138, %v2139
        %v2141 = vsel %vm1643, %v1570, -inf
        %v2142 = vrot.slane %v2141, 4
        %v2143 = vmax.f32 %v2141, %v2142
        %v2144 = vrot.slane %v2143, 2
        %v2145 = vmax.f32 %v2143, %v2144
        %v2146 = vrot.slane %v2145, 1
        %v2147 = vmax.f32 %v2145, %v2146
        %v2148 = vmax.f32 %v1650, %v1671
        %v2149 = vmax.f32 %v1657, %v1678
        %v2150 = vmax.f32 %v1664, %v1685
        %v2151 = vmax.f32 %v1692, %v1713
        %v2152 = vmax.f32 %v1699, %v1720
        %v2153 = vmax.f32 %v1706, %v1727
        %v2154 = vmax.f32 %v1734, %v1755
        %v2155 = vmax.f32 %v1741, %v1762
        %v2156 = vmax.f32 %v1748, %v1769
        %v2157 = vmax.f32 %v1776, %v1797
        %v2158 = vmax.f32 %v1783, %v1804
        %v2159 = vmax.f32 %v1790, %v1811
        %v2160 = vmax.f32 %v1818, %v1839
        %v2161 = vmax.f32 %v1825, %v1846
        %v2162 = vmax.f32 %v1832, %v1853
        %v2163 = vmax.f32 %v1860, %v1881
        %v2164 = vmax.f32 %v1867, %v1888
        %v2165 = vmax.f32 %v1874, %v1895
        %v2166 = vmax.f32 %v1902, %v1923
        %v2167 = vmax.f32 %v1909, %v1930
        %v2168 = vmax.f32 %v1916, %v1937
        %v2169 = vmax.f32 %v1944, %v1965
        %v2170 = vmax.f32 %v1951, %v1972
        %v2171 = vmax.f32 %v1958, %v1979
        %v2172 = vmax.f32 %v1986, %v2007
        %v2173 = vmax.f32 %v1993, %v2014
        %v2174 = vmax.f32 %v2000, %v2021
        %v2175 = vmax.f32 %v2028, %v2049
        %v2176 = vmax.f32 %v2035, %v2056
        %v2177 = vmax.f32 %v2042, %v2063
        %v2178 = vmax.f32 %v2070, %v2091
        %v2179 = vmax.f32 %v2077, %v2098
        %v2180 = vmax.f32 %v2084, %v2105
        %v2181 = vmax.f32 %v2112, %v2133
        %v2182 = vmax.f32 %v2119, %v2140
        %v2183 = vmax.f32 %v2126, %v2147
        %v2184 = vpack.c.bf16 %v2148, %v2148
        %v2185 = vpack.c.bf16 %v2149, %v2149
        %v2186 = vpack.c.bf16 %v2150, %v2150
        %v2187 = vpack.c.bf16 %v2151, %v2151
        %v2188 = vpack.c.bf16 %v2152, %v2152
        %v2189 = vpack.c.bf16 %v2153, %v2153
        %v2190 = vpack.c.bf16 %v2154, %v2154
        %v2191 = vpack.c.bf16 %v2155, %v2155
        %v2192 = vpack.c.bf16 %v2156, %v2156
        %v2193 = vpack.c.bf16 %v2157, %v2157
        %v2194 = vpack.c.bf16 %v2158, %v2158
        %v2195 = vpack.c.bf16 %v2159, %v2159
        %v2196 = vpack.c.bf16 %v2160, %v2160
        %v2197 = vpack.c.bf16 %v2161, %v2161
        %v2198 = vpack.c.bf16 %v2162, %v2162
        %v2199 = vpack.c.bf16 %v2163, %v2163
        %v2200 = vpack.c.bf16 %v2164, %v2164
        %v2201 = vpack.c.bf16 %v2165, %v2165
        %v2202 = vpack.c.bf16 %v2166, %v2166
        %v2203 = vpack.c.bf16 %v2167, %v2167
        %v2204 = vpack.c.bf16 %v2168, %v2168
        %v2205 = vpack.c.bf16 %v2169, %v2169
        %v2206 = vpack.c.bf16 %v2170, %v2170
        %v2207 = vpack.c.bf16 %v2171, %v2171
        %v2208 = vpack.c.bf16 %v2172, %v2172
        %v2209 = vpack.c.bf16 %v2173, %v2173
        %v2210 = vpack.c.bf16 %v2174, %v2174
        %v2211 = vpack.c.bf16 %v2175, %v2175
        %v2212 = vpack.c.bf16 %v2176, %v2176
        %v2213 = vpack.c.bf16 %v2177, %v2177
        %v2214 = vpack.c.bf16 %v2178, %v2178
        %v2215 = vpack.c.bf16 %v2179, %v2179
        %v2216 = vpack.c.bf16 %v2180, %v2180
        %v2217 = vpack.c.bf16 %v2181, %v2181
        %v2218 = vpack.c.bf16 %v2182, %v2182
        %v2219 = vpack.c.bf16 %v2183, %v2183
        %v2244 = vunpack.c.l.b16 %v2184
        %v2245 = vunpack.c.l.b16 %v2185
        %v2246 = vunpack.c.l.b16 %v2186
        %v2247 = vunpack.c.l.b16 %v2187
        %v2248 = vunpack.c.l.b16 %v2188
        %v2249 = vunpack.c.l.b16 %v2189
        %v2250 = vunpack.c.l.b16 %v2190
        %v2251 = vunpack.c.l.b16 %v2191
        %v2252 = vunpack.c.l.b16 %v2192
        %v2253 = vunpack.c.l.b16 %v2193
        %v2254 = vunpack.c.l.b16 %v2194
        %v2255 = vunpack.c.l.b16 %v2195
        %v2256 = vunpack.c.l.b16 %v2196
        %v2257 = vunpack.c.l.b16 %v2197
        %v2258 = vunpack.c.l.b16 %v2198
        %v2259 = vunpack.c.l.b16 %v2199
        %v2260 = vunpack.c.l.b16 %v2200
        %v2261 = vunpack.c.l.b16 %v2201
        %v2262 = vunpack.c.l.b16 %v2202
        %v2263 = vunpack.c.l.b16 %v2203
        %v2264 = vunpack.c.l.b16 %v2204
        %v2265 = vunpack.c.l.b16 %v2205
        %v2266 = vunpack.c.l.b16 %v2206
        %v2267 = vunpack.c.l.b16 %v2207
        %vm2268 = vcmask 1041409
        %v2269 = vsel %vm2268, %v2247, %v2244
        %vm2270 = vcmask 1042434
        %v2271 = vsel %vm2270, %v2250, %v2269
        %vm2272 = vcmask 1043459
        %v2273 = vsel %vm2272, %v2253, %v2271
        %vm2274 = vcmask 1044484
        %v2275 = vsel %vm2274, %v2256, %v2273
        %vm2276 = vcmask 1045509
        %v2277 = vsel %vm2276, %v2259, %v2275
        %vm2278 = vcmask 1046534
        %v2279 = vsel %vm2278, %v2262, %v2277
        %vm2280 = vcmask 1047559
        %v2281 = vsel %vm2280, %v2265, %v2279
        %v2282 = vsel %vm2268, %v2248, %v2245
        %v2283 = vsel %vm2270, %v2251, %v2282
        %v2284 = vsel %vm2272, %v2254, %v2283
        %v2285 = vsel %vm2274, %v2257, %v2284
        %v2286 = vsel %vm2276, %v2260, %v2285
        %v2287 = vsel %vm2278, %v2263, %v2286
        %v2288 = vsel %vm2280, %v2266, %v2287
        %v2289 = vsel %vm2268, %v2249, %v2246
        %v2290 = vsel %vm2270, %v2252, %v2289
        %v2291 = vsel %vm2272, %v2255, %v2290
        %v2292 = vsel %vm2274, %v2258, %v2291
        %v2293 = vsel %vm2276, %v2261, %v2292
        %v2294 = vsel %vm2278, %v2264, %v2293
        %v2295 = vsel %vm2280, %v2267, %v2294
        %v2296 = vpack.c.b16 %v2281, %v2281
        %v2297 = vpack.c.b16 %v2288, %v2288
        %v2298 = vpack.c.b16 %v2295, %v2295
        %v2305 = vunpack.c.l.b16 %v2208
        %v2306 = vunpack.c.l.b16 %v2209
        %v2307 = vunpack.c.l.b16 %v2210
        %v2308 = vsel %vm2268, %v2250, %v2247
        %v2309 = vsel %vm2270, %v2253, %v2308
        %v2310 = vsel %vm2272, %v2256, %v2309
        %v2311 = vsel %vm2274, %v2259, %v2310
        %v2312 = vsel %vm2276, %v2262, %v2311
        %v2313 = vsel %vm2278, %v2265, %v2312
        %v2314 = vsel %vm2280, %v2305, %v2313
        %v2315 = vsel %vm2268, %v2251, %v2248
        %v2316 = vsel %vm2270, %v2254, %v2315
        %v2317 = vsel %vm2272, %v2257, %v2316
        %v2318 = vsel %vm2274, %v2260, %v2317
        %v2319 = vsel %vm2276, %v2263, %v2318
        %v2320 = vsel %vm2278, %v2266, %v2319
        %v2321 = vsel %vm2280, %v2306, %v2320
        %v2322 = vsel %vm2268, %v2252, %v2249
        %v2323 = vsel %vm2270, %v2255, %v2322
        %v2324 = vsel %vm2272, %v2258, %v2323
        %v2325 = vsel %vm2274, %v2261, %v2324
        %v2326 = vsel %vm2276, %v2264, %v2325
        %v2327 = vsel %vm2278, %v2267, %v2326
        %v2328 = vsel %vm2280, %v2307, %v2327
        %v2329 = vpack.c.b16 %v2314, %v2314
        %v2330 = vpack.c.b16 %v2321, %v2321
        %v2331 = vpack.c.b16 %v2328, %v2328
        %v2338 = vunpack.c.l.b16 %v2211
        %v2339 = vunpack.c.l.b16 %v2212
        %v2340 = vunpack.c.l.b16 %v2213
        %v2341 = vsel %vm2268, %v2253, %v2250
        %v2342 = vsel %vm2270, %v2256, %v2341
        %v2343 = vsel %vm2272, %v2259, %v2342
        %v2344 = vsel %vm2274, %v2262, %v2343
        %v2345 = vsel %vm2276, %v2265, %v2344
        %v2346 = vsel %vm2278, %v2305, %v2345
        %v2347 = vsel %vm2280, %v2338, %v2346
        %v2348 = vsel %vm2268, %v2254, %v2251
        %v2349 = vsel %vm2270, %v2257, %v2348
        %v2350 = vsel %vm2272, %v2260, %v2349
        %v2351 = vsel %vm2274, %v2263, %v2350
        %v2352 = vsel %vm2276, %v2266, %v2351
        %v2353 = vsel %vm2278, %v2306, %v2352
        %v2354 = vsel %vm2280, %v2339, %v2353
        %v2355 = vsel %vm2268, %v2255, %v2252
        %v2356 = vsel %vm2270, %v2258, %v2355
        %v2357 = vsel %vm2272, %v2261, %v2356
        %v2358 = vsel %vm2274, %v2264, %v2357
        %v2359 = vsel %vm2276, %v2267, %v2358
        %v2360 = vsel %vm2278, %v2307, %v2359
        %v2361 = vsel %vm2280, %v2340, %v2360
        %v2362 = vpack.c.b16 %v2347, %v2347
        %v2363 = vpack.c.b16 %v2354, %v2354
        %v2364 = vpack.c.b16 %v2361, %v2361
        %v2371 = vunpack.c.l.b16 %v2214
        %v2372 = vunpack.c.l.b16 %v2215
        %v2373 = vunpack.c.l.b16 %v2216
        %v2374 = vsel %vm2268, %v2256, %v2253
        %v2375 = vsel %vm2270, %v2259, %v2374
        %v2376 = vsel %vm2272, %v2262, %v2375
        %v2377 = vsel %vm2274, %v2265, %v2376
        %v2378 = vsel %vm2276, %v2305, %v2377
        %v2379 = vsel %vm2278, %v2338, %v2378
        %v2380 = vsel %vm2280, %v2371, %v2379
        %v2381 = vsel %vm2268, %v2257, %v2254
        %v2382 = vsel %vm2270, %v2260, %v2381
        %v2383 = vsel %vm2272, %v2263, %v2382
        %v2384 = vsel %vm2274, %v2266, %v2383
        %v2385 = vsel %vm2276, %v2306, %v2384
        %v2386 = vsel %vm2278, %v2339, %v2385
        %v2387 = vsel %vm2280, %v2372, %v2386
        %v2388 = vsel %vm2268, %v2258, %v2255
        %v2389 = vsel %vm2270, %v2261, %v2388
        %v2390 = vsel %vm2272, %v2264, %v2389
        %v2391 = vsel %vm2274, %v2267, %v2390
        %v2392 = vsel %vm2276, %v2307, %v2391
        %v2393 = vsel %vm2278, %v2340, %v2392
        %v2394 = vsel %vm2280, %v2373, %v2393
        %v2395 = vpack.c.b16 %v2380, %v2380
        %v2396 = vpack.c.b16 %v2387, %v2387
        %v2397 = vpack.c.b16 %v2394, %v2394
        %v2404 = vunpack.c.l.b16 %v2217
        %v2405 = vunpack.c.l.b16 %v2218
        %v2406 = vunpack.c.l.b16 %v2219
        %v2407 = vsel %vm2268, %v2259, %v2256
        %v2408 = vsel %vm2270, %v2262, %v2407
        %v2409 = vsel %vm2272, %v2265, %v2408
        %v2410 = vsel %vm2274, %v2305, %v2409
        %v2411 = vsel %vm2276, %v2338, %v2410
        %v2412 = vsel %vm2278, %v2371, %v2411
        %v2413 = vsel %vm2280, %v2404, %v2412
        %v2414 = vsel %vm2268, %v2260, %v2257
        %v2415 = vsel %vm2270, %v2263, %v2414
        %v2416 = vsel %vm2272, %v2266, %v2415
        %v2417 = vsel %vm2274, %v2306, %v2416
        %v2418 = vsel %vm2276, %v2339, %v2417
        %v2419 = vsel %vm2278, %v2372, %v2418
        %v2420 = vsel %vm2280, %v2405, %v2419
        %v2421 = vsel %vm2268, %v2261, %v2258
        %v2422 = vsel %vm2270, %v2264, %v2421
        %v2423 = vsel %vm2272, %v2267, %v2422
        %v2424 = vsel %vm2274, %v2307, %v2423
        %v2425 = vsel %vm2276, %v2340, %v2424
        %v2426 = vsel %vm2278, %v2373, %v2425
        %v2427 = vsel %vm2280, %v2406, %v2426
        %v2428 = vpack.c.b16 %v2413, %v2413
        %v2429 = vpack.c.b16 %v2420, %v2420
        %v2430 = vpack.c.b16 %v2427, %v2427
        %v2434 = vld [vmem:[%s4] sm:$0xff]
        %v2435 = vld [vmem:[%s4 + $0x8] sm:$0xff]
        %v2436 = vld [vmem:[%s4 + $0x10] sm:$0xff]
        %v2437 = vld [vmem:[%s4 + $0x18] sm:$0xff]
        %v2438 = vld [vmem:[%s4 + $0x20] sm:$0xff]
        %v2439 = vld [vmem:[%s4 + $0x28] sm:$0xff]
        %v2440 = vld [vmem:[%s4 + $0x30] sm:$0xff]
        %v2441 = vld [vmem:[%s4 + $0x38] sm:$0xff]
        %v2442 = vld [vmem:[%s4 + $0x40] sm:$0xff]
        %v2443 = vld [vmem:[%s4 + $0x48] sm:$0xff]
        %v2444 = vld [vmem:[%s4 + $0x50] sm:$0xff]
        %v2445 = vld [vmem:[%s4 + $0x58] sm:$0xff]
        %v2446 = vld [vmem:[%s4 + $0x60] sm:$0xff]
        %v2447 = vld [vmem:[%s4 + $0x68] sm:$0xff]
        %v2448 = vld [vmem:[%s4 + $0x70] sm:$0xff]
        %v2449 = vld [vmem:[%s4 + $0x78] sm:$0xff]
        %v2450 = vld [vmem:[%s4 + $0x80] sm:$0xff]
        %v2451 = vld [vmem:[%s4 + $0x88] sm:$0xff]
        %v2452 = vld [vmem:[%s4 + $0x90] sm:$0xff]
        %v2453 = vld [vmem:[%s4 + $0x98] sm:$0xff]
        %v2454 = vld [vmem:[%s4 + $0xa0] sm:$0xff]
        %v2455 = vld [vmem:[%s4 + $0xa8] sm:$0xff]
        %v2456 = vld [vmem:[%s4 + $0xb0] sm:$0xff]
        %v2457 = vld [vmem:[%s4 + $0xb8] sm:$0xff]
        %v2458 = vld [vmem:[%s4 + $0xc0] sm:$0xff]
        %v2459 = vld [vmem:[%s4 + $0xc8] sm:$0xff]
        %v2460 = vld [vmem:[%s4 + $0xd0] sm:$0xff]
        %v2461 = vld [vmem:[%s4 + $0xd8] sm:$0xff]
        %v2462 = vld [vmem:[%s4 + $0xe0] sm:$0xff]
        %v2463 = vld [vmem:[%s4 + $0xe8] sm:$0xff]
        %v2464 = vld [vmem:[%s4 + $0xf0] sm:$0xff]
        %v2465 = vld [vmem:[%s4 + $0xf8] sm:$0xff]
        %v2466 = vld [vmem:[%s4 + $0x100] sm:$0xff]
        %v2467 = vld [vmem:[%s4 + $0x108] sm:$0xff]
        %v2468 = vld [vmem:[%s4 + $0x110] sm:$0xff]
        %v2469 = vld [vmem:[%s4 + $0x118] sm:$0xff]
        %v2470 = vld [vmem:[%s4 + $0x120] sm:$0xff]
        %v2471 = vld [vmem:[%s4 + $0x128] sm:$0xff]
        %v2472 = vld [vmem:[%s4 + $0x130] sm:$0xff]
        %v2473 = vld [vmem:[%s4 + $0x138] sm:$0xff]
        %v2474 = vld [vmem:[%s4 + $0x140] sm:$0xff]
        %v2475 = vld [vmem:[%s4 + $0x148] sm:$0xff]
        %v2476 = vld [vmem:[%s4 + $0x150] sm:$0xff]
        %v2477 = vld [vmem:[%s4 + $0x158] sm:$0xff]
        %v2478 = vld [vmem:[%s4 + $0x160] sm:$0xff]
        %v2479 = vld [vmem:[%s4 + $0x168] sm:$0xff]
        %v2480 = vld [vmem:[%s4 + $0x170] sm:$0xff]
        %v2481 = vld [vmem:[%s4 + $0x178] sm:$0xff]
        %v2482 = vld [vmem:[%s4 + $0x180] sm:$0xff]
        %v2483 = vld [vmem:[%s4 + $0x188] sm:$0xff]
        %v2484 = vld [vmem:[%s4 + $0x190] sm:$0xff]
        %v2485 = vld [vmem:[%s4 + $0x198] sm:$0xff]
        %v2486 = vld [vmem:[%s4 + $0x1a0] sm:$0xff]
        %v2487 = vld [vmem:[%s4 + $0x1a8] sm:$0xff]
        %v2488 = vld [vmem:[%s4 + $0x1b0] sm:$0xff]
        %v2489 = vld [vmem:[%s4 + $0x1b8] sm:$0xff]
        %v2490 = vld [vmem:[%s4 + $0x1c0] sm:$0xff]
        %v2491 = vld [vmem:[%s4 + $0x1c8] sm:$0xff]
        %v2492 = vld [vmem:[%s4 + $0x1d0] sm:$0xff]
        %v2493 = vld [vmem:[%s4 + $0x1d8] sm:$0xff]
        %v2494 = vld [vmem:[%s4 + $0x1e0] sm:$0xff]
        %v2495 = vld [vmem:[%s4 + $0x1e8] sm:$0xff]
        %v2496 = vld [vmem:[%s4 + $0x1f0] sm:$0xff]
        %v2497 = vld [vmem:[%s4 + $0x1f8] sm:$0xff]
        %v2498 = vld [vmem:[%s4 + $0x200] sm:$0xff]
        %v2499 = vld [vmem:[%s4 + $0x208] sm:$0xff]
        %v2500 = vld [vmem:[%s4 + $0x210] sm:$0xff]
        %v2501 = vld [vmem:[%s4 + $0x218] sm:$0xff]
        %v2502 = vld [vmem:[%s4 + $0x220] sm:$0xff]
        %v2503 = vld [vmem:[%s4 + $0x228] sm:$0xff]
        %v2504 = vld [vmem:[%s4 + $0x230] sm:$0xff]
        %v2505 = vld [vmem:[%s4 + $0x238] sm:$0xff]
        %v2506 = vld [vmem:[%s4 + $0x240] sm:$0xff]
        %v2507 = vld [vmem:[%s4 + $0x248] sm:$0xff]
        %v2508 = vld [vmem:[%s4 + $0x250] sm:$0xff]
        %v2509 = vld [vmem:[%s4 + $0x258] sm:$0xff]
        %v2510 = vld [vmem:[%s4 + $0x260] sm:$0xff]
        %v2511 = vld [vmem:[%s4 + $0x268] sm:$0xff]
        %v2512 = vld [vmem:[%s4 + $0x270] sm:$0xff]
        %v2513 = vld [vmem:[%s4 + $0x278] sm:$0xff]
        %v2514 = vld [vmem:[%s4 + $0x280] sm:$0xff]
        %v2515 = vld [vmem:[%s4 + $0x288] sm:$0xff]
        %v2516 = vld [vmem:[%s4 + $0x290] sm:$0xff]
        %v2517 = vld [vmem:[%s4 + $0x298] sm:$0xff]
        %v2518 = vld [vmem:[%s4 + $0x2a0] sm:$0xff]
        %v2519 = vld [vmem:[%s4 + $0x2a8] sm:$0xff]
        %v2520 = vld [vmem:[%s4 + $0x2b0] sm:$0xff]
        %v2521 = vld [vmem:[%s4 + $0x2b8] sm:$0xff]
        %v2522 = vld [vmem:[%s4 + $0x2c0] sm:$0xff]
        %v2523 = vld [vmem:[%s4 + $0x2c8] sm:$0xff]
        %v2524 = vld [vmem:[%s4 + $0x2d0] sm:$0xff]
        %v2525 = vld [vmem:[%s4 + $0x2d8] sm:$0xff]
        %v2526 = vld [vmem:[%s4 + $0x2e0] sm:$0xff]
        %v2527 = vld [vmem:[%s4 + $0x2e8] sm:$0xff]
        %v2528 = vld [vmem:[%s4 + $0x2f0] sm:$0xff]
        %v2529 = vld [vmem:[%s4 + $0x2f8] sm:$0xff]
        %v2530 = vld [vmem:[%s4 + $0x300] sm:$0xff]
        %v2531 = vld [vmem:[%s4 + $0x308] sm:$0xff]
        %v2532 = vld [vmem:[%s4 + $0x310] sm:$0xff]
        %v2533 = vld [vmem:[%s4 + $0x318] sm:$0xff]
        %v2534 = vld [vmem:[%s4 + $0x320] sm:$0xff]
        %v2535 = vld [vmem:[%s4 + $0x328] sm:$0xff]
        %v2536 = vld [vmem:[%s4 + $0x330] sm:$0xff]
        %v2537 = vld [vmem:[%s4 + $0x338] sm:$0xff]
        %v2538 = vld [vmem:[%s4 + $0x340] sm:$0xff]
        %v2539 = vld [vmem:[%s4 + $0x348] sm:$0xff]
        %v2540 = vld [vmem:[%s4 + $0x350] sm:$0xff]
        %v2541 = vld [vmem:[%s4 + $0x358] sm:$0xff]
        %v2542 = vld [vmem:[%s4 + $0x360] sm:$0xff]
        %v2543 = vld [vmem:[%s4 + $0x368] sm:$0xff]
        %v2544 = vld [vmem:[%s4 + $0x370] sm:$0xff]
        %v2545 = vld [vmem:[%s4 + $0x378] sm:$0xff]
        %v2546 = vld [vmem:[%s4 + $0x380] sm:$0xff]
        %v2547 = vld [vmem:[%s4 + $0x388] sm:$0xff]
        %v2548 = vld [vmem:[%s4 + $0x390] sm:$0xff]
        %v2549 = vld [vmem:[%s4 + $0x398] sm:$0xff]
        %v2550 = vld [vmem:[%s4 + $0x3a0] sm:$0xff]
        %v2551 = vld [vmem:[%s4 + $0x3a8] sm:$0xff]
        %v2552 = vld [vmem:[%s4 + $0x3b0] sm:$0xff]
        %v2553 = vld [vmem:[%s4 + $0x3b8] sm:$0xff]
        %v2554 = vld [vmem:[%s4 + $0x3c0] sm:$0xff]
        %v2555 = vld [vmem:[%s4 + $0x3c8] sm:$0xff]
        %v2556 = vld [vmem:[%s4 + $0x3d0] sm:$0xff]
        %v2557 = vld [vmem:[%s4 + $0x3d8] sm:$0xff]
        %v2558 = vld [vmem:[%s4 + $0x3e0] sm:$0xff]
        %v2559 = vld [vmem:[%s4 + $0x3e8] sm:$0xff]
        %v2560 = vld [vmem:[%s4 + $0x3f0] sm:$0xff]
        %v2561 = vld [vmem:[%s4 + $0x3f8] sm:$0xff]
        %v2562 = vld [vmem:[%s4 + $0x400] sm:$0xff]
        %v2563 = vld [vmem:[%s4 + $0x408] sm:$0xff]
        %v2564 = vld [vmem:[%s4 + $0x410] sm:$0xff]
        %v2565 = vld [vmem:[%s4 + $0x418] sm:$0xff]
        %v2566 = vld [vmem:[%s4 + $0x420] sm:$0xff]
        %v2567 = vld [vmem:[%s4 + $0x428] sm:$0xff]
        %v2568 = vld [vmem:[%s4 + $0x430] sm:$0xff]
        %v2569 = vld [vmem:[%s4 + $0x438] sm:$0xff]
        %v2570 = vld [vmem:[%s4 + $0x440] sm:$0xff]
        %v2571 = vld [vmem:[%s4 + $0x448] sm:$0xff]
        %v2572 = vld [vmem:[%s4 + $0x450] sm:$0xff]
        %v2573 = vld [vmem:[%s4 + $0x458] sm:$0xff]
        %v2574 = vld [vmem:[%s4 + $0x460] sm:$0xff]
        %v2575 = vld [vmem:[%s4 + $0x468] sm:$0xff]
        %v2576 = vld [vmem:[%s4 + $0x470] sm:$0xff]
        %v2577 = vld [vmem:[%s4 + $0x478] sm:$0xff]
        %v2578 = vld [vmem:[%s4 + $0x480] sm:$0xff]
        %v2579 = vld [vmem:[%s4 + $0x488] sm:$0xff]
        %v2580 = vld [vmem:[%s4 + $0x490] sm:$0xff]
        %v2581 = vld [vmem:[%s4 + $0x498] sm:$0xff]
        %v2582 = vld [vmem:[%s4 + $0x4a0] sm:$0xff]
        %v2583 = vld [vmem:[%s4 + $0x4a8] sm:$0xff]
        %v2584 = vld [vmem:[%s4 + $0x4b0] sm:$0xff]
        %v2585 = vld [vmem:[%s4 + $0x4b8] sm:$0xff]
        %v2586 = vld [vmem:[%s4 + $0x4c0] sm:$0xff]
        %v2587 = vld [vmem:[%s4 + $0x4c8] sm:$0xff]
        %v2588 = vld [vmem:[%s4 + $0x4d0] sm:$0xff]
        %v2589 = vld [vmem:[%s4 + $0x4d8] sm:$0xff]
        %v2590 = vld [vmem:[%s4 + $0x4e0] sm:$0xff]
        %v2591 = vld [vmem:[%s4 + $0x4e8] sm:$0xff]
        %v2592 = vld [vmem:[%s4 + $0x4f0] sm:$0xff]
        %v2593 = vld [vmem:[%s4 + $0x4f8] sm:$0xff]
        %v2594 = vld [vmem:[%s4 + $0x500] sm:$0xff]
        %v2595 = vld [vmem:[%s4 + $0x508] sm:$0xff]
        %v2596 = vld [vmem:[%s4 + $0x510] sm:$0xff]
        %v2597 = vld [vmem:[%s4 + $0x518] sm:$0xff]
        %v2598 = vld [vmem:[%s4 + $0x520] sm:$0xff]
        %v2599 = vld [vmem:[%s4 + $0x528] sm:$0xff]
        %v2600 = vld [vmem:[%s4 + $0x530] sm:$0xff]
        %v2601 = vld [vmem:[%s4 + $0x538] sm:$0xff]
        %v2602 = vld [vmem:[%s4 + $0x540] sm:$0xff]
        %v2603 = vld [vmem:[%s4 + $0x548] sm:$0xff]
        %v2604 = vld [vmem:[%s4 + $0x550] sm:$0xff]
        %v2605 = vld [vmem:[%s4 + $0x558] sm:$0xff]
        %v2606 = vld [vmem:[%s4 + $0x560] sm:$0xff]
        %v2607 = vld [vmem:[%s4 + $0x568] sm:$0xff]
        %v2608 = vld [vmem:[%s4 + $0x570] sm:$0xff]
        %v2609 = vld [vmem:[%s4 + $0x578] sm:$0xff]
        %v2610 = vld [vmem:[%s4 + $0x580] sm:$0xff]
        %v2611 = vld [vmem:[%s4 + $0x588] sm:$0xff]
        %v2612 = vld [vmem:[%s4 + $0x590] sm:$0xff]
        %v2613 = vld [vmem:[%s4 + $0x598] sm:$0xff]
        %v2614 = vld [vmem:[%s4 + $0x5a0] sm:$0xff]
        %v2615 = vld [vmem:[%s4 + $0x5a8] sm:$0xff]
        %v2616 = vld [vmem:[%s4 + $0x5b0] sm:$0xff]
        %v2617 = vld [vmem:[%s4 + $0x5b8] sm:$0xff]
        %v2618 = vld [vmem:[%s4 + $0x5c0] sm:$0xff]
        %v2619 = vld [vmem:[%s4 + $0x5c8] sm:$0xff]
        %v2620 = vld [vmem:[%s4 + $0x5d0] sm:$0xff]
        %v2621 = vld [vmem:[%s4 + $0x5d8] sm:$0xff]
        %v2622 = vld [vmem:[%s4 + $0x5e0] sm:$0xff]
        %v2623 = vld [vmem:[%s4 + $0x5e8] sm:$0xff]
        %v2624 = vld [vmem:[%s4 + $0x5f0] sm:$0xff]
        %v2625 = vld [vmem:[%s4 + $0x5f8] sm:$0xff]
        %v2626 = vld [vmem:[%s4 + $0x600] sm:$0xff]
        %v2627 = vld [vmem:[%s4 + $0x608] sm:$0xff]
        %v2628 = vld [vmem:[%s4 + $0x610] sm:$0xff]
        %v2629 = vld [vmem:[%s4 + $0x618] sm:$0xff]
        %v2630 = vld [vmem:[%s4 + $0x620] sm:$0xff]
        %v2631 = vld [vmem:[%s4 + $0x628] sm:$0xff]
        %v2632 = vld [vmem:[%s4 + $0x630] sm:$0xff]
        %v2633 = vld [vmem:[%s4 + $0x638] sm:$0xff]
        %v2634 = vld [vmem:[%s4 + $0x640] sm:$0xff]
        %v2635 = vld [vmem:[%s4 + $0x648] sm:$0xff]
        %v2636 = vld [vmem:[%s4 + $0x650] sm:$0xff]
        %v2637 = vld [vmem:[%s4 + $0x658] sm:$0xff]
        %v2638 = vld [vmem:[%s4 + $0x660] sm:$0xff]
        %v2639 = vld [vmem:[%s4 + $0x668] sm:$0xff]
        %v2640 = vld [vmem:[%s4 + $0x670] sm:$0xff]
        %v2641 = vld [vmem:[%s4 + $0x678] sm:$0xff]
        %v2642 = vld [vmem:[%s4 + $0x680] sm:$0xff]
        %v2643 = vld [vmem:[%s4 + $0x688] sm:$0xff]
        %v2644 = vld [vmem:[%s4 + $0x690] sm:$0xff]
        %v2645 = vld [vmem:[%s4 + $0x698] sm:$0xff]
        %v2646 = vld [vmem:[%s4 + $0x6a0] sm:$0xff]
        %v2647 = vld [vmem:[%s4 + $0x6a8] sm:$0xff]
        %v2648 = vld [vmem:[%s4 + $0x6b0] sm:$0xff]
        %v2649 = vld [vmem:[%s4 + $0x6b8] sm:$0xff]
        %v2650 = vld [vmem:[%s4 + $0x6c0] sm:$0xff]
        %v2651 = vld [vmem:[%s4 + $0x6c8] sm:$0xff]
        %v2652 = vld [vmem:[%s4 + $0x6d0] sm:$0xff]
        %v2653 = vld [vmem:[%s4 + $0x6d8] sm:$0xff]
        %v2654 = vld [vmem:[%s4 + $0x6e0] sm:$0xff]
        %v2655 = vld [vmem:[%s4 + $0x6e8] sm:$0xff]
        %v2656 = vld [vmem:[%s4 + $0x6f0] sm:$0xff]
        %v2657 = vld [vmem:[%s4 + $0x6f8] sm:$0xff]
        %v2658 = vld [vmem:[%s4 + $0x700] sm:$0xff]
        %v2659 = vld [vmem:[%s4 + $0x708] sm:$0xff]
        %v2660 = vld [vmem:[%s4 + $0x710] sm:$0xff]
        %v2661 = vld [vmem:[%s4 + $0x718] sm:$0xff]
        %v2662 = vld [vmem:[%s4 + $0x720] sm:$0xff]
        %v2663 = vld [vmem:[%s4 + $0x728] sm:$0xff]
        %v2664 = vld [vmem:[%s4 + $0x730] sm:$0xff]
        %v2665 = vld [vmem:[%s4 + $0x738] sm:$0xff]
        %v2666 = vld [vmem:[%s4 + $0x740] sm:$0xff]
        %v2667 = vld [vmem:[%s4 + $0x748] sm:$0xff]
        %v2668 = vld [vmem:[%s4 + $0x750] sm:$0xff]
        %v2669 = vld [vmem:[%s4 + $0x758] sm:$0xff]
        %v2670 = vld [vmem:[%s4 + $0x760] sm:$0xff]
        %v2671 = vld [vmem:[%s4 + $0x768] sm:$0xff]
        %v2672 = vld [vmem:[%s4 + $0x770] sm:$0xff]
        %v2673 = vld [vmem:[%s4 + $0x778] sm:$0xff]
        %v2674 = vld [vmem:[%s4 + $0x780] sm:$0xff]
        %v2675 = vld [vmem:[%s4 + $0x788] sm:$0xff]
        %v2676 = vld [vmem:[%s4 + $0x790] sm:$0xff]
        %v2677 = vld [vmem:[%s4 + $0x798] sm:$0xff]
        %v2678 = vld [vmem:[%s4 + $0x7a0] sm:$0xff]
        %v2679 = vld [vmem:[%s4 + $0x7a8] sm:$0xff]
        %v2680 = vld [vmem:[%s4 + $0x7b0] sm:$0xff]
        %v2681 = vld [vmem:[%s4 + $0x7b8] sm:$0xff]
        %v2682 = vld [vmem:[%s4 + $0x7c0] sm:$0xff]
        %v2683 = vld [vmem:[%s4 + $0x7c8] sm:$0xff]
        %v2684 = vld [vmem:[%s4 + $0x7d0] sm:$0xff]
        %v2685 = vld [vmem:[%s4 + $0x7d8] sm:$0xff]
        %v2686 = vld [vmem:[%s4 + $0x7e0] sm:$0xff]
        %v2687 = vld [vmem:[%s4 + $0x7e8] sm:$0xff]
        %v2688 = vld [vmem:[%s4 + $0x7f0] sm:$0xff]
        %v2689 = vld [vmem:[%s4 + $0x7f8] sm:$0xff]
        %v2690 = vld [vmem:[%s4 + $0x800] sm:$0xff]
        %v2691 = vld [vmem:[%s4 + $0x808] sm:$0xff]
        %v2692 = vld [vmem:[%s4 + $0x810] sm:$0xff]
        %v2693 = vld [vmem:[%s4 + $0x818] sm:$0xff]
        %v2694 = vld [vmem:[%s4 + $0x820] sm:$0xff]
        %v2695 = vld [vmem:[%s4 + $0x828] sm:$0xff]
        %v2696 = vld [vmem:[%s4 + $0x830] sm:$0xff]
        %v2697 = vld [vmem:[%s4 + $0x838] sm:$0xff]
        %v2698 = vld [vmem:[%s4 + $0x840] sm:$0xff]
        %v2699 = vld [vmem:[%s4 + $0x848] sm:$0xff]
        %v2700 = vld [vmem:[%s4 + $0x850] sm:$0xff]
        %v2701 = vld [vmem:[%s4 + $0x858] sm:$0xff]
        %v2702 = vld [vmem:[%s4 + $0x860] sm:$0xff]
        %v2703 = vld [vmem:[%s4 + $0x868] sm:$0xff]
        %v2704 = vld [vmem:[%s4 + $0x870] sm:$0xff]
        %v2705 = vld [vmem:[%s4 + $0x878] sm:$0xff]
        %v2706 = vld [vmem:[%s4 + $0x880] sm:$0xff]
        %v2707 = vld [vmem:[%s4 + $0x888] sm:$0xff]
        %v2708 = vld [vmem:[%s4 + $0x890] sm:$0xff]
        %v2709 = vld [vmem:[%s4 + $0x898] sm:$0xff]
        %v2710 = vld [vmem:[%s4 + $0x8a0] sm:$0xff]
        %v2711 = vld [vmem:[%s4 + $0x8a8] sm:$0xff]
        %v2712 = vld [vmem:[%s4 + $0x8b0] sm:$0xff]
        %v2713 = vld [vmem:[%s4 + $0x8b8] sm:$0xff]
        %v2714 = vld [vmem:[%s4 + $0x8c0] sm:$0xff]
        %v2715 = vld [vmem:[%s4 + $0x8c8] sm:$0xff]
        %v2716 = vld [vmem:[%s4 + $0x8d0] sm:$0xff]
        %v2717 = vld [vmem:[%s4 + $0x8d8] sm:$0xff]
        %v2718 = vld [vmem:[%s4 + $0x8e0] sm:$0xff]
        %v2719 = vld [vmem:[%s4 + $0x8e8] sm:$0xff]
        %v2720 = vld [vmem:[%s4 + $0x8f0] sm:$0xff]
        %v2721 = vld [vmem:[%s4 + $0x8f8] sm:$0xff]
        %v2722 = vld [vmem:[%s4 + $0x900] sm:$0xff]
        %v2723 = vld [vmem:[%s4 + $0x908] sm:$0xff]
        %v2724 = vld [vmem:[%s4 + $0x910] sm:$0xff]
        %v2725 = vld [vmem:[%s4 + $0x918] sm:$0xff]
        %v2726 = vld [vmem:[%s4 + $0x920] sm:$0xff]
        %v2727 = vld [vmem:[%s4 + $0x928] sm:$0xff]
        %v2728 = vld [vmem:[%s4 + $0x930] sm:$0xff]
        %v2729 = vld [vmem:[%s4 + $0x938] sm:$0xff]
        %v2730 = vld [vmem:[%s4 + $0x940] sm:$0xff]
        %v2731 = vld [vmem:[%s4 + $0x948] sm:$0xff]
        %v2732 = vld [vmem:[%s4 + $0x950] sm:$0xff]
        %v2733 = vld [vmem:[%s4 + $0x958] sm:$0xff]
        %v2734 = vld [vmem:[%s4 + $0x960] sm:$0xff]
        %v2735 = vld [vmem:[%s4 + $0x968] sm:$0xff]
        %v2736 = vld [vmem:[%s4 + $0x970] sm:$0xff]
        %v2737 = vld [vmem:[%s4 + $0x978] sm:$0xff]
        %v2738 = vld [vmem:[%s4 + $0x980] sm:$0xff]
        %v2739 = vld [vmem:[%s4 + $0x988] sm:$0xff]
        %v2740 = vld [vmem:[%s4 + $0x990] sm:$0xff]
        %v2741 = vld [vmem:[%s4 + $0x998] sm:$0xff]
        %v2742 = vld [vmem:[%s4 + $0x9a0] sm:$0xff]
        %v2743 = vld [vmem:[%s4 + $0x9a8] sm:$0xff]
        %v2744 = vld [vmem:[%s4 + $0x9b0] sm:$0xff]
        %v2745 = vld [vmem:[%s4 + $0x9b8] sm:$0xff]
        %v2746 = vld [vmem:[%s4 + $0x9c0] sm:$0xff]
        %v2747 = vld [vmem:[%s4 + $0x9c8] sm:$0xff]
        %v2748 = vld [vmem:[%s4 + $0x9d0] sm:$0xff]
        %v2749 = vld [vmem:[%s4 + $0x9d8] sm:$0xff]
        %v2750 = vld [vmem:[%s4 + $0x9e0] sm:$0xff]
        %v2751 = vld [vmem:[%s4 + $0x9e8] sm:$0xff]
        %v2752 = vld [vmem:[%s4 + $0x9f0] sm:$0xff]
        %v2753 = vld [vmem:[%s4 + $0x9f8] sm:$0xff]
        %v2754 = vld [vmem:[%s4 + $0xa00] sm:$0xff]
        %v2755 = vld [vmem:[%s4 + $0xa08] sm:$0xff]
        %v2756 = vld [vmem:[%s4 + $0xa10] sm:$0xff]
        %v2757 = vld [vmem:[%s4 + $0xa18] sm:$0xff]
        %v2758 = vld [vmem:[%s4 + $0xa20] sm:$0xff]
        %v2759 = vld [vmem:[%s4 + $0xa28] sm:$0xff]
        %v2760 = vld [vmem:[%s4 + $0xa30] sm:$0xff]
        %v2761 = vld [vmem:[%s4 + $0xa38] sm:$0xff]
        %v2762 = vld [vmem:[%s4 + $0xa40] sm:$0xff]
        %v2763 = vld [vmem:[%s4 + $0xa48] sm:$0xff]
        %v2764 = vld [vmem:[%s4 + $0xa50] sm:$0xff]
        %v2765 = vld [vmem:[%s4 + $0xa58] sm:$0xff]
        %v2766 = vld [vmem:[%s4 + $0xa60] sm:$0xff]
        %v2767 = vld [vmem:[%s4 + $0xa68] sm:$0xff]
        %v2768 = vld [vmem:[%s4 + $0xa70] sm:$0xff]
        %v2769 = vld [vmem:[%s4 + $0xa78] sm:$0xff]
        %v2770 = vld [vmem:[%s4 + $0xa80] sm:$0xff]
        %v2771 = vld [vmem:[%s4 + $0xa88] sm:$0xff]
        %v2772 = vld [vmem:[%s4 + $0xa90] sm:$0xff]
        %v2773 = vld [vmem:[%s4 + $0xa98] sm:$0xff]
        %v2774 = vld [vmem:[%s4 + $0xaa0] sm:$0xff]
        %v2775 = vld [vmem:[%s4 + $0xaa8] sm:$0xff]
        %v2776 = vld [vmem:[%s4 + $0xab0] sm:$0xff]
        %v2777 = vld [vmem:[%s4 + $0xab8] sm:$0xff]
        %v2778 = vld [vmem:[%s4 + $0xac0] sm:$0xff]
        %v2779 = vld [vmem:[%s4 + $0xac8] sm:$0xff]
        %v2780 = vld [vmem:[%s4 + $0xad0] sm:$0xff]
        %v2781 = vld [vmem:[%s4 + $0xad8] sm:$0xff]
        %v2782 = vld [vmem:[%s4 + $0xae0] sm:$0xff]
        %v2783 = vld [vmem:[%s4 + $0xae8] sm:$0xff]
        %v2784 = vld [vmem:[%s4 + $0xaf0] sm:$0xff]
        %v2785 = vld [vmem:[%s4 + $0xaf8] sm:$0xff]
        %v2786 = vld [vmem:[%s4 + $0xb00] sm:$0xff]
        %v2787 = vld [vmem:[%s4 + $0xb08] sm:$0xff]
        %v2788 = vld [vmem:[%s4 + $0xb10] sm:$0xff]
        %v2789 = vld [vmem:[%s4 + $0xb18] sm:$0xff]
        %v2790 = vld [vmem:[%s4 + $0xb20] sm:$0xff]
        %v2791 = vld [vmem:[%s4 + $0xb28] sm:$0xff]
        %v2792 = vld [vmem:[%s4 + $0xb30] sm:$0xff]
        %v2793 = vld [vmem:[%s4 + $0xb38] sm:$0xff]
        %v2794 = vld [vmem:[%s4 + $0xb40] sm:$0xff]
        %v2795 = vld [vmem:[%s4 + $0xb48] sm:$0xff]
        %v2796 = vld [vmem:[%s4 + $0xb50] sm:$0xff]
        %v2797 = vld [vmem:[%s4 + $0xb58] sm:$0xff]
        %v2798 = vld [vmem:[%s4 + $0xb60] sm:$0xff]
        %v2799 = vld [vmem:[%s4 + $0xb68] sm:$0xff]
        %v2800 = vld [vmem:[%s4 + $0xb70] sm:$0xff]
        %v2801 = vld [vmem:[%s4 + $0xb78] sm:$0xff]
        %v2802 = vld [vmem:[%s4 + $0xb80] sm:$0xff]
        %v2803 = vld [vmem:[%s4 + $0xb88] sm:$0xff]
        %v2804 = vld [vmem:[%s4 + $0xb90] sm:$0xff]
        %v2805 = vld [vmem:[%s4 + $0xb98] sm:$0xff]
        %v2806 = vld [vmem:[%s4 + $0xba0] sm:$0xff]
        %v2807 = vld [vmem:[%s4 + $0xba8] sm:$0xff]
        %v2808 = vld [vmem:[%s4 + $0xbb0] sm:$0xff]
        %v2809 = vld [vmem:[%s4 + $0xbb8] sm:$0xff]
        %v2810 = vld [vmem:[%s4 + $0xbc0] sm:$0xff]
        %v2811 = vld [vmem:[%s4 + $0xbc8] sm:$0xff]
        %v2812 = vld [vmem:[%s4 + $0xbd0] sm:$0xff]
        %v2813 = vld [vmem:[%s4 + $0xbd8] sm:$0xff]
        %v2814 = vld [vmem:[%s4 + $0xbe0] sm:$0xff]
        %v2815 = vld [vmem:[%s4 + $0xbe8] sm:$0xff]
        %v2816 = vld [vmem:[%s4 + $0xbf0] sm:$0xff]
        %v2817 = vld [vmem:[%s4 + $0xbf8] sm:$0xff]
        %v2818 = vld [vmem:[%s4 + $0xc00] sm:$0xff]
        %v2819 = vld [vmem:[%s4 + $0xc08] sm:$0xff]
        %v2820 = vld [vmem:[%s4 + $0xc10] sm:$0xff]
        %v2821 = vld [vmem:[%s4 + $0xc18] sm:$0xff]
        %v2822 = vld [vmem:[%s4 + $0xc20] sm:$0xff]
        %v2823 = vld [vmem:[%s4 + $0xc28] sm:$0xff]
        %v2824 = vld [vmem:[%s4 + $0xc30] sm:$0xff]
        %v2825 = vld [vmem:[%s4 + $0xc38] sm:$0xff]
        %v2826 = vld [vmem:[%s4 + $0xc40] sm:$0xff]
        %v2827 = vld [vmem:[%s4 + $0xc48] sm:$0xff]
        %v2828 = vld [vmem:[%s4 + $0xc50] sm:$0xff]
        %v2829 = vld [vmem:[%s4 + $0xc58] sm:$0xff]
        %v2830 = vld [vmem:[%s4 + $0xc60] sm:$0xff]
        %v2831 = vld [vmem:[%s4 + $0xc68] sm:$0xff]
        %v2832 = vld [vmem:[%s4 + $0xc70] sm:$0xff]
        %v2833 = vld [vmem:[%s4 + $0xc78] sm:$0xff]
        %v2834 = vld [vmem:[%s4 + $0xc80] sm:$0xff]
        %v2835 = vld [vmem:[%s4 + $0xc88] sm:$0xff]
        %v2836 = vld [vmem:[%s4 + $0xc90] sm:$0xff]
        %v2837 = vld [vmem:[%s4 + $0xc98] sm:$0xff]
        %v2838 = vld [vmem:[%s4 + $0xca0] sm:$0xff]
        %v2839 = vld [vmem:[%s4 + $0xca8] sm:$0xff]
        %v2840 = vld [vmem:[%s4 + $0xcb0] sm:$0xff]
        %v2841 = vld [vmem:[%s4 + $0xcb8] sm:$0xff]
        %v2842 = vld [vmem:[%s4 + $0xcc0] sm:$0xff]
        %v2843 = vld [vmem:[%s4 + $0xcc8] sm:$0xff]
        %v2844 = vld [vmem:[%s4 + $0xcd0] sm:$0xff]
        %v2845 = vld [vmem:[%s4 + $0xcd8] sm:$0xff]
        %v2846 = vld [vmem:[%s4 + $0xce0] sm:$0xff]
        %v2847 = vld [vmem:[%s4 + $0xce8] sm:$0xff]
        %v2848 = vld [vmem:[%s4 + $0xcf0] sm:$0xff]
        %v2849 = vld [vmem:[%s4 + $0xcf8] sm:$0xff]
        %v2850 = vld [vmem:[%s4 + $0xd00] sm:$0xff]
        %v2851 = vld [vmem:[%s4 + $0xd08] sm:$0xff]
        %v2852 = vld [vmem:[%s4 + $0xd10] sm:$0xff]
        %v2853 = vld [vmem:[%s4 + $0xd18] sm:$0xff]
        %v2854 = vld [vmem:[%s4 + $0xd20] sm:$0xff]
        %v2855 = vld [vmem:[%s4 + $0xd28] sm:$0xff]
        %v2856 = vld [vmem:[%s4 + $0xd30] sm:$0xff]
        %v2857 = vld [vmem:[%s4 + $0xd38] sm:$0xff]
        %v2858 = vld [vmem:[%s4 + $0xd40] sm:$0xff]
        %v2859 = vld [vmem:[%s4 + $0xd48] sm:$0xff]
        %v2860 = vld [vmem:[%s4 + $0xd50] sm:$0xff]
        %v2861 = vld [vmem:[%s4 + $0xd58] sm:$0xff]
        %v2862 = vld [vmem:[%s4 + $0xd60] sm:$0xff]
        %v2863 = vld [vmem:[%s4 + $0xd68] sm:$0xff]
        %v2864 = vld [vmem:[%s4 + $0xd70] sm:$0xff]
        %v2865 = vld [vmem:[%s4 + $0xd78] sm:$0xff]
        %v2866 = vld [vmem:[%s4 + $0xd80] sm:$0xff]
        %v2867 = vld [vmem:[%s4 + $0xd88] sm:$0xff]
        %v2868 = vld [vmem:[%s4 + $0xd90] sm:$0xff]
        %v2869 = vld [vmem:[%s4 + $0xd98] sm:$0xff]
        %v2870 = vld [vmem:[%s4 + $0xda0] sm:$0xff]
        %v2871 = vld [vmem:[%s4 + $0xda8] sm:$0xff]
        %v2872 = vld [vmem:[%s4 + $0xdb0] sm:$0xff]
        %v2873 = vld [vmem:[%s4 + $0xdb8] sm:$0xff]
        %v2874 = vld [vmem:[%s4 + $0xdc0] sm:$0xff]
        %v2875 = vld [vmem:[%s4 + $0xdc8] sm:$0xff]
        %v2876 = vld [vmem:[%s4 + $0xdd0] sm:$0xff]
        %v2877 = vld [vmem:[%s4 + $0xdd8] sm:$0xff]
        %v2878 = vld [vmem:[%s4 + $0xde0] sm:$0xff]
        %v2879 = vld [vmem:[%s4 + $0xde8] sm:$0xff]
        %v2880 = vld [vmem:[%s4 + $0xdf0] sm:$0xff]
        %v2881 = vld [vmem:[%s4 + $0xdf8] sm:$0xff]
        %v2882 = vld [vmem:[%s4 + $0xe00] sm:$0xff]
        %v2883 = vld [vmem:[%s4 + $0xe08] sm:$0xff]
        %v2884 = vld [vmem:[%s4 + $0xe10] sm:$0xff]
        %v2885 = vld [vmem:[%s4 + $0xe18] sm:$0xff]
        %v2886 = vld [vmem:[%s4 + $0xe20] sm:$0xff]
        %v2887 = vld [vmem:[%s4 + $0xe28] sm:$0xff]
        %v2888 = vld [vmem:[%s4 + $0xe30] sm:$0xff]
        %v2889 = vld [vmem:[%s4 + $0xe38] sm:$0xff]
        %v2890 = vld [vmem:[%s4 + $0xe40] sm:$0xff]
        %v2891 = vld [vmem:[%s4 + $0xe48] sm:$0xff]
        %v2892 = vld [vmem:[%s4 + $0xe50] sm:$0xff]
        %v2893 = vld [vmem:[%s4 + $0xe58] sm:$0xff]
        %v2894 = vld [vmem:[%s4 + $0xe60] sm:$0xff]
        %v2895 = vld [vmem:[%s4 + $0xe68] sm:$0xff]
        %v2896 = vld [vmem:[%s4 + $0xe70] sm:$0xff]
        %v2897 = vld [vmem:[%s4 + $0xe78] sm:$0xff]
        %v2898 = vld [vmem:[%s4 + $0xe80] sm:$0xff]
        %v2899 = vld [vmem:[%s4 + $0xe88] sm:$0xff]
        %v2900 = vld [vmem:[%s4 + $0xe90] sm:$0xff]
        %v2901 = vld [vmem:[%s4 + $0xe98] sm:$0xff]
        %v2902 = vld [vmem:[%s4 + $0xea0] sm:$0xff]
        %v2903 = vld [vmem:[%s4 + $0xea8] sm:$0xff]
        %v2904 = vld [vmem:[%s4 + $0xeb0] sm:$0xff]
        %v2905 = vld [vmem:[%s4 + $0xeb8] sm:$0xff]
        %v2906 = vld [vmem:[%s4 + $0xec0] sm:$0xff]
        %v2907 = vld [vmem:[%s4 + $0xec8] sm:$0xff]
        %v2908 = vld [vmem:[%s4 + $0xed0] sm:$0xff]
        %v2909 = vld [vmem:[%s4 + $0xed8] sm:$0xff]
        %v2910 = vld [vmem:[%s4 + $0xee0] sm:$0xff]
        %v2911 = vld [vmem:[%s4 + $0xee8] sm:$0xff]
        %v2912 = vld [vmem:[%s4 + $0xef0] sm:$0xff]
        %v2913 = vld [vmem:[%s4 + $0xef8] sm:$0xff]
        %v3394 = vunpack.c.l.b16 %v2434
        %v3395 = vunpack.c.h.b16 %v2434
        %v3396 = vunpack.c.l.b16 %v2435
        %v3397 = vunpack.c.h.b16 %v2435
        %v3398 = vunpack.c.l.b16 %v2436
        %v3399 = vunpack.c.h.b16 %v2436
        %v3400 = vunpack.c.l.b16 %v2437
        %v3401 = vunpack.c.h.b16 %v2437
        %v3402 = vunpack.c.l.b16 %v2438
        %v3403 = vunpack.c.h.b16 %v2438
        %v3404 = vunpack.c.l.b16 %v2439
        %v3405 = vunpack.c.h.b16 %v2439
        %v3406 = vunpack.c.l.b16 %v2440
        %v3407 = vunpack.c.h.b16 %v2440
        %v3408 = vunpack.c.l.b16 %v2441
        %v3409 = vunpack.c.h.b16 %v2441
        %v3410 = vunpack.c.l.b16 %v2442
        %v3411 = vunpack.c.h.b16 %v2442
        %v3412 = vunpack.c.l.b16 %v2443
        %v3413 = vunpack.c.h.b16 %v2443
        %v3414 = vunpack.c.l.b16 %v2444
        %v3415 = vunpack.c.h.b16 %v2444
        %v3416 = vunpack.c.l.b16 %v2445
        %v3417 = vunpack.c.h.b16 %v2445
        %v3418 = vunpack.c.l.b16 %v2446
        %v3419 = vunpack.c.h.b16 %v2446
        %v3420 = vunpack.c.l.b16 %v2447
        %v3421 = vunpack.c.h.b16 %v2447
        %v3422 = vunpack.c.l.b16 %v2448
        %v3423 = vunpack.c.h.b16 %v2448
        %v3424 = vunpack.c.l.b16 %v2449
        %v3425 = vunpack.c.h.b16 %v2449
        %v3426 = vunpack.c.l.b16 %v2450
        %v3427 = vunpack.c.h.b16 %v2450
        %v3428 = vunpack.c.l.b16 %v2451
        %v3429 = vunpack.c.h.b16 %v2451
        %v3430 = vunpack.c.l.b16 %v2452
        %v3431 = vunpack.c.h.b16 %v2452
        %v3432 = vunpack.c.l.b16 %v2453
        %v3433 = vunpack.c.h.b16 %v2453
        %v3434 = vunpack.c.l.b16 %v2454
        %v3435 = vunpack.c.h.b16 %v2454
        %v3436 = vunpack.c.l.b16 %v2455
        %v3437 = vunpack.c.h.b16 %v2455
        %v3438 = vunpack.c.l.b16 %v2456
        %v3439 = vunpack.c.h.b16 %v2456
        %v3440 = vunpack.c.l.b16 %v2457
        %v3441 = vunpack.c.h.b16 %v2457
        %v3442 = vunpack.c.l.b16 %v2458
        %v3443 = vunpack.c.h.b16 %v2458
        %v3444 = vunpack.c.l.b16 %v2459
        %v3445 = vunpack.c.h.b16 %v2459
        %v3446 = vunpack.c.l.b16 %v2460
        %v3447 = vunpack.c.h.b16 %v2460
        %v3448 = vunpack.c.l.b16 %v2461
        %v3449 = vunpack.c.h.b16 %v2461
        %v3450 = vunpack.c.l.b16 %v2462
        %v3451 = vunpack.c.h.b16 %v2462
        %v3452 = vunpack.c.l.b16 %v2463
        %v3453 = vunpack.c.h.b16 %v2463
        %v3454 = vunpack.c.l.b16 %v2464
        %v3455 = vunpack.c.h.b16 %v2464
        %v3456 = vunpack.c.l.b16 %v2465
        %v3457 = vunpack.c.h.b16 %v2465
        %v3458 = vunpack.c.l.b16 %v2466
        %v3459 = vunpack.c.h.b16 %v2466
        %v3460 = vunpack.c.l.b16 %v2467
        %v3461 = vunpack.c.h.b16 %v2467
        %v3462 = vunpack.c.l.b16 %v2468
        %v3463 = vunpack.c.h.b16 %v2468
        %v3464 = vunpack.c.l.b16 %v2469
        %v3465 = vunpack.c.h.b16 %v2469
        %v3466 = vunpack.c.l.b16 %v2470
        %v3467 = vunpack.c.h.b16 %v2470
        %v3468 = vunpack.c.l.b16 %v2471
        %v3469 = vunpack.c.h.b16 %v2471
        %v3470 = vunpack.c.l.b16 %v2472
        %v3471 = vunpack.c.h.b16 %v2472
        %v3472 = vunpack.c.l.b16 %v2473
        %v3473 = vunpack.c.h.b16 %v2473
        %v3474 = vunpack.c.l.b16 %v2474
        %v3475 = vunpack.c.h.b16 %v2474
        %v3476 = vunpack.c.l.b16 %v2475
        %v3477 = vunpack.c.h.b16 %v2475
        %v3478 = vunpack.c.l.b16 %v2476
        %v3479 = vunpack.c.h.b16 %v2476
        %v3480 = vunpack.c.l.b16 %v2477
        %v3481 = vunpack.c.h.b16 %v2477
        %v3482 = vunpack.c.l.b16 %v2478
        %v3483 = vunpack.c.h.b16 %v2478
        %v3484 = vunpack.c.l.b16 %v2479
        %v3485 = vunpack.c.h.b16 %v2479
        %v3486 = vunpack.c.l.b16 %v2480
        %v3487 = vunpack.c.h.b16 %v2480
        %v3488 = vunpack.c.l.b16 %v2481
        %v3489 = vunpack.c.h.b16 %v2481
        %v3490 = vunpack.c.l.b16 %v2482
        %v3491 = vunpack.c.h.b16 %v2482
        %v3492 = vunpack.c.l.b16 %v2483
        %v3493 = vunpack.c.h.b16 %v2483
        %v3494 = vunpack.c.l.b16 %v2484
        %v3495 = vunpack.c.h.b16 %v2484
        %v3496 = vunpack.c.l.b16 %v2485
        %v3497 = vunpack.c.h.b16 %v2485
        %v3498 = vunpack.c.l.b16 %v2486
        %v3499 = vunpack.c.h.b16 %v2486
        %v3500 = vunpack.c.l.b16 %v2487
        %v3501 = vunpack.c.h.b16 %v2487
        %v3502 = vunpack.c.l.b16 %v2488
        %v3503 = vunpack.c.h.b16 %v2488
        %v3504 = vunpack.c.l.b16 %v2489
        %v3505 = vunpack.c.h.b16 %v2489
        %v3506 = vunpack.c.l.b16 %v2490
        %v3507 = vunpack.c.h.b16 %v2490
        %v3508 = vunpack.c.l.b16 %v2491
        %v3509 = vunpack.c.h.b16 %v2491
        %v3510 = vunpack.c.l.b16 %v2492
        %v3511 = vunpack.c.h.b16 %v2492
        %v3512 = vunpack.c.l.b16 %v2493
        %v3513 = vunpack.c.h.b16 %v2493
        %v3514 = vunpack.c.l.b16 %v2494
        %v3515 = vunpack.c.h.b16 %v2494
        %v3516 = vunpack.c.l.b16 %v2495
        %v3517 = vunpack.c.h.b16 %v2495
        %v3518 = vunpack.c.l.b16 %v2496
        %v3519 = vunpack.c.h.b16 %v2496
        %v3520 = vunpack.c.l.b16 %v2497
        %v3521 = vunpack.c.h.b16 %v2497
        %v3522 = vunpack.c.l.b16 %v2498
        %v3523 = vunpack.c.h.b16 %v2498
        %v3524 = vunpack.c.l.b16 %v2499
        %v3525 = vunpack.c.h.b16 %v2499
        %v3526 = vunpack.c.l.b16 %v2500
        %v3527 = vunpack.c.h.b16 %v2500
        %v3528 = vunpack.c.l.b16 %v2501
        %v3529 = vunpack.c.h.b16 %v2501
        %v3530 = vunpack.c.l.b16 %v2502
        %v3531 = vunpack.c.h.b16 %v2502
        %v3532 = vunpack.c.l.b16 %v2503
        %v3533 = vunpack.c.h.b16 %v2503
        %v3534 = vunpack.c.l.b16 %v2504
        %v3535 = vunpack.c.h.b16 %v2504
        %v3536 = vunpack.c.l.b16 %v2505
        %v3537 = vunpack.c.h.b16 %v2505
        %v3538 = vunpack.c.l.b16 %v2506
        %v3539 = vunpack.c.h.b16 %v2506
        %v3540 = vunpack.c.l.b16 %v2507
        %v3541 = vunpack.c.h.b16 %v2507
        %v3542 = vunpack.c.l.b16 %v2508
        %v3543 = vunpack.c.h.b16 %v2508
        %v3544 = vunpack.c.l.b16 %v2509
        %v3545 = vunpack.c.h.b16 %v2509
        %v3546 = vunpack.c.l.b16 %v2510
        %v3547 = vunpack.c.h.b16 %v2510
        %v3548 = vunpack.c.l.b16 %v2511
        %v3549 = vunpack.c.h.b16 %v2511
        %v3550 = vunpack.c.l.b16 %v2512
        %v3551 = vunpack.c.h.b16 %v2512
        %v3552 = vunpack.c.l.b16 %v2513
        %v3553 = vunpack.c.h.b16 %v2513
        %v3554 = vunpack.c.l.b16 %v2514
        %v3555 = vunpack.c.h.b16 %v2514
        %v3556 = vunpack.c.l.b16 %v2515
        %v3557 = vunpack.c.h.b16 %v2515
        %v3558 = vunpack.c.l.b16 %v2516
        %v3559 = vunpack.c.h.b16 %v2516
        %v3560 = vunpack.c.l.b16 %v2517
        %v3561 = vunpack.c.h.b16 %v2517
        %v3562 = vunpack.c.l.b16 %v2518
        %v3563 = vunpack.c.h.b16 %v2518
        %v3564 = vunpack.c.l.b16 %v2519
        %v3565 = vunpack.c.h.b16 %v2519
        %v3566 = vunpack.c.l.b16 %v2520
        %v3567 = vunpack.c.h.b16 %v2520
        %v3568 = vunpack.c.l.b16 %v2521
        %v3569 = vunpack.c.h.b16 %v2521
        %v3570 = vunpack.c.l.b16 %v2522
        %v3571 = vunpack.c.h.b16 %v2522
        %v3572 = vunpack.c.l.b16 %v2523
        %v3573 = vunpack.c.h.b16 %v2523
        %v3574 = vunpack.c.l.b16 %v2524
        %v3575 = vunpack.c.h.b16 %v2524
        %v3576 = vunpack.c.l.b16 %v2525
        %v3577 = vunpack.c.h.b16 %v2525
        %v3578 = vunpack.c.l.b16 %v2526
        %v3579 = vunpack.c.h.b16 %v2526
        %v3580 = vunpack.c.l.b16 %v2527
        %v3581 = vunpack.c.h.b16 %v2527
        %v3582 = vunpack.c.l.b16 %v2528
        %v3583 = vunpack.c.h.b16 %v2528
        %v3584 = vunpack.c.l.b16 %v2529
        %v3585 = vunpack.c.h.b16 %v2529
        %v3586 = vunpack.c.l.b16 %v2530
        %v3587 = vunpack.c.h.b16 %v2530
        %v3588 = vunpack.c.l.b16 %v2531
        %v3589 = vunpack.c.h.b16 %v2531
        %v3590 = vunpack.c.l.b16 %v2532
        %v3591 = vunpack.c.h.b16 %v2532
        %v3592 = vunpack.c.l.b16 %v2533
        %v3593 = vunpack.c.h.b16 %v2533
        %v3594 = vunpack.c.l.b16 %v2534
        %v3595 = vunpack.c.h.b16 %v2534
        %v3596 = vunpack.c.l.b16 %v2535
        %v3597 = vunpack.c.h.b16 %v2535
        %v3598 = vunpack.c.l.b16 %v2536
        %v3599 = vunpack.c.h.b16 %v2536
        %v3600 = vunpack.c.l.b16 %v2537
        %v3601 = vunpack.c.h.b16 %v2537
        %v3602 = vunpack.c.l.b16 %v2538
        %v3603 = vunpack.c.h.b16 %v2538
        %v3604 = vunpack.c.l.b16 %v2539
        %v3605 = vunpack.c.h.b16 %v2539
        %v3606 = vunpack.c.l.b16 %v2540
        %v3607 = vunpack.c.h.b16 %v2540
        %v3608 = vunpack.c.l.b16 %v2541
        %v3609 = vunpack.c.h.b16 %v2541
        %v3610 = vunpack.c.l.b16 %v2542
        %v3611 = vunpack.c.h.b16 %v2542
        %v3612 = vunpack.c.l.b16 %v2543
        %v3613 = vunpack.c.h.b16 %v2543
        %v3614 = vunpack.c.l.b16 %v2544
        %v3615 = vunpack.c.h.b16 %v2544
        %v3616 = vunpack.c.l.b16 %v2545
        %v3617 = vunpack.c.h.b16 %v2545
        %v3618 = vunpack.c.l.b16 %v2546
        %v3619 = vunpack.c.h.b16 %v2546
        %v3620 = vunpack.c.l.b16 %v2547
        %v3621 = vunpack.c.h.b16 %v2547
        %v3622 = vunpack.c.l.b16 %v2548
        %v3623 = vunpack.c.h.b16 %v2548
        %v3624 = vunpack.c.l.b16 %v2549
        %v3625 = vunpack.c.h.b16 %v2549
        %v3626 = vunpack.c.l.b16 %v2550
        %v3627 = vunpack.c.h.b16 %v2550
        %v3628 = vunpack.c.l.b16 %v2551
        %v3629 = vunpack.c.h.b16 %v2551
        %v3630 = vunpack.c.l.b16 %v2552
        %v3631 = vunpack.c.h.b16 %v2552
        %v3632 = vunpack.c.l.b16 %v2553
        %v3633 = vunpack.c.h.b16 %v2553
        %v3634 = vunpack.c.l.b16 %v2554
        %v3635 = vunpack.c.h.b16 %v2554
        %v3636 = vunpack.c.l.b16 %v2555
        %v3637 = vunpack.c.h.b16 %v2555
        %v3638 = vunpack.c.l.b16 %v2556
        %v3639 = vunpack.c.h.b16 %v2556
        %v3640 = vunpack.c.l.b16 %v2557
        %v3641 = vunpack.c.h.b16 %v2557
        %v3642 = vunpack.c.l.b16 %v2558
        %v3643 = vunpack.c.h.b16 %v2558
        %v3644 = vunpack.c.l.b16 %v2559
        %v3645 = vunpack.c.h.b16 %v2559
        %v3646 = vunpack.c.l.b16 %v2560
        %v3647 = vunpack.c.h.b16 %v2560
        %v3648 = vunpack.c.l.b16 %v2561
        %v3649 = vunpack.c.h.b16 %v2561
        %v3650 = vunpack.c.l.b16 %v2562
        %v3651 = vunpack.c.h.b16 %v2562
        %v3652 = vunpack.c.l.b16 %v2563
        %v3653 = vunpack.c.h.b16 %v2563
        %v3654 = vunpack.c.l.b16 %v2564
        %v3655 = vunpack.c.h.b16 %v2564
        %v3656 = vunpack.c.l.b16 %v2565
        %v3657 = vunpack.c.h.b16 %v2565
        %v3658 = vunpack.c.l.b16 %v2566
        %v3659 = vunpack.c.h.b16 %v2566
        %v3660 = vunpack.c.l.b16 %v2567
        %v3661 = vunpack.c.h.b16 %v2567
        %v3662 = vunpack.c.l.b16 %v2568
        %v3663 = vunpack.c.h.b16 %v2568
        %v3664 = vunpack.c.l.b16 %v2569
        %v3665 = vunpack.c.h.b16 %v2569
        %v3666 = vunpack.c.l.b16 %v2570
        %v3667 = vunpack.c.h.b16 %v2570
        %v3668 = vunpack.c.l.b16 %v2571
        %v3669 = vunpack.c.h.b16 %v2571
        %v3670 = vunpack.c.l.b16 %v2572
        %v3671 = vunpack.c.h.b16 %v2572
        %v3672 = vunpack.c.l.b16 %v2573
        %v3673 = vunpack.c.h.b16 %v2573
        %v3674 = vunpack.c.l.b16 %v2574
        %v3675 = vunpack.c.h.b16 %v2574
        %v3676 = vunpack.c.l.b16 %v2575
        %v3677 = vunpack.c.h.b16 %v2575
        %v3678 = vunpack.c.l.b16 %v2576
        %v3679 = vunpack.c.h.b16 %v2576
        %v3680 = vunpack.c.l.b16 %v2577
        %v3681 = vunpack.c.h.b16 %v2577
        %v3682 = vunpack.c.l.b16 %v2578
        %v3683 = vunpack.c.h.b16 %v2578
        %v3684 = vunpack.c.l.b16 %v2579
        %v3685 = vunpack.c.h.b16 %v2579
        %v3686 = vunpack.c.l.b16 %v2580
        %v3687 = vunpack.c.h.b16 %v2580
        %v3688 = vunpack.c.l.b16 %v2581
        %v3689 = vunpack.c.h.b16 %v2581
        %v3690 = vunpack.c.l.b16 %v2582
        %v3691 = vunpack.c.h.b16 %v2582
        %v3692 = vunpack.c.l.b16 %v2583
        %v3693 = vunpack.c.h.b16 %v2583
        %v3694 = vunpack.c.l.b16 %v2584
        %v3695 = vunpack.c.h.b16 %v2584
        %v3696 = vunpack.c.l.b16 %v2585
        %v3697 = vunpack.c.h.b16 %v2585
        %v3698 = vunpack.c.l.b16 %v2586
        %v3699 = vunpack.c.h.b16 %v2586
        %v3700 = vunpack.c.l.b16 %v2587
        %v3701 = vunpack.c.h.b16 %v2587
        %v3702 = vunpack.c.l.b16 %v2588
        %v3703 = vunpack.c.h.b16 %v2588
        %v3704 = vunpack.c.l.b16 %v2589
        %v3705 = vunpack.c.h.b16 %v2589
        %v3706 = vunpack.c.l.b16 %v2590
        %v3707 = vunpack.c.h.b16 %v2590
        %v3708 = vunpack.c.l.b16 %v2591
        %v3709 = vunpack.c.h.b16 %v2591
        %v3710 = vunpack.c.l.b16 %v2592
        %v3711 = vunpack.c.h.b16 %v2592
        %v3712 = vunpack.c.l.b16 %v2593
        %v3713 = vunpack.c.h.b16 %v2593
        %v3714 = vunpack.c.l.b16 %v2594
        %v3715 = vunpack.c.h.b16 %v2594
        %v3716 = vunpack.c.l.b16 %v2595
        %v3717 = vunpack.c.h.b16 %v2595
        %v3718 = vunpack.c.l.b16 %v2596
        %v3719 = vunpack.c.h.b16 %v2596
        %v3720 = vunpack.c.l.b16 %v2597
        %v3721 = vunpack.c.h.b16 %v2597
        %v3722 = vunpack.c.l.b16 %v2598
        %v3723 = vunpack.c.h.b16 %v2598
        %v3724 = vunpack.c.l.b16 %v2599
        %v3725 = vunpack.c.h.b16 %v2599
        %v3726 = vunpack.c.l.b16 %v2600
        %v3727 = vunpack.c.h.b16 %v2600
        %v3728 = vunpack.c.l.b16 %v2601
        %v3729 = vunpack.c.h.b16 %v2601
        %v3730 = vunpack.c.l.b16 %v2602
        %v3731 = vunpack.c.h.b16 %v2602
        %v3732 = vunpack.c.l.b16 %v2603
        %v3733 = vunpack.c.h.b16 %v2603
        %v3734 = vunpack.c.l.b16 %v2604
        %v3735 = vunpack.c.h.b16 %v2604
        %v3736 = vunpack.c.l.b16 %v2605
        %v3737 = vunpack.c.h.b16 %v2605
        %v3738 = vunpack.c.l.b16 %v2606
        %v3739 = vunpack.c.h.b16 %v2606
        %v3740 = vunpack.c.l.b16 %v2607
        %v3741 = vunpack.c.h.b16 %v2607
        %v3742 = vunpack.c.l.b16 %v2608
        %v3743 = vunpack.c.h.b16 %v2608
        %v3744 = vunpack.c.l.b16 %v2609
        %v3745 = vunpack.c.h.b16 %v2609
        %v3746 = vunpack.c.l.b16 %v2610
        %v3747 = vunpack.c.h.b16 %v2610
        %v3748 = vunpack.c.l.b16 %v2611
        %v3749 = vunpack.c.h.b16 %v2611
        %v3750 = vunpack.c.l.b16 %v2612
        %v3751 = vunpack.c.h.b16 %v2612
        %v3752 = vunpack.c.l.b16 %v2613
        %v3753 = vunpack.c.h.b16 %v2613
        %v3754 = vunpack.c.l.b16 %v2614
        %v3755 = vunpack.c.h.b16 %v2614
        %v3756 = vunpack.c.l.b16 %v2615
        %v3757 = vunpack.c.h.b16 %v2615
        %v3758 = vunpack.c.l.b16 %v2616
        %v3759 = vunpack.c.h.b16 %v2616
        %v3760 = vunpack.c.l.b16 %v2617
        %v3761 = vunpack.c.h.b16 %v2617
        %v3762 = vunpack.c.l.b16 %v2618
        %v3763 = vunpack.c.h.b16 %v2618
        %v3764 = vunpack.c.l.b16 %v2619
        %v3765 = vunpack.c.h.b16 %v2619
        %v3766 = vunpack.c.l.b16 %v2620
        %v3767 = vunpack.c.h.b16 %v2620
        %v3768 = vunpack.c.l.b16 %v2621
        %v3769 = vunpack.c.h.b16 %v2621
        %v3770 = vunpack.c.l.b16 %v2622
        %v3771 = vunpack.c.h.b16 %v2622
        %v3772 = vunpack.c.l.b16 %v2623
        %v3773 = vunpack.c.h.b16 %v2623
        %v3774 = vunpack.c.l.b16 %v2624
        %v3775 = vunpack.c.h.b16 %v2624
        %v3776 = vunpack.c.l.b16 %v2625
        %v3777 = vunpack.c.h.b16 %v2625
        %v3778 = vunpack.c.l.b16 %v2626
        %v3779 = vunpack.c.h.b16 %v2626
        %v3780 = vunpack.c.l.b16 %v2627
        %v3781 = vunpack.c.h.b16 %v2627
        %v3782 = vunpack.c.l.b16 %v2628
        %v3783 = vunpack.c.h.b16 %v2628
        %v3784 = vunpack.c.l.b16 %v2629
        %v3785 = vunpack.c.h.b16 %v2629
        %v3786 = vunpack.c.l.b16 %v2630
        %v3787 = vunpack.c.h.b16 %v2630
        %v3788 = vunpack.c.l.b16 %v2631
        %v3789 = vunpack.c.h.b16 %v2631
        %v3790 = vunpack.c.l.b16 %v2632
        %v3791 = vunpack.c.h.b16 %v2632
        %v3792 = vunpack.c.l.b16 %v2633
        %v3793 = vunpack.c.h.b16 %v2633
        %v3794 = vunpack.c.l.b16 %v2634
        %v3795 = vunpack.c.h.b16 %v2634
        %v3796 = vunpack.c.l.b16 %v2635
        %v3797 = vunpack.c.h.b16 %v2635
        %v3798 = vunpack.c.l.b16 %v2636
        %v3799 = vunpack.c.h.b16 %v2636
        %v3800 = vunpack.c.l.b16 %v2637
        %v3801 = vunpack.c.h.b16 %v2637
        %v3802 = vunpack.c.l.b16 %v2638
        %v3803 = vunpack.c.h.b16 %v2638
        %v3804 = vunpack.c.l.b16 %v2639
        %v3805 = vunpack.c.h.b16 %v2639
        %v3806 = vunpack.c.l.b16 %v2640
        %v3807 = vunpack.c.h.b16 %v2640
        %v3808 = vunpack.c.l.b16 %v2641
        %v3809 = vunpack.c.h.b16 %v2641
        %v3810 = vunpack.c.l.b16 %v2642
        %v3811 = vunpack.c.h.b16 %v2642
        %v3812 = vunpack.c.l.b16 %v2643
        %v3813 = vunpack.c.h.b16 %v2643
        %v3814 = vunpack.c.l.b16 %v2644
        %v3815 = vunpack.c.h.b16 %v2644
        %v3816 = vunpack.c.l.b16 %v2645
        %v3817 = vunpack.c.h.b16 %v2645
        %v3818 = vunpack.c.l.b16 %v2646
        %v3819 = vunpack.c.h.b16 %v2646
        %v3820 = vunpack.c.l.b16 %v2647
        %v3821 = vunpack.c.h.b16 %v2647
        %v3822 = vunpack.c.l.b16 %v2648
        %v3823 = vunpack.c.h.b16 %v2648
        %v3824 = vunpack.c.l.b16 %v2649
        %v3825 = vunpack.c.h.b16 %v2649
        %v3826 = vunpack.c.l.b16 %v2650
        %v3827 = vunpack.c.h.b16 %v2650
        %v3828 = vunpack.c.l.b16 %v2651
        %v3829 = vunpack.c.h.b16 %v2651
        %v3830 = vunpack.c.l.b16 %v2652
        %v3831 = vunpack.c.h.b16 %v2652
        %v3832 = vunpack.c.l.b16 %v2653
        %v3833 = vunpack.c.h.b16 %v2653
        %v3834 = vunpack.c.l.b16 %v2654
        %v3835 = vunpack.c.h.b16 %v2654
        %v3836 = vunpack.c.l.b16 %v2655
        %v3837 = vunpack.c.h.b16 %v2655
        %v3838 = vunpack.c.l.b16 %v2656
        %v3839 = vunpack.c.h.b16 %v2656
        %v3840 = vunpack.c.l.b16 %v2657
        %v3841 = vunpack.c.h.b16 %v2657
        %v3842 = vunpack.c.l.b16 %v2658
        %v3843 = vunpack.c.h.b16 %v2658
        %v3844 = vunpack.c.l.b16 %v2659
        %v3845 = vunpack.c.h.b16 %v2659
        %v3846 = vunpack.c.l.b16 %v2660
        %v3847 = vunpack.c.h.b16 %v2660
        %v3848 = vunpack.c.l.b16 %v2661
        %v3849 = vunpack.c.h.b16 %v2661
        %v3850 = vunpack.c.l.b16 %v2662
        %v3851 = vunpack.c.h.b16 %v2662
        %v3852 = vunpack.c.l.b16 %v2663
        %v3853 = vunpack.c.h.b16 %v2663
        %v3854 = vunpack.c.l.b16 %v2664
        %v3855 = vunpack.c.h.b16 %v2664
        %v3856 = vunpack.c.l.b16 %v2665
        %v3857 = vunpack.c.h.b16 %v2665
        %v3858 = vunpack.c.l.b16 %v2666
        %v3859 = vunpack.c.h.b16 %v2666
        %v3860 = vunpack.c.l.b16 %v2667
        %v3861 = vunpack.c.h.b16 %v2667
        %v3862 = vunpack.c.l.b16 %v2668
        %v3863 = vunpack.c.h.b16 %v2668
        %v3864 = vunpack.c.l.b16 %v2669
        %v3865 = vunpack.c.h.b16 %v2669
        %v3866 = vunpack.c.l.b16 %v2670
        %v3867 = vunpack.c.h.b16 %v2670
        %v3868 = vunpack.c.l.b16 %v2671
        %v3869 = vunpack.c.h.b16 %v2671
        %v3870 = vunpack.c.l.b16 %v2672
        %v3871 = vunpack.c.h.b16 %v2672
        %v3872 = vunpack.c.l.b16 %v2673
        %v3873 = vunpack.c.h.b16 %v2673
        %v3874 = vunpack.c.l.b16 %v2674
        %v3875 = vunpack.c.h.b16 %v2674
        %v3876 = vunpack.c.l.b16 %v2675
        %v3877 = vunpack.c.h.b16 %v2675
        %v3878 = vunpack.c.l.b16 %v2676
        %v3879 = vunpack.c.h.b16 %v2676
        %v3880 = vunpack.c.l.b16 %v2677
        %v3881 = vunpack.c.h.b16 %v2677
        %v3882 = vunpack.c.l.b16 %v2678
        %v3883 = vunpack.c.h.b16 %v2678
        %v3884 = vunpack.c.l.b16 %v2679
        %v3885 = vunpack.c.h.b16 %v2679
        %v3886 = vunpack.c.l.b16 %v2680
        %v3887 = vunpack.c.h.b16 %v2680
        %v3888 = vunpack.c.l.b16 %v2681
        %v3889 = vunpack.c.h.b16 %v2681
        %v3890 = vunpack.c.l.b16 %v2682
        %v3891 = vunpack.c.h.b16 %v2682
        %v3892 = vunpack.c.l.b16 %v2683
        %v3893 = vunpack.c.h.b16 %v2683
        %v3894 = vunpack.c.l.b16 %v2684
        %v3895 = vunpack.c.h.b16 %v2684
        %v3896 = vunpack.c.l.b16 %v2685
        %v3897 = vunpack.c.h.b16 %v2685
        %v3898 = vunpack.c.l.b16 %v2686
        %v3899 = vunpack.c.h.b16 %v2686
        %v3900 = vunpack.c.l.b16 %v2687
        %v3901 = vunpack.c.h.b16 %v2687
        %v3902 = vunpack.c.l.b16 %v2688
        %v3903 = vunpack.c.h.b16 %v2688
        %v3904 = vunpack.c.l.b16 %v2689
        %v3905 = vunpack.c.h.b16 %v2689
        %v3906 = vunpack.c.l.b16 %v2690
        %v3907 = vunpack.c.h.b16 %v2690
        %v3908 = vunpack.c.l.b16 %v2691
        %v3909 = vunpack.c.h.b16 %v2691
        %v3910 = vunpack.c.l.b16 %v2692
        %v3911 = vunpack.c.h.b16 %v2692
        %v3912 = vunpack.c.l.b16 %v2693
        %v3913 = vunpack.c.h.b16 %v2693
        %v3914 = vunpack.c.l.b16 %v2694
        %v3915 = vunpack.c.h.b16 %v2694
        %v3916 = vunpack.c.l.b16 %v2695
        %v3917 = vunpack.c.h.b16 %v2695
        %v3918 = vunpack.c.l.b16 %v2696
        %v3919 = vunpack.c.h.b16 %v2696
        %v3920 = vunpack.c.l.b16 %v2697
        %v3921 = vunpack.c.h.b16 %v2697
        %v3922 = vunpack.c.l.b16 %v2698
        %v3923 = vunpack.c.h.b16 %v2698
        %v3924 = vunpack.c.l.b16 %v2699
        %v3925 = vunpack.c.h.b16 %v2699
        %v3926 = vunpack.c.l.b16 %v2700
        %v3927 = vunpack.c.h.b16 %v2700
        %v3928 = vunpack.c.l.b16 %v2701
        %v3929 = vunpack.c.h.b16 %v2701
        %v3930 = vunpack.c.l.b16 %v2702
        %v3931 = vunpack.c.h.b16 %v2702
        %v3932 = vunpack.c.l.b16 %v2703
        %v3933 = vunpack.c.h.b16 %v2703
        %v3934 = vunpack.c.l.b16 %v2704
        %v3935 = vunpack.c.h.b16 %v2704
        %v3936 = vunpack.c.l.b16 %v2705
        %v3937 = vunpack.c.h.b16 %v2705
        %v3938 = vunpack.c.l.b16 %v2706
        %v3939 = vunpack.c.h.b16 %v2706
        %v3940 = vunpack.c.l.b16 %v2707
        %v3941 = vunpack.c.h.b16 %v2707
        %v3942 = vunpack.c.l.b16 %v2708
        %v3943 = vunpack.c.h.b16 %v2708
        %v3944 = vunpack.c.l.b16 %v2709
        %v3945 = vunpack.c.h.b16 %v2709
        %v3946 = vunpack.c.l.b16 %v2710
        %v3947 = vunpack.c.h.b16 %v2710
        %v3948 = vunpack.c.l.b16 %v2711
        %v3949 = vunpack.c.h.b16 %v2711
        %v3950 = vunpack.c.l.b16 %v2712
        %v3951 = vunpack.c.h.b16 %v2712
        %v3952 = vunpack.c.l.b16 %v2713
        %v3953 = vunpack.c.h.b16 %v2713
        %v3954 = vunpack.c.l.b16 %v2714
        %v3955 = vunpack.c.h.b16 %v2714
        %v3956 = vunpack.c.l.b16 %v2715
        %v3957 = vunpack.c.h.b16 %v2715
        %v3958 = vunpack.c.l.b16 %v2716
        %v3959 = vunpack.c.h.b16 %v2716
        %v3960 = vunpack.c.l.b16 %v2717
        %v3961 = vunpack.c.h.b16 %v2717
        %v3962 = vunpack.c.l.b16 %v2718
        %v3963 = vunpack.c.h.b16 %v2718
        %v3964 = vunpack.c.l.b16 %v2719
        %v3965 = vunpack.c.h.b16 %v2719
        %v3966 = vunpack.c.l.b16 %v2720
        %v3967 = vunpack.c.h.b16 %v2720
        %v3968 = vunpack.c.l.b16 %v2721
        %v3969 = vunpack.c.h.b16 %v2721
        %v3970 = vunpack.c.l.b16 %v2722
        %v3971 = vunpack.c.h.b16 %v2722
        %v3972 = vunpack.c.l.b16 %v2723
        %v3973 = vunpack.c.h.b16 %v2723
        %v3974 = vunpack.c.l.b16 %v2724
        %v3975 = vunpack.c.h.b16 %v2724
        %v3976 = vunpack.c.l.b16 %v2725
        %v3977 = vunpack.c.h.b16 %v2725
        %v3978 = vunpack.c.l.b16 %v2726
        %v3979 = vunpack.c.h.b16 %v2726
        %v3980 = vunpack.c.l.b16 %v2727
        %v3981 = vunpack.c.h.b16 %v2727
        %v3982 = vunpack.c.l.b16 %v2728
        %v3983 = vunpack.c.h.b16 %v2728
        %v3984 = vunpack.c.l.b16 %v2729
        %v3985 = vunpack.c.h.b16 %v2729
        %v3986 = vunpack.c.l.b16 %v2730
        %v3987 = vunpack.c.h.b16 %v2730
        %v3988 = vunpack.c.l.b16 %v2731
        %v3989 = vunpack.c.h.b16 %v2731
        %v3990 = vunpack.c.l.b16 %v2732
        %v3991 = vunpack.c.h.b16 %v2732
        %v3992 = vunpack.c.l.b16 %v2733
        %v3993 = vunpack.c.h.b16 %v2733
        %v3994 = vunpack.c.l.b16 %v2734
        %v3995 = vunpack.c.h.b16 %v2734
        %v3996 = vunpack.c.l.b16 %v2735
        %v3997 = vunpack.c.h.b16 %v2735
        %v3998 = vunpack.c.l.b16 %v2736
        %v3999 = vunpack.c.h.b16 %v2736
        %v4000 = vunpack.c.l.b16 %v2737
        %v4001 = vunpack.c.h.b16 %v2737
        %v4002 = vunpack.c.l.b16 %v2738
        %v4003 = vunpack.c.h.b16 %v2738
        %v4004 = vunpack.c.l.b16 %v2739
        %v4005 = vunpack.c.h.b16 %v2739
        %v4006 = vunpack.c.l.b16 %v2740
        %v4007 = vunpack.c.h.b16 %v2740
        %v4008 = vunpack.c.l.b16 %v2741
        %v4009 = vunpack.c.h.b16 %v2741
        %v4010 = vunpack.c.l.b16 %v2742
        %v4011 = vunpack.c.h.b16 %v2742
        %v4012 = vunpack.c.l.b16 %v2743
        %v4013 = vunpack.c.h.b16 %v2743
        %v4014 = vunpack.c.l.b16 %v2744
        %v4015 = vunpack.c.h.b16 %v2744
        %v4016 = vunpack.c.l.b16 %v2745
        %v4017 = vunpack.c.h.b16 %v2745
        %v4018 = vunpack.c.l.b16 %v2746
        %v4019 = vunpack.c.h.b16 %v2746
        %v4020 = vunpack.c.l.b16 %v2747
        %v4021 = vunpack.c.h.b16 %v2747
        %v4022 = vunpack.c.l.b16 %v2748
        %v4023 = vunpack.c.h.b16 %v2748
        %v4024 = vunpack.c.l.b16 %v2749
        %v4025 = vunpack.c.h.b16 %v2749
        %v4026 = vunpack.c.l.b16 %v2750
        %v4027 = vunpack.c.h.b16 %v2750
        %v4028 = vunpack.c.l.b16 %v2751
        %v4029 = vunpack.c.h.b16 %v2751
        %v4030 = vunpack.c.l.b16 %v2752
        %v4031 = vunpack.c.h.b16 %v2752
        %v4032 = vunpack.c.l.b16 %v2753
        %v4033 = vunpack.c.h.b16 %v2753
        %v4034 = vunpack.c.l.b16 %v2754
        %v4035 = vunpack.c.h.b16 %v2754
        %v4036 = vunpack.c.l.b16 %v2755
        %v4037 = vunpack.c.h.b16 %v2755
        %v4038 = vunpack.c.l.b16 %v2756
        %v4039 = vunpack.c.h.b16 %v2756
        %v4040 = vunpack.c.l.b16 %v2757
        %v4041 = vunpack.c.h.b16 %v2757
        %v4042 = vunpack.c.l.b16 %v2758
        %v4043 = vunpack.c.h.b16 %v2758
        %v4044 = vunpack.c.l.b16 %v2759
        %v4045 = vunpack.c.h.b16 %v2759
        %v4046 = vunpack.c.l.b16 %v2760
        %v4047 = vunpack.c.h.b16 %v2760
        %v4048 = vunpack.c.l.b16 %v2761
        %v4049 = vunpack.c.h.b16 %v2761
        %v4050 = vunpack.c.l.b16 %v2762
        %v4051 = vunpack.c.h.b16 %v2762
        %v4052 = vunpack.c.l.b16 %v2763
        %v4053 = vunpack.c.h.b16 %v2763
        %v4054 = vunpack.c.l.b16 %v2764
        %v4055 = vunpack.c.h.b16 %v2764
        %v4056 = vunpack.c.l.b16 %v2765
        %v4057 = vunpack.c.h.b16 %v2765
        %v4058 = vunpack.c.l.b16 %v2766
        %v4059 = vunpack.c.h.b16 %v2766
        %v4060 = vunpack.c.l.b16 %v2767
        %v4061 = vunpack.c.h.b16 %v2767
        %v4062 = vunpack.c.l.b16 %v2768
        %v4063 = vunpack.c.h.b16 %v2768
        %v4064 = vunpack.c.l.b16 %v2769
        %v4065 = vunpack.c.h.b16 %v2769
        %v4066 = vunpack.c.l.b16 %v2770
        %v4067 = vunpack.c.h.b16 %v2770
        %v4068 = vunpack.c.l.b16 %v2771
        %v4069 = vunpack.c.h.b16 %v2771
        %v4070 = vunpack.c.l.b16 %v2772
        %v4071 = vunpack.c.h.b16 %v2772
        %v4072 = vunpack.c.l.b16 %v2773
        %v4073 = vunpack.c.h.b16 %v2773
        %v4074 = vunpack.c.l.b16 %v2774
        %v4075 = vunpack.c.h.b16 %v2774
        %v4076 = vunpack.c.l.b16 %v2775
        %v4077 = vunpack.c.h.b16 %v2775
        %v4078 = vunpack.c.l.b16 %v2776
        %v4079 = vunpack.c.h.b16 %v2776
        %v4080 = vunpack.c.l.b16 %v2777
        %v4081 = vunpack.c.h.b16 %v2777
        %v4082 = vunpack.c.l.b16 %v2778
        %v4083 = vunpack.c.h.b16 %v2778
        %v4084 = vunpack.c.l.b16 %v2779
        %v4085 = vunpack.c.h.b16 %v2779
        %v4086 = vunpack.c.l.b16 %v2780
        %v4087 = vunpack.c.h.b16 %v2780
        %v4088 = vunpack.c.l.b16 %v2781
        %v4089 = vunpack.c.h.b16 %v2781
        %v4090 = vunpack.c.l.b16 %v2782
        %v4091 = vunpack.c.h.b16 %v2782
        %v4092 = vunpack.c.l.b16 %v2783
        %v4093 = vunpack.c.h.b16 %v2783
        %v4094 = vunpack.c.l.b16 %v2784
        %v4095 = vunpack.c.h.b16 %v2784
        %v4096 = vunpack.c.l.b16 %v2785
        %v4097 = vunpack.c.h.b16 %v2785
        %v4098 = vunpack.c.l.b16 %v2786
        %v4099 = vunpack.c.h.b16 %v2786
        %v4100 = vunpack.c.l.b16 %v2787
        %v4101 = vunpack.c.h.b16 %v2787
        %v4102 = vunpack.c.l.b16 %v2788
        %v4103 = vunpack.c.h.b16 %v2788
        %v4104 = vunpack.c.l.b16 %v2789
        %v4105 = vunpack.c.h.b16 %v2789
        %v4106 = vunpack.c.l.b16 %v2790
        %v4107 = vunpack.c.h.b16 %v2790
        %v4108 = vunpack.c.l.b16 %v2791
        %v4109 = vunpack.c.h.b16 %v2791
        %v4110 = vunpack.c.l.b16 %v2792
        %v4111 = vunpack.c.h.b16 %v2792
        %v4112 = vunpack.c.l.b16 %v2793
        %v4113 = vunpack.c.h.b16 %v2793
        %v4114 = vunpack.c.l.b16 %v2794
        %v4115 = vunpack.c.h.b16 %v2794
        %v4116 = vunpack.c.l.b16 %v2795
        %v4117 = vunpack.c.h.b16 %v2795
        %v4118 = vunpack.c.l.b16 %v2796
        %v4119 = vunpack.c.h.b16 %v2796
        %v4120 = vunpack.c.l.b16 %v2797
        %v4121 = vunpack.c.h.b16 %v2797
        %v4122 = vunpack.c.l.b16 %v2798
        %v4123 = vunpack.c.h.b16 %v2798
        %v4124 = vunpack.c.l.b16 %v2799
        %v4125 = vunpack.c.h.b16 %v2799
        %v4126 = vunpack.c.l.b16 %v2800
        %v4127 = vunpack.c.h.b16 %v2800
        %v4128 = vunpack.c.l.b16 %v2801
        %v4129 = vunpack.c.h.b16 %v2801
        %v4130 = vunpack.c.l.b16 %v2802
        %v4131 = vunpack.c.h.b16 %v2802
        %v4132 = vunpack.c.l.b16 %v2803
        %v4133 = vunpack.c.h.b16 %v2803
        %v4134 = vunpack.c.l.b16 %v2804
        %v4135 = vunpack.c.h.b16 %v2804
        %v4136 = vunpack.c.l.b16 %v2805
        %v4137 = vunpack.c.h.b16 %v2805
        %v4138 = vunpack.c.l.b16 %v2806
        %v4139 = vunpack.c.h.b16 %v2806
        %v4140 = vunpack.c.l.b16 %v2807
        %v4141 = vunpack.c.h.b16 %v2807
        %v4142 = vunpack.c.l.b16 %v2808
        %v4143 = vunpack.c.h.b16 %v2808
        %v4144 = vunpack.c.l.b16 %v2809
        %v4145 = vunpack.c.h.b16 %v2809
        %v4146 = vunpack.c.l.b16 %v2810
        %v4147 = vunpack.c.h.b16 %v2810
        %v4148 = vunpack.c.l.b16 %v2811
        %v4149 = vunpack.c.h.b16 %v2811
        %v4150 = vunpack.c.l.b16 %v2812
        %v4151 = vunpack.c.h.b16 %v2812
        %v4152 = vunpack.c.l.b16 %v2813
        %v4153 = vunpack.c.h.b16 %v2813
        %v4154 = vunpack.c.l.b16 %v2814
        %v4155 = vunpack.c.h.b16 %v2814
        %v4156 = vunpack.c.l.b16 %v2815
        %v4157 = vunpack.c.h.b16 %v2815
        %v4158 = vunpack.c.l.b16 %v2816
        %v4159 = vunpack.c.h.b16 %v2816
        %v4160 = vunpack.c.l.b16 %v2817
        %v4161 = vunpack.c.h.b16 %v2817
        %v4162 = vunpack.c.l.b16 %v2818
        %v4163 = vunpack.c.h.b16 %v2818
        %v4164 = vunpack.c.l.b16 %v2819
        %v4165 = vunpack.c.h.b16 %v2819
        %v4166 = vunpack.c.l.b16 %v2820
        %v4167 = vunpack.c.h.b16 %v2820
        %v4168 = vunpack.c.l.b16 %v2821
        %v4169 = vunpack.c.h.b16 %v2821
        %v4170 = vunpack.c.l.b16 %v2822
        %v4171 = vunpack.c.h.b16 %v2822
        %v4172 = vunpack.c.l.b16 %v2823
        %v4173 = vunpack.c.h.b16 %v2823
        %v4174 = vunpack.c.l.b16 %v2824
        %v4175 = vunpack.c.h.b16 %v2824
        %v4176 = vunpack.c.l.b16 %v2825
        %v4177 = vunpack.c.h.b16 %v2825
        %v4178 = vunpack.c.l.b16 %v2826
        %v4179 = vunpack.c.h.b16 %v2826
        %v4180 = vunpack.c.l.b16 %v2827
        %v4181 = vunpack.c.h.b16 %v2827
        %v4182 = vunpack.c.l.b16 %v2828
        %v4183 = vunpack.c.h.b16 %v2828
        %v4184 = vunpack.c.l.b16 %v2829
        %v4185 = vunpack.c.h.b16 %v2829
        %v4186 = vunpack.c.l.b16 %v2830
        %v4187 = vunpack.c.h.b16 %v2830
        %v4188 = vunpack.c.l.b16 %v2831
        %v4189 = vunpack.c.h.b16 %v2831
        %v4190 = vunpack.c.l.b16 %v2832
        %v4191 = vunpack.c.h.b16 %v2832
        %v4192 = vunpack.c.l.b16 %v2833
        %v4193 = vunpack.c.h.b16 %v2833
        %v4194 = vunpack.c.l.b16 %v2834
        %v4195 = vunpack.c.h.b16 %v2834
        %v4196 = vunpack.c.l.b16 %v2835
        %v4197 = vunpack.c.h.b16 %v2835
        %v4198 = vunpack.c.l.b16 %v2836
        %v4199 = vunpack.c.h.b16 %v2836
        %v4200 = vunpack.c.l.b16 %v2837
        %v4201 = vunpack.c.h.b16 %v2837
        %v4202 = vunpack.c.l.b16 %v2838
        %v4203 = vunpack.c.h.b16 %v2838
        %v4204 = vunpack.c.l.b16 %v2839
        %v4205 = vunpack.c.h.b16 %v2839
        %v4206 = vunpack.c.l.b16 %v2840
        %v4207 = vunpack.c.h.b16 %v2840
        %v4208 = vunpack.c.l.b16 %v2841
        %v4209 = vunpack.c.h.b16 %v2841
        %v4210 = vunpack.c.l.b16 %v2842
        %v4211 = vunpack.c.h.b16 %v2842
        %v4212 = vunpack.c.l.b16 %v2843
        %v4213 = vunpack.c.h.b16 %v2843
        %v4214 = vunpack.c.l.b16 %v2844
        %v4215 = vunpack.c.h.b16 %v2844
        %v4216 = vunpack.c.l.b16 %v2845
        %v4217 = vunpack.c.h.b16 %v2845
        %v4218 = vunpack.c.l.b16 %v2846
        %v4219 = vunpack.c.h.b16 %v2846
        %v4220 = vunpack.c.l.b16 %v2847
        %v4221 = vunpack.c.h.b16 %v2847
        %v4222 = vunpack.c.l.b16 %v2848
        %v4223 = vunpack.c.h.b16 %v2848
        %v4224 = vunpack.c.l.b16 %v2849
        %v4225 = vunpack.c.h.b16 %v2849
        %v4226 = vunpack.c.l.b16 %v2850
        %v4227 = vunpack.c.h.b16 %v2850
        %v4228 = vunpack.c.l.b16 %v2851
        %v4229 = vunpack.c.h.b16 %v2851
        %v4230 = vunpack.c.l.b16 %v2852
        %v4231 = vunpack.c.h.b16 %v2852
        %v4232 = vunpack.c.l.b16 %v2853
        %v4233 = vunpack.c.h.b16 %v2853
        %v4234 = vunpack.c.l.b16 %v2854
        %v4235 = vunpack.c.h.b16 %v2854
        %v4236 = vunpack.c.l.b16 %v2855
        %v4237 = vunpack.c.h.b16 %v2855
        %v4238 = vunpack.c.l.b16 %v2856
        %v4239 = vunpack.c.h.b16 %v2856
        %v4240 = vunpack.c.l.b16 %v2857
        %v4241 = vunpack.c.h.b16 %v2857
        %v4242 = vunpack.c.l.b16 %v2858
        %v4243 = vunpack.c.h.b16 %v2858
        %v4244 = vunpack.c.l.b16 %v2859
        %v4245 = vunpack.c.h.b16 %v2859
        %v4246 = vunpack.c.l.b16 %v2860
        %v4247 = vunpack.c.h.b16 %v2860
        %v4248 = vunpack.c.l.b16 %v2861
        %v4249 = vunpack.c.h.b16 %v2861
        %v4250 = vunpack.c.l.b16 %v2862
        %v4251 = vunpack.c.h.b16 %v2862
        %v4252 = vunpack.c.l.b16 %v2863
        %v4253 = vunpack.c.h.b16 %v2863
        %v4254 = vunpack.c.l.b16 %v2864
        %v4255 = vunpack.c.h.b16 %v2864
        %v4256 = vunpack.c.l.b16 %v2865
        %v4257 = vunpack.c.h.b16 %v2865
        %v4258 = vunpack.c.l.b16 %v2866
        %v4259 = vunpack.c.h.b16 %v2866
        %v4260 = vunpack.c.l.b16 %v2867
        %v4261 = vunpack.c.h.b16 %v2867
        %v4262 = vunpack.c.l.b16 %v2868
        %v4263 = vunpack.c.h.b16 %v2868
        %v4264 = vunpack.c.l.b16 %v2869
        %v4265 = vunpack.c.h.b16 %v2869
        %v4266 = vunpack.c.l.b16 %v2870
        %v4267 = vunpack.c.h.b16 %v2870
        %v4268 = vunpack.c.l.b16 %v2871
        %v4269 = vunpack.c.h.b16 %v2871
        %v4270 = vunpack.c.l.b16 %v2872
        %v4271 = vunpack.c.h.b16 %v2872
        %v4272 = vunpack.c.l.b16 %v2873
        %v4273 = vunpack.c.h.b16 %v2873
        %v4274 = vunpack.c.l.b16 %v2874
        %v4275 = vunpack.c.h.b16 %v2874
        %v4276 = vunpack.c.l.b16 %v2875
        %v4277 = vunpack.c.h.b16 %v2875
        %v4278 = vunpack.c.l.b16 %v2876
        %v4279 = vunpack.c.h.b16 %v2876
        %v4280 = vunpack.c.l.b16 %v2877
        %v4281 = vunpack.c.h.b16 %v2877
        %v4282 = vunpack.c.l.b16 %v2878
        %v4283 = vunpack.c.h.b16 %v2878
        %v4284 = vunpack.c.l.b16 %v2879
        %v4285 = vunpack.c.h.b16 %v2879
        %v4286 = vunpack.c.l.b16 %v2880
        %v4287 = vunpack.c.h.b16 %v2880
        %v4288 = vunpack.c.l.b16 %v2881
        %v4289 = vunpack.c.h.b16 %v2881
        %v4290 = vunpack.c.l.b16 %v2882
        %v4291 = vunpack.c.h.b16 %v2882
        %v4292 = vunpack.c.l.b16 %v2883
        %v4293 = vunpack.c.h.b16 %v2883
        %v4294 = vunpack.c.l.b16 %v2884
        %v4295 = vunpack.c.h.b16 %v2884
        %v4296 = vunpack.c.l.b16 %v2885
        %v4297 = vunpack.c.h.b16 %v2885
        %v4298 = vunpack.c.l.b16 %v2886
        %v4299 = vunpack.c.h.b16 %v2886
        %v4300 = vunpack.c.l.b16 %v2887
        %v4301 = vunpack.c.h.b16 %v2887
        %v4302 = vunpack.c.l.b16 %v2888
        %v4303 = vunpack.c.h.b16 %v2888
        %v4304 = vunpack.c.l.b16 %v2889
        %v4305 = vunpack.c.h.b16 %v2889
        %v4306 = vunpack.c.l.b16 %v2890
        %v4307 = vunpack.c.h.b16 %v2890
        %v4308 = vunpack.c.l.b16 %v2891
        %v4309 = vunpack.c.h.b16 %v2891
        %v4310 = vunpack.c.l.b16 %v2892
        %v4311 = vunpack.c.h.b16 %v2892
        %v4312 = vunpack.c.l.b16 %v2893
        %v4313 = vunpack.c.h.b16 %v2893
        %v4314 = vunpack.c.l.b16 %v2894
        %v4315 = vunpack.c.h.b16 %v2894
        %v4316 = vunpack.c.l.b16 %v2895
        %v4317 = vunpack.c.h.b16 %v2895
        %v4318 = vunpack.c.l.b16 %v2896
        %v4319 = vunpack.c.h.b16 %v2896
        %v4320 = vunpack.c.l.b16 %v2897
        %v4321 = vunpack.c.h.b16 %v2897
        %v4322 = vunpack.c.l.b16 %v2898
        %v4323 = vunpack.c.h.b16 %v2898
        %v4324 = vunpack.c.l.b16 %v2899
        %v4325 = vunpack.c.h.b16 %v2899
        %v4326 = vunpack.c.l.b16 %v2900
        %v4327 = vunpack.c.h.b16 %v2900
        %v4328 = vunpack.c.l.b16 %v2901
        %v4329 = vunpack.c.h.b16 %v2901
        %v4330 = vunpack.c.l.b16 %v2902
        %v4331 = vunpack.c.h.b16 %v2902
        %v4332 = vunpack.c.l.b16 %v2903
        %v4333 = vunpack.c.h.b16 %v2903
        %v4334 = vunpack.c.l.b16 %v2904
        %v4335 = vunpack.c.h.b16 %v2904
        %v4336 = vunpack.c.l.b16 %v2905
        %v4337 = vunpack.c.h.b16 %v2905
        %v4338 = vunpack.c.l.b16 %v2906
        %v4339 = vunpack.c.h.b16 %v2906
        %v4340 = vunpack.c.l.b16 %v2907
        %v4341 = vunpack.c.h.b16 %v2907
        %v4342 = vunpack.c.l.b16 %v2908
        %v4343 = vunpack.c.h.b16 %v2908
        %v4344 = vunpack.c.l.b16 %v2909
        %v4345 = vunpack.c.h.b16 %v2909
        %v4346 = vunpack.c.l.b16 %v2910
        %v4347 = vunpack.c.h.b16 %v2910
        %v4348 = vunpack.c.l.b16 %v2911
        %v4349 = vunpack.c.h.b16 %v2911
        %v4350 = vunpack.c.l.b16 %v2912
        %v4351 = vunpack.c.h.b16 %v2912
        %v4352 = vunpack.c.l.b16 %v2913
        %v4353 = vunpack.c.h.b16 %v2913
        %v4354 = vpack.c.b16 %v3398, %v3394
        %v4355 = vpack.c.b16 %v3399, %v3395
        %v4356 = vpack.c.b16 %v3400, %v3396
        %v4357 = vpack.c.b16 %v3401, %v3397
        %v4358 = vpack.c.b16 %v3406, %v3402
        %v4359 = vpack.c.b16 %v3407, %v3403
        %v4360 = vpack.c.b16 %v3408, %v3404
        %v4361 = vpack.c.b16 %v3409, %v3405
        %v4362 = vpack.c.b16 %v3414, %v3410
        %v4363 = vpack.c.b16 %v3415, %v3411
        %v4364 = vpack.c.b16 %v3416, %v3412
        %v4365 = vpack.c.b16 %v3417, %v3413
        %v4366 = vpack.c.b16 %v3422, %v3418
        %v4367 = vpack.c.b16 %v3423, %v3419
        %v4368 = vpack.c.b16 %v3424, %v3420
        %v4369 = vpack.c.b16 %v3425, %v3421
        %v4370 = vpack.c.b16 %v3430, %v3426
        %v4371 = vpack.c.b16 %v3431, %v3427
        %v4372 = vpack.c.b16 %v3432, %v3428
        %v4373 = vpack.c.b16 %v3433, %v3429
        %v4374 = vpack.c.b16 %v3438, %v3434
        %v4375 = vpack.c.b16 %v3439, %v3435
        %v4376 = vpack.c.b16 %v3440, %v3436
        %v4377 = vpack.c.b16 %v3441, %v3437
        %v4378 = vpack.c.b16 %v3446, %v3442
        %v4379 = vpack.c.b16 %v3447, %v3443
        %v4380 = vpack.c.b16 %v3448, %v3444
        %v4381 = vpack.c.b16 %v3449, %v3445
        %v4382 = vpack.c.b16 %v3454, %v3450
        %v4383 = vpack.c.b16 %v3455, %v3451
        %v4384 = vpack.c.b16 %v3456, %v3452
        %v4385 = vpack.c.b16 %v3457, %v3453
        %v4386 = vpack.c.b16 %v3462, %v3458
        %v4387 = vpack.c.b16 %v3463, %v3459
        %v4388 = vpack.c.b16 %v3464, %v3460
        %v4389 = vpack.c.b16 %v3465, %v3461
        %v4390 = vpack.c.b16 %v3470, %v3466
        %v4391 = vpack.c.b16 %v3471, %v3467
        %v4392 = vpack.c.b16 %v3472, %v3468
        %v4393 = vpack.c.b16 %v3473, %v3469
        %v4394 = vpack.c.b16 %v3478, %v3474
        %v4395 = vpack.c.b16 %v3479, %v3475
        %v4396 = vpack.c.b16 %v3480, %v3476
        %v4397 = vpack.c.b16 %v3481, %v3477
        %v4398 = vpack.c.b16 %v3486, %v3482
        %v4399 = vpack.c.b16 %v3487, %v3483
        %v4400 = vpack.c.b16 %v3488, %v3484
        %v4401 = vpack.c.b16 %v3489, %v3485
        %v4402 = vpack.c.b16 %v3494, %v3490
        %v4403 = vpack.c.b16 %v3495, %v3491
        %v4404 = vpack.c.b16 %v3496, %v3492
        %v4405 = vpack.c.b16 %v3497, %v3493
        %v4406 = vpack.c.b16 %v3502, %v3498
        %v4407 = vpack.c.b16 %v3503, %v3499
        %v4408 = vpack.c.b16 %v3504, %v3500
        %v4409 = vpack.c.b16 %v3505, %v3501
        %v4410 = vpack.c.b16 %v3510, %v3506
        %v4411 = vpack.c.b16 %v3511, %v3507
        %v4412 = vpack.c.b16 %v3512, %v3508
        %v4413 = vpack.c.b16 %v3513, %v3509
        %v4414 = vpack.c.b16 %v3518, %v3514
        %v4415 = vpack.c.b16 %v3519, %v3515
        %v4416 = vpack.c.b16 %v3520, %v3516
        %v4417 = vpack.c.b16 %v3521, %v3517
        %v4418 = vpack.c.b16 %v3526, %v3522
        %v4419 = vpack.c.b16 %v3527, %v3523
        %v4420 = vpack.c.b16 %v3528, %v3524
        %v4421 = vpack.c.b16 %v3529, %v3525
        %v4422 = vpack.c.b16 %v3534, %v3530
        %v4423 = vpack.c.b16 %v3535, %v3531
        %v4424 = vpack.c.b16 %v3536, %v3532
        %v4425 = vpack.c.b16 %v3537, %v3533
        %v4426 = vpack.c.b16 %v3542, %v3538
        %v4427 = vpack.c.b16 %v3543, %v3539
        %v4428 = vpack.c.b16 %v3544, %v3540
        %v4429 = vpack.c.b16 %v3545, %v3541
        %v4430 = vpack.c.b16 %v3550, %v3546
        %v4431 = vpack.c.b16 %v3551, %v3547
        %v4432 = vpack.c.b16 %v3552, %v3548
        %v4433 = vpack.c.b16 %v3553, %v3549
        %v4434 = vpack.c.b16 %v3558, %v3554
        %v4435 = vpack.c.b16 %v3559, %v3555
        %v4436 = vpack.c.b16 %v3560, %v3556
        %v4437 = vpack.c.b16 %v3561, %v3557
        %v4438 = vpack.c.b16 %v3566, %v3562
        %v4439 = vpack.c.b16 %v3567, %v3563
        %v4440 = vpack.c.b16 %v3568, %v3564
        %v4441 = vpack.c.b16 %v3569, %v3565
        %v4442 = vpack.c.b16 %v3574, %v3570
        %v4443 = vpack.c.b16 %v3575, %v3571
        %v4444 = vpack.c.b16 %v3576, %v3572
        %v4445 = vpack.c.b16 %v3577, %v3573
        %v4446 = vpack.c.b16 %v3582, %v3578
        %v4447 = vpack.c.b16 %v3583, %v3579
        %v4448 = vpack.c.b16 %v3584, %v3580
        %v4449 = vpack.c.b16 %v3585, %v3581
        %v4450 = vpack.c.b16 %v3590, %v3586
        %v4451 = vpack.c.b16 %v3591, %v3587
        %v4452 = vpack.c.b16 %v3592, %v3588
        %v4453 = vpack.c.b16 %v3593, %v3589
        %v4454 = vpack.c.b16 %v3598, %v3594
        %v4455 = vpack.c.b16 %v3599, %v3595
        %v4456 = vpack.c.b16 %v3600, %v3596
        %v4457 = vpack.c.b16 %v3601, %v3597
        %v4458 = vpack.c.b16 %v3606, %v3602
        %v4459 = vpack.c.b16 %v3607, %v3603
        %v4460 = vpack.c.b16 %v3608, %v3604
        %v4461 = vpack.c.b16 %v3609, %v3605
        %v4462 = vpack.c.b16 %v3614, %v3610
        %v4463 = vpack.c.b16 %v3615, %v3611
        %v4464 = vpack.c.b16 %v3616, %v3612
        %v4465 = vpack.c.b16 %v3617, %v3613
        %v4466 = vpack.c.b16 %v3622, %v3618
        %v4467 = vpack.c.b16 %v3623, %v3619
        %v4468 = vpack.c.b16 %v3624, %v3620
        %v4469 = vpack.c.b16 %v3625, %v3621
        %v4470 = vpack.c.b16 %v3630, %v3626
        %v4471 = vpack.c.b16 %v3631, %v3627
        %v4472 = vpack.c.b16 %v3632, %v3628
        %v4473 = vpack.c.b16 %v3633, %v3629
        %v4474 = vpack.c.b16 %v3638, %v3634
        %v4475 = vpack.c.b16 %v3639, %v3635
        %v4476 = vpack.c.b16 %v3640, %v3636
        %v4477 = vpack.c.b16 %v3641, %v3637
        %v4478 = vpack.c.b16 %v3646, %v3642
        %v4479 = vpack.c.b16 %v3647, %v3643
        %v4480 = vpack.c.b16 %v3648, %v3644
        %v4481 = vpack.c.b16 %v3649, %v3645
        %v4482 = vpack.c.b16 %v3654, %v3650
        %v4483 = vpack.c.b16 %v3655, %v3651
        %v4484 = vpack.c.b16 %v3656, %v3652
        %v4485 = vpack.c.b16 %v3657, %v3653
        %v4486 = vpack.c.b16 %v3662, %v3658
        %v4487 = vpack.c.b16 %v3663, %v3659
        %v4488 = vpack.c.b16 %v3664, %v3660
        %v4489 = vpack.c.b16 %v3665, %v3661
        %v4490 = vpack.c.b16 %v3670, %v3666
        %v4491 = vpack.c.b16 %v3671, %v3667
        %v4492 = vpack.c.b16 %v3672, %v3668
        %v4493 = vpack.c.b16 %v3673, %v3669
        %v4494 = vpack.c.b16 %v3678, %v3674
        %v4495 = vpack.c.b16 %v3679, %v3675
        %v4496 = vpack.c.b16 %v3680, %v3676
        %v4497 = vpack.c.b16 %v3681, %v3677
        %v4498 = vpack.c.b16 %v3686, %v3682
        %v4499 = vpack.c.b16 %v3687, %v3683
        %v4500 = vpack.c.b16 %v3688, %v3684
        %v4501 = vpack.c.b16 %v3689, %v3685
        %v4502 = vpack.c.b16 %v3694, %v3690
        %v4503 = vpack.c.b16 %v3695, %v3691
        %v4504 = vpack.c.b16 %v3696, %v3692
        %v4505 = vpack.c.b16 %v3697, %v3693
        %v4506 = vpack.c.b16 %v3702, %v3698
        %v4507 = vpack.c.b16 %v3703, %v3699
        %v4508 = vpack.c.b16 %v3704, %v3700
        %v4509 = vpack.c.b16 %v3705, %v3701
        %v4510 = vpack.c.b16 %v3710, %v3706
        %v4511 = vpack.c.b16 %v3711, %v3707
        %v4512 = vpack.c.b16 %v3712, %v3708
        %v4513 = vpack.c.b16 %v3713, %v3709
        %v4514 = vpack.c.b16 %v3718, %v3714
        %v4515 = vpack.c.b16 %v3719, %v3715
        %v4516 = vpack.c.b16 %v3720, %v3716
        %v4517 = vpack.c.b16 %v3721, %v3717
        %v4518 = vpack.c.b16 %v3726, %v3722
        %v4519 = vpack.c.b16 %v3727, %v3723
        %v4520 = vpack.c.b16 %v3728, %v3724
        %v4521 = vpack.c.b16 %v3729, %v3725
        %v4522 = vpack.c.b16 %v3734, %v3730
        %v4523 = vpack.c.b16 %v3735, %v3731
        %v4524 = vpack.c.b16 %v3736, %v3732
        %v4525 = vpack.c.b16 %v3737, %v3733
        %v4526 = vpack.c.b16 %v3742, %v3738
        %v4527 = vpack.c.b16 %v3743, %v3739
        %v4528 = vpack.c.b16 %v3744, %v3740
        %v4529 = vpack.c.b16 %v3745, %v3741
        %v4530 = vpack.c.b16 %v3750, %v3746
        %v4531 = vpack.c.b16 %v3751, %v3747
        %v4532 = vpack.c.b16 %v3752, %v3748
        %v4533 = vpack.c.b16 %v3753, %v3749
        %v4534 = vpack.c.b16 %v3758, %v3754
        %v4535 = vpack.c.b16 %v3759, %v3755
        %v4536 = vpack.c.b16 %v3760, %v3756
        %v4537 = vpack.c.b16 %v3761, %v3757
        %v4538 = vpack.c.b16 %v3766, %v3762
        %v4539 = vpack.c.b16 %v3767, %v3763
        %v4540 = vpack.c.b16 %v3768, %v3764
        %v4541 = vpack.c.b16 %v3769, %v3765
        %v4542 = vpack.c.b16 %v3774, %v3770
        %v4543 = vpack.c.b16 %v3775, %v3771
        %v4544 = vpack.c.b16 %v3776, %v3772
        %v4545 = vpack.c.b16 %v3777, %v3773
        %v4546 = vpack.c.b16 %v3782, %v3778
        %v4547 = vpack.c.b16 %v3783, %v3779
        %v4548 = vpack.c.b16 %v3784, %v3780
        %v4549 = vpack.c.b16 %v3785, %v3781
        %v4550 = vpack.c.b16 %v3790, %v3786
        %v4551 = vpack.c.b16 %v3791, %v3787
        %v4552 = vpack.c.b16 %v3792, %v3788
        %v4553 = vpack.c.b16 %v3793, %v3789
        %v4554 = vpack.c.b16 %v3798, %v3794
        %v4555 = vpack.c.b16 %v3799, %v3795
        %v4556 = vpack.c.b16 %v3800, %v3796
        %v4557 = vpack.c.b16 %v3801, %v3797
        %v4558 = vpack.c.b16 %v3806, %v3802
        %v4559 = vpack.c.b16 %v3807, %v3803
        %v4560 = vpack.c.b16 %v3808, %v3804
        %v4561 = vpack.c.b16 %v3809, %v3805
        %v4562 = vpack.c.b16 %v3814, %v3810
        %v4563 = vpack.c.b16 %v3815, %v3811
        %v4564 = vpack.c.b16 %v3816, %v3812
        %v4565 = vpack.c.b16 %v3817, %v3813
        %v4566 = vpack.c.b16 %v3822, %v3818
        %v4567 = vpack.c.b16 %v3823, %v3819
        %v4568 = vpack.c.b16 %v3824, %v3820
        %v4569 = vpack.c.b16 %v3825, %v3821
        %v4570 = vpack.c.b16 %v3830, %v3826
        %v4571 = vpack.c.b16 %v3831, %v3827
        %v4572 = vpack.c.b16 %v3832, %v3828
        %v4573 = vpack.c.b16 %v3833, %v3829
        %v4574 = vpack.c.b16 %v3838, %v3834
        %v4575 = vpack.c.b16 %v3839, %v3835
        %v4576 = vpack.c.b16 %v3840, %v3836
        %v4577 = vpack.c.b16 %v3841, %v3837
        %v4578 = vpack.c.b16 %v3846, %v3842
        %v4579 = vpack.c.b16 %v3847, %v3843
        %v4580 = vpack.c.b16 %v3848, %v3844
        %v4581 = vpack.c.b16 %v3849, %v3845
        %v4582 = vpack.c.b16 %v3854, %v3850
        %v4583 = vpack.c.b16 %v3855, %v3851
        %v4584 = vpack.c.b16 %v3856, %v3852
        %v4585 = vpack.c.b16 %v3857, %v3853
        %v4586 = vpack.c.b16 %v3862, %v3858
        %v4587 = vpack.c.b16 %v3863, %v3859
        %v4588 = vpack.c.b16 %v3864, %v3860
        %v4589 = vpack.c.b16 %v3865, %v3861
        %v4590 = vpack.c.b16 %v3870, %v3866
        %v4591 = vpack.c.b16 %v3871, %v3867
        %v4592 = vpack.c.b16 %v3872, %v3868
        %v4593 = vpack.c.b16 %v3873, %v3869
        %v4594 = vpack.c.b16 %v3878, %v3874
        %v4595 = vpack.c.b16 %v3879, %v3875
        %v4596 = vpack.c.b16 %v3880, %v3876
        %v4597 = vpack.c.b16 %v3881, %v3877
        %v4598 = vpack.c.b16 %v3886, %v3882
        %v4599 = vpack.c.b16 %v3887, %v3883
        %v4600 = vpack.c.b16 %v3888, %v3884
        %v4601 = vpack.c.b16 %v3889, %v3885
        %v4602 = vpack.c.b16 %v3894, %v3890
        %v4603 = vpack.c.b16 %v3895, %v3891
        %v4604 = vpack.c.b16 %v3896, %v3892
        %v4605 = vpack.c.b16 %v3897, %v3893
        %v4606 = vpack.c.b16 %v3902, %v3898
        %v4607 = vpack.c.b16 %v3903, %v3899
        %v4608 = vpack.c.b16 %v3904, %v3900
        %v4609 = vpack.c.b16 %v3905, %v3901
        %v4610 = vpack.c.b16 %v3910, %v3906
        %v4611 = vpack.c.b16 %v3911, %v3907
        %v4612 = vpack.c.b16 %v3912, %v3908
        %v4613 = vpack.c.b16 %v3913, %v3909
        %v4614 = vpack.c.b16 %v3918, %v3914
        %v4615 = vpack.c.b16 %v3919, %v3915
        %v4616 = vpack.c.b16 %v3920, %v3916
        %v4617 = vpack.c.b16 %v3921, %v3917
        %v4618 = vpack.c.b16 %v3926, %v3922
        %v4619 = vpack.c.b16 %v3927, %v3923
        %v4620 = vpack.c.b16 %v3928, %v3924
        %v4621 = vpack.c.b16 %v3929, %v3925
        %v4622 = vpack.c.b16 %v3934, %v3930
        %v4623 = vpack.c.b16 %v3935, %v3931
        %v4624 = vpack.c.b16 %v3936, %v3932
        %v4625 = vpack.c.b16 %v3937, %v3933
        %v4626 = vpack.c.b16 %v3942, %v3938
        %v4627 = vpack.c.b16 %v3943, %v3939
        %v4628 = vpack.c.b16 %v3944, %v3940
        %v4629 = vpack.c.b16 %v3945, %v3941
        %v4630 = vpack.c.b16 %v3950, %v3946
        %v4631 = vpack.c.b16 %v3951, %v3947
        %v4632 = vpack.c.b16 %v3952, %v3948
        %v4633 = vpack.c.b16 %v3953, %v3949
        %v4634 = vpack.c.b16 %v3958, %v3954
        %v4635 = vpack.c.b16 %v3959, %v3955
        %v4636 = vpack.c.b16 %v3960, %v3956
        %v4637 = vpack.c.b16 %v3961, %v3957
        %v4638 = vpack.c.b16 %v3966, %v3962
        %v4639 = vpack.c.b16 %v3967, %v3963
        %v4640 = vpack.c.b16 %v3968, %v3964
        %v4641 = vpack.c.b16 %v3969, %v3965
        %v4642 = vpack.c.b16 %v3974, %v3970
        %v4643 = vpack.c.b16 %v3975, %v3971
        %v4644 = vpack.c.b16 %v3976, %v3972
        %v4645 = vpack.c.b16 %v3977, %v3973
        %v4646 = vpack.c.b16 %v3982, %v3978
        %v4647 = vpack.c.b16 %v3983, %v3979
        %v4648 = vpack.c.b16 %v3984, %v3980
        %v4649 = vpack.c.b16 %v3985, %v3981
        %v4650 = vpack.c.b16 %v3990, %v3986
        %v4651 = vpack.c.b16 %v3991, %v3987
        %v4652 = vpack.c.b16 %v3992, %v3988
        %v4653 = vpack.c.b16 %v3993, %v3989
        %v4654 = vpack.c.b16 %v3998, %v3994
        %v4655 = vpack.c.b16 %v3999, %v3995
        %v4656 = vpack.c.b16 %v4000, %v3996
        %v4657 = vpack.c.b16 %v4001, %v3997
        %v4658 = vpack.c.b16 %v4006, %v4002
        %v4659 = vpack.c.b16 %v4007, %v4003
        %v4660 = vpack.c.b16 %v4008, %v4004
        %v4661 = vpack.c.b16 %v4009, %v4005
        %v4662 = vpack.c.b16 %v4014, %v4010
        %v4663 = vpack.c.b16 %v4015, %v4011
        %v4664 = vpack.c.b16 %v4016, %v4012
        %v4665 = vpack.c.b16 %v4017, %v4013
        %v4666 = vpack.c.b16 %v4022, %v4018
        %v4667 = vpack.c.b16 %v4023, %v4019
        %v4668 = vpack.c.b16 %v4024, %v4020
        %v4669 = vpack.c.b16 %v4025, %v4021
        %v4670 = vpack.c.b16 %v4030, %v4026
        %v4671 = vpack.c.b16 %v4031, %v4027
        %v4672 = vpack.c.b16 %v4032, %v4028
        %v4673 = vpack.c.b16 %v4033, %v4029
        %v4674 = vpack.c.b16 %v4038, %v4034
        %v4675 = vpack.c.b16 %v4039, %v4035
        %v4676 = vpack.c.b16 %v4040, %v4036
        %v4677 = vpack.c.b16 %v4041, %v4037
        %v4678 = vpack.c.b16 %v4046, %v4042
        %v4679 = vpack.c.b16 %v4047, %v4043
        %v4680 = vpack.c.b16 %v4048, %v4044
        %v4681 = vpack.c.b16 %v4049, %v4045
        %v4682 = vpack.c.b16 %v4054, %v4050
        %v4683 = vpack.c.b16 %v4055, %v4051
        %v4684 = vpack.c.b16 %v4056, %v4052
        %v4685 = vpack.c.b16 %v4057, %v4053
        %v4686 = vpack.c.b16 %v4062, %v4058
        %v4687 = vpack.c.b16 %v4063, %v4059
        %v4688 = vpack.c.b16 %v4064, %v4060
        %v4689 = vpack.c.b16 %v4065, %v4061
        %v4690 = vpack.c.b16 %v4070, %v4066
        %v4691 = vpack.c.b16 %v4071, %v4067
        %v4692 = vpack.c.b16 %v4072, %v4068
        %v4693 = vpack.c.b16 %v4073, %v4069
        %v4694 = vpack.c.b16 %v4078, %v4074
        %v4695 = vpack.c.b16 %v4079, %v4075
        %v4696 = vpack.c.b16 %v4080, %v4076
        %v4697 = vpack.c.b16 %v4081, %v4077
        %v4698 = vpack.c.b16 %v4086, %v4082
        %v4699 = vpack.c.b16 %v4087, %v4083
        %v4700 = vpack.c.b16 %v4088, %v4084
        %v4701 = vpack.c.b16 %v4089, %v4085
        %v4702 = vpack.c.b16 %v4094, %v4090
        %v4703 = vpack.c.b16 %v4095, %v4091
        %v4704 = vpack.c.b16 %v4096, %v4092
        %v4705 = vpack.c.b16 %v4097, %v4093
        %v4706 = vpack.c.b16 %v4102, %v4098
        %v4707 = vpack.c.b16 %v4103, %v4099
        %v4708 = vpack.c.b16 %v4104, %v4100
        %v4709 = vpack.c.b16 %v4105, %v4101
        %v4710 = vpack.c.b16 %v4110, %v4106
        %v4711 = vpack.c.b16 %v4111, %v4107
        %v4712 = vpack.c.b16 %v4112, %v4108
        %v4713 = vpack.c.b16 %v4113, %v4109
        %v4714 = vpack.c.b16 %v4118, %v4114
        %v4715 = vpack.c.b16 %v4119, %v4115
        %v4716 = vpack.c.b16 %v4120, %v4116
        %v4717 = vpack.c.b16 %v4121, %v4117
        %v4718 = vpack.c.b16 %v4126, %v4122
        %v4719 = vpack.c.b16 %v4127, %v4123
        %v4720 = vpack.c.b16 %v4128, %v4124
        %v4721 = vpack.c.b16 %v4129, %v4125
        %v4722 = vpack.c.b16 %v4134, %v4130
        %v4723 = vpack.c.b16 %v4135, %v4131
        %v4724 = vpack.c.b16 %v4136, %v4132
        %v4725 = vpack.c.b16 %v4137, %v4133
        %v4726 = vpack.c.b16 %v4142, %v4138
        %v4727 = vpack.c.b16 %v4143, %v4139
        %v4728 = vpack.c.b16 %v4144, %v4140
        %v4729 = vpack.c.b16 %v4145, %v4141
        %v4730 = vpack.c.b16 %v4150, %v4146
        %v4731 = vpack.c.b16 %v4151, %v4147
        %v4732 = vpack.c.b16 %v4152, %v4148
        %v4733 = vpack.c.b16 %v4153, %v4149
        %v4734 = vpack.c.b16 %v4158, %v4154
        %v4735 = vpack.c.b16 %v4159, %v4155
        %v4736 = vpack.c.b16 %v4160, %v4156
        %v4737 = vpack.c.b16 %v4161, %v4157
        %v4738 = vpack.c.b16 %v4166, %v4162
        %v4739 = vpack.c.b16 %v4167, %v4163
        %v4740 = vpack.c.b16 %v4168, %v4164
        %v4741 = vpack.c.b16 %v4169, %v4165
        %v4742 = vpack.c.b16 %v4174, %v4170
        %v4743 = vpack.c.b16 %v4175, %v4171
        %v4744 = vpack.c.b16 %v4176, %v4172
        %v4745 = vpack.c.b16 %v4177, %v4173
        %v4746 = vpack.c.b16 %v4182, %v4178
        %v4747 = vpack.c.b16 %v4183, %v4179
        %v4748 = vpack.c.b16 %v4184, %v4180
        %v4749 = vpack.c.b16 %v4185, %v4181
        %v4750 = vpack.c.b16 %v4190, %v4186
        %v4751 = vpack.c.b16 %v4191, %v4187
        %v4752 = vpack.c.b16 %v4192, %v4188
        %v4753 = vpack.c.b16 %v4193, %v4189
        %v4754 = vpack.c.b16 %v4198, %v4194
        %v4755 = vpack.c.b16 %v4199, %v4195
        %v4756 = vpack.c.b16 %v4200, %v4196
        %v4757 = vpack.c.b16 %v4201, %v4197
        %v4758 = vpack.c.b16 %v4206, %v4202
        %v4759 = vpack.c.b16 %v4207, %v4203
        %v4760 = vpack.c.b16 %v4208, %v4204
        %v4761 = vpack.c.b16 %v4209, %v4205
        %v4762 = vpack.c.b16 %v4214, %v4210
        %v4763 = vpack.c.b16 %v4215, %v4211
        %v4764 = vpack.c.b16 %v4216, %v4212
        %v4765 = vpack.c.b16 %v4217, %v4213
        %v4766 = vpack.c.b16 %v4222, %v4218
        %v4767 = vpack.c.b16 %v4223, %v4219
        %v4768 = vpack.c.b16 %v4224, %v4220
        %v4769 = vpack.c.b16 %v4225, %v4221
        %v4770 = vpack.c.b16 %v4230, %v4226
        %v4771 = vpack.c.b16 %v4231, %v4227
        %v4772 = vpack.c.b16 %v4232, %v4228
        %v4773 = vpack.c.b16 %v4233, %v4229
        %v4774 = vpack.c.b16 %v4238, %v4234
        %v4775 = vpack.c.b16 %v4239, %v4235
        %v4776 = vpack.c.b16 %v4240, %v4236
        %v4777 = vpack.c.b16 %v4241, %v4237
        %v4778 = vpack.c.b16 %v4246, %v4242
        %v4779 = vpack.c.b16 %v4247, %v4243
        %v4780 = vpack.c.b16 %v4248, %v4244
        %v4781 = vpack.c.b16 %v4249, %v4245
        %v4782 = vpack.c.b16 %v4254, %v4250
        %v4783 = vpack.c.b16 %v4255, %v4251
        %v4784 = vpack.c.b16 %v4256, %v4252
        %v4785 = vpack.c.b16 %v4257, %v4253
        %v4786 = vpack.c.b16 %v4262, %v4258
        %v4787 = vpack.c.b16 %v4263, %v4259
        %v4788 = vpack.c.b16 %v4264, %v4260
        %v4789 = vpack.c.b16 %v4265, %v4261
        %v4790 = vpack.c.b16 %v4270, %v4266
        %v4791 = vpack.c.b16 %v4271, %v4267
        %v4792 = vpack.c.b16 %v4272, %v4268
        %v4793 = vpack.c.b16 %v4273, %v4269
        %v4794 = vpack.c.b16 %v4278, %v4274
        %v4795 = vpack.c.b16 %v4279, %v4275
        %v4796 = vpack.c.b16 %v4280, %v4276
        %v4797 = vpack.c.b16 %v4281, %v4277
        %v4798 = vpack.c.b16 %v4286, %v4282
        %v4799 = vpack.c.b16 %v4287, %v4283
        %v4800 = vpack.c.b16 %v4288, %v4284
        %v4801 = vpack.c.b16 %v4289, %v4285
        %v4802 = vpack.c.b16 %v4294, %v4290
        %v4803 = vpack.c.b16 %v4295, %v4291
        %v4804 = vpack.c.b16 %v4296, %v4292
        %v4805 = vpack.c.b16 %v4297, %v4293
        %v4806 = vpack.c.b16 %v4302, %v4298
        %v4807 = vpack.c.b16 %v4303, %v4299
        %v4808 = vpack.c.b16 %v4304, %v4300
        %v4809 = vpack.c.b16 %v4305, %v4301
        %v4810 = vpack.c.b16 %v4310, %v4306
        %v4811 = vpack.c.b16 %v4311, %v4307
        %v4812 = vpack.c.b16 %v4312, %v4308
        %v4813 = vpack.c.b16 %v4313, %v4309
        %v4814 = vpack.c.b16 %v4318, %v4314
        %v4815 = vpack.c.b16 %v4319, %v4315
        %v4816 = vpack.c.b16 %v4320, %v4316
        %v4817 = vpack.c.b16 %v4321, %v4317
        %v4818 = vpack.c.b16 %v4326, %v4322
        %v4819 = vpack.c.b16 %v4327, %v4323
        %v4820 = vpack.c.b16 %v4328, %v4324
        %v4821 = vpack.c.b16 %v4329, %v4325
        %v4822 = vpack.c.b16 %v4334, %v4330
        %v4823 = vpack.c.b16 %v4335, %v4331
        %v4824 = vpack.c.b16 %v4336, %v4332
        %v4825 = vpack.c.b16 %v4337, %v4333
        %v4826 = vpack.c.b16 %v4342, %v4338
        %v4827 = vpack.c.b16 %v4343, %v4339
        %v4828 = vpack.c.b16 %v4344, %v4340
        %v4829 = vpack.c.b16 %v4345, %v4341
        %v4830 = vpack.c.b16 %v4350, %v4346
        %v4831 = vpack.c.b16 %v4351, %v4347
        %v4832 = vpack.c.b16 %v4352, %v4348
        %v4833 = vpack.c.b16 %v4353, %v4349
        %5314 = vmatprep.subr.bf16.mxu0 %v4355
        %5315 = vmatpush1.bf16.msra.mxu0 %v4354
        %5316 = vmatprep.subr.bf16.mxu0 %v4359
        %5317 = vmatpush1.bf16.msra.mxu0 %v4358
        %5318 = vmatprep.subr.bf16.mxu0 %v4363
        %5319 = vmatpush1.bf16.msra.mxu0 %v4362
        %5320 = vmatprep.subr.bf16.mxu0 %v4367
        %5321 = vmatpush1.bf16.msra.mxu0 %v4366
        %5322 = vmatprep.subr.bf16.mxu0 %v4371
        %5323 = vmatpush1.bf16.msra.mxu0 %v4370
        %5324 = vmatprep.subr.bf16.mxu0 %v4375
        %5325 = vmatpush1.bf16.msra.mxu0 %v4374
        %5326 = vmatprep.subr.bf16.mxu0 %v4379
        %5327 = vmatpush1.bf16.msra.mxu0 %v4378
        %5328 = vmatprep.subr.bf16.mxu0 %v4383
        %5329 = vmatpush1.bf16.msra.mxu0 %v4382
        %5330 = vmatprep.subr.bf16.mxu0 %v4387
        %5331 = vmatpush1.bf16.msra.mxu0 %v4386
        %5332 = vmatprep.subr.bf16.mxu0 %v4391
        %5333 = vmatpush1.bf16.msra.mxu0 %v4390
        %5334 = vmatprep.subr.bf16.mxu0 %v4395
        %5335 = vmatpush1.bf16.msra.mxu0 %v4394
        %5336 = vmatprep.subr.bf16.mxu0 %v4399
        %5337 = vmatpush1.bf16.msra.mxu0 %v4398
        %5338 = vmatprep.subr.bf16.mxu0 %v4403
        %5339 = vmatpush1.bf16.msra.mxu0 %v4402
        %5340 = vmatprep.subr.bf16.mxu0 %v4407
        %5341 = vmatpush1.bf16.msra.mxu0 %v4406
        %5342 = vmatprep.subr.bf16.mxu0 %v4411
        %5343 = vmatpush1.bf16.msra.mxu0 %v4410
        %5344 = vmatprep.subr.bf16.mxu0 %v4415
        %5345 = vmatpush1.bf16.msra.mxu0 %v4414
        %5346 = vmatprep.mubr.bf16.mxu0 %v2297
        %5347 = vmatmul.mubr.bf16.gmra.mrb[0].mxu0 %v2296
        %v5348 = vpop.f32.mrb[0].mxu0
        %v5349 = vadd.f32 0.0, %v5348
        %v5350 = vpop.f32.mrb[0].mxu0
        %v5351 = vadd.f32 0.0, %v5350
        %v5352 = vpop.f32.mrb[0].mxu0
        %v5353 = vpop.f32.mrb[0].mxu0
        %5354 = vdwg.mxu0
        %5355 = vmatprep.subr.bf16.mxu0 %v4419
        %5356 = vmatpush1.bf16.msra.mxu0 %v4418
        %5357 = vmatprep.subr.bf16.mxu0 %v4423
        %5358 = vmatpush1.bf16.msra.mxu0 %v4422
        %5359 = vmatprep.subr.bf16.mxu0 %v4427
        %5360 = vmatpush1.bf16.msra.mxu0 %v4426
        %5361 = vmatprep.subr.bf16.mxu0 %v4431
        %5362 = vmatpush1.bf16.msra.mxu0 %v4430
        %5363 = vmatprep.subr.bf16.mxu0 %v4435
        %5364 = vmatpush1.bf16.msra.mxu0 %v4434
        %5365 = vmatprep.subr.bf16.mxu0 %v4439
        %5366 = vmatpush1.bf16.msra.mxu0 %v4438
        %5367 = vmatprep.subr.bf16.mxu0 %v4443
        %5368 = vmatpush1.bf16.msra.mxu0 %v4442
        %5369 = vmatprep.subr.bf16.mxu0 %v4447
        %5370 = vmatpush1.bf16.msra.mxu0 %v4446
        %5371 = vmatprep.subr.bf16.mxu0 %v4451
        %5372 = vmatpush1.bf16.msra.mxu0 %v4450
        %5373 = vmatprep.subr.bf16.mxu0 %v4455
        %5374 = vmatpush1.bf16.msra.mxu0 %v4454
        %5375 = vmatprep.subr.bf16.mxu0 %v4459
        %5376 = vmatpush1.bf16.msra.mxu0 %v4458
        %5377 = vmatprep.subr.bf16.mxu0 %v4463
        %5378 = vmatpush1.bf16.msra.mxu0 %v4462
        %5379 = vmatprep.subr.bf16.mxu0 %v4467
        %5380 = vmatpush1.bf16.msra.mxu0 %v4466
        %5381 = vmatprep.subr.bf16.mxu0 %v4471
        %5382 = vmatpush1.bf16.msra.mxu0 %v4470
        %5383 = vmatprep.subr.bf16.mxu0 %v4475
        %5384 = vmatpush1.bf16.msra.mxu0 %v4474
        %5385 = vmatprep.subr.bf16.mxu0 %v4479
        %5386 = vmatpush1.bf16.msra.mxu0 %v4478
        %5387 = vmatprep.mubr.bf16.mxu0 %v2329
        %5388 = vmatmul.mubr.bf16.gmra.mrb[0].mxu0 %v2298
        %v5389 = vpop.f32.mrb[0].mxu0
        %v5390 = vadd.f32 %v5349, %v5389
        %v5391 = vpop.f32.mrb[0].mxu0
        %v5392 = vadd.f32 %v5351, %v5391
        %v5393 = vpop.f32.mrb[0].mxu0
        %v5394 = vpop.f32.mrb[0].mxu0
        %5395 = vdwg.mxu0
        %5396 = vmatprep.subr.bf16.mxu0 %v4483
        %5397 = vmatpush1.bf16.msra.mxu0 %v4482
        %5398 = vmatprep.subr.bf16.mxu0 %v4487
        %5399 = vmatpush1.bf16.msra.mxu0 %v4486
        %5400 = vmatprep.subr.bf16.mxu0 %v4491
        %5401 = vmatpush1.bf16.msra.mxu0 %v4490
        %5402 = vmatprep.subr.bf16.mxu0 %v4495
        %5403 = vmatpush1.bf16.msra.mxu0 %v4494
        %5404 = vmatprep.subr.bf16.mxu0 %v4499
        %5405 = vmatpush1.bf16.msra.mxu0 %v4498
        %5406 = vmatprep.subr.bf16.mxu0 %v4503
        %5407 = vmatpush1.bf16.msra.mxu0 %v4502
        %5408 = vmatprep.subr.bf16.mxu0 %v4507
        %5409 = vmatpush1.bf16.msra.mxu0 %v4506
        %5410 = vmatprep.subr.bf16.mxu0 %v4511
        %5411 = vmatpush1.bf16.msra.mxu0 %v4510
        %5412 = vmatprep.subr.bf16.mxu0 %v4515
        %5413 = vmatpush1.bf16.msra.mxu0 %v4514
        %5414 = vmatprep.subr.bf16.mxu0 %v4519
        %5415 = vmatpush1.bf16.msra.mxu0 %v4518
        %5416 = vmatprep.subr.bf16.mxu0 %v4523
        %5417 = vmatpush1.bf16.msra.mxu0 %v4522
        %5418 = vmatprep.subr.bf16.mxu0 %v4527
        %5419 = vmatpush1.bf16.msra.mxu0 %v4526
        %5420 = vmatprep.subr.bf16.mxu0 %v4531
        %5421 = vmatpush1.bf16.msra.mxu0 %v4530
        %5422 = vmatprep.subr.bf16.mxu0 %v4535
        %5423 = vmatpush1.bf16.msra.mxu0 %v4534
        %5424 = vmatprep.subr.bf16.mxu0 %v4539
        %5425 = vmatpush1.bf16.msra.mxu0 %v4538
        %5426 = vmatprep.subr.bf16.mxu0 %v4543
        %5427 = vmatpush1.bf16.msra.mxu0 %v4542
        %5428 = vmatprep.mubr.bf16.mxu0 %v2331
        %5429 = vmatmul.mubr.bf16.gmra.mrb[0].mxu0 %v2330
        %v5430 = vpop.f32.mrb[0].mxu0
        %v5431 = vadd.f32 %v5390, %v5430
        %v5432 = vpop.f32.mrb[0].mxu0
        %v5433 = vadd.f32 %v5392, %v5432
        %v5434 = vpop.f32.mrb[0].mxu0
        %v5435 = vpop.f32.mrb[0].mxu0
        %5436 = vdwg.mxu0
        %5437 = vmatprep.subr.bf16.mxu0 %v4547
        %5438 = vmatpush1.bf16.msra.mxu0 %v4546
        %5439 = vmatprep.subr.bf16.mxu0 %v4551
        %5440 = vmatpush1.bf16.msra.mxu0 %v4550
        %5441 = vmatprep.subr.bf16.mxu0 %v4555
        %5442 = vmatpush1.bf16.msra.mxu0 %v4554
        %5443 = vmatprep.subr.bf16.mxu0 %v4559
        %5444 = vmatpush1.bf16.msra.mxu0 %v4558
        %5445 = vmatprep.subr.bf16.mxu0 %v4563
        %5446 = vmatpush1.bf16.msra.mxu0 %v4562
        %5447 = vmatprep.subr.bf16.mxu0 %v4567
        %5448 = vmatpush1.bf16.msra.mxu0 %v4566
        %5449 = vmatprep.subr.bf16.mxu0 %v4571
        %5450 = vmatpush1.bf16.msra.mxu0 %v4570
        %5451 = vmatprep.subr.bf16.mxu0 %v4575
        %5452 = vmatpush1.bf16.msra.mxu0 %v4574
        %5453 = vmatprep.subr.bf16.mxu0 %v4579
        %5454 = vmatpush1.bf16.msra.mxu0 %v4578
        %5455 = vmatprep.subr.bf16.mxu0 %v4583
        %5456 = vmatpush1.bf16.msra.mxu0 %v4582
        %5457 = vmatprep.subr.bf16.mxu0 %v4587
        %5458 = vmatpush1.bf16.msra.mxu0 %v4586
        %5459 = vmatprep.subr.bf16.mxu0 %v4591
        %5460 = vmatpush1.bf16.msra.mxu0 %v4590
        %5461 = vmatprep.subr.bf16.mxu0 %v4595
        %5462 = vmatpush1.bf16.msra.mxu0 %v4594
        %5463 = vmatprep.subr.bf16.mxu0 %v4599
        %5464 = vmatpush1.bf16.msra.mxu0 %v4598
        %5465 = vmatprep.subr.bf16.mxu0 %v4603
        %5466 = vmatpush1.bf16.msra.mxu0 %v4602
        %5467 = vmatprep.subr.bf16.mxu0 %v4607
        %5468 = vmatpush1.bf16.msra.mxu0 %v4606
        %5469 = vmatprep.mubr.bf16.mxu0 %v2363
        %5470 = vmatmul.mubr.bf16.gmra.mrb[0].mxu0 %v2362
        %v5471 = vpop.f32.mrb[0].mxu0
        %v5472 = vadd.f32 %v5431, %v5471
        %v5473 = vpop.f32.mrb[0].mxu0
        %v5474 = vadd.f32 %v5433, %v5473
        %v5475 = vpop.f32.mrb[0].mxu0
        %v5476 = vpop.f32.mrb[0].mxu0
        %5477 = vdwg.mxu0
        %5478 = vmatprep.subr.bf16.mxu0 %v4611
        %5479 = vmatpush1.bf16.msra.mxu0 %v4610
        %5480 = vmatprep.subr.bf16.mxu0 %v4615
        %5481 = vmatpush1.bf16.msra.mxu0 %v4614
        %5482 = vmatprep.subr.bf16.mxu0 %v4619
        %5483 = vmatpush1.bf16.msra.mxu0 %v4618
        %5484 = vmatprep.subr.bf16.mxu0 %v4623
        %5485 = vmatpush1.bf16.msra.mxu0 %v4622
        %5486 = vmatprep.subr.bf16.mxu0 %v4627
        %5487 = vmatpush1.bf16.msra.mxu0 %v4626
        %5488 = vmatprep.subr.bf16.mxu0 %v4631
        %5489 = vmatpush1.bf16.msra.mxu0 %v4630
        %5490 = vmatprep.subr.bf16.mxu0 %v4635
        %5491 = vmatpush1.bf16.msra.mxu0 %v4634
        %5492 = vmatprep.subr.bf16.mxu0 %v4639
        %5493 = vmatpush1.bf16.msra.mxu0 %v4638
        %5494 = vmatprep.subr.bf16.mxu0 %v4643
        %5495 = vmatpush1.bf16.msra.mxu0 %v4642
        %5496 = vmatprep.subr.bf16.mxu0 %v4647
        %5497 = vmatpush1.bf16.msra.mxu0 %v4646
        %5498 = vmatprep.subr.bf16.mxu0 %v4651
        %5499 = vmatpush1.bf16.msra.mxu0 %v4650
        %5500 = vmatprep.subr.bf16.mxu0 %v4655
        %5501 = vmatpush1.bf16.msra.mxu0 %v4654
        %5502 = vmatprep.subr.bf16.mxu0 %v4659
        %5503 = vmatpush1.bf16.msra.mxu0 %v4658
        %5504 = vmatprep.subr.bf16.mxu0 %v4663
        %5505 = vmatpush1.bf16.msra.mxu0 %v4662
        %5506 = vmatprep.subr.bf16.mxu0 %v4667
        %5507 = vmatpush1.bf16.msra.mxu0 %v4666
        %5508 = vmatprep.subr.bf16.mxu0 %v4671
        %5509 = vmatpush1.bf16.msra.mxu0 %v4670
        %5510 = vmatprep.mubr.bf16.mxu0 %v2395
        %5511 = vmatmul.mubr.bf16.gmra.mrb[0].mxu0 %v2364
        %v5512 = vpop.f32.mrb[0].mxu0
        %v5513 = vadd.f32 %v5472, %v5512
        %v5514 = vpop.f32.mrb[0].mxu0
        %v5515 = vadd.f32 %v5474, %v5514
        %v5516 = vpop.f32.mrb[0].mxu0
        %v5517 = vpop.f32.mrb[0].mxu0
        %5518 = vdwg.mxu0
        %5519 = vmatprep.subr.bf16.mxu0 %v4675
        %5520 = vmatpush1.bf16.msra.mxu0 %v4674
        %5521 = vmatprep.subr.bf16.mxu0 %v4679
        %5522 = vmatpush1.bf16.msra.mxu0 %v4678
        %5523 = vmatprep.subr.bf16.mxu0 %v4683
        %5524 = vmatpush1.bf16.msra.mxu0 %v4682
        %5525 = vmatprep.subr.bf16.mxu0 %v4687
        %5526 = vmatpush1.bf16.msra.mxu0 %v4686
        %5527 = vmatprep.subr.bf16.mxu0 %v4691
        %5528 = vmatpush1.bf16.msra.mxu0 %v4690
        %5529 = vmatprep.subr.bf16.mxu0 %v4695
        %5530 = vmatpush1.bf16.msra.mxu0 %v4694
        %5531 = vmatprep.subr.bf16.mxu0 %v4699
        %5532 = vmatpush1.bf16.msra.mxu0 %v4698
        %5533 = vmatprep.subr.bf16.mxu0 %v4703
        %5534 = vmatpush1.bf16.msra.mxu0 %v4702
        %5535 = vmatprep.subr.bf16.mxu0 %v4707
        %5536 = vmatpush1.bf16.msra.mxu0 %v4706
        %5537 = vmatprep.subr.bf16.mxu0 %v4711
        %5538 = vmatpush1.bf16.msra.mxu0 %v4710
        %5539 = vmatprep.subr.bf16.mxu0 %v4715
        %5540 = vmatpush1.bf16.msra.mxu0 %v4714
        %5541 = vmatprep.subr.bf16.mxu0 %v4719
        %5542 = vmatpush1.bf16.msra.mxu0 %v4718
        %5543 = vmatprep.subr.bf16.mxu0 %v4723
        %5544 = vmatpush1.bf16.msra.mxu0 %v4722
        %5545 = vmatprep.subr.bf16.mxu0 %v4727
        %5546 = vmatpush1.bf16.msra.mxu0 %v4726
        %5547 = vmatprep.subr.bf16.mxu0 %v4731
        %5548 = vmatpush1.bf16.msra.mxu0 %v4730
        %5549 = vmatprep.subr.bf16.mxu0 %v4735
        %5550 = vmatpush1.bf16.msra.mxu0 %v4734
        %5551 = vmatprep.mubr.bf16.mxu0 %v2397
        %5552 = vmatmul.mubr.bf16.gmra.mrb[0].mxu0 %v2396
        %v5553 = vpop.f32.mrb[0].mxu0
        %v5554 = vadd.f32 %v5513, %v5553
        %v5555 = vpop.f32.mrb[0].mxu0
        %v5556 = vadd.f32 %v5515, %v5555
        %v5557 = vpop.f32.mrb[0].mxu0
        %v5558 = vpop.f32.mrb[0].mxu0
        %5559 = vdwg.mxu0
        %5560 = vmatprep.subr.bf16.mxu0 %v4739
        %5561 = vmatpush1.bf16.msra.mxu0 %v4738
        %5562 = vmatprep.subr.bf16.mxu0 %v4743
        %5563 = vmatpush1.bf16.msra.mxu0 %v4742
        %5564 = vmatprep.subr.bf16.mxu0 %v4747
        %5565 = vmatpush1.bf16.msra.mxu0 %v4746
        %5566 = vmatprep.subr.bf16.mxu0 %v4751
        %5567 = vmatpush1.bf16.msra.mxu0 %v4750
        %5568 = vmatprep.subr.bf16.mxu0 %v4755
        %5569 = vmatpush1.bf16.msra.mxu0 %v4754
        %5570 = vmatprep.subr.bf16.mxu0 %v4759
        %5571 = vmatpush1.bf16.msra.mxu0 %v4758
        %5572 = vmatprep.subr.bf16.mxu0 %v4763
        %5573 = vmatpush1.bf16.msra.mxu0 %v4762
        %5574 = vmatprep.subr.bf16.mxu0 %v4767
        %5575 = vmatpush1.bf16.msra.mxu0 %v4766
        %5576 = vmatprep.subr.bf16.mxu0 %v4771
        %5577 = vmatpush1.bf16.msra.mxu0 %v4770
        %5578 = vmatprep.subr.bf16.mxu0 %v4775
        %5579 = vmatpush1.bf16.msra.mxu0 %v4774
        %5580 = vmatprep.subr.bf16.mxu0 %v4779
        %5581 = vmatpush1.bf16.msra.mxu0 %v4778
        %5582 = vmatprep.subr.bf16.mxu0 %v4783
        %5583 = vmatpush1.bf16.msra.mxu0 %v4782
        %5584 = vmatprep.subr.bf16.mxu0 %v4787
        %5585 = vmatpush1.bf16.msra.mxu0 %v4786
        %5586 = vmatprep.subr.bf16.mxu0 %v4791
        %5587 = vmatpush1.bf16.msra.mxu0 %v4790
        %5588 = vmatprep.subr.bf16.mxu0 %v4795
        %5589 = vmatpush1.bf16.msra.mxu0 %v4794
        %5590 = vmatprep.subr.bf16.mxu0 %v4799
        %5591 = vmatpush1.bf16.msra.mxu0 %v4798
        %5592 = vmatprep.mubr.bf16.mxu0 %v2429
        %5593 = vmatmul.mubr.bf16.gmra.mrb[0].mxu0 %v2428
        %v5594 = vpop.f32.mrb[0].mxu0
        %v5595 = vadd.f32 %v5554, %v5594
        %v5596 = vpop.f32.mrb[0].mxu0
        %v5597 = vadd.f32 %v5556, %v5596
        %v5598 = vpop.f32.mrb[0].mxu0
        %v5599 = vpop.f32.mrb[0].mxu0
        %5600 = vdwg.mxu0
        %5601 = vmatprep.subr.bf16.mxu0 %v4803
        %5602 = vmatpush1.bf16.msra.mxu0 %v4802
        %5603 = vmatprep.subr.bf16.mxu0 %v4807
        %5604 = vmatpush1.bf16.msra.mxu0 %v4806
        %5605 = vmatprep.subr.bf16.mxu0 %v4811
        %5606 = vmatpush1.bf16.msra.mxu0 %v4810
        %5607 = vmatprep.subr.bf16.mxu0 %v4815
        %5608 = vmatpush1.bf16.msra.mxu0 %v4814
        %5609 = vmatprep.subr.bf16.mxu0 %v4819
        %5610 = vmatpush1.bf16.msra.mxu0 %v4818
        %5611 = vmatprep.subr.bf16.mxu0 %v4823
        %5612 = vmatpush1.bf16.msra.mxu0 %v4822
        %5613 = vmatprep.subr.bf16.mxu0 %v4827
        %5614 = vmatpush1.bf16.msra.mxu0 %v4826
        %5615 = vmatprep.subr.bf16.mxu0 %v4831
        %5616 = vmatpush1.bf16.msra.mxu0 %v4830
        %5617 = vmatprep.subr.bf16.mxu0 0
        %5618 = vmatpush1.bf16.msra.mxu0 0
        %5619 = vmatprep.subr.bf16.mxu0 0
        %5620 = vmatpush1.bf16.msra.mxu0 0
        %5621 = vmatprep.subr.bf16.mxu0 0
        %5622 = vmatpush1.bf16.msra.mxu0 0
        %5623 = vmatprep.subr.bf16.mxu0 0
        %5624 = vmatpush1.bf16.msra.mxu0 0
        %5625 = vmatprep.subr.bf16.mxu0 0
        %5626 = vmatpush1.bf16.msra.mxu0 0
        %5627 = vmatprep.subr.bf16.mxu0 0
        %5628 = vmatpush1.bf16.msra.mxu0 0
        %5629 = vmatprep.subr.bf16.mxu0 0
        %5630 = vmatpush1.bf16.msra.mxu0 0
        %5631 = vmatprep.subr.bf16.mxu0 0
        %5632 = vmatpush1.bf16.msra.mxu0 0
        %5633 = vmatprep.mubr.bf16.mxu0 0
        %5634 = vmatmul.mubr.bf16.gmra.mrb[0].mxu0 %v2430
        %v5635 = vpop.f32.mrb[0].mxu0
        %v5636 = vadd.f32 %v5595, %v5635
        %v5637 = vpop.f32.mrb[0].mxu0
        %v5638 = vadd.f32 %v5597, %v5637
        %v5639 = vpop.f32.mrb[0].mxu0
        %v5640 = vpop.f32.mrb[0].mxu0
        %5641 = vdwg.mxu0
        %5642 = vmatprep.subr.bf16.mxu0 %v4357
        %5643 = vmatpush1.bf16.msra.mxu0 %v4356
        %5644 = vmatprep.subr.bf16.mxu0 %v4361
        %5645 = vmatpush1.bf16.msra.mxu0 %v4360
        %5646 = vmatprep.subr.bf16.mxu0 %v4365
        %5647 = vmatpush1.bf16.msra.mxu0 %v4364
        %5648 = vmatprep.subr.bf16.mxu0 %v4369
        %5649 = vmatpush1.bf16.msra.mxu0 %v4368
        %5650 = vmatprep.subr.bf16.mxu0 %v4373
        %5651 = vmatpush1.bf16.msra.mxu0 %v4372
        %5652 = vmatprep.subr.bf16.mxu0 %v4377
        %5653 = vmatpush1.bf16.msra.mxu0 %v4376
        %5654 = vmatprep.subr.bf16.mxu0 %v4381
        %5655 = vmatpush1.bf16.msra.mxu0 %v4380
        %5656 = vmatprep.subr.bf16.mxu0 %v4385
        %5657 = vmatpush1.bf16.msra.mxu0 %v4384
        %5658 = vmatprep.subr.bf16.mxu0 %v4389
        %5659 = vmatpush1.bf16.msra.mxu0 %v4388
        %5660 = vmatprep.subr.bf16.mxu0 %v4393
        %5661 = vmatpush1.bf16.msra.mxu0 %v4392
        %5662 = vmatprep.subr.bf16.mxu0 %v4397
        %5663 = vmatpush1.bf16.msra.mxu0 %v4396
        %5664 = vmatprep.subr.bf16.mxu0 %v4401
        %5665 = vmatpush1.bf16.msra.mxu0 %v4400
        %5666 = vmatprep.subr.bf16.mxu0 %v4405
        %5667 = vmatpush1.bf16.msra.mxu0 %v4404
        %5668 = vmatprep.subr.bf16.mxu0 %v4409
        %5669 = vmatpush1.bf16.msra.mxu0 %v4408
        %5670 = vmatprep.subr.bf16.mxu0 %v4413
        %5671 = vmatpush1.bf16.msra.mxu0 %v4412
        %5672 = vmatprep.subr.bf16.mxu0 %v4417
        %5673 = vmatpush1.bf16.msra.mxu0 %v4416
        %5674 = vmatprep.mubr.bf16.mxu0 %v2297
        %5675 = vmatmul.mubr.bf16.gmra.mrb[0].mxu0 %v2296
        %v5676 = vpop.f32.mrb[0].mxu0
        %v5677 = vadd.f32 0.0, %v5676
        %v5678 = vpop.f32.mrb[0].mxu0
        %v5679 = vadd.f32 0.0, %v5678
        %v5680 = vpop.f32.mrb[0].mxu0
        %v5681 = vpop.f32.mrb[0].mxu0
        %5682 = vdwg.mxu0
        %5683 = vmatprep.subr.bf16.mxu0 %v4421
        %5684 = vmatpush1.bf16.msra.mxu0 %v4420
        %5685 = vmatprep.subr.bf16.mxu0 %v4425
        %5686 = vmatpush1.bf16.msra.mxu0 %v4424
        %5687 = vmatprep.subr.bf16.mxu0 %v4429
        %5688 = vmatpush1.bf16.msra.mxu0 %v4428
        %5689 = vmatprep.subr.bf16.mxu0 %v4433
        %5690 = vmatpush1.bf16.msra.mxu0 %v4432
        %5691 = vmatprep.subr.bf16.mxu0 %v4437
        %5692 = vmatpush1.bf16.msra.mxu0 %v4436
        %5693 = vmatprep.subr.bf16.mxu0 %v4441
        %5694 = vmatpush1.bf16.msra.mxu0 %v4440
        %5695 = vmatprep.subr.bf16.mxu0 %v4445
        %5696 = vmatpush1.bf16.msra.mxu0 %v4444
        %5697 = vmatprep.subr.bf16.mxu0 %v4449
        %5698 = vmatpush1.bf16.msra.mxu0 %v4448
        %5699 = vmatprep.subr.bf16.mxu0 %v4453
        %5700 = vmatpush1.bf16.msra.mxu0 %v4452
        %5701 = vmatprep.subr.bf16.mxu0 %v4457
        %5702 = vmatpush1.bf16.msra.mxu0 %v4456
        %5703 = vmatprep.subr.bf16.mxu0 %v4461
        %5704 = vmatpush1.bf16.msra.mxu0 %v4460
        %5705 = vmatprep.subr.bf16.mxu0 %v4465
        %5706 = vmatpush1.bf16.msra.mxu0 %v4464
        %5707 = vmatprep.subr.bf16.mxu0 %v4469
        %5708 = vmatpush1.bf16.msra.mxu0 %v4468
        %5709 = vmatprep.subr.bf16.mxu0 %v4473
        %5710 = vmatpush1.bf16.msra.mxu0 %v4472
        %5711 = vmatprep.subr.bf16.mxu0 %v4477
        %5712 = vmatpush1.bf16.msra.mxu0 %v4476
        %5713 = vmatprep.subr.bf16.mxu0 %v4481
        %5714 = vmatpush1.bf16.msra.mxu0 %v4480
        %5715 = vmatprep.mubr.bf16.mxu0 %v2329
        %5716 = vmatmul.mubr.bf16.gmra.mrb[0].mxu0 %v2298
        %v5717 = vpop.f32.mrb[0].mxu0
        %v5718 = vadd.f32 %v5677, %v5717
        %v5719 = vpop.f32.mrb[0].mxu0
        %v5720 = vadd.f32 %v5679, %v5719
        %v5721 = vpop.f32.mrb[0].mxu0
        %v5722 = vpop.f32.mrb[0].mxu0
        %5723 = vdwg.mxu0
        %5724 = vmatprep.subr.bf16.mxu0 %v4485
        %5725 = vmatpush1.bf16.msra.mxu0 %v4484
        %5726 = vmatprep.subr.bf16.mxu0 %v4489
        %5727 = vmatpush1.bf16.msra.mxu0 %v4488
        %5728 = vmatprep.subr.bf16.mxu0 %v4493
        %5729 = vmatpush1.bf16.msra.mxu0 %v4492
        %5730 = vmatprep.subr.bf16.mxu0 %v4497
        %5731 = vmatpush1.bf16.msra.mxu0 %v4496
        %5732 = vmatprep.subr.bf16.mxu0 %v4501
        %5733 = vmatpush1.bf16.msra.mxu0 %v4500
        %5734 = vmatprep.subr.bf16.mxu0 %v4505
        %5735 = vmatpush1.bf16.msra.mxu0 %v4504
        %5736 = vmatprep.subr.bf16.mxu0 %v4509
        %5737 = vmatpush1.bf16.msra.mxu0 %v4508
        %5738 = vmatprep.subr.bf16.mxu0 %v4513
        %5739 = vmatpush1.bf16.msra.mxu0 %v4512
        %5740 = vmatprep.subr.bf16.mxu0 %v4517
        %5741 = vmatpush1.bf16.msra.mxu0 %v4516
        %5742 = vmatprep.subr.bf16.mxu0 %v4521
        %5743 = vmatpush1.bf16.msra.mxu0 %v4520
        %5744 = vmatprep.subr.bf16.mxu0 %v4525
        %5745 = vmatpush1.bf16.msra.mxu0 %v4524
        %5746 = vmatprep.subr.bf16.mxu0 %v4529
        %5747 = vmatpush1.bf16.msra.mxu0 %v4528
        %5748 = vmatprep.subr.bf16.mxu0 %v4533
        %5749 = vmatpush1.bf16.msra.mxu0 %v4532
        %5750 = vmatprep.subr.bf16.mxu0 %v4537
        %5751 = vmatpush1.bf16.msra.mxu0 %v4536
        %5752 = vmatprep.subr.bf16.mxu0 %v4541
        %5753 = vmatpush1.bf16.msra.mxu0 %v4540
        %5754 = vmatprep.subr.bf16.mxu0 %v4545
        %5755 = vmatpush1.bf16.msra.mxu0 %v4544
        %5756 = vmatprep.mubr.bf16.mxu0 %v2331
        %5757 = vmatmul.mubr.bf16.gmra.mrb[0].mxu0 %v2330
        %v5758 = vpop.f32.mrb[0].mxu0
        %v5759 = vadd.f32 %v5718, %v5758
        %v5760 = vpop.f32.mrb[0].mxu0
        %v5761 = vadd.f32 %v5720, %v5760
        %v5762 = vpop.f32.mrb[0].mxu0
        %v5763 = vpop.f32.mrb[0].mxu0
        %5764 = vdwg.mxu0
        %5765 = vmatprep.subr.bf16.mxu0 %v4549
        %5766 = vmatpush1.bf16.msra.mxu0 %v4548
        %5767 = vmatprep.subr.bf16.mxu0 %v4553
        %5768 = vmatpush1.bf16.msra.mxu0 %v4552
        %5769 = vmatprep.subr.bf16.mxu0 %v4557
        %5770 = vmatpush1.bf16.msra.mxu0 %v4556
        %5771 = vmatprep.subr.bf16.mxu0 %v4561
        %5772 = vmatpush1.bf16.msra.mxu0 %v4560
        %5773 = vmatprep.subr.bf16.mxu0 %v4565
        %5774 = vmatpush1.bf16.msra.mxu0 %v4564
        %5775 = vmatprep.subr.bf16.mxu0 %v4569
        %5776 = vmatpush1.bf16.msra.mxu0 %v4568
        %5777 = vmatprep.subr.bf16.mxu0 %v4573
        %5778 = vmatpush1.bf16.msra.mxu0 %v4572
        %5779 = vmatprep.subr.bf16.mxu0 %v4577
        %5780 = vmatpush1.bf16.msra.mxu0 %v4576
        %5781 = vmatprep.subr.bf16.mxu0 %v4581
        %5782 = vmatpush1.bf16.msra.mxu0 %v4580
        %5783 = vmatprep.subr.bf16.mxu0 %v4585
        %5784 = vmatpush1.bf16.msra.mxu0 %v4584
        %5785 = vmatprep.subr.bf16.mxu0 %v4589
        %5786 = vmatpush1.bf16.msra.mxu0 %v4588
        %5787 = vmatprep.subr.bf16.mxu0 %v4593
        %5788 = vmatpush1.bf16.msra.mxu0 %v4592
        %5789 = vmatprep.subr.bf16.mxu0 %v4597
        %5790 = vmatpush1.bf16.msra.mxu0 %v4596
        %5791 = vmatprep.subr.bf16.mxu0 %v4601
        %5792 = vmatpush1.bf16.msra.mxu0 %v4600
        %5793 = vmatprep.subr.bf16.mxu0 %v4605
        %5794 = vmatpush1.bf16.msra.mxu0 %v4604
        %5795 = vmatprep.subr.bf16.mxu0 %v4609
        %5796 = vmatpush1.bf16.msra.mxu0 %v4608
        %5797 = vmatprep.mubr.bf16.mxu0 %v2363
        %5798 = vmatmul.mubr.bf16.gmra.mrb[0].mxu0 %v2362
        %v5799 = vpop.f32.mrb[0].mxu0
        %v5800 = vadd.f32 %v5759, %v5799
        %v5801 = vpop.f32.mrb[0].mxu0
        %v5802 = vadd.f32 %v5761, %v5801
        %v5803 = vpop.f32.mrb[0].mxu0
        %v5804 = vpop.f32.mrb[0].mxu0
        %5805 = vdwg.mxu0
        %5806 = vmatprep.subr.bf16.mxu0 %v4613
        %5807 = vmatpush1.bf16.msra.mxu0 %v4612
        %5808 = vmatprep.subr.bf16.mxu0 %v4617
        %5809 = vmatpush1.bf16.msra.mxu0 %v4616
        %5810 = vmatprep.subr.bf16.mxu0 %v4621
        %5811 = vmatpush1.bf16.msra.mxu0 %v4620
        %5812 = vmatprep.subr.bf16.mxu0 %v4625
        %5813 = vmatpush1.bf16.msra.mxu0 %v4624
        %5814 = vmatprep.subr.bf16.mxu0 %v4629
        %5815 = vmatpush1.bf16.msra.mxu0 %v4628
        %5816 = vmatprep.subr.bf16.mxu0 %v4633
        %5817 = vmatpush1.bf16.msra.mxu0 %v4632
        %5818 = vmatprep.subr.bf16.mxu0 %v4637
        %5819 = vmatpush1.bf16.msra.mxu0 %v4636
        %5820 = vmatprep.subr.bf16.mxu0 %v4641
        %5821 = vmatpush1.bf16.msra.mxu0 %v4640
        %5822 = vmatprep.subr.bf16.mxu0 %v4645
        %5823 = vmatpush1.bf16.msra.mxu0 %v4644
        %5824 = vmatprep.subr.bf16.mxu0 %v4649
        %5825 = vmatpush1.bf16.msra.mxu0 %v4648
        %5826 = vmatprep.subr.bf16.mxu0 %v4653
        %5827 = vmatpush1.bf16.msra.mxu0 %v4652
        %5828 = vmatprep.subr.bf16.mxu0 %v4657
        %5829 = vmatpush1.bf16.msra.mxu0 %v4656
        %5830 = vmatprep.subr.bf16.mxu0 %v4661
        %5831 = vmatpush1.bf16.msra.mxu0 %v4660
        %5832 = vmatprep.subr.bf16.mxu0 %v4665
        %5833 = vmatpush1.bf16.msra.mxu0 %v4664
        %5834 = vmatprep.subr.bf16.mxu0 %v4669
        %5835 = vmatpush1.bf16.msra.mxu0 %v4668
        %5836 = vmatprep.subr.bf16.mxu0 %v4673
        %5837 = vmatpush1.bf16.msra.mxu0 %v4672
        %5838 = vmatprep.mubr.bf16.mxu0 %v2395
        %5839 = vmatmul.mubr.bf16.gmra.mrb[0].mxu0 %v2364
        %v5840 = vpop.f32.mrb[0].mxu0
        %v5841 = vadd.f32 %v5800, %v5840
        %v5842 = vpop.f32.mrb[0].mxu0
        %v5843 = vadd.f32 %v5802, %v5842
        %v5844 = vpop.f32.mrb[0].mxu0
        %v5845 = vpop.f32.mrb[0].mxu0
        %5846 = vdwg.mxu0
        %5847 = vmatprep.subr.bf16.mxu0 %v4677
        %5848 = vmatpush1.bf16.msra.mxu0 %v4676
        %5849 = vmatprep.subr.bf16.mxu0 %v4681
        %5850 = vmatpush1.bf16.msra.mxu0 %v4680
        %5851 = vmatprep.subr.bf16.mxu0 %v4685
        %5852 = vmatpush1.bf16.msra.mxu0 %v4684
        %5853 = vmatprep.subr.bf16.mxu0 %v4689
        %5854 = vmatpush1.bf16.msra.mxu0 %v4688
        %5855 = vmatprep.subr.bf16.mxu0 %v4693
        %5856 = vmatpush1.bf16.msra.mxu0 %v4692
        %5857 = vmatprep.subr.bf16.mxu0 %v4697
        %5858 = vmatpush1.bf16.msra.mxu0 %v4696
        %5859 = vmatprep.subr.bf16.mxu0 %v4701
        %5860 = vmatpush1.bf16.msra.mxu0 %v4700
        %5861 = vmatprep.subr.bf16.mxu0 %v4705
        %5862 = vmatpush1.bf16.msra.mxu0 %v4704
        %5863 = vmatprep.subr.bf16.mxu0 %v4709
        %5864 = vmatpush1.bf16.msra.mxu0 %v4708
        %5865 = vmatprep.subr.bf16.mxu0 %v4713
        %5866 = vmatpush1.bf16.msra.mxu0 %v4712
        %5867 = vmatprep.subr.bf16.mxu0 %v4717
        %5868 = vmatpush1.bf16.msra.mxu0 %v4716
        %5869 = vmatprep.subr.bf16.mxu0 %v4721
        %5870 = vmatpush1.bf16.msra.mxu0 %v4720
        %5871 = vmatprep.subr.bf16.mxu0 %v4725
        %5872 = vmatpush1.bf16.msra.mxu0 %v4724
        %5873 = vmatprep.subr.bf16.mxu0 %v4729
        %5874 = vmatpush1.bf16.msra.mxu0 %v4728
        %5875 = vmatprep.subr.bf16.mxu0 %v4733
        %5876 = vmatpush1.bf16.msra.mxu0 %v4732
        %5877 = vmatprep.subr.bf16.mxu0 %v4737
        %5878 = vmatpush1.bf16.msra.mxu0 %v4736
        %5879 = vmatprep.mubr.bf16.mxu0 %v2397
        %5880 = vmatmul.mubr.bf16.gmra.mrb[0].mxu0 %v2396
        %v5881 = vpop.f32.mrb[0].mxu0
        %v5882 = vadd.f32 %v5841, %v5881
        %v5883 = vpop.f32.mrb[0].mxu0
        %v5884 = vadd.f32 %v5843, %v5883
        %v5885 = vpop.f32.mrb[0].mxu0
        %v5886 = vpop.f32.mrb[0].mxu0
        %5887 = vdwg.mxu0
        %5888 = vmatprep.subr.bf16.mxu0 %v4741
        %5889 = vmatpush1.bf16.msra.mxu0 %v4740
        %5890 = vmatprep.subr.bf16.mxu0 %v4745
        %5891 = vmatpush1.bf16.msra.mxu0 %v4744
        %5892 = vmatprep.subr.bf16.mxu0 %v4749
        %5893 = vmatpush1.bf16.msra.mxu0 %v4748
        %5894 = vmatprep.subr.bf16.mxu0 %v4753
        %5895 = vmatpush1.bf16.msra.mxu0 %v4752
        %5896 = vmatprep.subr.bf16.mxu0 %v4757
        %5897 = vmatpush1.bf16.msra.mxu0 %v4756
        %5898 = vmatprep.subr.bf16.mxu0 %v4761
        %5899 = vmatpush1.bf16.msra.mxu0 %v4760
        %5900 = vmatprep.subr.bf16.mxu0 %v4765
        %5901 = vmatpush1.bf16.msra.mxu0 %v4764
        %5902 = vmatprep.subr.bf16.mxu0 %v4769
        %5903 = vmatpush1.bf16.msra.mxu0 %v4768
        %5904 = vmatprep.subr.bf16.mxu0 %v4773
        %5905 = vmatpush1.bf16.msra.mxu0 %v4772
        %5906 = vmatprep.subr.bf16.mxu0 %v4777
        %5907 = vmatpush1.bf16.msra.mxu0 %v4776
        %5908 = vmatprep.subr.bf16.mxu0 %v4781
        %5909 = vmatpush1.bf16.msra.mxu0 %v4780
        %5910 = vmatprep.subr.bf16.mxu0 %v4785
        %5911 = vmatpush1.bf16.msra.mxu0 %v4784
        %5912 = vmatprep.subr.bf16.mxu0 %v4789
        %5913 = vmatpush1.bf16.msra.mxu0 %v4788
        %5914 = vmatprep.subr.bf16.mxu0 %v4793
        %5915 = vmatpush1.bf16.msra.mxu0 %v4792
        %5916 = vmatprep.subr.bf16.mxu0 %v4797
        %5917 = vmatpush1.bf16.msra.mxu0 %v4796
        %5918 = vmatprep.subr.bf16.mxu0 %v4801
        %5919 = vmatpush1.bf16.msra.mxu0 %v4800
        %5920 = vmatprep.mubr.bf16.mxu0 %v2429
        %5921 = vmatmul.mubr.bf16.gmra.mrb[0].mxu0 %v2428
        %v5922 = vpop.f32.mrb[0].mxu0
        %v5923 = vadd.f32 %v5882, %v5922
        %v5924 = vpop.f32.mrb[0].mxu0
        %v5925 = vadd.f32 %v5884, %v5924
        %v5926 = vpop.f32.mrb[0].mxu0
        %v5927 = vpop.f32.mrb[0].mxu0
        %5928 = vdwg.mxu0
        %5929 = vmatprep.subr.bf16.mxu0 %v4805
        %5930 = vmatpush1.bf16.msra.mxu0 %v4804
        %5931 = vmatprep.subr.bf16.mxu0 %v4809
        %5932 = vmatpush1.bf16.msra.mxu0 %v4808
        %5933 = vmatprep.subr.bf16.mxu0 %v4813
        %5934 = vmatpush1.bf16.msra.mxu0 %v4812
        %5935 = vmatprep.subr.bf16.mxu0 %v4817
        %5936 = vmatpush1.bf16.msra.mxu0 %v4816
        %5937 = vmatprep.subr.bf16.mxu0 %v4821
        %5938 = vmatpush1.bf16.msra.mxu0 %v4820
        %5939 = vmatprep.subr.bf16.mxu0 %v4825
        %5940 = vmatpush1.bf16.msra.mxu0 %v4824
        %5941 = vmatprep.subr.bf16.mxu0 %v4829
        %5942 = vmatpush1.bf16.msra.mxu0 %v4828
        %5943 = vmatprep.subr.bf16.mxu0 %v4833
        %5944 = vmatpush1.bf16.msra.mxu0 %v4832
        %5945 = vmatprep.subr.bf16.mxu0 0
        %5946 = vmatpush1.bf16.msra.mxu0 0
        %5947 = vmatprep.subr.bf16.mxu0 0
        %5948 = vmatpush1.bf16.msra.mxu0 0
        %5949 = vmatprep.subr.bf16.mxu0 0
        %5950 = vmatpush1.bf16.msra.mxu0 0
        %5951 = vmatprep.subr.bf16.mxu0 0
        %5952 = vmatpush1.bf16.msra.mxu0 0
        %5953 = vmatprep.subr.bf16.mxu0 0
        %5954 = vmatpush1.bf16.msra.mxu0 0
        %5955 = vmatprep.subr.bf16.mxu0 0
        %5956 = vmatpush1.bf16.msra.mxu0 0
        %5957 = vmatprep.subr.bf16.mxu0 0
        %5958 = vmatpush1.bf16.msra.mxu0 0
        %5959 = vmatprep.subr.bf16.mxu0 0
        %5960 = vmatpush1.bf16.msra.mxu0 0
        %5961 = vmatprep.mubr.bf16.mxu0 0
        %5962 = vmatmul.mubr.bf16.gmra.mrb[0].mxu0 %v2430
        %v5963 = vpop.f32.mrb[0].mxu0
        %v5964 = vadd.f32 %v5923, %v5963
        %v5965 = vpop.f32.mrb[0].mxu0
        %v5966 = vadd.f32 %v5925, %v5965
        %v5967 = vpop.f32.mrb[0].mxu0
        %v5968 = vpop.f32.mrb[0].mxu0
        %5969 = vdwg.mxu0
        %v5970 = vld [vmem:[%s5] sm:$0xf]
        %v5972 = vlaneseq
        %v5973 = vshrl.u32 %v5972, 7
        %v5974 = vsub.s32 0, %v5973
        %v5975 = vrot.slane %v5970, %v5974
        %v5976 = vlaneseq
        %v5977 = vshrl.u32 %v5976, 7
        %v5978 = vsub.s32 1, %v5977
        %v5979 = vrot.slane %v5970, %v5978
        %v5980 = vlaneseq
        %v5981 = vshrl.u32 %v5980, 7
        %v5982 = vsub.s32 2, %v5981
        %v5983 = vrot.slane %v5970, %v5982
        %v5984 = vlaneseq
        %v5985 = vshrl.u32 %v5984, 7
        %v5986 = vsub.s32 3, %v5985
        %v5987 = vrot.slane %v5970, %v5986
        %v5992 = vmul.f32 %v5636, %v5975
        %v5993 = vmul.f32 %v5638, %v5979
        %v5994 = vmul.f32 %v5964, %v5983
        %v5995 = vmul.f32 %v5966, %v5987
        %v5996 = vld [vmem:[%s6] sm:$0xf]
        %v5998 = vlaneseq
        %v5999 = vshrl.u32 %v5998, 7
        %v6000 = vsub.s32 0, %v5999
        %v6001 = vrot.slane %v5996, %v6000
        %v6002 = vlaneseq
        %v6003 = vshrl.u32 %v6002, 7
        %v6004 = vsub.s32 1, %v6003
        %v6005 = vrot.slane %v5996, %v6004
        %v6006 = vlaneseq
        %v6007 = vshrl.u32 %v6006, 7
        %v6008 = vsub.s32 2, %v6007
        %v6009 = vrot.slane %v5996, %v6008
        %v6010 = vlaneseq
        %v6011 = vshrl.u32 %v6010, 7
        %v6012 = vsub.s32 3, %v6011
        %v6013 = vrot.slane %v5996, %v6012
        %v6018 = vadd.f32 %v5992, %v6001
        %v6019 = vadd.f32 %v5993, %v6005
        %v6020 = vadd.f32 %v5994, %v6009
        %v6021 = vadd.f32 %v5995, %v6013
        %v6022 = vmax.f32 %v6018, 0.0
        %v6023 = vmax.f32 %v6019, 0.0
        %v6024 = vmax.f32 %v6020, 0.0
        %v6025 = vmax.f32 %v6021, 0.0
        %v6030 = vcombine.low %v6022, %v6023
        %v6031 = vcombine.high %v6022, %v6023
        %v6032 = vcombine.low %v6024, %v6025
        %v6033 = vcombine.high %v6024, %v6025
        %v6035 = vunpack.c.l.s4 1983009808
        %v6036 = vunpack.c.0.s8 %v6035
        %v6037 = vlaneseq
        %v6038 = vshrl.u32 %v6037, 7
        %v6039 = vsub.s32 %v6036, %v6038
        %v6040 = vrot.slane %v6030, %v6039
        %v6042 = vunpack.c.l.s4 1983009808
        %v6043 = vunpack.c.0.s8 %v6042
        %v6044 = vlaneseq
        %v6045 = vshrl.u32 %v6044, 7
        %v6046 = vsub.s32 %v6043, %v6045
        %v6047 = vrot.slane %v6031, %v6046
        %v6049 = vunpack.c.l.s4 1983009808
        %v6050 = vunpack.c.0.s8 %v6049
        %v6051 = vlaneseq
        %v6052 = vshrl.u32 %v6051, 7
        %v6053 = vsub.s32 %v6050, %v6052
        %v6054 = vrot.slane %v6032, %v6053
        %v6056 = vunpack.c.l.s4 1983009808
        %v6057 = vunpack.c.0.s8 %v6056
        %v6058 = vlaneseq
        %v6059 = vshrl.u32 %v6058, 7
        %v6060 = vsub.s32 %v6057, %v6059
        %v6061 = vrot.slane %v6033, %v6060
        %v6062 = vcombine.low %v6040, %v6054
        %v6063 = vcombine.high %v6040, %v6054
        %v6064 = vcombine.low %v6047, %v6061
        %v6065 = vcombine.high %v6047, %v6061
        %v6066 = vcombine.high %v6062, %v6062
        %v6068 = vunpack.c.l.s4 1983009808
        %v6069 = vunpack.c.0.s8 %v6068
        %v6070 = vlaneseq
        %v6071 = vshrl.u32 %v6070, 7
        %v6072 = vsub.s32 %v6069, %v6071
        %v6073 = vrot.slane %v6062, %v6072
        %v6075 = vunpack.c.l.s4 1983009808
        %v6076 = vunpack.c.0.s8 %v6075
        %v6077 = vlaneseq
        %v6078 = vshrl.u32 %v6077, 7
        %v6079 = vsub.s32 %v6076, %v6078
        %v6080 = vrot.slane %v6066, %v6079
        %v6081 = vcombine.high %v6073, %v6073
        %v6082 = vcombine.high %v6080, %v6080
        %v6083 = vcombine.high %v6063, %v6063
        %v6085 = vunpack.c.l.s4 1983009808
        %v6086 = vunpack.c.0.s8 %v6085
        %v6087 = vlaneseq
        %v6088 = vshrl.u32 %v6087, 7
        %v6089 = vsub.s32 %v6086, %v6088
        %v6090 = vrot.slane %v6063, %v6089
        %v6092 = vunpack.c.l.s4 1983009808
        %v6093 = vunpack.c.0.s8 %v6092
        %v6094 = vlaneseq
        %v6095 = vshrl.u32 %v6094, 7
        %v6096 = vsub.s32 %v6093, %v6095
        %v6097 = vrot.slane %v6083, %v6096
        %v6098 = vcombine.high %v6090, %v6090
        %v6099 = vcombine.high %v6097, %v6097
        %v6100 = vcombine.high %v6064, %v6064
        %v6102 = vunpack.c.l.s4 1983009808
        %v6103 = vunpack.c.0.s8 %v6102
        %v6104 = vlaneseq
        %v6105 = vshrl.u32 %v6104, 7
        %v6106 = vsub.s32 %v6103, %v6105
        %v6107 = vrot.slane %v6064, %v6106
        %v6109 = vunpack.c.l.s4 1983009808
        %v6110 = vunpack.c.0.s8 %v6109
        %v6111 = vlaneseq
        %v6112 = vshrl.u32 %v6111, 7
        %v6113 = vsub.s32 %v6110, %v6112
        %v6114 = vrot.slane %v6100, %v6113
        %v6115 = vcombine.high %v6107, %v6107
        %v6116 = vcombine.high %v6114, %v6114
        %v6117 = vcombine.high %v6065, %v6065
        %v6119 = vunpack.c.l.s4 1983009808
        %v6120 = vunpack.c.0.s8 %v6119
        %v6121 = vlaneseq
        %v6122 = vshrl.u32 %v6121, 7
        %v6123 = vsub.s32 %v6120, %v6122
        %v6124 = vrot.slane %v6065, %v6123
        %v6126 = vunpack.c.l.s4 1983009808
        %v6127 = vunpack.c.0.s8 %v6126
        %v6128 = vlaneseq
        %v6129 = vshrl.u32 %v6128, 7
        %v6130 = vsub.s32 %v6127, %v6129
        %v6131 = vrot.slane %v6117, %v6130
        %v6132 = vcombine.high %v6124, %v6124
        %v6133 = vcombine.high %v6131, %v6131
        %v6150 = vsel %vm1643, %v6073, -inf
        %v6151 = vrot.slane %v6150, 4
        %v6152 = vmax.f32 %v6150, %v6151
        %v6153 = vrot.slane %v6152, 2
        %v6154 = vmax.f32 %v6152, %v6153
        %v6155 = vrot.slane %v6154, 1
        %v6156 = vmax.f32 %v6154, %v6155
        %v6157 = vsel %vm1643, %v6081, -inf
        %v6158 = vrot.slane %v6157, 4
        %v6159 = vmax.f32 %v6157, %v6158
        %v6160 = vrot.slane %v6159, 2
        %v6161 = vmax.f32 %v6159, %v6160
        %v6162 = vrot.slane %v6161, 1
        %v6163 = vmax.f32 %v6161, %v6162
        %v6164 = vsel %vm1643, %v6080, -inf
        %v6165 = vrot.slane %v6164, 4
        %v6166 = vmax.f32 %v6164, %v6165
        %v6167 = vrot.slane %v6166, 2
        %v6168 = vmax.f32 %v6166, %v6167
        %v6169 = vrot.slane %v6168, 1
        %v6170 = vmax.f32 %v6168, %v6169
        %v6171 = vsel %vm1643, %v6082, -inf
        %v6172 = vrot.slane %v6171, 4
        %v6173 = vmax.f32 %v6171, %v6172
        %v6174 = vrot.slane %v6173, 2
        %v6175 = vmax.f32 %v6173, %v6174
        %v6176 = vrot.slane %v6175, 1
        %v6177 = vmax.f32 %v6175, %v6176
        %v6178 = vsel %vm1643, %v6090, -inf
        %v6179 = vrot.slane %v6178, 4
        %v6180 = vmax.f32 %v6178, %v6179
        %v6181 = vrot.slane %v6180, 2
        %v6182 = vmax.f32 %v6180, %v6181
        %v6183 = vrot.slane %v6182, 1
        %v6184 = vmax.f32 %v6182, %v6183
        %v6185 = vsel %vm1643, %v6098, -inf
        %v6186 = vrot.slane %v6185, 4
        %v6187 = vmax.f32 %v6185, %v6186
        %v6188 = vrot.slane %v6187, 2
        %v6189 = vmax.f32 %v6187, %v6188
        %v6190 = vrot.slane %v6189, 1
        %v6191 = vmax.f32 %v6189, %v6190
        %v6192 = vsel %vm1643, %v6097, -inf
        %v6193 = vrot.slane %v6192, 4
        %v6194 = vmax.f32 %v6192, %v6193
        %v6195 = vrot.slane %v6194, 2
        %v6196 = vmax.f32 %v6194, %v6195
        %v6197 = vrot.slane %v6196, 1
        %v6198 = vmax.f32 %v6196, %v6197
        %v6199 = vsel %vm1643, %v6099, -inf
        %v6200 = vrot.slane %v6199, 4
        %v6201 = vmax.f32 %v6199, %v6200
        %v6202 = vrot.slane %v6201, 2
        %v6203 = vmax.f32 %v6201, %v6202
        %v6204 = vrot.slane %v6203, 1
        %v6205 = vmax.f32 %v6203, %v6204
        %v6206 = vsel %vm1643, %v6107, -inf
        %v6207 = vrot.slane %v6206, 4
        %v6208 = vmax.f32 %v6206, %v6207
        %v6209 = vrot.slane %v6208, 2
        %v6210 = vmax.f32 %v6208, %v6209
        %v6211 = vrot.slane %v6210, 1
        %v6212 = vmax.f32 %v6210, %v6211
        %v6213 = vsel %vm1643, %v6115, -inf
        %v6214 = vrot.slane %v6213, 4
        %v6215 = vmax.f32 %v6213, %v6214
        %v6216 = vrot.slane %v6215, 2
        %v6217 = vmax.f32 %v6215, %v6216
        %v6218 = vrot.slane %v6217, 1
        %v6219 = vmax.f32 %v6217, %v6218
        %v6220 = vsel %vm1643, %v6114, -inf
        %v6221 = vrot.slane %v6220, 4
        %v6222 = vmax.f32 %v6220, %v6221
        %v6223 = vrot.slane %v6222, 2
        %v6224 = vmax.f32 %v6222, %v6223
        %v6225 = vrot.slane %v6224, 1
        %v6226 = vmax.f32 %v6224, %v6225
        %v6227 = vsel %vm1643, %v6116, -inf
        %v6228 = vrot.slane %v6227, 4
        %v6229 = vmax.f32 %v6227, %v6228
        %v6230 = vrot.slane %v6229, 2
        %v6231 = vmax.f32 %v6229, %v6230
        %v6232 = vrot.slane %v6231, 1
        %v6233 = vmax.f32 %v6231, %v6232
        %v6234 = vsel %vm1643, %v6124, -inf
        %v6235 = vrot.slane %v6234, 4
        %v6236 = vmax.f32 %v6234, %v6235
        %v6237 = vrot.slane %v6236, 2
        %v6238 = vmax.f32 %v6236, %v6237
        %v6239 = vrot.slane %v6238, 1
        %v6240 = vmax.f32 %v6238, %v6239
        %v6241 = vsel %vm1643, %v6132, -inf
        %v6242 = vrot.slane %v6241, 4
        %v6243 = vmax.f32 %v6241, %v6242
        %v6244 = vrot.slane %v6243, 2
        %v6245 = vmax.f32 %v6243, %v6244
        %v6246 = vrot.slane %v6245, 1
        %v6247 = vmax.f32 %v6245, %v6246
        %v6248 = vsel %vm1643, %v6131, -inf
        %v6249 = vrot.slane %v6248, 4
        %v6250 = vmax.f32 %v6248, %v6249
        %v6251 = vrot.slane %v6250, 2
        %v6252 = vmax.f32 %v6250, %v6251
        %v6253 = vrot.slane %v6252, 1
        %v6254 = vmax.f32 %v6252, %v6253
        %v6255 = vsel %vm1643, %v6133, -inf
        %v6256 = vrot.slane %v6255, 4
        %v6257 = vmax.f32 %v6255, %v6256
        %v6258 = vrot.slane %v6257, 2
        %v6259 = vmax.f32 %v6257, %v6258
        %v6260 = vrot.slane %v6259, 1
        %v6261 = vmax.f32 %v6259, %v6260
        %v6262 = vmax.f32 %v6156, %v6170
        %v6263 = vmax.f32 %v6163, %v6177
        %v6264 = vmax.f32 %v6184, %v6198
        %v6265 = vmax.f32 %v6191, %v6205
        %v6266 = vmax.f32 %v6212, %v6226
        %v6267 = vmax.f32 %v6219, %v6233
        %v6268 = vmax.f32 %v6240, %v6254
        %v6269 = vmax.f32 %v6247, %v6261
        %v6270 = vpack.c.bf16 %v6262, %v6262
        %v6271 = vpack.c.bf16 %v6263, %v6263
        %v6272 = vpack.c.bf16 %v6264, %v6264
        %v6273 = vpack.c.bf16 %v6265, %v6265
        %v6274 = vpack.c.bf16 %v6266, %v6266
        %v6275 = vpack.c.bf16 %v6267, %v6267
        %v6276 = vpack.c.bf16 %v6268, %v6268
        %v6277 = vpack.c.bf16 %v6269, %v6269
        %v6278 = vld [vmem:[%s7] sm:$0xff]
        %v6279 = vld [vmem:[%s7 + $0x8] sm:$0xff]
        %v6280 = vld [vmem:[%s7 + $0x10] sm:$0xff]
        %v6281 = vld [vmem:[%s7 + $0x18] sm:$0xff]
        %v6282 = vld [vmem:[%s7 + $0x20] sm:$0xff]
        %v6283 = vld [vmem:[%s7 + $0x28] sm:$0xff]
        %v6284 = vld [vmem:[%s7 + $0x30] sm:$0xff]
        %v6285 = vld [vmem:[%s7 + $0x38] sm:$0xff]
        %v6286 = vld [vmem:[%s7 + $0x40] sm:$0xff]
        %v6287 = vld [vmem:[%s7 + $0x48] sm:$0xff]
        %v6288 = vld [vmem:[%s7 + $0x50] sm:$0xff]
        %v6289 = vld [vmem:[%s7 + $0x58] sm:$0xff]
        %v6290 = vld [vmem:[%s7 + $0x60] sm:$0xff]
        %v6291 = vld [vmem:[%s7 + $0x68] sm:$0xff]
        %v6292 = vld [vmem:[%s7 + $0x70] sm:$0xff]
        %v6293 = vld [vmem:[%s7 + $0x78] sm:$0xff]
        %v6294 = vld [vmem:[%s7 + $0x80] sm:$0xff]
        %v6295 = vld [vmem:[%s7 + $0x88] sm:$0xff]
        %v6296 = vld [vmem:[%s7 + $0x90] sm:$0xff]
        %v6297 = vld [vmem:[%s7 + $0x98] sm:$0xff]
        %v6298 = vld [vmem:[%s7 + $0xa0] sm:$0xff]
        %v6299 = vld [vmem:[%s7 + $0xa8] sm:$0xff]
        %v6300 = vld [vmem:[%s7 + $0xb0] sm:$0xff]
        %v6301 = vld [vmem:[%s7 + $0xb8] sm:$0xff]
        %v6302 = vld [vmem:[%s7 + $0xc0] sm:$0xff]
        %v6303 = vld [vmem:[%s7 + $0xc8] sm:$0xff]
        %v6304 = vld [vmem:[%s7 + $0xd0] sm:$0xff]
        %v6305 = vld [vmem:[%s7 + $0xd8] sm:$0xff]
        %v6306 = vld [vmem:[%s7 + $0xe0] sm:$0xff]
        %v6307 = vld [vmem:[%s7 + $0xe8] sm:$0xff]
        %v6308 = vld [vmem:[%s7 + $0xf0] sm:$0xff]
        %v6309 = vld [vmem:[%s7 + $0xf8] sm:$0xff]
        %v6310 = vld [vmem:[%s7 + $0x100] sm:$0xff]
        %v6311 = vld [vmem:[%s7 + $0x108] sm:$0xff]
        %v6312 = vld [vmem:[%s7 + $0x110] sm:$0xff]
        %v6313 = vld [vmem:[%s7 + $0x118] sm:$0xff]
        %v6314 = vld [vmem:[%s7 + $0x120] sm:$0xff]
        %v6315 = vld [vmem:[%s7 + $0x128] sm:$0xff]
        %v6316 = vld [vmem:[%s7 + $0x130] sm:$0xff]
        %v6317 = vld [vmem:[%s7 + $0x138] sm:$0xff]
        %v6318 = vld [vmem:[%s7 + $0x140] sm:$0xff]
        %v6319 = vld [vmem:[%s7 + $0x148] sm:$0xff]
        %v6320 = vld [vmem:[%s7 + $0x150] sm:$0xff]
        %v6321 = vld [vmem:[%s7 + $0x158] sm:$0xff]
        %v6322 = vld [vmem:[%s7 + $0x160] sm:$0xff]
        %v6323 = vld [vmem:[%s7 + $0x168] sm:$0xff]
        %v6324 = vld [vmem:[%s7 + $0x170] sm:$0xff]
        %v6325 = vld [vmem:[%s7 + $0x178] sm:$0xff]
        %v6326 = vld [vmem:[%s7 + $0x180] sm:$0xff]
        %v6327 = vld [vmem:[%s7 + $0x188] sm:$0xff]
        %v6328 = vld [vmem:[%s7 + $0x190] sm:$0xff]
        %v6329 = vld [vmem:[%s7 + $0x198] sm:$0xff]
        %v6330 = vld [vmem:[%s7 + $0x1a0] sm:$0xff]
        %v6331 = vld [vmem:[%s7 + $0x1a8] sm:$0xff]
        %v6332 = vld [vmem:[%s7 + $0x1b0] sm:$0xff]
        %v6333 = vld [vmem:[%s7 + $0x1b8] sm:$0xff]
        %v6334 = vld [vmem:[%s7 + $0x1c0] sm:$0xff]
        %v6335 = vld [vmem:[%s7 + $0x1c8] sm:$0xff]
        %v6336 = vld [vmem:[%s7 + $0x1d0] sm:$0xff]
        %v6337 = vld [vmem:[%s7 + $0x1d8] sm:$0xff]
        %v6338 = vld [vmem:[%s7 + $0x1e0] sm:$0xff]
        %v6339 = vld [vmem:[%s7 + $0x1e8] sm:$0xff]
        %v6340 = vld [vmem:[%s7 + $0x1f0] sm:$0xff]
        %v6341 = vld [vmem:[%s7 + $0x1f8] sm:$0xff]
        %v6342 = vld [vmem:[%s7 + $0x200] sm:$0xff]
        %v6343 = vld [vmem:[%s7 + $0x208] sm:$0xff]
        %v6344 = vld [vmem:[%s7 + $0x210] sm:$0xff]
        %v6345 = vld [vmem:[%s7 + $0x218] sm:$0xff]
        %v6346 = vld [vmem:[%s7 + $0x220] sm:$0xff]
        %v6347 = vld [vmem:[%s7 + $0x228] sm:$0xff]
        %v6348 = vld [vmem:[%s7 + $0x230] sm:$0xff]
        %v6349 = vld [vmem:[%s7 + $0x238] sm:$0xff]
        %v6350 = vld [vmem:[%s7 + $0x240] sm:$0xff]
        %v6351 = vld [vmem:[%s7 + $0x248] sm:$0xff]
        %v6352 = vld [vmem:[%s7 + $0x250] sm:$0xff]
        %v6353 = vld [vmem:[%s7 + $0x258] sm:$0xff]
        %v6354 = vld [vmem:[%s7 + $0x260] sm:$0xff]
        %v6355 = vld [vmem:[%s7 + $0x268] sm:$0xff]
        %v6356 = vld [vmem:[%s7 + $0x270] sm:$0xff]
        %v6357 = vld [vmem:[%s7 + $0x278] sm:$0xff]
        %v6358 = vld [vmem:[%s7 + $0x280] sm:$0xff]
        %v6359 = vld [vmem:[%s7 + $0x288] sm:$0xff]
        %v6360 = vld [vmem:[%s7 + $0x290] sm:$0xff]
        %v6361 = vld [vmem:[%s7 + $0x298] sm:$0xff]
        %v6362 = vld [vmem:[%s7 + $0x2a0] sm:$0xff]
        %v6363 = vld [vmem:[%s7 + $0x2a8] sm:$0xff]
        %v6364 = vld [vmem:[%s7 + $0x2b0] sm:$0xff]
        %v6365 = vld [vmem:[%s7 + $0x2b8] sm:$0xff]
        %v6366 = vld [vmem:[%s7 + $0x2c0] sm:$0xff]
        %v6367 = vld [vmem:[%s7 + $0x2c8] sm:$0xff]
        %v6368 = vld [vmem:[%s7 + $0x2d0] sm:$0xff]
        %v6369 = vld [vmem:[%s7 + $0x2d8] sm:$0xff]
        %v6370 = vld [vmem:[%s7 + $0x2e0] sm:$0xff]
        %v6371 = vld [vmem:[%s7 + $0x2e8] sm:$0xff]
        %v6372 = vld [vmem:[%s7 + $0x2f0] sm:$0xff]
        %v6373 = vld [vmem:[%s7 + $0x2f8] sm:$0xff]
        %v6374 = vld [vmem:[%s7 + $0x300] sm:$0xff]
        %v6375 = vld [vmem:[%s7 + $0x308] sm:$0xff]
        %v6376 = vld [vmem:[%s7 + $0x310] sm:$0xff]
        %v6377 = vld [vmem:[%s7 + $0x318] sm:$0xff]
        %v6378 = vld [vmem:[%s7 + $0x320] sm:$0xff]
        %v6379 = vld [vmem:[%s7 + $0x328] sm:$0xff]
        %v6380 = vld [vmem:[%s7 + $0x330] sm:$0xff]
        %v6381 = vld [vmem:[%s7 + $0x338] sm:$0xff]
        %v6382 = vld [vmem:[%s7 + $0x340] sm:$0xff]
        %v6383 = vld [vmem:[%s7 + $0x348] sm:$0xff]
        %v6384 = vld [vmem:[%s7 + $0x350] sm:$0xff]
        %v6385 = vld [vmem:[%s7 + $0x358] sm:$0xff]
        %v6386 = vld [vmem:[%s7 + $0x360] sm:$0xff]
        %v6387 = vld [vmem:[%s7 + $0x368] sm:$0xff]
        %v6388 = vld [vmem:[%s7 + $0x370] sm:$0xff]
        %v6389 = vld [vmem:[%s7 + $0x378] sm:$0xff]
        %v6390 = vld [vmem:[%s7 + $0x380] sm:$0xff]
        %v6391 = vld [vmem:[%s7 + $0x388] sm:$0xff]
        %v6392 = vld [vmem:[%s7 + $0x390] sm:$0xff]
        %v6393 = vld [vmem:[%s7 + $0x398] sm:$0xff]
        %v6394 = vld [vmem:[%s7 + $0x3a0] sm:$0xff]
        %v6395 = vld [vmem:[%s7 + $0x3a8] sm:$0xff]
        %v6396 = vld [vmem:[%s7 + $0x3b0] sm:$0xff]
        %v6397 = vld [vmem:[%s7 + $0x3b8] sm:$0xff]
        %v6398 = vld [vmem:[%s7 + $0x3c0] sm:$0xff]
        %v6399 = vld [vmem:[%s7 + $0x3c8] sm:$0xff]
        %v6400 = vld [vmem:[%s7 + $0x3d0] sm:$0xff]
        %v6401 = vld [vmem:[%s7 + $0x3d8] sm:$0xff]
        %v6402 = vld [vmem:[%s7 + $0x3e0] sm:$0xff]
        %v6403 = vld [vmem:[%s7 + $0x3e8] sm:$0xff]
        %v6404 = vld [vmem:[%s7 + $0x3f0] sm:$0xff]
        %v6405 = vld [vmem:[%s7 + $0x3f8] sm:$0xff]
        %v6406 = vld [vmem:[%s7 + $0x400] sm:$0xff]
        %v6407 = vld [vmem:[%s7 + $0x408] sm:$0xff]
        %v6408 = vld [vmem:[%s7 + $0x410] sm:$0xff]
        %v6409 = vld [vmem:[%s7 + $0x418] sm:$0xff]
        %v6410 = vld [vmem:[%s7 + $0x420] sm:$0xff]
        %v6411 = vld [vmem:[%s7 + $0x428] sm:$0xff]
        %v6412 = vld [vmem:[%s7 + $0x430] sm:$0xff]
        %v6413 = vld [vmem:[%s7 + $0x438] sm:$0xff]
        %v6414 = vld [vmem:[%s7 + $0x440] sm:$0xff]
        %v6415 = vld [vmem:[%s7 + $0x448] sm:$0xff]
        %v6416 = vld [vmem:[%s7 + $0x450] sm:$0xff]
        %v6417 = vld [vmem:[%s7 + $0x458] sm:$0xff]
        %v6418 = vld [vmem:[%s7 + $0x460] sm:$0xff]
        %v6419 = vld [vmem:[%s7 + $0x468] sm:$0xff]
        %v6420 = vld [vmem:[%s7 + $0x470] sm:$0xff]
        %v6421 = vld [vmem:[%s7 + $0x478] sm:$0xff]
        %v6422 = vld [vmem:[%s7 + $0x480] sm:$0xff]
        %v6423 = vld [vmem:[%s7 + $0x488] sm:$0xff]
        %v6424 = vld [vmem:[%s7 + $0x490] sm:$0xff]
        %v6425 = vld [vmem:[%s7 + $0x498] sm:$0xff]
        %v6426 = vld [vmem:[%s7 + $0x4a0] sm:$0xff]
        %v6427 = vld [vmem:[%s7 + $0x4a8] sm:$0xff]
        %v6428 = vld [vmem:[%s7 + $0x4b0] sm:$0xff]
        %v6429 = vld [vmem:[%s7 + $0x4b8] sm:$0xff]
        %v6430 = vld [vmem:[%s7 + $0x4c0] sm:$0xff]
        %v6431 = vld [vmem:[%s7 + $0x4c8] sm:$0xff]
        %v6432 = vld [vmem:[%s7 + $0x4d0] sm:$0xff]
        %v6433 = vld [vmem:[%s7 + $0x4d8] sm:$0xff]
        %v6434 = vld [vmem:[%s7 + $0x4e0] sm:$0xff]
        %v6435 = vld [vmem:[%s7 + $0x4e8] sm:$0xff]
        %v6436 = vld [vmem:[%s7 + $0x4f0] sm:$0xff]
        %v6437 = vld [vmem:[%s7 + $0x4f8] sm:$0xff]
        %v6438 = vld [vmem:[%s7 + $0x500] sm:$0xff]
        %v6439 = vld [vmem:[%s7 + $0x508] sm:$0xff]
        %v6440 = vld [vmem:[%s7 + $0x510] sm:$0xff]
        %v6441 = vld [vmem:[%s7 + $0x518] sm:$0xff]
        %v6442 = vld [vmem:[%s7 + $0x520] sm:$0xff]
        %v6443 = vld [vmem:[%s7 + $0x528] sm:$0xff]
        %v6444 = vld [vmem:[%s7 + $0x530] sm:$0xff]
        %v6445 = vld [vmem:[%s7 + $0x538] sm:$0xff]
        %v6446 = vld [vmem:[%s7 + $0x540] sm:$0xff]
        %v6447 = vld [vmem:[%s7 + $0x548] sm:$0xff]
        %v6448 = vld [vmem:[%s7 + $0x550] sm:$0xff]
        %v6449 = vld [vmem:[%s7 + $0x558] sm:$0xff]
        %v6450 = vld [vmem:[%s7 + $0x560] sm:$0xff]
        %v6451 = vld [vmem:[%s7 + $0x568] sm:$0xff]
        %v6452 = vld [vmem:[%s7 + $0x570] sm:$0xff]
        %v6453 = vld [vmem:[%s7 + $0x578] sm:$0xff]
        %v6454 = vld [vmem:[%s7 + $0x580] sm:$0xff]
        %v6455 = vld [vmem:[%s7 + $0x588] sm:$0xff]
        %v6456 = vld [vmem:[%s7 + $0x590] sm:$0xff]
        %v6457 = vld [vmem:[%s7 + $0x598] sm:$0xff]
        %v6458 = vld [vmem:[%s7 + $0x5a0] sm:$0xff]
        %v6459 = vld [vmem:[%s7 + $0x5a8] sm:$0xff]
        %v6460 = vld [vmem:[%s7 + $0x5b0] sm:$0xff]
        %v6461 = vld [vmem:[%s7 + $0x5b8] sm:$0xff]
        %v6462 = vld [vmem:[%s7 + $0x5c0] sm:$0xff]
        %v6463 = vld [vmem:[%s7 + $0x5c8] sm:$0xff]
        %v6464 = vld [vmem:[%s7 + $0x5d0] sm:$0xff]
        %v6465 = vld [vmem:[%s7 + $0x5d8] sm:$0xff]
        %v6466 = vld [vmem:[%s7 + $0x5e0] sm:$0xff]
        %v6467 = vld [vmem:[%s7 + $0x5e8] sm:$0xff]
        %v6468 = vld [vmem:[%s7 + $0x5f0] sm:$0xff]
        %v6469 = vld [vmem:[%s7 + $0x5f8] sm:$0xff]
        %v6470 = vld [vmem:[%s7 + $0x600] sm:$0xff]
        %v6471 = vld [vmem:[%s7 + $0x608] sm:$0xff]
        %v6472 = vld [vmem:[%s7 + $0x610] sm:$0xff]
        %v6473 = vld [vmem:[%s7 + $0x618] sm:$0xff]
        %v6474 = vld [vmem:[%s7 + $0x620] sm:$0xff]
        %v6475 = vld [vmem:[%s7 + $0x628] sm:$0xff]
        %v6476 = vld [vmem:[%s7 + $0x630] sm:$0xff]
        %v6477 = vld [vmem:[%s7 + $0x638] sm:$0xff]
        %v6478 = vld [vmem:[%s7 + $0x640] sm:$0xff]
        %v6479 = vld [vmem:[%s7 + $0x648] sm:$0xff]
        %v6480 = vld [vmem:[%s7 + $0x650] sm:$0xff]
        %v6481 = vld [vmem:[%s7 + $0x658] sm:$0xff]
        %v6482 = vld [vmem:[%s7 + $0x660] sm:$0xff]
        %v6483 = vld [vmem:[%s7 + $0x668] sm:$0xff]
        %v6484 = vld [vmem:[%s7 + $0x670] sm:$0xff]
        %v6485 = vld [vmem:[%s7 + $0x678] sm:$0xff]
        %v6486 = vld [vmem:[%s7 + $0x680] sm:$0xff]
        %v6487 = vld [vmem:[%s7 + $0x688] sm:$0xff]
        %v6488 = vld [vmem:[%s7 + $0x690] sm:$0xff]
        %v6489 = vld [vmem:[%s7 + $0x698] sm:$0xff]
        %v6490 = vld [vmem:[%s7 + $0x6a0] sm:$0xff]
        %v6491 = vld [vmem:[%s7 + $0x6a8] sm:$0xff]
        %v6492 = vld [vmem:[%s7 + $0x6b0] sm:$0xff]
        %v6493 = vld [vmem:[%s7 + $0x6b8] sm:$0xff]
        %v6494 = vld [vmem:[%s7 + $0x6c0] sm:$0xff]
        %v6495 = vld [vmem:[%s7 + $0x6c8] sm:$0xff]
        %v6496 = vld [vmem:[%s7 + $0x6d0] sm:$0xff]
        %v6497 = vld [vmem:[%s7 + $0x6d8] sm:$0xff]
        %v6498 = vld [vmem:[%s7 + $0x6e0] sm:$0xff]
        %v6499 = vld [vmem:[%s7 + $0x6e8] sm:$0xff]
        %v6500 = vld [vmem:[%s7 + $0x6f0] sm:$0xff]
        %v6501 = vld [vmem:[%s7 + $0x6f8] sm:$0xff]
        %v6502 = vld [vmem:[%s7 + $0x700] sm:$0xff]
        %v6503 = vld [vmem:[%s7 + $0x708] sm:$0xff]
        %v6504 = vld [vmem:[%s7 + $0x710] sm:$0xff]
        %v6505 = vld [vmem:[%s7 + $0x718] sm:$0xff]
        %v6506 = vld [vmem:[%s7 + $0x720] sm:$0xff]
        %v6507 = vld [vmem:[%s7 + $0x728] sm:$0xff]
        %v6508 = vld [vmem:[%s7 + $0x730] sm:$0xff]
        %v6509 = vld [vmem:[%s7 + $0x738] sm:$0xff]
        %v6510 = vld [vmem:[%s7 + $0x740] sm:$0xff]
        %v6511 = vld [vmem:[%s7 + $0x748] sm:$0xff]
        %v6512 = vld [vmem:[%s7 + $0x750] sm:$0xff]
        %v6513 = vld [vmem:[%s7 + $0x758] sm:$0xff]
        %v6514 = vld [vmem:[%s7 + $0x760] sm:$0xff]
        %v6515 = vld [vmem:[%s7 + $0x768] sm:$0xff]
        %v6516 = vld [vmem:[%s7 + $0x770] sm:$0xff]
        %v6517 = vld [vmem:[%s7 + $0x778] sm:$0xff]
        %v6518 = vld [vmem:[%s7 + $0x780] sm:$0xff]
        %v6519 = vld [vmem:[%s7 + $0x788] sm:$0xff]
        %v6520 = vld [vmem:[%s7 + $0x790] sm:$0xff]
        %v6521 = vld [vmem:[%s7 + $0x798] sm:$0xff]
        %v6522 = vld [vmem:[%s7 + $0x7a0] sm:$0xff]
        %v6523 = vld [vmem:[%s7 + $0x7a8] sm:$0xff]
        %v6524 = vld [vmem:[%s7 + $0x7b0] sm:$0xff]
        %v6525 = vld [vmem:[%s7 + $0x7b8] sm:$0xff]
        %v6526 = vld [vmem:[%s7 + $0x7c0] sm:$0xff]
        %v6527 = vld [vmem:[%s7 + $0x7c8] sm:$0xff]
        %v6528 = vld [vmem:[%s7 + $0x7d0] sm:$0xff]
        %v6529 = vld [vmem:[%s7 + $0x7d8] sm:$0xff]
        %v6530 = vld [vmem:[%s7 + $0x7e0] sm:$0xff]
        %v6531 = vld [vmem:[%s7 + $0x7e8] sm:$0xff]
        %v6532 = vld [vmem:[%s7 + $0x7f0] sm:$0xff]
        %v6533 = vld [vmem:[%s7 + $0x7f8] sm:$0xff]
        %v6534 = vld [vmem:[%s8] sm:$0xf]
        %v6791 = vunpack.c.l.b16 %v6278
        %v6792 = vunpack.c.h.b16 %v6278
        %v6793 = vunpack.c.l.b16 %v6279
        %v6794 = vunpack.c.h.b16 %v6279
        %v6795 = vunpack.c.l.b16 %v6280
        %v6796 = vunpack.c.h.b16 %v6280
        %v6797 = vunpack.c.l.b16 %v6281
        %v6798 = vunpack.c.h.b16 %v6281
        %v6799 = vunpack.c.l.b16 %v6282
        %v6800 = vunpack.c.h.b16 %v6282
        %v6801 = vunpack.c.l.b16 %v6283
        %v6802 = vunpack.c.h.b16 %v6283
        %v6803 = vunpack.c.l.b16 %v6284
        %v6804 = vunpack.c.h.b16 %v6284
        %v6805 = vunpack.c.l.b16 %v6285
        %v6806 = vunpack.c.h.b16 %v6285
        %v6807 = vunpack.c.l.b16 %v6286
        %v6808 = vunpack.c.h.b16 %v6286
        %v6809 = vunpack.c.l.b16 %v6287
        %v6810 = vunpack.c.h.b16 %v6287
        %v6811 = vunpack.c.l.b16 %v6288
        %v6812 = vunpack.c.h.b16 %v6288
        %v6813 = vunpack.c.l.b16 %v6289
        %v6814 = vunpack.c.h.b16 %v6289
        %v6815 = vunpack.c.l.b16 %v6290
        %v6816 = vunpack.c.h.b16 %v6290
        %v6817 = vunpack.c.l.b16 %v6291
        %v6818 = vunpack.c.h.b16 %v6291
        %v6819 = vunpack.c.l.b16 %v6292
        %v6820 = vunpack.c.h.b16 %v6292
        %v6821 = vunpack.c.l.b16 %v6293
        %v6822 = vunpack.c.h.b16 %v6293
        %v6823 = vunpack.c.l.b16 %v6294
        %v6824 = vunpack.c.h.b16 %v6294
        %v6825 = vunpack.c.l.b16 %v6295
        %v6826 = vunpack.c.h.b16 %v6295
        %v6827 = vunpack.c.l.b16 %v6296
        %v6828 = vunpack.c.h.b16 %v6296
        %v6829 = vunpack.c.l.b16 %v6297
        %v6830 = vunpack.c.h.b16 %v6297
        %v6831 = vunpack.c.l.b16 %v6298
        %v6832 = vunpack.c.h.b16 %v6298
        %v6833 = vunpack.c.l.b16 %v6299
        %v6834 = vunpack.c.h.b16 %v6299
        %v6835 = vunpack.c.l.b16 %v6300
        %v6836 = vunpack.c.h.b16 %v6300
        %v6837 = vunpack.c.l.b16 %v6301
        %v6838 = vunpack.c.h.b16 %v6301
        %v6839 = vunpack.c.l.b16 %v6302
        %v6840 = vunpack.c.h.b16 %v6302
        %v6841 = vunpack.c.l.b16 %v6303
        %v6842 = vunpack.c.h.b16 %v6303
        %v6843 = vunpack.c.l.b16 %v6304
        %v6844 = vunpack.c.h.b16 %v6304
        %v6845 = vunpack.c.l.b16 %v6305
        %v6846 = vunpack.c.h.b16 %v6305
        %v6847 = vunpack.c.l.b16 %v6306
        %v6848 = vunpack.c.h.b16 %v6306
        %v6849 = vunpack.c.l.b16 %v6307
        %v6850 = vunpack.c.h.b16 %v6307
        %v6851 = vunpack.c.l.b16 %v6308
        %v6852 = vunpack.c.h.b16 %v6308
        %v6853 = vunpack.c.l.b16 %v6309
        %v6854 = vunpack.c.h.b16 %v6309
        %v6855 = vunpack.c.l.b16 %v6310
        %v6856 = vunpack.c.h.b16 %v6310
        %v6857 = vunpack.c.l.b16 %v6311
        %v6858 = vunpack.c.h.b16 %v6311
        %v6859 = vunpack.c.l.b16 %v6312
        %v6860 = vunpack.c.h.b16 %v6312
        %v6861 = vunpack.c.l.b16 %v6313
        %v6862 = vunpack.c.h.b16 %v6313
        %v6863 = vunpack.c.l.b16 %v6314
        %v6864 = vunpack.c.h.b16 %v6314
        %v6865 = vunpack.c.l.b16 %v6315
        %v6866 = vunpack.c.h.b16 %v6315
        %v6867 = vunpack.c.l.b16 %v6316
        %v6868 = vunpack.c.h.b16 %v6316
        %v6869 = vunpack.c.l.b16 %v6317
        %v6870 = vunpack.c.h.b16 %v6317
        %v6871 = vunpack.c.l.b16 %v6318
        %v6872 = vunpack.c.h.b16 %v6318
        %v6873 = vunpack.c.l.b16 %v6319
        %v6874 = vunpack.c.h.b16 %v6319
        %v6875 = vunpack.c.l.b16 %v6320
        %v6876 = vunpack.c.h.b16 %v6320
        %v6877 = vunpack.c.l.b16 %v6321
        %v6878 = vunpack.c.h.b16 %v6321
        %v6879 = vunpack.c.l.b16 %v6322
        %v6880 = vunpack.c.h.b16 %v6322
        %v6881 = vunpack.c.l.b16 %v6323
        %v6882 = vunpack.c.h.b16 %v6323
        %v6883 = vunpack.c.l.b16 %v6324
        %v6884 = vunpack.c.h.b16 %v6324
        %v6885 = vunpack.c.l.b16 %v6325
        %v6886 = vunpack.c.h.b16 %v6325
        %v6887 = vunpack.c.l.b16 %v6326
        %v6888 = vunpack.c.h.b16 %v6326
        %v6889 = vunpack.c.l.b16 %v6327
        %v6890 = vunpack.c.h.b16 %v6327
        %v6891 = vunpack.c.l.b16 %v6328
        %v6892 = vunpack.c.h.b16 %v6328
        %v6893 = vunpack.c.l.b16 %v6329
        %v6894 = vunpack.c.h.b16 %v6329
        %v6895 = vunpack.c.l.b16 %v6330
        %v6896 = vunpack.c.h.b16 %v6330
        %v6897 = vunpack.c.l.b16 %v6331
        %v6898 = vunpack.c.h.b16 %v6331
        %v6899 = vunpack.c.l.b16 %v6332
        %v6900 = vunpack.c.h.b16 %v6332
        %v6901 = vunpack.c.l.b16 %v6333
        %v6902 = vunpack.c.h.b16 %v6333
        %v6903 = vunpack.c.l.b16 %v6334
        %v6904 = vunpack.c.h.b16 %v6334
        %v6905 = vunpack.c.l.b16 %v6335
        %v6906 = vunpack.c.h.b16 %v6335
        %v6907 = vunpack.c.l.b16 %v6336
        %v6908 = vunpack.c.h.b16 %v6336
        %v6909 = vunpack.c.l.b16 %v6337
        %v6910 = vunpack.c.h.b16 %v6337
        %v6911 = vunpack.c.l.b16 %v6338
        %v6912 = vunpack.c.h.b16 %v6338
        %v6913 = vunpack.c.l.b16 %v6339
        %v6914 = vunpack.c.h.b16 %v6339
        %v6915 = vunpack.c.l.b16 %v6340
        %v6916 = vunpack.c.h.b16 %v6340
        %v6917 = vunpack.c.l.b16 %v6341
        %v6918 = vunpack.c.h.b16 %v6341
        %v6919 = vunpack.c.l.b16 %v6342
        %v6920 = vunpack.c.h.b16 %v6342
        %v6921 = vunpack.c.l.b16 %v6343
        %v6922 = vunpack.c.h.b16 %v6343
        %v6923 = vunpack.c.l.b16 %v6344
        %v6924 = vunpack.c.h.b16 %v6344
        %v6925 = vunpack.c.l.b16 %v6345
        %v6926 = vunpack.c.h.b16 %v6345
        %v6927 = vunpack.c.l.b16 %v6346
        %v6928 = vunpack.c.h.b16 %v6346
        %v6929 = vunpack.c.l.b16 %v6347
        %v6930 = vunpack.c.h.b16 %v6347
        %v6931 = vunpack.c.l.b16 %v6348
        %v6932 = vunpack.c.h.b16 %v6348
        %v6933 = vunpack.c.l.b16 %v6349
        %v6934 = vunpack.c.h.b16 %v6349
        %v6935 = vunpack.c.l.b16 %v6350
        %v6936 = vunpack.c.h.b16 %v6350
        %v6937 = vunpack.c.l.b16 %v6351
        %v6938 = vunpack.c.h.b16 %v6351
        %v6939 = vunpack.c.l.b16 %v6352
        %v6940 = vunpack.c.h.b16 %v6352
        %v6941 = vunpack.c.l.b16 %v6353
        %v6942 = vunpack.c.h.b16 %v6353
        %v6943 = vunpack.c.l.b16 %v6354
        %v6944 = vunpack.c.h.b16 %v6354
        %v6945 = vunpack.c.l.b16 %v6355
        %v6946 = vunpack.c.h.b16 %v6355
        %v6947 = vunpack.c.l.b16 %v6356
        %v6948 = vunpack.c.h.b16 %v6356
        %v6949 = vunpack.c.l.b16 %v6357
        %v6950 = vunpack.c.h.b16 %v6357
        %v6951 = vunpack.c.l.b16 %v6358
        %v6952 = vunpack.c.h.b16 %v6358
        %v6953 = vunpack.c.l.b16 %v6359
        %v6954 = vunpack.c.h.b16 %v6359
        %v6955 = vunpack.c.l.b16 %v6360
        %v6956 = vunpack.c.h.b16 %v6360
        %v6957 = vunpack.c.l.b16 %v6361
        %v6958 = vunpack.c.h.b16 %v6361
        %v6959 = vunpack.c.l.b16 %v6362
        %v6960 = vunpack.c.h.b16 %v6362
        %v6961 = vunpack.c.l.b16 %v6363
        %v6962 = vunpack.c.h.b16 %v6363
        %v6963 = vunpack.c.l.b16 %v6364
        %v6964 = vunpack.c.h.b16 %v6364
        %v6965 = vunpack.c.l.b16 %v6365
        %v6966 = vunpack.c.h.b16 %v6365
        %v6967 = vunpack.c.l.b16 %v6366
        %v6968 = vunpack.c.h.b16 %v6366
        %v6969 = vunpack.c.l.b16 %v6367
        %v6970 = vunpack.c.h.b16 %v6367
        %v6971 = vunpack.c.l.b16 %v6368
        %v6972 = vunpack.c.h.b16 %v6368
        %v6973 = vunpack.c.l.b16 %v6369
        %v6974 = vunpack.c.h.b16 %v6369
        %v6975 = vunpack.c.l.b16 %v6370
        %v6976 = vunpack.c.h.b16 %v6370
        %v6977 = vunpack.c.l.b16 %v6371
        %v6978 = vunpack.c.h.b16 %v6371
        %v6979 = vunpack.c.l.b16 %v6372
        %v6980 = vunpack.c.h.b16 %v6372
        %v6981 = vunpack.c.l.b16 %v6373
        %v6982 = vunpack.c.h.b16 %v6373
        %v6983 = vunpack.c.l.b16 %v6374
        %v6984 = vunpack.c.h.b16 %v6374
        %v6985 = vunpack.c.l.b16 %v6375
        %v6986 = vunpack.c.h.b16 %v6375
        %v6987 = vunpack.c.l.b16 %v6376
        %v6988 = vunpack.c.h.b16 %v6376
        %v6989 = vunpack.c.l.b16 %v6377
        %v6990 = vunpack.c.h.b16 %v6377
        %v6991 = vunpack.c.l.b16 %v6378
        %v6992 = vunpack.c.h.b16 %v6378
        %v6993 = vunpack.c.l.b16 %v6379
        %v6994 = vunpack.c.h.b16 %v6379
        %v6995 = vunpack.c.l.b16 %v6380
        %v6996 = vunpack.c.h.b16 %v6380
        %v6997 = vunpack.c.l.b16 %v6381
        %v6998 = vunpack.c.h.b16 %v6381
        %v6999 = vunpack.c.l.b16 %v6382
        %v7000 = vunpack.c.h.b16 %v6382
        %v7001 = vunpack.c.l.b16 %v6383
        %v7002 = vunpack.c.h.b16 %v6383
        %v7003 = vunpack.c.l.b16 %v6384
        %v7004 = vunpack.c.h.b16 %v6384
        %v7005 = vunpack.c.l.b16 %v6385
        %v7006 = vunpack.c.h.b16 %v6385
        %v7007 = vunpack.c.l.b16 %v6386
        %v7008 = vunpack.c.h.b16 %v6386
        %v7009 = vunpack.c.l.b16 %v6387
        %v7010 = vunpack.c.h.b16 %v6387
        %v7011 = vunpack.c.l.b16 %v6388
        %v7012 = vunpack.c.h.b16 %v6388
        %v7013 = vunpack.c.l.b16 %v6389
        %v7014 = vunpack.c.h.b16 %v6389
        %v7015 = vunpack.c.l.b16 %v6390
        %v7016 = vunpack.c.h.b16 %v6390
        %v7017 = vunpack.c.l.b16 %v6391
        %v7018 = vunpack.c.h.b16 %v6391
        %v7019 = vunpack.c.l.b16 %v6392
        %v7020 = vunpack.c.h.b16 %v6392
        %v7021 = vunpack.c.l.b16 %v6393
        %v7022 = vunpack.c.h.b16 %v6393
        %v7023 = vunpack.c.l.b16 %v6394
        %v7024 = vunpack.c.h.b16 %v6394
        %v7025 = vunpack.c.l.b16 %v6395
        %v7026 = vunpack.c.h.b16 %v6395
        %v7027 = vunpack.c.l.b16 %v6396
        %v7028 = vunpack.c.h.b16 %v6396
        %v7029 = vunpack.c.l.b16 %v6397
        %v7030 = vunpack.c.h.b16 %v6397
        %v7031 = vunpack.c.l.b16 %v6398
        %v7032 = vunpack.c.h.b16 %v6398
        %v7033 = vunpack.c.l.b16 %v6399
        %v7034 = vunpack.c.h.b16 %v6399
        %v7035 = vunpack.c.l.b16 %v6400
        %v7036 = vunpack.c.h.b16 %v6400
        %v7037 = vunpack.c.l.b16 %v6401
        %v7038 = vunpack.c.h.b16 %v6401
        %v7039 = vunpack.c.l.b16 %v6402
        %v7040 = vunpack.c.h.b16 %v6402
        %v7041 = vunpack.c.l.b16 %v6403
        %v7042 = vunpack.c.h.b16 %v6403
        %v7043 = vunpack.c.l.b16 %v6404
        %v7044 = vunpack.c.h.b16 %v6404
        %v7045 = vunpack.c.l.b16 %v6405
        %v7046 = vunpack.c.h.b16 %v6405
        %v7047 = vunpack.c.l.b16 %v6406
        %v7048 = vunpack.c.h.b16 %v6406
        %v7049 = vunpack.c.l.b16 %v6407
        %v7050 = vunpack.c.h.b16 %v6407
        %v7051 = vunpack.c.l.b16 %v6408
        %v7052 = vunpack.c.h.b16 %v6408
        %v7053 = vunpack.c.l.b16 %v6409
        %v7054 = vunpack.c.h.b16 %v6409
        %v7055 = vunpack.c.l.b16 %v6410
        %v7056 = vunpack.c.h.b16 %v6410
        %v7057 = vunpack.c.l.b16 %v6411
        %v7058 = vunpack.c.h.b16 %v6411
        %v7059 = vunpack.c.l.b16 %v6412
        %v7060 = vunpack.c.h.b16 %v6412
        %v7061 = vunpack.c.l.b16 %v6413
        %v7062 = vunpack.c.h.b16 %v6413
        %v7063 = vunpack.c.l.b16 %v6414
        %v7064 = vunpack.c.h.b16 %v6414
        %v7065 = vunpack.c.l.b16 %v6415
        %v7066 = vunpack.c.h.b16 %v6415
        %v7067 = vunpack.c.l.b16 %v6416
        %v7068 = vunpack.c.h.b16 %v6416
        %v7069 = vunpack.c.l.b16 %v6417
        %v7070 = vunpack.c.h.b16 %v6417
        %v7071 = vunpack.c.l.b16 %v6418
        %v7072 = vunpack.c.h.b16 %v6418
        %v7073 = vunpack.c.l.b16 %v6419
        %v7074 = vunpack.c.h.b16 %v6419
        %v7075 = vunpack.c.l.b16 %v6420
        %v7076 = vunpack.c.h.b16 %v6420
        %v7077 = vunpack.c.l.b16 %v6421
        %v7078 = vunpack.c.h.b16 %v6421
        %v7079 = vunpack.c.l.b16 %v6422
        %v7080 = vunpack.c.h.b16 %v6422
        %v7081 = vunpack.c.l.b16 %v6423
        %v7082 = vunpack.c.h.b16 %v6423
        %v7083 = vunpack.c.l.b16 %v6424
        %v7084 = vunpack.c.h.b16 %v6424
        %v7085 = vunpack.c.l.b16 %v6425
        %v7086 = vunpack.c.h.b16 %v6425
        %v7087 = vunpack.c.l.b16 %v6426
        %v7088 = vunpack.c.h.b16 %v6426
        %v7089 = vunpack.c.l.b16 %v6427
        %v7090 = vunpack.c.h.b16 %v6427
        %v7091 = vunpack.c.l.b16 %v6428
        %v7092 = vunpack.c.h.b16 %v6428
        %v7093 = vunpack.c.l.b16 %v6429
        %v7094 = vunpack.c.h.b16 %v6429
        %v7095 = vunpack.c.l.b16 %v6430
        %v7096 = vunpack.c.h.b16 %v6430
        %v7097 = vunpack.c.l.b16 %v6431
        %v7098 = vunpack.c.h.b16 %v6431
        %v7099 = vunpack.c.l.b16 %v6432
        %v7100 = vunpack.c.h.b16 %v6432
        %v7101 = vunpack.c.l.b16 %v6433
        %v7102 = vunpack.c.h.b16 %v6433
        %v7103 = vunpack.c.l.b16 %v6434
        %v7104 = vunpack.c.h.b16 %v6434
        %v7105 = vunpack.c.l.b16 %v6435
        %v7106 = vunpack.c.h.b16 %v6435
        %v7107 = vunpack.c.l.b16 %v6436
        %v7108 = vunpack.c.h.b16 %v6436
        %v7109 = vunpack.c.l.b16 %v6437
        %v7110 = vunpack.c.h.b16 %v6437
        %v7111 = vunpack.c.l.b16 %v6438
        %v7112 = vunpack.c.h.b16 %v6438
        %v7113 = vunpack.c.l.b16 %v6439
        %v7114 = vunpack.c.h.b16 %v6439
        %v7115 = vunpack.c.l.b16 %v6440
        %v7116 = vunpack.c.h.b16 %v6440
        %v7117 = vunpack.c.l.b16 %v6441
        %v7118 = vunpack.c.h.b16 %v6441
        %v7119 = vunpack.c.l.b16 %v6442
        %v7120 = vunpack.c.h.b16 %v6442
        %v7121 = vunpack.c.l.b16 %v6443
        %v7122 = vunpack.c.h.b16 %v6443
        %v7123 = vunpack.c.l.b16 %v6444
        %v7124 = vunpack.c.h.b16 %v6444
        %v7125 = vunpack.c.l.b16 %v6445
        %v7126 = vunpack.c.h.b16 %v6445
        %v7127 = vunpack.c.l.b16 %v6446
        %v7128 = vunpack.c.h.b16 %v6446
        %v7129 = vunpack.c.l.b16 %v6447
        %v7130 = vunpack.c.h.b16 %v6447
        %v7131 = vunpack.c.l.b16 %v6448
        %v7132 = vunpack.c.h.b16 %v6448
        %v7133 = vunpack.c.l.b16 %v6449
        %v7134 = vunpack.c.h.b16 %v6449
        %v7135 = vunpack.c.l.b16 %v6450
        %v7136 = vunpack.c.h.b16 %v6450
        %v7137 = vunpack.c.l.b16 %v6451
        %v7138 = vunpack.c.h.b16 %v6451
        %v7139 = vunpack.c.l.b16 %v6452
        %v7140 = vunpack.c.h.b16 %v6452
        %v7141 = vunpack.c.l.b16 %v6453
        %v7142 = vunpack.c.h.b16 %v6453
        %v7143 = vunpack.c.l.b16 %v6454
        %v7144 = vunpack.c.h.b16 %v6454
        %v7145 = vunpack.c.l.b16 %v6455
        %v7146 = vunpack.c.h.b16 %v6455
        %v7147 = vunpack.c.l.b16 %v6456
        %v7148 = vunpack.c.h.b16 %v6456
        %v7149 = vunpack.c.l.b16 %v6457
        %v7150 = vunpack.c.h.b16 %v6457
        %v7151 = vunpack.c.l.b16 %v6458
        %v7152 = vunpack.c.h.b16 %v6458
        %v7153 = vunpack.c.l.b16 %v6459
        %v7154 = vunpack.c.h.b16 %v6459
        %v7155 = vunpack.c.l.b16 %v6460
        %v7156 = vunpack.c.h.b16 %v6460
        %v7157 = vunpack.c.l.b16 %v6461
        %v7158 = vunpack.c.h.b16 %v6461
        %v7159 = vunpack.c.l.b16 %v6462
        %v7160 = vunpack.c.h.b16 %v6462
        %v7161 = vunpack.c.l.b16 %v6463
        %v7162 = vunpack.c.h.b16 %v6463
        %v7163 = vunpack.c.l.b16 %v6464
        %v7164 = vunpack.c.h.b16 %v6464
        %v7165 = vunpack.c.l.b16 %v6465
        %v7166 = vunpack.c.h.b16 %v6465
        %v7167 = vunpack.c.l.b16 %v6466
        %v7168 = vunpack.c.h.b16 %v6466
        %v7169 = vunpack.c.l.b16 %v6467
        %v7170 = vunpack.c.h.b16 %v6467
        %v7171 = vunpack.c.l.b16 %v6468
        %v7172 = vunpack.c.h.b16 %v6468
        %v7173 = vunpack.c.l.b16 %v6469
        %v7174 = vunpack.c.h.b16 %v6469
        %v7175 = vunpack.c.l.b16 %v6470
        %v7176 = vunpack.c.h.b16 %v6470
        %v7177 = vunpack.c.l.b16 %v6471
        %v7178 = vunpack.c.h.b16 %v6471
        %v7179 = vunpack.c.l.b16 %v6472
        %v7180 = vunpack.c.h.b16 %v6472
        %v7181 = vunpack.c.l.b16 %v6473
        %v7182 = vunpack.c.h.b16 %v6473
        %v7183 = vunpack.c.l.b16 %v6474
        %v7184 = vunpack.c.h.b16 %v6474
        %v7185 = vunpack.c.l.b16 %v6475
        %v7186 = vunpack.c.h.b16 %v6475
        %v7187 = vunpack.c.l.b16 %v6476
        %v7188 = vunpack.c.h.b16 %v6476
        %v7189 = vunpack.c.l.b16 %v6477
        %v7190 = vunpack.c.h.b16 %v6477
        %v7191 = vunpack.c.l.b16 %v6478
        %v7192 = vunpack.c.h.b16 %v6478
        %v7193 = vunpack.c.l.b16 %v6479
        %v7194 = vunpack.c.h.b16 %v6479
        %v7195 = vunpack.c.l.b16 %v6480
        %v7196 = vunpack.c.h.b16 %v6480
        %v7197 = vunpack.c.l.b16 %v6481
        %v7198 = vunpack.c.h.b16 %v6481
        %v7199 = vunpack.c.l.b16 %v6482
        %v7200 = vunpack.c.h.b16 %v6482
        %v7201 = vunpack.c.l.b16 %v6483
        %v7202 = vunpack.c.h.b16 %v6483
        %v7203 = vunpack.c.l.b16 %v6484
        %v7204 = vunpack.c.h.b16 %v6484
        %v7205 = vunpack.c.l.b16 %v6485
        %v7206 = vunpack.c.h.b16 %v6485
        %v7207 = vunpack.c.l.b16 %v6486
        %v7208 = vunpack.c.h.b16 %v6486
        %v7209 = vunpack.c.l.b16 %v6487
        %v7210 = vunpack.c.h.b16 %v6487
        %v7211 = vunpack.c.l.b16 %v6488
        %v7212 = vunpack.c.h.b16 %v6488
        %v7213 = vunpack.c.l.b16 %v6489
        %v7214 = vunpack.c.h.b16 %v6489
        %v7215 = vunpack.c.l.b16 %v6490
        %v7216 = vunpack.c.h.b16 %v6490
        %v7217 = vunpack.c.l.b16 %v6491
        %v7218 = vunpack.c.h.b16 %v6491
        %v7219 = vunpack.c.l.b16 %v6492
        %v7220 = vunpack.c.h.b16 %v6492
        %v7221 = vunpack.c.l.b16 %v6493
        %v7222 = vunpack.c.h.b16 %v6493
        %v7223 = vunpack.c.l.b16 %v6494
        %v7224 = vunpack.c.h.b16 %v6494
        %v7225 = vunpack.c.l.b16 %v6495
        %v7226 = vunpack.c.h.b16 %v6495
        %v7227 = vunpack.c.l.b16 %v6496
        %v7228 = vunpack.c.h.b16 %v6496
        %v7229 = vunpack.c.l.b16 %v6497
        %v7230 = vunpack.c.h.b16 %v6497
        %v7231 = vunpack.c.l.b16 %v6498
        %v7232 = vunpack.c.h.b16 %v6498
        %v7233 = vunpack.c.l.b16 %v6499
        %v7234 = vunpack.c.h.b16 %v6499
        %v7235 = vunpack.c.l.b16 %v6500
        %v7236 = vunpack.c.h.b16 %v6500
        %v7237 = vunpack.c.l.b16 %v6501
        %v7238 = vunpack.c.h.b16 %v6501
        %v7239 = vunpack.c.l.b16 %v6502
        %v7240 = vunpack.c.h.b16 %v6502
        %v7241 = vunpack.c.l.b16 %v6503
        %v7242 = vunpack.c.h.b16 %v6503
        %v7243 = vunpack.c.l.b16 %v6504
        %v7244 = vunpack.c.h.b16 %v6504
        %v7245 = vunpack.c.l.b16 %v6505
        %v7246 = vunpack.c.h.b16 %v6505
        %v7247 = vunpack.c.l.b16 %v6506
        %v7248 = vunpack.c.h.b16 %v6506
        %v7249 = vunpack.c.l.b16 %v6507
        %v7250 = vunpack.c.h.b16 %v6507
        %v7251 = vunpack.c.l.b16 %v6508
        %v7252 = vunpack.c.h.b16 %v6508
        %v7253 = vunpack.c.l.b16 %v6509
        %v7254 = vunpack.c.h.b16 %v6509
        %v7255 = vunpack.c.l.b16 %v6510
        %v7256 = vunpack.c.h.b16 %v6510
        %v7257 = vunpack.c.l.b16 %v6511
        %v7258 = vunpack.c.h.b16 %v6511
        %v7259 = vunpack.c.l.b16 %v6512
        %v7260 = vunpack.c.h.b16 %v6512
        %v7261 = vunpack.c.l.b16 %v6513
        %v7262 = vunpack.c.h.b16 %v6513
        %v7263 = vunpack.c.l.b16 %v6514
        %v7264 = vunpack.c.h.b16 %v6514
        %v7265 = vunpack.c.l.b16 %v6515
        %v7266 = vunpack.c.h.b16 %v6515
        %v7267 = vunpack.c.l.b16 %v6516
        %v7268 = vunpack.c.h.b16 %v6516
        %v7269 = vunpack.c.l.b16 %v6517
        %v7270 = vunpack.c.h.b16 %v6517
        %v7271 = vunpack.c.l.b16 %v6518
        %v7272 = vunpack.c.h.b16 %v6518
        %v7273 = vunpack.c.l.b16 %v6519
        %v7274 = vunpack.c.h.b16 %v6519
        %v7275 = vunpack.c.l.b16 %v6520
        %v7276 = vunpack.c.h.b16 %v6520
        %v7277 = vunpack.c.l.b16 %v6521
        %v7278 = vunpack.c.h.b16 %v6521
        %v7279 = vunpack.c.l.b16 %v6522
        %v7280 = vunpack.c.h.b16 %v6522
        %v7281 = vunpack.c.l.b16 %v6523
        %v7282 = vunpack.c.h.b16 %v6523
        %v7283 = vunpack.c.l.b16 %v6524
        %v7284 = vunpack.c.h.b16 %v6524
        %v7285 = vunpack.c.l.b16 %v6525
        %v7286 = vunpack.c.h.b16 %v6525
        %v7287 = vunpack.c.l.b16 %v6526
        %v7288 = vunpack.c.h.b16 %v6526
        %v7289 = vunpack.c.l.b16 %v6527
        %v7290 = vunpack.c.h.b16 %v6527
        %v7291 = vunpack.c.l.b16 %v6528
        %v7292 = vunpack.c.h.b16 %v6528
        %v7293 = vunpack.c.l.b16 %v6529
        %v7294 = vunpack.c.h.b16 %v6529
        %v7295 = vunpack.c.l.b16 %v6530
        %v7296 = vunpack.c.h.b16 %v6530
        %v7297 = vunpack.c.l.b16 %v6531
        %v7298 = vunpack.c.h.b16 %v6531
        %v7299 = vunpack.c.l.b16 %v6532
        %v7300 = vunpack.c.h.b16 %v6532
        %v7301 = vunpack.c.l.b16 %v6533
        %v7302 = vunpack.c.h.b16 %v6533
        %v7303 = vpack.c.b16 %v6795, %v6791
        %v7304 = vpack.c.b16 %v6796, %v6792
        %v7305 = vpack.c.b16 %v6797, %v6793
        %v7306 = vpack.c.b16 %v6798, %v6794
        %v7307 = vpack.c.b16 %v6803, %v6799
        %v7308 = vpack.c.b16 %v6804, %v6800
        %v7309 = vpack.c.b16 %v6805, %v6801
        %v7310 = vpack.c.b16 %v6806, %v6802
        %v7311 = vpack.c.b16 %v6811, %v6807
        %v7312 = vpack.c.b16 %v6812, %v6808
        %v7313 = vpack.c.b16 %v6813, %v6809
        %v7314 = vpack.c.b16 %v6814, %v6810
        %v7315 = vpack.c.b16 %v6819, %v6815
        %v7316 = vpack.c.b16 %v6820, %v6816
        %v7317 = vpack.c.b16 %v6821, %v6817
        %v7318 = vpack.c.b16 %v6822, %v6818
        %v7319 = vpack.c.b16 %v6827, %v6823
        %v7320 = vpack.c.b16 %v6828, %v6824
        %v7321 = vpack.c.b16 %v6829, %v6825
        %v7322 = vpack.c.b16 %v6830, %v6826
        %v7323 = vpack.c.b16 %v6835, %v6831
        %v7324 = vpack.c.b16 %v6836, %v6832
        %v7325 = vpack.c.b16 %v6837, %v6833
        %v7326 = vpack.c.b16 %v6838, %v6834
        %v7327 = vpack.c.b16 %v6843, %v6839
        %v7328 = vpack.c.b16 %v6844, %v6840
        %v7329 = vpack.c.b16 %v6845, %v6841
        %v7330 = vpack.c.b16 %v6846, %v6842
        %v7331 = vpack.c.b16 %v6851, %v6847
        %v7332 = vpack.c.b16 %v6852, %v6848
        %v7333 = vpack.c.b16 %v6853, %v6849
        %v7334 = vpack.c.b16 %v6854, %v6850
        %v7335 = vpack.c.b16 %v6859, %v6855
        %v7336 = vpack.c.b16 %v6860, %v6856
        %v7337 = vpack.c.b16 %v6861, %v6857
        %v7338 = vpack.c.b16 %v6862, %v6858
        %v7339 = vpack.c.b16 %v6867, %v6863
        %v7340 = vpack.c.b16 %v6868, %v6864
        %v7341 = vpack.c.b16 %v6869, %v6865
        %v7342 = vpack.c.b16 %v6870, %v6866
        %v7343 = vpack.c.b16 %v6875, %v6871
        %v7344 = vpack.c.b16 %v6876, %v6872
        %v7345 = vpack.c.b16 %v6877, %v6873
        %v7346 = vpack.c.b16 %v6878, %v6874
        %v7347 = vpack.c.b16 %v6883, %v6879
        %v7348 = vpack.c.b16 %v6884, %v6880
        %v7349 = vpack.c.b16 %v6885, %v6881
        %v7350 = vpack.c.b16 %v6886, %v6882
        %v7351 = vpack.c.b16 %v6891, %v6887
        %v7352 = vpack.c.b16 %v6892, %v6888
        %v7353 = vpack.c.b16 %v6893, %v6889
        %v7354 = vpack.c.b16 %v6894, %v6890
        %v7355 = vpack.c.b16 %v6899, %v6895
        %v7356 = vpack.c.b16 %v6900, %v6896
        %v7357 = vpack.c.b16 %v6901, %v6897
        %v7358 = vpack.c.b16 %v6902, %v6898
        %v7359 = vpack.c.b16 %v6907, %v6903
        %v7360 = vpack.c.b16 %v6908, %v6904
        %v7361 = vpack.c.b16 %v6909, %v6905
        %v7362 = vpack.c.b16 %v6910, %v6906
        %v7363 = vpack.c.b16 %v6915, %v6911
        %v7364 = vpack.c.b16 %v6916, %v6912
        %v7365 = vpack.c.b16 %v6917, %v6913
        %v7366 = vpack.c.b16 %v6918, %v6914
        %v7367 = vpack.c.b16 %v6923, %v6919
        %v7368 = vpack.c.b16 %v6924, %v6920
        %v7369 = vpack.c.b16 %v6925, %v6921
        %v7370 = vpack.c.b16 %v6926, %v6922
        %v7371 = vpack.c.b16 %v6931, %v6927
        %v7372 = vpack.c.b16 %v6932, %v6928
        %v7373 = vpack.c.b16 %v6933, %v6929
        %v7374 = vpack.c.b16 %v6934, %v6930
        %v7375 = vpack.c.b16 %v6939, %v6935
        %v7376 = vpack.c.b16 %v6940, %v6936
        %v7377 = vpack.c.b16 %v6941, %v6937
        %v7378 = vpack.c.b16 %v6942, %v6938
        %v7379 = vpack.c.b16 %v6947, %v6943
        %v7380 = vpack.c.b16 %v6948, %v6944
        %v7381 = vpack.c.b16 %v6949, %v6945
        %v7382 = vpack.c.b16 %v6950, %v6946
        %v7383 = vpack.c.b16 %v6955, %v6951
        %v7384 = vpack.c.b16 %v6956, %v6952
        %v7385 = vpack.c.b16 %v6957, %v6953
        %v7386 = vpack.c.b16 %v6958, %v6954
        %v7387 = vpack.c.b16 %v6963, %v6959
        %v7388 = vpack.c.b16 %v6964, %v6960
        %v7389 = vpack.c.b16 %v6965, %v6961
        %v7390 = vpack.c.b16 %v6966, %v6962
        %v7391 = vpack.c.b16 %v6971, %v6967
        %v7392 = vpack.c.b16 %v6972, %v6968
        %v7393 = vpack.c.b16 %v6973, %v6969
        %v7394 = vpack.c.b16 %v6974, %v6970
        %v7395 = vpack.c.b16 %v6979, %v6975
        %v7396 = vpack.c.b16 %v6980, %v6976
        %v7397 = vpack.c.b16 %v6981, %v6977
        %v7398 = vpack.c.b16 %v6982, %v6978
        %v7399 = vpack.c.b16 %v6987, %v6983
        %v7400 = vpack.c.b16 %v6988, %v6984
        %v7401 = vpack.c.b16 %v6989, %v6985
        %v7402 = vpack.c.b16 %v6990, %v6986
        %v7403 = vpack.c.b16 %v6995, %v6991
        %v7404 = vpack.c.b16 %v6996, %v6992
        %v7405 = vpack.c.b16 %v6997, %v6993
        %v7406 = vpack.c.b16 %v6998, %v6994
        %v7407 = vpack.c.b16 %v7003, %v6999
        %v7408 = vpack.c.b16 %v7004, %v7000
        %v7409 = vpack.c.b16 %v7005, %v7001
        %v7410 = vpack.c.b16 %v7006, %v7002
        %v7411 = vpack.c.b16 %v7011, %v7007
        %v7412 = vpack.c.b16 %v7012, %v7008
        %v7413 = vpack.c.b16 %v7013, %v7009
        %v7414 = vpack.c.b16 %v7014, %v7010
        %v7415 = vpack.c.b16 %v7019, %v7015
        %v7416 = vpack.c.b16 %v7020, %v7016
        %v7417 = vpack.c.b16 %v7021, %v7017
        %v7418 = vpack.c.b16 %v7022, %v7018
        %v7419 = vpack.c.b16 %v7027, %v7023
        %v7420 = vpack.c.b16 %v7028, %v7024
        %v7421 = vpack.c.b16 %v7029, %v7025
        %v7422 = vpack.c.b16 %v7030, %v7026
        %v7423 = vpack.c.b16 %v7035, %v7031
        %v7424 = vpack.c.b16 %v7036, %v7032
        %v7425 = vpack.c.b16 %v7037, %v7033
        %v7426 = vpack.c.b16 %v7038, %v7034
        %v7427 = vpack.c.b16 %v7043, %v7039
        %v7428 = vpack.c.b16 %v7044, %v7040
        %v7429 = vpack.c.b16 %v7045, %v7041
        %v7430 = vpack.c.b16 %v7046, %v7042
        %v7431 = vpack.c.b16 %v7051, %v7047
        %v7432 = vpack.c.b16 %v7052, %v7048
        %v7433 = vpack.c.b16 %v7053, %v7049
        %v7434 = vpack.c.b16 %v7054, %v7050
        %v7435 = vpack.c.b16 %v7059, %v7055
        %v7436 = vpack.c.b16 %v7060, %v7056
        %v7437 = vpack.c.b16 %v7061, %v7057
        %v7438 = vpack.c.b16 %v7062, %v7058
        %v7439 = vpack.c.b16 %v7067, %v7063
        %v7440 = vpack.c.b16 %v7068, %v7064
        %v7441 = vpack.c.b16 %v7069, %v7065
        %v7442 = vpack.c.b16 %v7070, %v7066
        %v7443 = vpack.c.b16 %v7075, %v7071
        %v7444 = vpack.c.b16 %v7076, %v7072
        %v7445 = vpack.c.b16 %v7077, %v7073
        %v7446 = vpack.c.b16 %v7078, %v7074
        %v7447 = vpack.c.b16 %v7083, %v7079
        %v7448 = vpack.c.b16 %v7084, %v7080
        %v7449 = vpack.c.b16 %v7085, %v7081
        %v7450 = vpack.c.b16 %v7086, %v7082
        %v7451 = vpack.c.b16 %v7091, %v7087
        %v7452 = vpack.c.b16 %v7092, %v7088
        %v7453 = vpack.c.b16 %v7093, %v7089
        %v7454 = vpack.c.b16 %v7094, %v7090
        %v7455 = vpack.c.b16 %v7099, %v7095
        %v7456 = vpack.c.b16 %v7100, %v7096
        %v7457 = vpack.c.b16 %v7101, %v7097
        %v7458 = vpack.c.b16 %v7102, %v7098
        %v7459 = vpack.c.b16 %v7107, %v7103
        %v7460 = vpack.c.b16 %v7108, %v7104
        %v7461 = vpack.c.b16 %v7109, %v7105
        %v7462 = vpack.c.b16 %v7110, %v7106
        %v7463 = vpack.c.b16 %v7115, %v7111
        %v7464 = vpack.c.b16 %v7116, %v7112
        %v7465 = vpack.c.b16 %v7117, %v7113
        %v7466 = vpack.c.b16 %v7118, %v7114
        %v7467 = vpack.c.b16 %v7123, %v7119
        %v7468 = vpack.c.b16 %v7124, %v7120
        %v7469 = vpack.c.b16 %v7125, %v7121
        %v7470 = vpack.c.b16 %v7126, %v7122
        %v7471 = vpack.c.b16 %v7131, %v7127
        %v7472 = vpack.c.b16 %v7132, %v7128
        %v7473 = vpack.c.b16 %v7133, %v7129
        %v7474 = vpack.c.b16 %v7134, %v7130
        %v7475 = vpack.c.b16 %v7139, %v7135
        %v7476 = vpack.c.b16 %v7140, %v7136
        %v7477 = vpack.c.b16 %v7141, %v7137
        %v7478 = vpack.c.b16 %v7142, %v7138
        %v7479 = vpack.c.b16 %v7147, %v7143
        %v7480 = vpack.c.b16 %v7148, %v7144
        %v7481 = vpack.c.b16 %v7149, %v7145
        %v7482 = vpack.c.b16 %v7150, %v7146
        %v7483 = vpack.c.b16 %v7155, %v7151
        %v7484 = vpack.c.b16 %v7156, %v7152
        %v7485 = vpack.c.b16 %v7157, %v7153
        %v7486 = vpack.c.b16 %v7158, %v7154
        %v7487 = vpack.c.b16 %v7163, %v7159
        %v7488 = vpack.c.b16 %v7164, %v7160
        %v7489 = vpack.c.b16 %v7165, %v7161
        %v7490 = vpack.c.b16 %v7166, %v7162
        %v7491 = vpack.c.b16 %v7171, %v7167
        %v7492 = vpack.c.b16 %v7172, %v7168
        %v7493 = vpack.c.b16 %v7173, %v7169
        %v7494 = vpack.c.b16 %v7174, %v7170
        %v7495 = vpack.c.b16 %v7179, %v7175
        %v7496 = vpack.c.b16 %v7180, %v7176
        %v7497 = vpack.c.b16 %v7181, %v7177
        %v7498 = vpack.c.b16 %v7182, %v7178
        %v7499 = vpack.c.b16 %v7187, %v7183
        %v7500 = vpack.c.b16 %v7188, %v7184
        %v7501 = vpack.c.b16 %v7189, %v7185
        %v7502 = vpack.c.b16 %v7190, %v7186
        %v7503 = vpack.c.b16 %v7195, %v7191
        %v7504 = vpack.c.b16 %v7196, %v7192
        %v7505 = vpack.c.b16 %v7197, %v7193
        %v7506 = vpack.c.b16 %v7198, %v7194
        %v7507 = vpack.c.b16 %v7203, %v7199
        %v7508 = vpack.c.b16 %v7204, %v7200
        %v7509 = vpack.c.b16 %v7205, %v7201
        %v7510 = vpack.c.b16 %v7206, %v7202
        %v7511 = vpack.c.b16 %v7211, %v7207
        %v7512 = vpack.c.b16 %v7212, %v7208
        %v7513 = vpack.c.b16 %v7213, %v7209
        %v7514 = vpack.c.b16 %v7214, %v7210
        %v7515 = vpack.c.b16 %v7219, %v7215
        %v7516 = vpack.c.b16 %v7220, %v7216
        %v7517 = vpack.c.b16 %v7221, %v7217
        %v7518 = vpack.c.b16 %v7222, %v7218
        %v7519 = vpack.c.b16 %v7227, %v7223
        %v7520 = vpack.c.b16 %v7228, %v7224
        %v7521 = vpack.c.b16 %v7229, %v7225
        %v7522 = vpack.c.b16 %v7230, %v7226
        %v7523 = vpack.c.b16 %v7235, %v7231
        %v7524 = vpack.c.b16 %v7236, %v7232
        %v7525 = vpack.c.b16 %v7237, %v7233
        %v7526 = vpack.c.b16 %v7238, %v7234
        %v7527 = vpack.c.b16 %v7243, %v7239
        %v7528 = vpack.c.b16 %v7244, %v7240
        %v7529 = vpack.c.b16 %v7245, %v7241
        %v7530 = vpack.c.b16 %v7246, %v7242
        %v7531 = vpack.c.b16 %v7251, %v7247
        %v7532 = vpack.c.b16 %v7252, %v7248
        %v7533 = vpack.c.b16 %v7253, %v7249
        %v7534 = vpack.c.b16 %v7254, %v7250
        %v7535 = vpack.c.b16 %v7259, %v7255
        %v7536 = vpack.c.b16 %v7260, %v7256
        %v7537 = vpack.c.b16 %v7261, %v7257
        %v7538 = vpack.c.b16 %v7262, %v7258
        %v7539 = vpack.c.b16 %v7267, %v7263
        %v7540 = vpack.c.b16 %v7268, %v7264
        %v7541 = vpack.c.b16 %v7269, %v7265
        %v7542 = vpack.c.b16 %v7270, %v7266
        %v7543 = vpack.c.b16 %v7275, %v7271
        %v7544 = vpack.c.b16 %v7276, %v7272
        %v7545 = vpack.c.b16 %v7277, %v7273
        %v7546 = vpack.c.b16 %v7278, %v7274
        %v7547 = vpack.c.b16 %v7283, %v7279
        %v7548 = vpack.c.b16 %v7284, %v7280
        %v7549 = vpack.c.b16 %v7285, %v7281
        %v7550 = vpack.c.b16 %v7286, %v7282
        %v7551 = vpack.c.b16 %v7291, %v7287
        %v7552 = vpack.c.b16 %v7292, %v7288
        %v7553 = vpack.c.b16 %v7293, %v7289
        %v7554 = vpack.c.b16 %v7294, %v7290
        %v7555 = vpack.c.b16 %v7299, %v7295
        %v7556 = vpack.c.b16 %v7300, %v7296
        %v7557 = vpack.c.b16 %v7301, %v7297
        %v7558 = vpack.c.b16 %v7302, %v7298
        %v7816 = vlaneseq
        %v7817 = vshrl.u32 %v7816, 7
        %v7818 = vsub.s32 0, %v7817
        %v7819 = vrot.slane %v6534, %v7818
        %v7820 = vlaneseq
        %v7821 = vshrl.u32 %v7820, 7
        %v7822 = vsub.s32 1, %v7821
        %v7823 = vrot.slane %v6534, %v7822
        %v7824 = vlaneseq
        %v7825 = vshrl.u32 %v7824, 7
        %v7826 = vsub.s32 2, %v7825
        %v7827 = vrot.slane %v6534, %v7826
        %v7828 = vlaneseq
        %v7829 = vshrl.u32 %v7828, 7
        %v7830 = vsub.s32 3, %v7829
        %v7831 = vrot.slane %v6534, %v7830
        %7836 = vmatprep.subr.bf16.mxu0 %v7304
        %7837 = vmatpush1.bf16.msra.mxu0 %v7303
        %7838 = vmatprep.subr.bf16.mxu0 %v7308
        %7839 = vmatpush1.bf16.msra.mxu0 %v7307
        %7840 = vmatprep.subr.bf16.mxu0 %v7312
        %7841 = vmatpush1.bf16.msra.mxu0 %v7311
        %7842 = vmatprep.subr.bf16.mxu0 %v7316
        %7843 = vmatpush1.bf16.msra.mxu0 %v7315
        %7844 = vmatprep.subr.bf16.mxu0 %v7320
        %7845 = vmatpush1.bf16.msra.mxu0 %v7319
        %7846 = vmatprep.subr.bf16.mxu0 %v7324
        %7847 = vmatpush1.bf16.msra.mxu0 %v7323
        %7848 = vmatprep.subr.bf16.mxu0 %v7328
        %7849 = vmatpush1.bf16.msra.mxu0 %v7327
        %7850 = vmatprep.subr.bf16.mxu0 %v7332
        %7851 = vmatpush1.bf16.msra.mxu0 %v7331
        %7852 = vmatprep.subr.bf16.mxu0 %v7336
        %7853 = vmatpush1.bf16.msra.mxu0 %v7335
        %7854 = vmatprep.subr.bf16.mxu0 %v7340
        %7855 = vmatpush1.bf16.msra.mxu0 %v7339
        %7856 = vmatprep.subr.bf16.mxu0 %v7344
        %7857 = vmatpush1.bf16.msra.mxu0 %v7343
        %7858 = vmatprep.subr.bf16.mxu0 %v7348
        %7859 = vmatpush1.bf16.msra.mxu0 %v7347
        %7860 = vmatprep.subr.bf16.mxu0 %v7352
        %7861 = vmatpush1.bf16.msra.mxu0 %v7351
        %7862 = vmatprep.subr.bf16.mxu0 %v7356
        %7863 = vmatpush1.bf16.msra.mxu0 %v7355
        %7864 = vmatprep.subr.bf16.mxu0 %v7360
        %7865 = vmatpush1.bf16.msra.mxu0 %v7359
        %7866 = vmatprep.subr.bf16.mxu0 %v7364
        %7867 = vmatpush1.bf16.msra.mxu0 %v7363
        %7868 = vmatprep.mubr.bf16.mxu0 %v6271
        %7869 = vmatmul.mubr.bf16.gmra.mrb[0].mxu0 %v6270
        %v7870 = vpop.f32.mrb[0].mxu0
        %v7871 = vadd.f32 %v7819, %v7870
        %v7872 = vpop.f32.mrb[0].mxu0
        %v7873 = vadd.f32 %v7823, %v7872
        %v7874 = vpop.f32.mrb[0].mxu0
        %v7875 = vpop.f32.mrb[0].mxu0
        %7876 = vdwg.mxu0
        %7877 = vmatprep.subr.bf16.mxu0 %v7368
        %7878 = vmatpush1.bf16.msra.mxu0 %v7367
        %7879 = vmatprep.subr.bf16.mxu0 %v7372
        %7880 = vmatpush1.bf16.msra.mxu0 %v7371
        %7881 = vmatprep.subr.bf16.mxu0 %v7376
        %7882 = vmatpush1.bf16.msra.mxu0 %v7375
        %7883 = vmatprep.subr.bf16.mxu0 %v7380
        %7884 = vmatpush1.bf16.msra.mxu0 %v7379
        %7885 = vmatprep.subr.bf16.mxu0 %v7384
        %7886 = vmatpush1.bf16.msra.mxu0 %v7383
        %7887 = vmatprep.subr.bf16.mxu0 %v7388
        %7888 = vmatpush1.bf16.msra.mxu0 %v7387
        %7889 = vmatprep.subr.bf16.mxu0 %v7392
        %7890 = vmatpush1.bf16.msra.mxu0 %v7391
        %7891 = vmatprep.subr.bf16.mxu0 %v7396
        %7892 = vmatpush1.bf16.msra.mxu0 %v7395
        %7893 = vmatprep.subr.bf16.mxu0 %v7400
        %7894 = vmatpush1.bf16.msra.mxu0 %v7399
        %7895 = vmatprep.subr.bf16.mxu0 %v7404
        %7896 = vmatpush1.bf16.msra.mxu0 %v7403
        %7897 = vmatprep.subr.bf16.mxu0 %v7408
        %7898 = vmatpush1.bf16.msra.mxu0 %v7407
        %7899 = vmatprep.subr.bf16.mxu0 %v7412
        %7900 = vmatpush1.bf16.msra.mxu0 %v7411
        %7901 = vmatprep.subr.bf16.mxu0 %v7416
        %7902 = vmatpush1.bf16.msra.mxu0 %v7415
        %7903 = vmatprep.subr.bf16.mxu0 %v7420
        %7904 = vmatpush1.bf16.msra.mxu0 %v7419
        %7905 = vmatprep.subr.bf16.mxu0 %v7424
        %7906 = vmatpush1.bf16.msra.mxu0 %v7423
        %7907 = vmatprep.subr.bf16.mxu0 %v7428
        %7908 = vmatpush1.bf16.msra.mxu0 %v7427
        %7909 = vmatprep.mubr.bf16.mxu0 %v6273
        %7910 = vmatmul.mubr.bf16.gmra.mrb[0].mxu0 %v6272
        %v7911 = vpop.f32.mrb[0].mxu0
        %v7912 = vadd.f32 %v7871, %v7911
        %v7913 = vpop.f32.mrb[0].mxu0
        %v7914 = vadd.f32 %v7873, %v7913
        %v7915 = vpop.f32.mrb[0].mxu0
        %v7916 = vpop.f32.mrb[0].mxu0
        %7917 = vdwg.mxu0
        %7918 = vmatprep.subr.bf16.mxu0 %v7432
        %7919 = vmatpush1.bf16.msra.mxu0 %v7431
        %7920 = vmatprep.subr.bf16.mxu0 %v7436
        %7921 = vmatpush1.bf16.msra.mxu0 %v7435
        %7922 = vmatprep.subr.bf16.mxu0 %v7440
        %7923 = vmatpush1.bf16.msra.mxu0 %v7439
        %7924 = vmatprep.subr.bf16.mxu0 %v7444
        %7925 = vmatpush1.bf16.msra.mxu0 %v7443
        %7926 = vmatprep.subr.bf16.mxu0 %v7448
        %7927 = vmatpush1.bf16.msra.mxu0 %v7447
        %7928 = vmatprep.subr.bf16.mxu0 %v7452
        %7929 = vmatpush1.bf16.msra.mxu0 %v7451
        %7930 = vmatprep.subr.bf16.mxu0 %v7456
        %7931 = vmatpush1.bf16.msra.mxu0 %v7455
        %7932 = vmatprep.subr.bf16.mxu0 %v7460
        %7933 = vmatpush1.bf16.msra.mxu0 %v7459
        %7934 = vmatprep.subr.bf16.mxu0 %v7464
        %7935 = vmatpush1.bf16.msra.mxu0 %v7463
        %7936 = vmatprep.subr.bf16.mxu0 %v7468
        %7937 = vmatpush1.bf16.msra.mxu0 %v7467
        %7938 = vmatprep.subr.bf16.mxu0 %v7472
        %7939 = vmatpush1.bf16.msra.mxu0 %v7471
        %7940 = vmatprep.subr.bf16.mxu0 %v7476
        %7941 = vmatpush1.bf16.msra.mxu0 %v7475
        %7942 = vmatprep.subr.bf16.mxu0 %v7480
        %7943 = vmatpush1.bf16.msra.mxu0 %v7479
        %7944 = vmatprep.subr.bf16.mxu0 %v7484
        %7945 = vmatpush1.bf16.msra.mxu0 %v7483
        %7946 = vmatprep.subr.bf16.mxu0 %v7488
        %7947 = vmatpush1.bf16.msra.mxu0 %v7487
        %7948 = vmatprep.subr.bf16.mxu0 %v7492
        %7949 = vmatpush1.bf16.msra.mxu0 %v7491
        %7950 = vmatprep.mubr.bf16.mxu0 %v6275
        %7951 = vmatmul.mubr.bf16.gmra.mrb[0].mxu0 %v6274
        %v7952 = vpop.f32.mrb[0].mxu0
        %v7953 = vadd.f32 %v7912, %v7952
        %v7954 = vpop.f32.mrb[0].mxu0
        %v7955 = vadd.f32 %v7914, %v7954
        %v7956 = vpop.f32.mrb[0].mxu0
        %v7957 = vpop.f32.mrb[0].mxu0
        %7958 = vdwg.mxu0
        %7959 = vmatprep.subr.bf16.mxu0 %v7496
        %7960 = vmatpush1.bf16.msra.mxu0 %v7495
        %7961 = vmatprep.subr.bf16.mxu0 %v7500
        %7962 = vmatpush1.bf16.msra.mxu0 %v7499
        %7963 = vmatprep.subr.bf16.mxu0 %v7504
        %7964 = vmatpush1.bf16.msra.mxu0 %v7503
        %7965 = vmatprep.subr.bf16.mxu0 %v7508
        %7966 = vmatpush1.bf16.msra.mxu0 %v7507
        %7967 = vmatprep.subr.bf16.mxu0 %v7512
        %7968 = vmatpush1.bf16.msra.mxu0 %v7511
        %7969 = vmatprep.subr.bf16.mxu0 %v7516
        %7970 = vmatpush1.bf16.msra.mxu0 %v7515
        %7971 = vmatprep.subr.bf16.mxu0 %v7520
        %7972 = vmatpush1.bf16.msra.mxu0 %v7519
        %7973 = vmatprep.subr.bf16.mxu0 %v7524
        %7974 = vmatpush1.bf16.msra.mxu0 %v7523
        %7975 = vmatprep.subr.bf16.mxu0 %v7528
        %7976 = vmatpush1.bf16.msra.mxu0 %v7527
        %7977 = vmatprep.subr.bf16.mxu0 %v7532
        %7978 = vmatpush1.bf16.msra.mxu0 %v7531
        %7979 = vmatprep.subr.bf16.mxu0 %v7536
        %7980 = vmatpush1.bf16.msra.mxu0 %v7535
        %7981 = vmatprep.subr.bf16.mxu0 %v7540
        %7982 = vmatpush1.bf16.msra.mxu0 %v7539
        %7983 = vmatprep.subr.bf16.mxu0 %v7544
        %7984 = vmatpush1.bf16.msra.mxu0 %v7543
        %7985 = vmatprep.subr.bf16.mxu0 %v7548
        %7986 = vmatpush1.bf16.msra.mxu0 %v7547
        %7987 = vmatprep.subr.bf16.mxu0 %v7552
        %7988 = vmatpush1.bf16.msra.mxu0 %v7551
        %7989 = vmatprep.subr.bf16.mxu0 %v7556
        %7990 = vmatpush1.bf16.msra.mxu0 %v7555
        %7991 = vmatprep.mubr.bf16.mxu0 %v6277
        %7992 = vmatmul.mubr.bf16.gmra.mrb[0].mxu0 %v6276
        %v7993 = vpop.f32.mrb[0].mxu0
        %v7994 = vadd.f32 %v7953, %v7993
        %v7995 = vpop.f32.mrb[0].mxu0
        %v7996 = vadd.f32 %v7955, %v7995
        %v7997 = vpop.f32.mrb[0].mxu0
        %v7998 = vpop.f32.mrb[0].mxu0
        %7999 = vdwg.mxu0
        %8000 = vmatprep.subr.bf16.mxu0 %v7306
        %8001 = vmatpush1.bf16.msra.mxu0 %v7305
        %8002 = vmatprep.subr.bf16.mxu0 %v7310
        %8003 = vmatpush1.bf16.msra.mxu0 %v7309
        %8004 = vmatprep.subr.bf16.mxu0 %v7314
        %8005 = vmatpush1.bf16.msra.mxu0 %v7313
        %8006 = vmatprep.subr.bf16.mxu0 %v7318
        %8007 = vmatpush1.bf16.msra.mxu0 %v7317
        %8008 = vmatprep.subr.bf16.mxu0 %v7322
        %8009 = vmatpush1.bf16.msra.mxu0 %v7321
        %8010 = vmatprep.subr.bf16.mxu0 %v7326
        %8011 = vmatpush1.bf16.msra.mxu0 %v7325
        %8012 = vmatprep.subr.bf16.mxu0 %v7330
        %8013 = vmatpush1.bf16.msra.mxu0 %v7329
        %8014 = vmatprep.subr.bf16.mxu0 %v7334
        %8015 = vmatpush1.bf16.msra.mxu0 %v7333
        %8016 = vmatprep.subr.bf16.mxu0 %v7338
        %8017 = vmatpush1.bf16.msra.mxu0 %v7337
        %8018 = vmatprep.subr.bf16.mxu0 %v7342
        %8019 = vmatpush1.bf16.msra.mxu0 %v7341
        %8020 = vmatprep.subr.bf16.mxu0 %v7346
        %8021 = vmatpush1.bf16.msra.mxu0 %v7345
        %8022 = vmatprep.subr.bf16.mxu0 %v7350
        %8023 = vmatpush1.bf16.msra.mxu0 %v7349
        %8024 = vmatprep.subr.bf16.mxu0 %v7354
        %8025 = vmatpush1.bf16.msra.mxu0 %v7353
        %8026 = vmatprep.subr.bf16.mxu0 %v7358
        %8027 = vmatpush1.bf16.msra.mxu0 %v7357
        %8028 = vmatprep.subr.bf16.mxu0 %v7362
        %8029 = vmatpush1.bf16.msra.mxu0 %v7361
        %8030 = vmatprep.subr.bf16.mxu0 %v7366
        %8031 = vmatpush1.bf16.msra.mxu0 %v7365
        %8032 = vmatprep.mubr.bf16.mxu0 %v6271
        %8033 = vmatmul.mubr.bf16.gmra.mrb[0].mxu0 %v6270
        %v8034 = vpop.f32.mrb[0].mxu0
        %v8035 = vadd.f32 %v7827, %v8034
        %v8036 = vpop.f32.mrb[0].mxu0
        %v8037 = vadd.f32 %v7831, %v8036
        %v8038 = vpop.f32.mrb[0].mxu0
        %v8039 = vpop.f32.mrb[0].mxu0
        %8040 = vdwg.mxu0
        %8041 = vmatprep.subr.bf16.mxu0 %v7370
        %8042 = vmatpush1.bf16.msra.mxu0 %v7369
        %8043 = vmatprep.subr.bf16.mxu0 %v7374
        %8044 = vmatpush1.bf16.msra.mxu0 %v7373
        %8045 = vmatprep.subr.bf16.mxu0 %v7378
        %8046 = vmatpush1.bf16.msra.mxu0 %v7377
        %8047 = vmatprep.subr.bf16.mxu0 %v7382
        %8048 = vmatpush1.bf16.msra.mxu0 %v7381
        %8049 = vmatprep.subr.bf16.mxu0 %v7386
        %8050 = vmatpush1.bf16.msra.mxu0 %v7385
        %8051 = vmatprep.subr.bf16.mxu0 %v7390
        %8052 = vmatpush1.bf16.msra.mxu0 %v7389
        %8053 = vmatprep.subr.bf16.mxu0 %v7394
        %8054 = vmatpush1.bf16.msra.mxu0 %v7393
        %8055 = vmatprep.subr.bf16.mxu0 %v7398
        %8056 = vmatpush1.bf16.msra.mxu0 %v7397
        %8057 = vmatprep.subr.bf16.mxu0 %v7402
        %8058 = vmatpush1.bf16.msra.mxu0 %v7401
        %8059 = vmatprep.subr.bf16.mxu0 %v7406
        %8060 = vmatpush1.bf16.msra.mxu0 %v7405
        %8061 = vmatprep.subr.bf16.mxu0 %v7410
        %8062 = vmatpush1.bf16.msra.mxu0 %v7409
        %8063 = vmatprep.subr.bf16.mxu0 %v7414
        %8064 = vmatpush1.bf16.msra.mxu0 %v7413
        %8065 = vmatprep.subr.bf16.mxu0 %v7418
        %8066 = vmatpush1.bf16.msra.mxu0 %v7417
        %8067 = vmatprep.subr.bf16.mxu0 %v7422
        %8068 = vmatpush1.bf16.msra.mxu0 %v7421
        %8069 = vmatprep.subr.bf16.mxu0 %v7426
        %8070 = vmatpush1.bf16.msra.mxu0 %v7425
        %8071 = vmatprep.subr.bf16.mxu0 %v7430
        %8072 = vmatpush1.bf16.msra.mxu0 %v7429
        %8073 = vmatprep.mubr.bf16.mxu0 %v6273
        %8074 = vmatmul.mubr.bf16.gmra.mrb[0].mxu0 %v6272
        %v8075 = vpop.f32.mrb[0].mxu0
        %v8076 = vadd.f32 %v8035, %v8075
        %v8077 = vpop.f32.mrb[0].mxu0
        %v8078 = vadd.f32 %v8037, %v8077
        %v8079 = vpop.f32.mrb[0].mxu0
        %v8080 = vpop.f32.mrb[0].mxu0
        %8081 = vdwg.mxu0
        %8082 = vmatprep.subr.bf16.mxu0 %v7434
        %8083 = vmatpush1.bf16.msra.mxu0 %v7433
        %8084 = vmatprep.subr.bf16.mxu0 %v7438
        %8085 = vmatpush1.bf16.msra.mxu0 %v7437
        %8086 = vmatprep.subr.bf16.mxu0 %v7442
        %8087 = vmatpush1.bf16.msra.mxu0 %v7441
        %8088 = vmatprep.subr.bf16.mxu0 %v7446
        %8089 = vmatpush1.bf16.msra.mxu0 %v7445
        %8090 = vmatprep.subr.bf16.mxu0 %v7450
        %8091 = vmatpush1.bf16.msra.mxu0 %v7449
        %8092 = vmatprep.subr.bf16.mxu0 %v7454
        %8093 = vmatpush1.bf16.msra.mxu0 %v7453
        %8094 = vmatprep.subr.bf16.mxu0 %v7458
        %8095 = vmatpush1.bf16.msra.mxu0 %v7457
        %8096 = vmatprep.subr.bf16.mxu0 %v7462
        %8097 = vmatpush1.bf16.msra.mxu0 %v7461
        %8098 = vmatprep.subr.bf16.mxu0 %v7466
        %8099 = vmatpush1.bf16.msra.mxu0 %v7465
        %8100 = vmatprep.subr.bf16.mxu0 %v7470
        %8101 = vmatpush1.bf16.msra.mxu0 %v7469
        %8102 = vmatprep.subr.bf16.mxu0 %v7474
        %8103 = vmatpush1.bf16.msra.mxu0 %v7473
        %8104 = vmatprep.subr.bf16.mxu0 %v7478
        %8105 = vmatpush1.bf16.msra.mxu0 %v7477
        %8106 = vmatprep.subr.bf16.mxu0 %v7482
        %8107 = vmatpush1.bf16.msra.mxu0 %v7481
        %8108 = vmatprep.subr.bf16.mxu0 %v7486
        %8109 = vmatpush1.bf16.msra.mxu0 %v7485
        %8110 = vmatprep.subr.bf16.mxu0 %v7490
        %8111 = vmatpush1.bf16.msra.mxu0 %v7489
        %8112 = vmatprep.subr.bf16.mxu0 %v7494
        %8113 = vmatpush1.bf16.msra.mxu0 %v7493
        %8114 = vmatprep.mubr.bf16.mxu0 %v6275
        %8115 = vmatmul.mubr.bf16.gmra.mrb[0].mxu0 %v6274
        %v8116 = vpop.f32.mrb[0].mxu0
        %v8117 = vadd.f32 %v8076, %v8116
        %v8118 = vpop.f32.mrb[0].mxu0
        %v8119 = vadd.f32 %v8078, %v8118
        %v8120 = vpop.f32.mrb[0].mxu0
        %v8121 = vpop.f32.mrb[0].mxu0
        %8122 = vdwg.mxu0
        %8123 = vmatprep.subr.bf16.mxu0 %v7498
        %8124 = vmatpush1.bf16.msra.mxu0 %v7497
        %8125 = vmatprep.subr.bf16.mxu0 %v7502
        %8126 = vmatpush1.bf16.msra.mxu0 %v7501
        %8127 = vmatprep.subr.bf16.mxu0 %v7506
        %8128 = vmatpush1.bf16.msra.mxu0 %v7505
        %8129 = vmatprep.subr.bf16.mxu0 %v7510
        %8130 = vmatpush1.bf16.msra.mxu0 %v7509
        %8131 = vmatprep.subr.bf16.mxu0 %v7514
        %8132 = vmatpush1.bf16.msra.mxu0 %v7513
        %8133 = vmatprep.subr.bf16.mxu0 %v7518
        %8134 = vmatpush1.bf16.msra.mxu0 %v7517
        %8135 = vmatprep.subr.bf16.mxu0 %v7522
        %8136 = vmatpush1.bf16.msra.mxu0 %v7521
        %8137 = vmatprep.subr.bf16.mxu0 %v7526
        %8138 = vmatpush1.bf16.msra.mxu0 %v7525
        %8139 = vmatprep.subr.bf16.mxu0 %v7530
        %8140 = vmatpush1.bf16.msra.mxu0 %v7529
        %8141 = vmatprep.subr.bf16.mxu0 %v7534
        %8142 = vmatpush1.bf16.msra.mxu0 %v7533
        %8143 = vmatprep.subr.bf16.mxu0 %v7538
        %8144 = vmatpush1.bf16.msra.mxu0 %v7537
        %8145 = vmatprep.subr.bf16.mxu0 %v7542
        %8146 = vmatpush1.bf16.msra.mxu0 %v7541
        %8147 = vmatprep.subr.bf16.mxu0 %v7546
        %8148 = vmatpush1.bf16.msra.mxu0 %v7545
        %8149 = vmatprep.subr.bf16.mxu0 %v7550
        %8150 = vmatpush1.bf16.msra.mxu0 %v7549
        %8151 = vmatprep.subr.bf16.mxu0 %v7554
        %8152 = vmatpush1.bf16.msra.mxu0 %v7553
        %8153 = vmatprep.subr.bf16.mxu0 %v7558
        %8154 = vmatpush1.bf16.msra.mxu0 %v7557
        %8155 = vmatprep.mubr.bf16.mxu0 %v6277
        %8156 = vmatmul.mubr.bf16.gmra.mrb[0].mxu0 %v6276
        %v8157 = vpop.f32.mrb[0].mxu0
        %v8158 = vadd.f32 %v8117, %v8157
        %v8159 = vpop.f32.mrb[0].mxu0
        %v8160 = vadd.f32 %v8119, %v8159
        %v8161 = vpop.f32.mrb[0].mxu0
        %v8162 = vpop.f32.mrb[0].mxu0
        %8163 = vdwg.mxu0
        %v8164 = vmax.f32 %v7994, 0.0
        %v8165 = vmax.f32 %v7996, 0.0
        %v8166 = vmax.f32 %v8158, 0.0
        %v8167 = vmax.f32 %v8160, 0.0
        %v8168 = vpack.c.bf16 %v8164, %v8164
        %v8169 = vpack.c.bf16 %v8165, %v8165
        %v8170 = vpack.c.bf16 %v8166, %v8166
        %v8171 = vpack.c.bf16 %v8167, %v8167
        %v8172 = vld [vmem:[%s9] sm:$0xf]
        %v8173 = vld [vmem:[%s9 + $0x4] sm:$0xf]
        %v8174 = vld [vmem:[%s9 + $0x8] sm:$0xf]
        %v8175 = vld [vmem:[%s9 + $0xc] sm:$0xf]
        %v8176 = vld [vmem:[%s9 + $0x10] sm:$0xf]
        %v8177 = vld [vmem:[%s9 + $0x14] sm:$0xf]
        %v8178 = vld [vmem:[%s9 + $0x18] sm:$0xf]
        %v8179 = vld [vmem:[%s9 + $0x1c] sm:$0xf]
        %v8180 = vld [vmem:[%s9 + $0x20] sm:$0xf]
        %v8181 = vld [vmem:[%s9 + $0x24] sm:$0xf]
        %v8182 = vld [vmem:[%s9 + $0x28] sm:$0xf]
        %v8183 = vld [vmem:[%s9 + $0x2c] sm:$0xf]
        %v8184 = vld [vmem:[%s9 + $0x30] sm:$0xf]
        %v8185 = vld [vmem:[%s9 + $0x34] sm:$0xf]
        %v8186 = vld [vmem:[%s9 + $0x38] sm:$0xf]
        %v8187 = vld [vmem:[%s9 + $0x3c] sm:$0xf]
        %v8188 = vld [vmem:[%s9 + $0x40] sm:$0xf]
        %v8189 = vld [vmem:[%s9 + $0x44] sm:$0xf]
        %v8190 = vld [vmem:[%s9 + $0x48] sm:$0xf]
        %v8191 = vld [vmem:[%s9 + $0x4c] sm:$0xf]
        %v8192 = vld [vmem:[%s9 + $0x50] sm:$0xf]
        %v8193 = vld [vmem:[%s9 + $0x54] sm:$0xf]
        %v8194 = vld [vmem:[%s9 + $0x58] sm:$0xf]
        %v8195 = vld [vmem:[%s9 + $0x5c] sm:$0xf]
        %v8196 = vld [vmem:[%s9 + $0x60] sm:$0xf]
        %v8197 = vld [vmem:[%s9 + $0x64] sm:$0xf]
        %v8198 = vld [vmem:[%s9 + $0x68] sm:$0xf]
        %v8199 = vld [vmem:[%s9 + $0x6c] sm:$0xf]
        %v8200 = vld [vmem:[%s9 + $0x70] sm:$0xf]
        %v8201 = vld [vmem:[%s9 + $0x74] sm:$0xf]
        %v8202 = vld [vmem:[%s9 + $0x78] sm:$0xf]
        %v8203 = vld [vmem:[%s9 + $0x7c] sm:$0xf]
        %v8204 = vld [vmem:[%s9 + $0x80] sm:$0xf]
        %v8205 = vld [vmem:[%s9 + $0x84] sm:$0xf]
        %v8206 = vld [vmem:[%s9 + $0x88] sm:$0xf]
        %v8207 = vld [vmem:[%s9 + $0x8c] sm:$0xf]
        %v8208 = vld [vmem:[%s9 + $0x90] sm:$0xf]
        %v8209 = vld [vmem:[%s9 + $0x94] sm:$0xf]
        %v8210 = vld [vmem:[%s9 + $0x98] sm:$0xf]
        %v8211 = vld [vmem:[%s9 + $0x9c] sm:$0xf]
        %v8212 = vld [vmem:[%s9 + $0xa0] sm:$0xf]
        %v8213 = vld [vmem:[%s9 + $0xa4] sm:$0xf]
        %v8214 = vld [vmem:[%s9 + $0xa8] sm:$0xf]
        %v8215 = vld [vmem:[%s9 + $0xac] sm:$0xf]
        %v8216 = vld [vmem:[%s9 + $0xb0] sm:$0xf]
        %v8217 = vld [vmem:[%s9 + $0xb4] sm:$0xf]
        %v8218 = vld [vmem:[%s9 + $0xb8] sm:$0xf]
        %v8219 = vld [vmem:[%s9 + $0xbc] sm:$0xf]
        %v8220 = vld [vmem:[%s9 + $0xc0] sm:$0xf]
        %v8221 = vld [vmem:[%s9 + $0xc4] sm:$0xf]
        %v8222 = vld [vmem:[%s9 + $0xc8] sm:$0xf]
        %v8223 = vld [vmem:[%s9 + $0xcc] sm:$0xf]
        %v8224 = vld [vmem:[%s9 + $0xd0] sm:$0xf]
        %v8225 = vld [vmem:[%s9 + $0xd4] sm:$0xf]
        %v8226 = vld [vmem:[%s9 + $0xd8] sm:$0xf]
        %v8227 = vld [vmem:[%s9 + $0xdc] sm:$0xf]
        %v8228 = vld [vmem:[%s9 + $0xe0] sm:$0xf]
        %v8229 = vld [vmem:[%s9 + $0xe4] sm:$0xf]
        %v8230 = vld [vmem:[%s9 + $0xe8] sm:$0xf]
        %v8231 = vld [vmem:[%s9 + $0xec] sm:$0xf]
        %v8232 = vld [vmem:[%s9 + $0xf0] sm:$0xf]
        %v8233 = vld [vmem:[%s9 + $0xf4] sm:$0xf]
        %v8234 = vld [vmem:[%s9 + $0xf8] sm:$0xf]
        %v8235 = vld [vmem:[%s9 + $0xfc] sm:$0xf]
        %v8236 = vld [vmem:[%s10] sm:$0x1]
        %v8301 = vunpack.c.l.b16 %v8172
        %v8302 = vunpack.c.l.b16 %v8173
        %v8303 = vunpack.c.l.b16 %v8174
        %v8304 = vunpack.c.l.b16 %v8175
        %v8305 = vunpack.c.l.b16 %v8176
        %v8306 = vunpack.c.l.b16 %v8177
        %v8307 = vunpack.c.l.b16 %v8178
        %v8308 = vunpack.c.l.b16 %v8179
        %v8309 = vunpack.c.l.b16 %v8180
        %v8310 = vunpack.c.l.b16 %v8181
        %v8311 = vunpack.c.l.b16 %v8182
        %v8312 = vunpack.c.l.b16 %v8183
        %v8313 = vunpack.c.l.b16 %v8184
        %v8314 = vunpack.c.l.b16 %v8185
        %v8315 = vunpack.c.l.b16 %v8186
        %v8316 = vunpack.c.l.b16 %v8187
        %v8317 = vunpack.c.l.b16 %v8188
        %v8318 = vunpack.c.l.b16 %v8189
        %v8319 = vunpack.c.l.b16 %v8190
        %v8320 = vunpack.c.l.b16 %v8191
        %v8321 = vunpack.c.l.b16 %v8192
        %v8322 = vunpack.c.l.b16 %v8193
        %v8323 = vunpack.c.l.b16 %v8194
        %v8324 = vunpack.c.l.b16 %v8195
        %v8325 = vunpack.c.l.b16 %v8196
        %v8326 = vunpack.c.l.b16 %v8197
        %v8327 = vunpack.c.l.b16 %v8198
        %v8328 = vunpack.c.l.b16 %v8199
        %v8329 = vunpack.c.l.b16 %v8200
        %v8330 = vunpack.c.l.b16 %v8201
        %v8331 = vunpack.c.l.b16 %v8202
        %v8332 = vunpack.c.l.b16 %v8203
        %v8333 = vunpack.c.l.b16 %v8204
        %v8334 = vunpack.c.l.b16 %v8205
        %v8335 = vunpack.c.l.b16 %v8206
        %v8336 = vunpack.c.l.b16 %v8207
        %v8337 = vunpack.c.l.b16 %v8208
        %v8338 = vunpack.c.l.b16 %v8209
        %v8339 = vunpack.c.l.b16 %v8210
        %v8340 = vunpack.c.l.b16 %v8211
        %v8341 = vunpack.c.l.b16 %v8212
        %v8342 = vunpack.c.l.b16 %v8213
        %v8343 = vunpack.c.l.b16 %v8214
        %v8344 = vunpack.c.l.b16 %v8215
        %v8345 = vunpack.c.l.b16 %v8216
        %v8346 = vunpack.c.l.b16 %v8217
        %v8347 = vunpack.c.l.b16 %v8218
        %v8348 = vunpack.c.l.b16 %v8219
        %v8349 = vunpack.c.l.b16 %v8220
        %v8350 = vunpack.c.l.b16 %v8221
        %v8351 = vunpack.c.l.b16 %v8222
        %v8352 = vunpack.c.l.b16 %v8223
        %v8353 = vunpack.c.l.b16 %v8224
        %v8354 = vunpack.c.l.b16 %v8225
        %v8355 = vunpack.c.l.b16 %v8226
        %v8356 = vunpack.c.l.b16 %v8227
        %v8357 = vunpack.c.l.b16 %v8228
        %v8358 = vunpack.c.l.b16 %v8229
        %v8359 = vunpack.c.l.b16 %v8230
        %v8360 = vunpack.c.l.b16 %v8231
        %v8361 = vunpack.c.l.b16 %v8232
        %v8362 = vunpack.c.l.b16 %v8233
        %v8363 = vunpack.c.l.b16 %v8234
        %v8364 = vunpack.c.l.b16 %v8235
        %v8365 = vpack.c.b16 %v8302, %v8301
        %v8366 = vpack.c.b16 %v8304, %v8303
        %v8367 = vpack.c.b16 %v8306, %v8305
        %v8368 = vpack.c.b16 %v8308, %v8307
        %v8369 = vpack.c.b16 %v8310, %v8309
        %v8370 = vpack.c.b16 %v8312, %v8311
        %v8371 = vpack.c.b16 %v8314, %v8313
        %v8372 = vpack.c.b16 %v8316, %v8315
        %v8373 = vpack.c.b16 %v8318, %v8317
        %v8374 = vpack.c.b16 %v8320, %v8319
        %v8375 = vpack.c.b16 %v8322, %v8321
        %v8376 = vpack.c.b16 %v8324, %v8323
        %v8377 = vpack.c.b16 %v8326, %v8325
        %v8378 = vpack.c.b16 %v8328, %v8327
        %v8379 = vpack.c.b16 %v8330, %v8329
        %v8380 = vpack.c.b16 %v8332, %v8331
        %v8381 = vpack.c.b16 %v8334, %v8333
        %v8382 = vpack.c.b16 %v8336, %v8335
        %v8383 = vpack.c.b16 %v8338, %v8337
        %v8384 = vpack.c.b16 %v8340, %v8339
        %v8385 = vpack.c.b16 %v8342, %v8341
        %v8386 = vpack.c.b16 %v8344, %v8343
        %v8387 = vpack.c.b16 %v8346, %v8345
        %v8388 = vpack.c.b16 %v8348, %v8347
        %v8389 = vpack.c.b16 %v8350, %v8349
        %v8390 = vpack.c.b16 %v8352, %v8351
        %v8391 = vpack.c.b16 %v8354, %v8353
        %v8392 = vpack.c.b16 %v8356, %v8355
        %v8393 = vpack.c.b16 %v8358, %v8357
        %v8394 = vpack.c.b16 %v8360, %v8359
        %v8395 = vpack.c.b16 %v8362, %v8361
        %v8396 = vpack.c.b16 %v8364, %v8363
        %8429 = vmatprep.subr.bf16.mxu0 0
        %8430 = vmatpush1.bf16.msra.mxu0 %v8365
        %8431 = vmatprep.subr.bf16.mxu0 0
        %8432 = vmatpush1.bf16.msra.mxu0 %v8366
        %8433 = vmatprep.subr.bf16.mxu0 0
        %8434 = vmatpush1.bf16.msra.mxu0 %v8367
        %8435 = vmatprep.subr.bf16.mxu0 0
        %8436 = vmatpush1.bf16.msra.mxu0 %v8368
        %8437 = vmatprep.subr.bf16.mxu0 0
        %8438 = vmatpush1.bf16.msra.mxu0 %v8369
        %8439 = vmatprep.subr.bf16.mxu0 0
        %8440 = vmatpush1.bf16.msra.mxu0 %v8370
        %8441 = vmatprep.subr.bf16.mxu0 0
        %8442 = vmatpush1.bf16.msra.mxu0 %v8371
        %8443 = vmatprep.subr.bf16.mxu0 0
        %8444 = vmatpush1.bf16.msra.mxu0 %v8372
        %8445 = vmatprep.subr.bf16.mxu0 0
        %8446 = vmatpush1.bf16.msra.mxu0 %v8373
        %8447 = vmatprep.subr.bf16.mxu0 0
        %8448 = vmatpush1.bf16.msra.mxu0 %v8374
        %8449 = vmatprep.subr.bf16.mxu0 0
        %8450 = vmatpush1.bf16.msra.mxu0 %v8375
        %8451 = vmatprep.subr.bf16.mxu0 0
        %8452 = vmatpush1.bf16.msra.mxu0 %v8376
        %8453 = vmatprep.subr.bf16.mxu0 0
        %8454 = vmatpush1.bf16.msra.mxu0 %v8377
        %8455 = vmatprep.subr.bf16.mxu0 0
        %8456 = vmatpush1.bf16.msra.mxu0 %v8378
        %8457 = vmatprep.subr.bf16.mxu0 0
        %8458 = vmatpush1.bf16.msra.mxu0 %v8379
        %8459 = vmatprep.subr.bf16.mxu0 0
        %8460 = vmatpush1.bf16.msra.mxu0 %v8380
        %8461 = vmatprep.mubr.bf16.mxu0 %v8169
        %8462 = vmatmul.mubr.bf16.gmra.mrb[0].mxu0 %v8168
        %v8463 = vpop.f32.mrb[0].mxu0
        %v8464 = vadd.f32 %v8236, %v8463
        %v8465 = vpop.f32.mrb[0].mxu0
        %v8466 = vpop.f32.mrb[0].mxu0
        %v8467 = vpop.f32.mrb[0].mxu0
        %8468 = vdwg.mxu0
        %8469 = vmatprep.subr.bf16.mxu0 0
        %8470 = vmatpush1.bf16.msra.mxu0 %v8381
        %8471 = vmatprep.subr.bf16.mxu0 0
        %8472 = vmatpush1.bf16.msra.mxu0 %v8382
        %8473 = vmatprep.subr.bf16.mxu0 0
        %8474 = vmatpush1.bf16.msra.mxu0 %v8383
        %8475 = vmatprep.subr.bf16.mxu0 0
        %8476 = vmatpush1.bf16.msra.mxu0 %v8384
        %8477 = vmatprep.subr.bf16.mxu0 0
        %8478 = vmatpush1.bf16.msra.mxu0 %v8385
        %8479 = vmatprep.subr.bf16.mxu0 0
        %8480 = vmatpush1.bf16.msra.mxu0 %v8386
        %8481 = vmatprep.subr.bf16.mxu0 0
        %8482 = vmatpush1.bf16.msra.mxu0 %v8387
        %8483 = vmatprep.subr.bf16.mxu0 0
        %8484 = vmatpush1.bf16.msra.mxu0 %v8388
        %8485 = vmatprep.subr.bf16.mxu0 0
        %8486 = vmatpush1.bf16.msra.mxu0 %v8389
        %8487 = vmatprep.subr.bf16.mxu0 0
        %8488 = vmatpush1.bf16.msra.mxu0 %v8390
        %8489 = vmatprep.subr.bf16.mxu0 0
        %8490 = vmatpush1.bf16.msra.mxu0 %v8391
        %8491 = vmatprep.subr.bf16.mxu0 0
        %8492 = vmatpush1.bf16.msra.mxu0 %v8392
        %8493 = vmatprep.subr.bf16.mxu0 0
        %8494 = vmatpush1.bf16.msra.mxu0 %v8393
        %8495 = vmatprep.subr.bf16.mxu0 0
        %8496 = vmatpush1.bf16.msra.mxu0 %v8394
        %8497 = vmatprep.subr.bf16.mxu0 0
        %8498 = vmatpush1.bf16.msra.mxu0 %v8395
        %8499 = vmatprep.subr.bf16.mxu0 0
        %8500 = vmatpush1.bf16.msra.mxu0 %v8396
        %8501 = vmatprep.mubr.bf16.mxu0 %v8171
        %8502 = vmatmul.mubr.bf16.gmra.mrb[0].mxu0 %v8170
        %v8503 = vpop.f32.mrb[0].mxu0
        %v8504 = vadd.f32 %v8464, %v8503
        %v8505 = vpop.f32.mrb[0].mxu0
        %v8506 = vpop.f32.mrb[0].mxu0
        %v8507 = vpop.f32.mrb[0].mxu0
        %8508 = vdwg.mxu0
        %8509 = vst [vmem:[%s378] sm:$0x1] %v8504
        %s8510 = sand.u32 %s269, 1
        %s8511 = scalar_lea.sflag [#allocation3], %s8510
        %s8512 = sand.u32 %s269, 1
        %s8513 = scalar_lea.vmem [#allocation2], %s8512
        // Predicated region
        $region65: #{_lambda_.1} parent=63 // pred_check
          %p8514 = pneg %p279
        $region66: #{_lambda_.1} parent=63 // pred_check_branch
          %8516 = sbr.rel (%p8514) target = $region68
        $region67: #{_lambda_.1} parent=63 // pred_region
          %s8518 = ssub.s32 16, 16
          %8519 = vsyncadd %s8511, %s8518
          %s8520 = smul.addr %s25, 16
          %s8521 = scalar_lea.hbm %s11, %s8520
          %s8523 = sshll.u32 %s8513, 4
          %s8524 = int_to_ptr.vmem [resolvable:$true] %s8523
          %8526 = dma.vmem_to_hbm [thread:$0]  %s8524, 16, %s8521, %s8511
        $region68: #{_lambda_.1} parent=63 // pred_fallthru
          _
      $region64: #{_lambda_.1} parent=5 // pred_fallthru
        _
      %p8527 = scmp.le.s32.totalorder 2, %s20
      // Predicated region
      $region69: #{_lambda_.1} parent=5 // pred_check
        %p8528 = pneg %p8527
      $region70: #{_lambda_.1} parent=5 // pred_check_branch
        %8530 = sbr.rel (%p8528) target = $region72
      $region71: #{_lambda_.1} parent=5 // pred_region
        %s8531 = ssub.s32 %s20, 2
        // Predicated region
        $region73: #{_lambda_.1} parent=71 // pred_check
          %p8532 = pneg %p285
        $region74: #{_lambda_.1} parent=71 // pred_check_branch
          %8534 = sbr.rel (%p8532) target = $region76
        $region75: #{_lambda_.1} parent=71 // pred_region
          %s8535 = sand.u32 %s270, 1
          %s8536 = scalar_lea.sflag [#allocation3], %s8535
          %s8537 = sand.u32 %s270, 1
          %s8538 = scalar_lea.vmem [#allocation2], %s8537
          %8539 = dma.done %s8536, 16
        $region76: #{_lambda_.1} parent=71 // pred_fallthru
          _
      $region72: #{_lambda_.1} parent=5 // pred_fallthru
        _
    $region6: #{_lambda_.1} parent=1 // loop_footer
      %s24 = sadd.s32 1, %s20
    $region7: #{_lambda_.1} parent=1 // loop_footer_branch
      %19 = sbr.rel target = $region3
    $region8: #{_lambda_.1} parent=1 // loop_exit
      _
    %8540 = vsyncpa [#allocation3], 1
    %s8541 = scalar_lea.sflag [#allocation3], 1
    %8542 = vsyncpa %s8541, 1

</llo_original>
